<compile_context>
chip_gen: v5e
topology: v5e:2x2
jax: 0.10.0
libtpu: 0.0.40
codegen_flags: <defaults>
</compile_context>

<pallas_src>
import functools

import jax
import jax.numpy as jnp
import numpy as np
from jax import lax
from jax.experimental import pallas as pl
from jax.experimental.pallas import tpu as pltpu


def _as3(v):
    return (v, v, v) if isinstance(v, int) else tuple(v)


def _round_up(x, mult):
    return ((x + mult - 1) // mult) * mult


# --------------------------------------------------------------------------
# In-kernel fused conv: 27 static-offset shifted matmuls (implicit im2col).
# --------------------------------------------------------------------------
def _conv_rows(xc_ref, xn_ref, w_ref, offsets, TL):
    """xc_ref/xn_ref: (C+1, TL) bf16 (current tile + right halo tile),
    w_ref: (kflat, rows, C+1) bf16.  Returns (rows, TL) f32."""
    x2 = jnp.concatenate([xc_ref[...], xn_ref[...]], axis=-1)   # (C+1, 2*TL)
    acc = None
    for k, off in enumerate(offsets):                           # static unroll
        xs = x2[:, off:off + TL]                                # static slice
        y = jnp.dot(w_ref[k], xs, preferred_element_type=jnp.float32)
        acc = y if acc is None else acc + y
    return acc                                                  # (rows, TL) f32


# --------------------------------------------------------------------------
# Pass 1: online softmax stats for B and AB^T accumulation.
# --------------------------------------------------------------------------
def a2net_pass1_kernel(xc_ref, xn_ref, w_ref, mask_ref,
                       abt_ref, bmax_ref, bden_ref,
                       *, m, n, offsets, TL):
    l = pl.program_id(1)

    @pl.when(l == 0)
    def _():
        abt_ref[...] = jnp.zeros(abt_ref.shape, abt_ref.dtype)
        bmax_ref[...] = jnp.full(bmax_ref.shape, -1e30, bmax_ref.dtype)
        bden_ref[...] = jnp.zeros(bden_ref.shape, bden_ref.dtype)

    Y = _conv_rows(xc_ref, xn_ref, w_ref, offsets, TL)          # (m+n, TL) f32
    A = Y[0:m, :]                                               # (m, TL)
    B0 = Y[m:m + n, :] + mask_ref[...]                          # (n, TL)

    t_max = jnp.max(B0, axis=1, keepdims=True)                  # (n, 1)
    new_max = jnp.maximum(bmax_ref[...], t_max)
    alpha = jnp.exp(bmax_ref[...] - new_max)                    # (n, 1)
    P = jnp.exp(B0 - new_max)                                   # (n, TL)

    bden_ref[...] = alpha * bden_ref[...] + jnp.sum(P, axis=1, keepdims=True)
    # AB^T stored transposed as (n, m) so the per-column rescale broadcasts
    # naturally along the lane axis.
    abt_ref[...] = alpha * abt_ref[...] + lax.dot_general(
        P, A, (((1,), (1,)), ((), ())), preferred_element_type=jnp.float32)
    bmax_ref[...] = new_max

    @pl.when(l == pl.num_programs(1) - 1)
    def _():
        inv = 1.0 / bden_ref[...]                               # exact
        abt_ref[...] = abt_ref[...] * inv                       # normalized AB^T
        bden_ref[...] = inv                                     # store 1/denom


# --------------------------------------------------------------------------
# Pass 2: recompute theta/rho conv per tile, emit Z^T and attn^T tiles.
# --------------------------------------------------------------------------
def a2net_pass2_kernel(xc_ref, xn_ref, w_ref, mask_ref,
                       abt_ref, bmax_ref, binv_ref,
                       z_ref, attn_ref,
                       *, n, offsets, TL):
    Y = _conv_rows(xc_ref, xn_ref, w_ref, offsets, TL)          # (2n, TL) f32
    B0 = Y[0:n, :] + mask_ref[...]
    P = jnp.exp(B0 - bmax_ref[...])                             # unnormalized B

    R = Y[n:2 * n, :]
    R = R - jnp.max(R, axis=0, keepdims=True)
    Rexp = jnp.exp(R)
    V = Rexp / jnp.sum(Rexp, axis=0, keepdims=True)             # softmax over n

    # Z^T (m, TL) = AB^T_norm[m, n] . V[n, TL]  (AB^T is stored as (n, m)).
    Z = lax.dot_general(abt_ref[...], V, (((0,), (0,)), ((), ())),
                        preferred_element_type=jnp.float32)
    z_ref[...] = Z.astype(z_ref.dtype)
    # attn^T (n, TL) = B * V = P * (1/denom) * V   (single fused pass).
    attn_ref[...] = ((P * binv_ref[...]) * V).astype(attn_ref.dtype)


# --------------------------------------------------------------------------
# Wrapper
# --------------------------------------------------------------------------
def _prep_weights(wa, ba, wb, bb, ksize):
    """Fuse two Conv3d weights into (kflat, oa+ob, C+1) bf16 with the bias
    folded into the extra input column of the k=0 offset slice."""
    kt, kh, kw = ksize
    oa, C = wa.shape[0], wa.shape[1]
    ob = wb.shape[0]
    kflat = kt * kh * kw
    wa_r = jnp.transpose(wa, (2, 3, 4, 0, 1)).reshape(kflat, oa, C)
    wb_r = jnp.transpose(wb, (2, 3, 4, 0, 1)).reshape(kflat, ob, C)
    w = jnp.concatenate([wa_r, wb_r], axis=1)                   # (kflat, oa+ob, C)
    bias = jnp.concatenate([ba, bb]).reshape(1, oa + ob, 1).astype(jnp.float32)
    bcol = jnp.zeros((kflat, oa + ob, 1), jnp.float32).at[0:1].set(bias)
    return jnp.concatenate([w.astype(jnp.float32), bcol], axis=2).astype(jnp.bfloat16)


def a2net_forward(x, params, *, in_channel, t, height, width,
                  kernel_size, stride_size, tile_l=1024):
    """tile_l: lane-tile size for the flattened spatial dim.  Choose smaller on
    v7x (64 MiB VMEM) and larger on v5e/v6e (128 MiB)."""
    ks = _as3(kernel_size)
    ss = _as3(stride_size)
    kt, kh, kw = ks
    st, sh, sw = ss
    C, T, H, W = in_channel, t, height, width

    x = x.reshape(-1, C, T, H, W).astype(jnp.float32)
    b = x.shape[0]
    To = (T - kt) // st + 1
    Ho = (H - kh) // sh + 1
    Wo = (W - kw) // sw + 1
    m = params["w_phi"].shape[0]
    n = params["w_theta"].shape[0]

    Lfull = T * H * W
    offsets = tuple(dt * H * W + dh * W + dw
                    for dt in range(kt) for dh in range(kh) for dw in range(kw))
    max_shift = offsets[-1]

    TL = _round_up(max(min(tile_l, Lfull), max_shift + 1), 128)
    assert max_shift <= TL, "conv halo exceeds one L tile"
    # TODO(synk): support multi-tile halos (max_shift > TL) for very large kernels.
    nLt = -(-Lfull // TL)
    Lmask = nLt * TL          # region covered by the grid
    Lx = Lmask + TL           # + one halo tile

    # Flattened input with fused-bias "ones" row, zero padded, bf16.
    x_flat = jnp.pad(x.reshape(b, C, Lfull), ((0, 0), (0, 0), (0, Lx - Lfull)))
    ones = jnp.ones((b, 1, Lx), jnp.float32)
    x_aug = jnp.concatenate([x_flat, ones], axis=1).astype(jnp.bfloat16)

    # Fused weights (phi|theta) for pass 1, (theta|rho) for pass 2.
    w1 = _prep_weights(params["w_phi"], params["b_phi"],
                       params["w_theta"], params["b_theta"], ks)
    w2 = _prep_weights(params["w_theta"], params["b_theta"],
                       params["w_rho"], params["b_rho"], ks)

    # Additive validity mask over the full grid (static -> constant folded).
    idx = np.arange(Lmask)
    tt = idx // (H * W)
    hh = (idx // W) % H
    ww = idx % W
    valid = (idx < Lfull)
    valid &= (tt % st == 0) & (tt // st < To)
    valid &= (hh % sh == 0) & (hh // sh < Ho)
    valid &= (ww % sw == 0) & (ww // sw < Wo)
    mask = jnp.asarray(np.where(valid, 0.0, -1e30), jnp.float32).reshape(1, Lmask)

    grid = (b, nLt)
    x_cur_spec = pl.BlockSpec((None, C + 1, TL), lambda i, l: (i, 0, l))
    x_nxt_spec = pl.BlockSpec((None, C + 1, TL), lambda i, l: (i, 0, l + 1))
    mask_spec = pl.BlockSpec((1, TL), lambda i, l: (0, l))
    abt_spec = pl.BlockSpec((None, n, m), lambda i, l: (i, 0, 0))
    vec_spec = pl.BlockSpec((None, n, 1), lambda i, l: (i, 0, 0))

    # ---- pass 1: B softmax stats + AB^T ----------------------------------
    abt, bmax, binv = pl.pallas_call(
        functools.partial(a2net_pass1_kernel, m=m, n=n, offsets=offsets, TL=TL),
        out_shape=(jax.ShapeDtypeStruct((b, n, m), jnp.float32),
                   jax.ShapeDtypeStruct((b, n, 1), jnp.float32),
                   jax.ShapeDtypeStruct((b, n, 1), jnp.float32)),
        grid_spec=pltpu.PrefetchScalarGridSpec(
            num_scalar_prefetch=0, grid=grid,
            in_specs=[x_cur_spec, x_nxt_spec,
                      pl.BlockSpec(w1.shape, lambda i, l: (0, 0, 0)),
                      mask_spec],
            out_specs=[abt_spec, vec_spec, vec_spec]),
        compiler_params=pltpu.CompilerParams(
            dimension_semantics=("parallel", "arbitrary"),
            vmem_limit_bytes=64 * 1024 * 1024),
    )(x_aug, x_aug, w1, mask)

    # ---- pass 2: emit Z^T and attn^T tiles (bf16) -------------------------
    zt, att = pl.pallas_call(
        functools.partial(a2net_pass2_kernel, n=n, offsets=offsets, TL=TL),
        out_shape=(jax.ShapeDtypeStruct((b, m, Lmask), jnp.bfloat16),
                   jax.ShapeDtypeStruct((b, n, Lmask), jnp.bfloat16)),
        grid_spec=pltpu.PrefetchScalarGridSpec(
            num_scalar_prefetch=0, grid=grid,
            in_specs=[x_cur_spec, x_nxt_spec,
                      pl.BlockSpec(w2.shape, lambda i, l: (0, 0, 0)),
                      mask_spec, abt_spec, vec_spec, vec_spec],
            out_specs=[pl.BlockSpec((None, m, TL), lambda i, l: (i, 0, l)),
                       pl.BlockSpec((None, n, TL), lambda i, l: (i, 0, l))]),
        compiler_params=pltpu.CompilerParams(
            dimension_semantics=("parallel", "parallel"),
            vmem_limit_bytes=64 * 1024 * 1024),
    )(x_aug, x_aug, w2, mask, abt, bmax, binv)

    # Extract the valid (strided) conv-output region from the full grid.
    def extract(y_full, rows):
        y = y_full[:, :, :Lfull].astype(jnp.float32).reshape(b, rows, T, H, W)
        return y[:, :, 0:st * To:st, 0:sh * Ho:sh, 0:sw * Wo:sw]

    Z = extract(zt, m)                                   # (b, m, To, Ho, Wo)
    attn = extract(att, n).transpose(0, 1, 3, 4, 2)      # (b, n, Ho, Wo, To)
    return Z, attn


# --------------------------------------------------------------------------
# Plain-JAX reference (mirrors the PyTorch forward)
# --------------------------------------------------------------------------
def a2net_reference(x, params, *, in_channel, t, height, width,
                    kernel_size, stride_size):
    ks = _as3(kernel_size)
    ss = _as3(stride_size)
    x = x.reshape(-1, in_channel, t, height, width).astype(jnp.float32)
    dn = lax.conv_dimension_numbers(x.shape, params["w_phi"].shape,
                                    ("NCDHW", "OIDHW", "NCDHW"))

    def conv(w, bb):
        y = lax.conv_general_dilated(x, w, window_strides=ss,
                                     padding="VALID", dimension_numbers=dn)
        return y + bb.reshape(1, -1, 1, 1, 1)

    A = conv(params["w_phi"], params["b_phi"])
    B0 = conv(params["w_theta"], params["b_theta"])
    bsz = B0.shape[0]
    B = jax.nn.softmax(B0.reshape(bsz, B0.shape[1], -1), axis=-1).reshape(B0.shape)
    AB_T = jnp.einsum("bmthw,bnthw->bmn", A, B)
    V = jax.nn.softmax(conv(params["w_rho"], params["b_rho"]), axis=1)
    Z = jnp.einsum("bmn,bnthw->bmthw", AB_T, V)
    attn = jnp.einsum("bnthw,bnthw->bnhwt", B, V)
    return Z, attn


if __name__ == "__main__":
    in_channel, m, n = 4, 8, 8
    t, height, width = 8, 16, 16
    kernel_size, stride_size = 3, 1
    batch = 2

    key = jax.random.PRNGKey(0)
    keys = jax.random.split(key, 7)
    fan_in = in_channel * kernel_size ** 3
    bound = 1.0 / np.sqrt(fan_in)

    def u(k, shape):
        return jax.random.uniform(k, shape, jnp.float32, -bound, bound)

    kshape = (kernel_size, kernel_size, kernel_size)
    params = {
        "w_phi": u(keys[0], (m, in_channel) + kshape),
        "b_phi": u(keys[1], (m,)),
        "w_theta": u(keys[2], (n, in_channel) + kshape),
        "b_theta": u(keys[3], (n,)),
        "w_rho": u(keys[4], (n, in_channel) + kshape),
        "b_rho": u(keys[5], (n,)),
    }

    x = jax.random.normal(keys[6], (batch, in_channel, t, height, width),
                          jnp.float32)

    cfg = dict(in_channel=in_channel, t=t, height=height, width=width,
               kernel_size=kernel_size, stride_size=stride_size)

    fwd = jax.jit(functools.partial(a2net_forward, **cfg))
    Z, attn = jax.block_until_ready(fwd(x, params))

    Zr, attnr = a2net_reference(x, params, **cfg)
    np.testing.assert_allclose(np.asarray(Z), np.asarray(Zr),
                               rtol=5e-2, atol=2e-2)
    np.testing.assert_allclose(np.asarray(attn), np.asarray(attnr),
                               rtol=5e-2, atol=2e-5)

    print("KERNEL_OK")
</pallas_src>

<mosaic_0001>
module attributes {stable_mosaic.version = 11 : i64} {
  func.func @a2net_pass2_kernel(%arg0: i32, %arg1: i32, %arg2: memref<1x5x1024xbf16, #tpu.memory_space<vmem>>, %arg3: memref<1x5x1024xbf16, #tpu.memory_space<vmem>>, %arg4: memref<27x16x5xbf16, #tpu.memory_space<vmem>>, %arg5: memref<1x1024xf32, #tpu.memory_space<vmem>>, %arg6: memref<1x8x8xf32, #tpu.memory_space<vmem>>, %arg7: memref<1x8x1xf32, #tpu.memory_space<vmem>>, %arg8: memref<1x8x1xf32, #tpu.memory_space<vmem>>, %arg9: memref<1x8x1024xbf16, #tpu.memory_space<vmem>>, %arg10: memref<1x8x1024xbf16, #tpu.memory_space<vmem>>) attributes {dimension_semantics = [#tpu.dimension_semantics<parallel>, #tpu.dimension_semantics<parallel>], iteration_bounds = array<i64: 2, 2>, scalar_prefetch = 0 : i64, scratch_operands = 0 : i64, tpu.core_type = #tpu.core_type<tc>, window_params = [{transform_indices = @transform_0, window_bounds = array<i64: 1, 5, 1024>}, {transform_indices = @transform_1, window_bounds = array<i64: 1, 5, 1024>}, {pipeline_mode = #tpu.pipeline_mode<synchronous>, transform_indices = @transform_2, window_bounds = array<i64: 27, 16, 5>}, {transform_indices = @transform_3, window_bounds = array<i64: 1, 1024>}, {transform_indices = @transform_4, window_bounds = array<i64: 1, 8, 8>}, {transform_indices = @transform_5, window_bounds = array<i64: 1, 8, 1>}, {transform_indices = @transform_6, window_bounds = array<i64: 1, 8, 1>}, {transform_indices = @transform_7, window_bounds = array<i64: 1, 8, 1024>}, {transform_indices = @transform_8, window_bounds = array<i64: 1, 8, 1024>}]} {
    %c0 = arith.constant 0 : index
    %c0_0 = arith.constant 0 : index
    %c0_1 = arith.constant 0 : index
    %0 = vector.load %arg2[%c0, %c0_0, %c0_1] : memref<1x5x1024xbf16, #tpu.memory_space<vmem>>, vector<1x5x1024xbf16>
    %1 = vector.shape_cast %0 : vector<1x5x1024xbf16> to vector<5x1024xbf16>
    %c0_2 = arith.constant 0 : index
    %c0_3 = arith.constant 0 : index
    %c0_4 = arith.constant 0 : index
    %2 = vector.load %arg3[%c0_2, %c0_3, %c0_4] : memref<1x5x1024xbf16, #tpu.memory_space<vmem>>, vector<1x5x1024xbf16>
    %3 = vector.shape_cast %2 : vector<1x5x1024xbf16> to vector<5x1024xbf16>
    %4 = tpu.concatenate %1, %3 in 1 : vector<5x1024xbf16>, vector<5x1024xbf16> -> vector<5x2048xbf16>
    %5 = vector.extract_strided_slice %4 {offsets = [0, 0], sizes = [5, 1024], strides = [1, 1]} : vector<5x2048xbf16> to vector<5x1024xbf16>
    %c0_5 = arith.constant 0 : index
    %c0_6 = arith.constant 0 : index
    %c0_7 = arith.constant 0 : index
    %6 = vector.load %arg4[%c0_5, %c0_6, %c0_7] : memref<27x16x5xbf16, #tpu.memory_space<vmem>>, vector<1x16x5xbf16>
    %7 = vector.shape_cast %6 : vector<1x16x5xbf16> to vector<16x5xbf16>
    %cst = arith.constant dense<0.000000e+00> : vector<16x1024xf32>
    %8 = tpu.matmul %7, %5, %cst {dimension_numbers = #tpu.dot_dimension_numbers<[1], [0], [0], [1], [0, 0, 1, 1], [], []>} : vector<16x5xbf16>, vector<5x1024xbf16>, vector<16x1024xf32> -> vector<16x1024xf32>
    %9 = vector.extract_strided_slice %4 {offsets = [0, 1], sizes = [5, 1024], strides = [1, 1]} : vector<5x2048xbf16> to vector<5x1024xbf16>
    %c1 = arith.constant 1 : index
    %c0_8 = arith.constant 0 : index
    %c0_9 = arith.constant 0 : index
    %10 = vector.load %arg4[%c1, %c0_8, %c0_9] : memref<27x16x5xbf16, #tpu.memory_space<vmem>>, vector<1x16x5xbf16>
    %11 = vector.shape_cast %10 : vector<1x16x5xbf16> to vector<16x5xbf16>
    %cst_10 = arith.constant dense<0.000000e+00> : vector<16x1024xf32>
    %12 = tpu.matmul %11, %9, %cst_10 {dimension_numbers = #tpu.dot_dimension_numbers<[1], [0], [0], [1], [0, 0, 1, 1], [], []>} : vector<16x5xbf16>, vector<5x1024xbf16>, vector<16x1024xf32> -> vector<16x1024xf32>
    %13 = arith.addf %8, %12 : vector<16x1024xf32>
    %14 = vector.extract_strided_slice %4 {offsets = [0, 2], sizes = [5, 1024], strides = [1, 1]} : vector<5x2048xbf16> to vector<5x1024xbf16>
    %c2 = arith.constant 2 : index
    %c0_11 = arith.constant 0 : index
    %c0_12 = arith.constant 0 : index
    %15 = vector.load %arg4[%c2, %c0_11, %c0_12] : memref<27x16x5xbf16, #tpu.memory_space<vmem>>, vector<1x16x5xbf16>
    %16 = vector.shape_cast %15 : vector<1x16x5xbf16> to vector<16x5xbf16>
    %cst_13 = arith.constant dense<0.000000e+00> : vector<16x1024xf32>
    %17 = tpu.matmul %16, %14, %cst_13 {dimension_numbers = #tpu.dot_dimension_numbers<[1], [0], [0], [1], [0, 0, 1, 1], [], []>} : vector<16x5xbf16>, vector<5x1024xbf16>, vector<16x1024xf32> -> vector<16x1024xf32>
    %18 = arith.addf %13, %17 : vector<16x1024xf32>
    %19 = vector.extract_strided_slice %4 {offsets = [0, 16], sizes = [5, 1024], strides = [1, 1]} : vector<5x2048xbf16> to vector<5x1024xbf16>
    %c3 = arith.constant 3 : index
    %c0_14 = arith.constant 0 : index
    %c0_15 = arith.constant 0 : index
    %20 = vector.load %arg4[%c3, %c0_14, %c0_15] : memref<27x16x5xbf16, #tpu.memory_space<vmem>>, vector<1x16x5xbf16>
    %21 = vector.shape_cast %20 : vector<1x16x5xbf16> to vector<16x5xbf16>
    %cst_16 = arith.constant dense<0.000000e+00> : vector<16x1024xf32>
    %22 = tpu.matmul %21, %19, %cst_16 {dimension_numbers = #tpu.dot_dimension_numbers<[1], [0], [0], [1], [0, 0, 1, 1], [], []>} : vector<16x5xbf16>, vector<5x1024xbf16>, vector<16x1024xf32> -> vector<16x1024xf32>
    %23 = arith.addf %18, %22 : vector<16x1024xf32>
    %24 = vector.extract_strided_slice %4 {offsets = [0, 17], sizes = [5, 1024], strides = [1, 1]} : vector<5x2048xbf16> to vector<5x1024xbf16>
    %c4 = arith.constant 4 : index
    %c0_17 = arith.constant 0 : index
    %c0_18 = arith.constant 0 : index
    %25 = vector.load %arg4[%c4, %c0_17, %c0_18] : memref<27x16x5xbf16, #tpu.memory_space<vmem>>, vector<1x16x5xbf16>
    %26 = vector.shape_cast %25 : vector<1x16x5xbf16> to vector<16x5xbf16>
    %cst_19 = arith.constant dense<0.000000e+00> : vector<16x1024xf32>
    %27 = tpu.matmul %26, %24, %cst_19 {dimension_numbers = #tpu.dot_dimension_numbers<[1], [0], [0], [1], [0, 0, 1, 1], [], []>} : vector<16x5xbf16>, vector<5x1024xbf16>, vector<16x1024xf32> -> vector<16x1024xf32>
    %28 = arith.addf %23, %27 : vector<16x1024xf32>
    %29 = vector.extract_strided_slice %4 {offsets = [0, 18], sizes = [5, 1024], strides = [1, 1]} : vector<5x2048xbf16> to vector<5x1024xbf16>
    %c5 = arith.constant 5 : index
    %c0_20 = arith.constant 0 : index
    %c0_21 = arith.constant 0 : index
    %30 = vector.load %arg4[%c5, %c0_20, %c0_21] : memref<27x16x5xbf16, #tpu.memory_space<vmem>>, vector<1x16x5xbf16>
    %31 = vector.shape_cast %30 : vector<1x16x5xbf16> to vector<16x5xbf16>
    %cst_22 = arith.constant dense<0.000000e+00> : vector<16x1024xf32>
    %32 = tpu.matmul %31, %29, %cst_22 {dimension_numbers = #tpu.dot_dimension_numbers<[1], [0], [0], [1], [0, 0, 1, 1], [], []>} : vector<16x5xbf16>, vector<5x1024xbf16>, vector<16x1024xf32> -> vector<16x1024xf32>
    %33 = arith.addf %28, %32 : vector<16x1024xf32>
    %34 = vector.extract_strided_slice %4 {offsets = [0, 32], sizes = [5, 1024], strides = [1, 1]} : vector<5x2048xbf16> to vector<5x1024xbf16>
    %c6 = arith.constant 6 : index
    %c0_23 = arith.constant 0 : index
    %c0_24 = arith.constant 0 : index
    %35 = vector.load %arg4[%c6, %c0_23, %c0_24] : memref<27x16x5xbf16, #tpu.memory_space<vmem>>, vector<1x16x5xbf16>
    %36 = vector.shape_cast %35 : vector<1x16x5xbf16> to vector<16x5xbf16>
    %cst_25 = arith.constant dense<0.000000e+00> : vector<16x1024xf32>
    %37 = tpu.matmul %36, %34, %cst_25 {dimension_numbers = #tpu.dot_dimension_numbers<[1], [0], [0], [1], [0, 0, 1, 1], [], []>} : vector<16x5xbf16>, vector<5x1024xbf16>, vector<16x1024xf32> -> vector<16x1024xf32>
    %38 = arith.addf %33, %37 : vector<16x1024xf32>
    %39 = vector.extract_strided_slice %4 {offsets = [0, 33], sizes = [5, 1024], strides = [1, 1]} : vector<5x2048xbf16> to vector<5x1024xbf16>
    %c7 = arith.constant 7 : index
    %c0_26 = arith.constant 0 : index
    %c0_27 = arith.constant 0 : index
    %40 = vector.load %arg4[%c7, %c0_26, %c0_27] : memref<27x16x5xbf16, #tpu.memory_space<vmem>>, vector<1x16x5xbf16>
    %41 = vector.shape_cast %40 : vector<1x16x5xbf16> to vector<16x5xbf16>
    %cst_28 = arith.constant dense<0.000000e+00> : vector<16x1024xf32>
    %42 = tpu.matmul %41, %39, %cst_28 {dimension_numbers = #tpu.dot_dimension_numbers<[1], [0], [0], [1], [0, 0, 1, 1], [], []>} : vector<16x5xbf16>, vector<5x1024xbf16>, vector<16x1024xf32> -> vector<16x1024xf32>
    %43 = arith.addf %38, %42 : vector<16x1024xf32>
    %44 = vector.extract_strided_slice %4 {offsets = [0, 34], sizes = [5, 1024], strides = [1, 1]} : vector<5x2048xbf16> to vector<5x1024xbf16>
    %c8 = arith.constant 8 : index
    %c0_29 = arith.constant 0 : index
    %c0_30 = arith.constant 0 : index
    %45 = vector.load %arg4[%c8, %c0_29, %c0_30] : memref<27x16x5xbf16, #tpu.memory_space<vmem>>, vector<1x16x5xbf16>
    %46 = vector.shape_cast %45 : vector<1x16x5xbf16> to vector<16x5xbf16>
    %cst_31 = arith.constant dense<0.000000e+00> : vector<16x1024xf32>
    %47 = tpu.matmul %46, %44, %cst_31 {dimension_numbers = #tpu.dot_dimension_numbers<[1], [0], [0], [1], [0, 0, 1, 1], [], []>} : vector<16x5xbf16>, vector<5x1024xbf16>, vector<16x1024xf32> -> vector<16x1024xf32>
    %48 = arith.addf %43, %47 : vector<16x1024xf32>
    %49 = vector.extract_strided_slice %4 {offsets = [0, 256], sizes = [5, 1024], strides = [1, 1]} : vector<5x2048xbf16> to vector<5x1024xbf16>
    %c9 = arith.constant 9 : index
    %c0_32 = arith.constant 0 : index
    %c0_33 = arith.constant 0 : index
    %50 = vector.load %arg4[%c9, %c0_32, %c0_33] : memref<27x16x5xbf16, #tpu.memory_space<vmem>>, vector<1x16x5xbf16>
    %51 = vector.shape_cast %50 : vector<1x16x5xbf16> to vector<16x5xbf16>
    %cst_34 = arith.constant dense<0.000000e+00> : vector<16x1024xf32>
    %52 = tpu.matmul %51, %49, %cst_34 {dimension_numbers = #tpu.dot_dimension_numbers<[1], [0], [0], [1], [0, 0, 1, 1], [], []>} : vector<16x5xbf16>, vector<5x1024xbf16>, vector<16x1024xf32> -> vector<16x1024xf32>
    %53 = arith.addf %48, %52 : vector<16x1024xf32>
    %54 = vector.extract_strided_slice %4 {offsets = [0, 257], sizes = [5, 1024], strides = [1, 1]} : vector<5x2048xbf16> to vector<5x1024xbf16>
    %c10 = arith.constant 10 : index
    %c0_35 = arith.constant 0 : index
    %c0_36 = arith.constant 0 : index
    %55 = vector.load %arg4[%c10, %c0_35, %c0_36] : memref<27x16x5xbf16, #tpu.memory_space<vmem>>, vector<1x16x5xbf16>
    %56 = vector.shape_cast %55 : vector<1x16x5xbf16> to vector<16x5xbf16>
    %cst_37 = arith.constant dense<0.000000e+00> : vector<16x1024xf32>
    %57 = tpu.matmul %56, %54, %cst_37 {dimension_numbers = #tpu.dot_dimension_numbers<[1], [0], [0], [1], [0, 0, 1, 1], [], []>} : vector<16x5xbf16>, vector<5x1024xbf16>, vector<16x1024xf32> -> vector<16x1024xf32>
    %58 = arith.addf %53, %57 : vector<16x1024xf32>
    %59 = vector.extract_strided_slice %4 {offsets = [0, 258], sizes = [5, 1024], strides = [1, 1]} : vector<5x2048xbf16> to vector<5x1024xbf16>
    %c11 = arith.constant 11 : index
    %c0_38 = arith.constant 0 : index
    %c0_39 = arith.constant 0 : index
    %60 = vector.load %arg4[%c11, %c0_38, %c0_39] : memref<27x16x5xbf16, #tpu.memory_space<vmem>>, vector<1x16x5xbf16>
    %61 = vector.shape_cast %60 : vector<1x16x5xbf16> to vector<16x5xbf16>
    %cst_40 = arith.constant dense<0.000000e+00> : vector<16x1024xf32>
    %62 = tpu.matmul %61, %59, %cst_40 {dimension_numbers = #tpu.dot_dimension_numbers<[1], [0], [0], [1], [0, 0, 1, 1], [], []>} : vector<16x5xbf16>, vector<5x1024xbf16>, vector<16x1024xf32> -> vector<16x1024xf32>
    %63 = arith.addf %58, %62 : vector<16x1024xf32>
    %64 = vector.extract_strided_slice %4 {offsets = [0, 272], sizes = [5, 1024], strides = [1, 1]} : vector<5x2048xbf16> to vector<5x1024xbf16>
    %c12 = arith.constant 12 : index
    %c0_41 = arith.constant 0 : index
    %c0_42 = arith.constant 0 : index
    %65 = vector.load %arg4[%c12, %c0_41, %c0_42] : memref<27x16x5xbf16, #tpu.memory_space<vmem>>, vector<1x16x5xbf16>
    %66 = vector.shape_cast %65 : vector<1x16x5xbf16> to vector<16x5xbf16>
    %cst_43 = arith.constant dense<0.000000e+00> : vector<16x1024xf32>
    %67 = tpu.matmul %66, %64, %cst_43 {dimension_numbers = #tpu.dot_dimension_numbers<[1], [0], [0], [1], [0, 0, 1, 1], [], []>} : vector<16x5xbf16>, vector<5x1024xbf16>, vector<16x1024xf32> -> vector<16x1024xf32>
    %68 = arith.addf %63, %67 : vector<16x1024xf32>
    %69 = vector.extract_strided_slice %4 {offsets = [0, 273], sizes = [5, 1024], strides = [1, 1]} : vector<5x2048xbf16> to vector<5x1024xbf16>
    %c13 = arith.constant 13 : index
    %c0_44 = arith.constant 0 : index
    %c0_45 = arith.constant 0 : index
    %70 = vector.load %arg4[%c13, %c0_44, %c0_45] : memref<27x16x5xbf16, #tpu.memory_space<vmem>>, vector<1x16x5xbf16>
    %71 = vector.shape_cast %70 : vector<1x16x5xbf16> to vector<16x5xbf16>
    %cst_46 = arith.constant dense<0.000000e+00> : vector<16x1024xf32>
    %72 = tpu.matmul %71, %69, %cst_46 {dimension_numbers = #tpu.dot_dimension_numbers<[1], [0], [0], [1], [0, 0, 1, 1], [], []>} : vector<16x5xbf16>, vector<5x1024xbf16>, vector<16x1024xf32> -> vector<16x1024xf32>
    %73 = arith.addf %68, %72 : vector<16x1024xf32>
    %74 = vector.extract_strided_slice %4 {offsets = [0, 274], sizes = [5, 1024], strides = [1, 1]} : vector<5x2048xbf16> to vector<5x1024xbf16>
    %c14 = arith.constant 14 : index
    %c0_47 = arith.constant 0 : index
    %c0_48 = arith.constant 0 : index
    %75 = vector.load %arg4[%c14, %c0_47, %c0_48] : memref<27x16x5xbf16, #tpu.memory_space<vmem>>, vector<1x16x5xbf16>
    %76 = vector.shape_cast %75 : vector<1x16x5xbf16> to vector<16x5xbf16>
    %cst_49 = arith.constant dense<0.000000e+00> : vector<16x1024xf32>
    %77 = tpu.matmul %76, %74, %cst_49 {dimension_numbers = #tpu.dot_dimension_numbers<[1], [0], [0], [1], [0, 0, 1, 1], [], []>} : vector<16x5xbf16>, vector<5x1024xbf16>, vector<16x1024xf32> -> vector<16x1024xf32>
    %78 = arith.addf %73, %77 : vector<16x1024xf32>
    %79 = vector.extract_strided_slice %4 {offsets = [0, 288], sizes = [5, 1024], strides = [1, 1]} : vector<5x2048xbf16> to vector<5x1024xbf16>
    %c15 = arith.constant 15 : index
    %c0_50 = arith.constant 0 : index
    %c0_51 = arith.constant 0 : index
    %80 = vector.load %arg4[%c15, %c0_50, %c0_51] : memref<27x16x5xbf16, #tpu.memory_space<vmem>>, vector<1x16x5xbf16>
    %81 = vector.shape_cast %80 : vector<1x16x5xbf16> to vector<16x5xbf16>
    %cst_52 = arith.constant dense<0.000000e+00> : vector<16x1024xf32>
    %82 = tpu.matmul %81, %79, %cst_52 {dimension_numbers = #tpu.dot_dimension_numbers<[1], [0], [0], [1], [0, 0, 1, 1], [], []>} : vector<16x5xbf16>, vector<5x1024xbf16>, vector<16x1024xf32> -> vector<16x1024xf32>
    %83 = arith.addf %78, %82 : vector<16x1024xf32>
    %84 = vector.extract_strided_slice %4 {offsets = [0, 289], sizes = [5, 1024], strides = [1, 1]} : vector<5x2048xbf16> to vector<5x1024xbf16>
    %c16 = arith.constant 16 : index
    %c0_53 = arith.constant 0 : index
    %c0_54 = arith.constant 0 : index
    %85 = vector.load %arg4[%c16, %c0_53, %c0_54] : memref<27x16x5xbf16, #tpu.memory_space<vmem>>, vector<1x16x5xbf16>
    %86 = vector.shape_cast %85 : vector<1x16x5xbf16> to vector<16x5xbf16>
    %cst_55 = arith.constant dense<0.000000e+00> : vector<16x1024xf32>
    %87 = tpu.matmul %86, %84, %cst_55 {dimension_numbers = #tpu.dot_dimension_numbers<[1], [0], [0], [1], [0, 0, 1, 1], [], []>} : vector<16x5xbf16>, vector<5x1024xbf16>, vector<16x1024xf32> -> vector<16x1024xf32>
    %88 = arith.addf %83, %87 : vector<16x1024xf32>
    %89 = vector.extract_strided_slice %4 {offsets = [0, 290], sizes = [5, 1024], strides = [1, 1]} : vector<5x2048xbf16> to vector<5x1024xbf16>
    %c17 = arith.constant 17 : index
    %c0_56 = arith.constant 0 : index
    %c0_57 = arith.constant 0 : index
    %90 = vector.load %arg4[%c17, %c0_56, %c0_57] : memref<27x16x5xbf16, #tpu.memory_space<vmem>>, vector<1x16x5xbf16>
    %91 = vector.shape_cast %90 : vector<1x16x5xbf16> to vector<16x5xbf16>
    %cst_58 = arith.constant dense<0.000000e+00> : vector<16x1024xf32>
    %92 = tpu.matmul %91, %89, %cst_58 {dimension_numbers = #tpu.dot_dimension_numbers<[1], [0], [0], [1], [0, 0, 1, 1], [], []>} : vector<16x5xbf16>, vector<5x1024xbf16>, vector<16x1024xf32> -> vector<16x1024xf32>
    %93 = arith.addf %88, %92 : vector<16x1024xf32>
    %94 = vector.extract_strided_slice %4 {offsets = [0, 512], sizes = [5, 1024], strides = [1, 1]} : vector<5x2048xbf16> to vector<5x1024xbf16>
    %c18 = arith.constant 18 : index
    %c0_59 = arith.constant 0 : index
    %c0_60 = arith.constant 0 : index
    %95 = vector.load %arg4[%c18, %c0_59, %c0_60] : memref<27x16x5xbf16, #tpu.memory_space<vmem>>, vector<1x16x5xbf16>
    %96 = vector.shape_cast %95 : vector<1x16x5xbf16> to vector<16x5xbf16>
    %cst_61 = arith.constant dense<0.000000e+00> : vector<16x1024xf32>
    %97 = tpu.matmul %96, %94, %cst_61 {dimension_numbers = #tpu.dot_dimension_numbers<[1], [0], [0], [1], [0, 0, 1, 1], [], []>} : vector<16x5xbf16>, vector<5x1024xbf16>, vector<16x1024xf32> -> vector<16x1024xf32>
    %98 = arith.addf %93, %97 : vector<16x1024xf32>
    %99 = vector.extract_strided_slice %4 {offsets = [0, 513], sizes = [5, 1024], strides = [1, 1]} : vector<5x2048xbf16> to vector<5x1024xbf16>
    %c19 = arith.constant 19 : index
    %c0_62 = arith.constant 0 : index
    %c0_63 = arith.constant 0 : index
    %100 = vector.load %arg4[%c19, %c0_62, %c0_63] : memref<27x16x5xbf16, #tpu.memory_space<vmem>>, vector<1x16x5xbf16>
    %101 = vector.shape_cast %100 : vector<1x16x5xbf16> to vector<16x5xbf16>
    %cst_64 = arith.constant dense<0.000000e+00> : vector<16x1024xf32>
    %102 = tpu.matmul %101, %99, %cst_64 {dimension_numbers = #tpu.dot_dimension_numbers<[1], [0], [0], [1], [0, 0, 1, 1], [], []>} : vector<16x5xbf16>, vector<5x1024xbf16>, vector<16x1024xf32> -> vector<16x1024xf32>
    %103 = arith.addf %98, %102 : vector<16x1024xf32>
    %104 = vector.extract_strided_slice %4 {offsets = [0, 514], sizes = [5, 1024], strides = [1, 1]} : vector<5x2048xbf16> to vector<5x1024xbf16>
    %c20 = arith.constant 20 : index
    %c0_65 = arith.constant 0 : index
    %c0_66 = arith.constant 0 : index
    %105 = vector.load %arg4[%c20, %c0_65, %c0_66] : memref<27x16x5xbf16, #tpu.memory_space<vmem>>, vector<1x16x5xbf16>
    %106 = vector.shape_cast %105 : vector<1x16x5xbf16> to vector<16x5xbf16>
    %cst_67 = arith.constant dense<0.000000e+00> : vector<16x1024xf32>
    %107 = tpu.matmul %106, %104, %cst_67 {dimension_numbers = #tpu.dot_dimension_numbers<[1], [0], [0], [1], [0, 0, 1, 1], [], []>} : vector<16x5xbf16>, vector<5x1024xbf16>, vector<16x1024xf32> -> vector<16x1024xf32>
    %108 = arith.addf %103, %107 : vector<16x1024xf32>
    %109 = vector.extract_strided_slice %4 {offsets = [0, 528], sizes = [5, 1024], strides = [1, 1]} : vector<5x2048xbf16> to vector<5x1024xbf16>
    %c21 = arith.constant 21 : index
    %c0_68 = arith.constant 0 : index
    %c0_69 = arith.constant 0 : index
    %110 = vector.load %arg4[%c21, %c0_68, %c0_69] : memref<27x16x5xbf16, #tpu.memory_space<vmem>>, vector<1x16x5xbf16>
    %111 = vector.shape_cast %110 : vector<1x16x5xbf16> to vector<16x5xbf16>
    %cst_70 = arith.constant dense<0.000000e+00> : vector<16x1024xf32>
    %112 = tpu.matmul %111, %109, %cst_70 {dimension_numbers = #tpu.dot_dimension_numbers<[1], [0], [0], [1], [0, 0, 1, 1], [], []>} : vector<16x5xbf16>, vector<5x1024xbf16>, vector<16x1024xf32> -> vector<16x1024xf32>
    %113 = arith.addf %108, %112 : vector<16x1024xf32>
    %114 = vector.extract_strided_slice %4 {offsets = [0, 529], sizes = [5, 1024], strides = [1, 1]} : vector<5x2048xbf16> to vector<5x1024xbf16>
    %c22 = arith.constant 22 : index
    %c0_71 = arith.constant 0 : index
    %c0_72 = arith.constant 0 : index
    %115 = vector.load %arg4[%c22, %c0_71, %c0_72] : memref<27x16x5xbf16, #tpu.memory_space<vmem>>, vector<1x16x5xbf16>
    %116 = vector.shape_cast %115 : vector<1x16x5xbf16> to vector<16x5xbf16>
    %cst_73 = arith.constant dense<0.000000e+00> : vector<16x1024xf32>
    %117 = tpu.matmul %116, %114, %cst_73 {dimension_numbers = #tpu.dot_dimension_numbers<[1], [0], [0], [1], [0, 0, 1, 1], [], []>} : vector<16x5xbf16>, vector<5x1024xbf16>, vector<16x1024xf32> -> vector<16x1024xf32>
    %118 = arith.addf %113, %117 : vector<16x1024xf32>
    %119 = vector.extract_strided_slice %4 {offsets = [0, 530], sizes = [5, 1024], strides = [1, 1]} : vector<5x2048xbf16> to vector<5x1024xbf16>
    %c23 = arith.constant 23 : index
    %c0_74 = arith.constant 0 : index
    %c0_75 = arith.constant 0 : index
    %120 = vector.load %arg4[%c23, %c0_74, %c0_75] : memref<27x16x5xbf16, #tpu.memory_space<vmem>>, vector<1x16x5xbf16>
    %121 = vector.shape_cast %120 : vector<1x16x5xbf16> to vector<16x5xbf16>
    %cst_76 = arith.constant dense<0.000000e+00> : vector<16x1024xf32>
    %122 = tpu.matmul %121, %119, %cst_76 {dimension_numbers = #tpu.dot_dimension_numbers<[1], [0], [0], [1], [0, 0, 1, 1], [], []>} : vector<16x5xbf16>, vector<5x1024xbf16>, vector<16x1024xf32> -> vector<16x1024xf32>
    %123 = arith.addf %118, %122 : vector<16x1024xf32>
    %124 = vector.extract_strided_slice %4 {offsets = [0, 544], sizes = [5, 1024], strides = [1, 1]} : vector<5x2048xbf16> to vector<5x1024xbf16>
    %c24 = arith.constant 24 : index
    %c0_77 = arith.constant 0 : index
    %c0_78 = arith.constant 0 : index
    %125 = vector.load %arg4[%c24, %c0_77, %c0_78] : memref<27x16x5xbf16, #tpu.memory_space<vmem>>, vector<1x16x5xbf16>
    %126 = vector.shape_cast %125 : vector<1x16x5xbf16> to vector<16x5xbf16>
    %cst_79 = arith.constant dense<0.000000e+00> : vector<16x1024xf32>
    %127 = tpu.matmul %126, %124, %cst_79 {dimension_numbers = #tpu.dot_dimension_numbers<[1], [0], [0], [1], [0, 0, 1, 1], [], []>} : vector<16x5xbf16>, vector<5x1024xbf16>, vector<16x1024xf32> -> vector<16x1024xf32>
    %128 = arith.addf %123, %127 : vector<16x1024xf32>
    %129 = vector.extract_strided_slice %4 {offsets = [0, 545], sizes = [5, 1024], strides = [1, 1]} : vector<5x2048xbf16> to vector<5x1024xbf16>
    %c25 = arith.constant 25 : index
    %c0_80 = arith.constant 0 : index
    %c0_81 = arith.constant 0 : index
    %130 = vector.load %arg4[%c25, %c0_80, %c0_81] : memref<27x16x5xbf16, #tpu.memory_space<vmem>>, vector<1x16x5xbf16>
    %131 = vector.shape_cast %130 : vector<1x16x5xbf16> to vector<16x5xbf16>
    %cst_82 = arith.constant dense<0.000000e+00> : vector<16x1024xf32>
    %132 = tpu.matmul %131, %129, %cst_82 {dimension_numbers = #tpu.dot_dimension_numbers<[1], [0], [0], [1], [0, 0, 1, 1], [], []>} : vector<16x5xbf16>, vector<5x1024xbf16>, vector<16x1024xf32> -> vector<16x1024xf32>
    %133 = arith.addf %128, %132 : vector<16x1024xf32>
    %134 = vector.extract_strided_slice %4 {offsets = [0, 546], sizes = [5, 1024], strides = [1, 1]} : vector<5x2048xbf16> to vector<5x1024xbf16>
    %c26 = arith.constant 26 : index
    %c0_83 = arith.constant 0 : index
    %c0_84 = arith.constant 0 : index
    %135 = vector.load %arg4[%c26, %c0_83, %c0_84] : memref<27x16x5xbf16, #tpu.memory_space<vmem>>, vector<1x16x5xbf16>
    %136 = vector.shape_cast %135 : vector<1x16x5xbf16> to vector<16x5xbf16>
    %cst_85 = arith.constant dense<0.000000e+00> : vector<16x1024xf32>
    %137 = tpu.matmul %136, %134, %cst_85 {dimension_numbers = #tpu.dot_dimension_numbers<[1], [0], [0], [1], [0, 0, 1, 1], [], []>} : vector<16x5xbf16>, vector<5x1024xbf16>, vector<16x1024xf32> -> vector<16x1024xf32>
    %138 = arith.addf %133, %137 : vector<16x1024xf32>
    %139 = vector.extract_strided_slice %138 {offsets = [0, 0], sizes = [8, 1024], strides = [1, 1]} : vector<16x1024xf32> to vector<8x1024xf32>
    %c0_86 = arith.constant 0 : index
    %c0_87 = arith.constant 0 : index
    %140 = vector.load %arg5[%c0_86, %c0_87] : memref<1x1024xf32, #tpu.memory_space<vmem>>, vector<1x1024xf32>
    %141 = vector.broadcast %140 : vector<1x1024xf32> to vector<8x1024xf32>
    %142 = arith.addf %139, %141 : vector<8x1024xf32>
    %c0_88 = arith.constant 0 : index
    %c0_89 = arith.constant 0 : index
    %c0_90 = arith.constant 0 : index
    %143 = vector.load %arg7[%c0_88, %c0_89, %c0_90] : memref<1x8x1xf32, #tpu.memory_space<vmem>>, vector<1x8x1xf32>
    %144 = vector.shape_cast %143 : vector<1x8x1xf32> to vector<8x1xf32>
    %145 = vector.broadcast %144 : vector<8x1xf32> to vector<8x1024xf32>
    %146 = arith.subf %142, %145 : vector<8x1024xf32>
    %147 = math.exp %146 : vector<8x1024xf32>
    %148 = vector.extract_strided_slice %138 {offsets = [8, 0], sizes = [8, 1024], strides = [1, 1]} : vector<16x1024xf32> to vector<8x1024xf32>
    %cst_91 = arith.constant dense<0xFF800000> : vector<1024xf32>
    %149 = vector.multi_reduction <maximumf>, %148, %cst_91 [0] : vector<8x1024xf32> to vector<1024xf32>
    %150 = vector.shape_cast %149 : vector<1024xf32> to vector<1x1024xf32>
    %151 = vector.broadcast %150 : vector<1x1024xf32> to vector<8x1024xf32>
    %152 = arith.subf %148, %151 : vector<8x1024xf32>
    %153 = math.exp %152 : vector<8x1024xf32>
    %cst_92 = arith.constant dense<0.000000e+00> : vector<1024xf32>
    %154 = vector.multi_reduction <add>, %153, %cst_92 [0] : vector<8x1024xf32> to vector<1024xf32>
    %155 = vector.shape_cast %154 : vector<1024xf32> to vector<1x1024xf32>
    %156 = vector.broadcast %155 : vector<1x1024xf32> to vector<8x1024xf32>
    %157 = arith.divf %153, %156 : vector<8x1024xf32>
    %c0_93 = arith.constant 0 : index
    %c0_94 = arith.constant 0 : index
    %c0_95 = arith.constant 0 : index
    %158 = vector.load %arg6[%c0_93, %c0_94, %c0_95] : memref<1x8x8xf32, #tpu.memory_space<vmem>>, vector<1x8x8xf32>
    %159 = vector.shape_cast %158 : vector<1x8x8xf32> to vector<8x8xf32>
    %cst_96 = arith.constant dense<0.000000e+00> : vector<8x1024xf32>
    %160 = tpu.matmul %159, %157, %cst_96 {dimension_numbers = #tpu.dot_dimension_numbers<[0], [0], [1], [1], [0, 1, 1, 1], [], []>} : vector<8x8xf32>, vector<8x1024xf32>, vector<8x1024xf32> -> vector<8x1024xf32>
    %161 = arith.truncf %160 : vector<8x1024xf32> to vector<8x1024xbf16>
    %c0_97 = arith.constant 0 : index
    %c0_98 = arith.constant 0 : index
    %c0_99 = arith.constant 0 : index
    %162 = vector.load %arg9[%c0_97, %c0_98, %c0_99] : memref<1x8x1024xbf16, #tpu.memory_space<vmem>>, vector<1x8x1024xbf16>
    %163 = vector.shape_cast %162 : vector<1x8x1024xbf16> to vector<8x1024xbf16>
    %164 = vector.shape_cast %161 : vector<8x1024xbf16> to vector<1x8x1024xbf16>
    tpu.vector_store %arg9[%c0_97, %c0_98, %c0_99], %164 {strides = array<i32>} : memref<1x8x1024xbf16, #tpu.memory_space<vmem>>, vector<1x8x1024xbf16>,
    %c0_100 = arith.constant 0 : index
    %c0_101 = arith.constant 0 : index
    %c0_102 = arith.constant 0 : index
    %165 = vector.load %arg8[%c0_100, %c0_101, %c0_102] : memref<1x8x1xf32, #tpu.memory_space<vmem>>, vector<1x8x1xf32>
    %166 = vector.shape_cast %165 : vector<1x8x1xf32> to vector<8x1xf32>
    %167 = vector.broadcast %166 : vector<8x1xf32> to vector<8x1024xf32>
    %168 = arith.mulf %147, %167 : vector<8x1024xf32>
    %169 = arith.mulf %168, %157 : vector<8x1024xf32>
    %170 = arith.truncf %169 : vector<8x1024xf32> to vector<8x1024xbf16>
    %c0_103 = arith.constant 0 : index
    %c0_104 = arith.constant 0 : index
    %c0_105 = arith.constant 0 : index
    %171 = vector.load %arg10[%c0_103, %c0_104, %c0_105] : memref<1x8x1024xbf16, #tpu.memory_space<vmem>>, vector<1x8x1024xbf16>
    %172 = vector.shape_cast %171 : vector<1x8x1024xbf16> to vector<8x1024xbf16>
    %173 = vector.shape_cast %170 : vector<8x1024xbf16> to vector<1x8x1024xbf16>
    tpu.vector_store %arg10[%c0_103, %c0_104, %c0_105], %173 {strides = array<i32>} : memref<1x8x1024xbf16, #tpu.memory_space<vmem>>, vector<1x8x1024xbf16>,
    return
  }
  func.func @transform_0(%arg0: i32, %arg1: i32) -> (i32, i32, i32) {
    %c0_i32 = arith.constant 0 : i32
    %c0_i32_0 = arith.constant 0 : i32
    return %arg0, %c0_i32, %arg1 : i32, i32, i32
  }
  func.func @transform_1(%arg0: i32, %arg1: i32) -> (i32, i32, i32) {
    %c1_i32 = arith.constant 1 : i32
    %0 = arith.addi %arg1, %c1_i32 : i32
    %c0_i32 = arith.constant 0 : i32
    %c0_i32_0 = arith.constant 0 : i32
    return %arg0, %c0_i32, %0 : i32, i32, i32
  }
  func.func @transform_2(%arg0: i32, %arg1: i32) -> (i32, i32, i32) {
    %c0_i32 = arith.constant 0 : i32
    %c0_i32_0 = arith.constant 0 : i32
    %c0_i32_1 = arith.constant 0 : i32
    %c0_i32_2 = arith.constant 0 : i32
    return %c0_i32, %c0_i32_0, %c0_i32_1 : i32, i32, i32
  }
  func.func @transform_3(%arg0: i32, %arg1: i32) -> (i32, i32) {
    %c0_i32 = arith.constant 0 : i32
    %c0_i32_0 = arith.constant 0 : i32
    return %c0_i32, %arg1 : i32, i32
  }
  func.func @transform_4(%arg0: i32, %arg1: i32) -> (i32, i32, i32) {
    %c0_i32 = arith.constant 0 : i32
    %c0_i32_0 = arith.constant 0 : i32
    %c0_i32_1 = arith.constant 0 : i32
    return %arg0, %c0_i32, %c0_i32_0 : i32, i32, i32
  }
  func.func @transform_5(%arg0: i32, %arg1: i32) -> (i32, i32, i32) {
    %c0_i32 = arith.constant 0 : i32
    %c0_i32_0 = arith.constant 0 : i32
    %c0_i32_1 = arith.constant 0 : i32
    return %arg0, %c0_i32, %c0_i32_0 : i32, i32, i32
  }
  func.func @transform_6(%arg0: i32, %arg1: i32) -> (i32, i32, i32) {
    %c0_i32 = arith.constant 0 : i32
    %c0_i32_0 = arith.constant 0 : i32
    %c0_i32_1 = arith.constant 0 : i32
    return %arg0, %c0_i32, %c0_i32_0 : i32, i32, i32
  }
  func.func @transform_7(%arg0: i32, %arg1: i32) -> (i32, i32, i32) {
    %c0_i32 = arith.constant 0 : i32
    %c0_i32_0 = arith.constant 0 : i32
    return %arg0, %c0_i32, %arg1 : i32, i32, i32
  }
  func.func @transform_8(%arg0: i32, %arg1: i32) -> (i32, i32, i32) {
    %c0_i32 = arith.constant 0 : i32
    %c0_i32_0 = arith.constant 0 : i32
    return %arg0, %c0_i32, %arg1 : i32, i32, i32
  }
}

module attributes {stable_mosaic.version = 11 : i64} {
  func.func @a2net_pass1_kernel(%arg0: i32, %arg1: i32, %arg2: memref<1x5x1024xbf16, #tpu.memory_space<vmem>>, %arg3: memref<1x5x1024xbf16, #tpu.memory_space<vmem>>, %arg4: memref<27x16x5xbf16, #tpu.memory_space<vmem>>, %arg5: memref<1x1024xf32, #tpu.memory_space<vmem>>, %arg6: memref<1x8x8xf32, #tpu.memory_space<vmem>>, %arg7: memref<1x8x1xf32, #tpu.memory_space<vmem>>, %arg8: memref<1x8x1xf32, #tpu.memory_space<vmem>>) attributes {dimension_semantics = [#tpu.dimension_semantics<parallel>, #tpu.dimension_semantics<arbitrary>], iteration_bounds = array<i64: 2, 2>, scalar_prefetch = 0 : i64, scratch_operands = 0 : i64, tpu.core_type = #tpu.core_type<tc>, window_params = [{transform_indices = @transform_0, window_bounds = array<i64: 1, 5, 1024>}, {transform_indices = @transform_1, window_bounds = array<i64: 1, 5, 1024>}, {pipeline_mode = #tpu.pipeline_mode<synchronous>, transform_indices = @transform_2, window_bounds = array<i64: 27, 16, 5>}, {transform_indices = @transform_3, window_bounds = array<i64: 1, 1024>}, {transform_indices = @transform_4, window_bounds = array<i64: 1, 8, 8>}, {transform_indices = @transform_5, window_bounds = array<i64: 1, 8, 1>}, {transform_indices = @transform_6, window_bounds = array<i64: 1, 8, 1>}]} {
    %c0_i32 = arith.constant 0 : i32
    %0 = arith.cmpi eq, %arg1, %c0_i32 : i32
    %1 = arith.extui %0 : i1 to i32
    %c0_i32_0 = arith.constant 0 : i32
    %2 = arith.cmpi ne, %1, %c0_i32_0 : i32
    scf.if %2 {
      %cst_114 = arith.constant 0.000000e+00 : f32
      %183 = vector.broadcast %cst_114 : f32 to vector<8x8xf32>
      %c0_115 = arith.constant 0 : index
      %c0_116 = arith.constant 0 : index
      %c0_117 = arith.constant 0 : index
      %184 = vector.load %arg6[%c0_115, %c0_116, %c0_117] : memref<1x8x8xf32, #tpu.memory_space<vmem>>, vector<1x8x8xf32>
      %185 = vector.shape_cast %184 : vector<1x8x8xf32> to vector<8x8xf32>
      %186 = vector.shape_cast %183 : vector<8x8xf32> to vector<1x8x8xf32>
      tpu.vector_store %arg6[%c0_115, %c0_116, %c0_117], %186 {strides = array<i32>} : memref<1x8x8xf32, #tpu.memory_space<vmem>>, vector<1x8x8xf32>,
      %cst_118 = arith.constant -1.000000e+30 : f32
      %187 = vector.broadcast %cst_118 : f32 to vector<8x1xf32>
      %c0_119 = arith.constant 0 : index
      %c0_120 = arith.constant 0 : index
      %c0_121 = arith.constant 0 : index
      %188 = vector.load %arg7[%c0_119, %c0_120, %c0_121] : memref<1x8x1xf32, #tpu.memory_space<vmem>>, vector<1x8x1xf32>
      %189 = vector.shape_cast %188 : vector<1x8x1xf32> to vector<8x1xf32>
      %190 = vector.shape_cast %187 : vector<8x1xf32> to vector<1x8x1xf32>
      tpu.vector_store %arg7[%c0_119, %c0_120, %c0_121], %190 {strides = array<i32>} : memref<1x8x1xf32, #tpu.memory_space<vmem>>, vector<1x8x1xf32>,
      %cst_122 = arith.constant 0.000000e+00 : f32
      %191 = vector.broadcast %cst_122 : f32 to vector<8x1xf32>
      %c0_123 = arith.constant 0 : index
      %c0_124 = arith.constant 0 : index
      %c0_125 = arith.constant 0 : index
      %192 = vector.load %arg8[%c0_123, %c0_124, %c0_125] : memref<1x8x1xf32, #tpu.memory_space<vmem>>, vector<1x8x1xf32>
      %193 = vector.shape_cast %192 : vector<1x8x1xf32> to vector<8x1xf32>
      %194 = vector.shape_cast %191 : vector<8x1xf32> to vector<1x8x1xf32>
      tpu.vector_store %arg8[%c0_123, %c0_124, %c0_125], %194 {strides = array<i32>} : memref<1x8x1xf32, #tpu.memory_space<vmem>>, vector<1x8x1xf32>,
    } else {
    }
    %c0 = arith.constant 0 : index
    %c0_1 = arith.constant 0 : index
    %c0_2 = arith.constant 0 : index
    %3 = vector.load %arg2[%c0, %c0_1, %c0_2] : memref<1x5x1024xbf16, #tpu.memory_space<vmem>>, vector<1x5x1024xbf16>
    %4 = vector.shape_cast %3 : vector<1x5x1024xbf16> to vector<5x1024xbf16>
    %c0_3 = arith.constant 0 : index
    %c0_4 = arith.constant 0 : index
    %c0_5 = arith.constant 0 : index
    %5 = vector.load %arg3[%c0_3, %c0_4, %c0_5] : memref<1x5x1024xbf16, #tpu.memory_space<vmem>>, vector<1x5x1024xbf16>
    %6 = vector.shape_cast %5 : vector<1x5x1024xbf16> to vector<5x1024xbf16>
    %7 = tpu.concatenate %4, %6 in 1 : vector<5x1024xbf16>, vector<5x1024xbf16> -> vector<5x2048xbf16>
    %8 = vector.extract_strided_slice %7 {offsets = [0, 0], sizes = [5, 1024], strides = [1, 1]} : vector<5x2048xbf16> to vector<5x1024xbf16>
    %c0_6 = arith.constant 0 : index
    %c0_7 = arith.constant 0 : index
    %c0_8 = arith.constant 0 : index
    %9 = vector.load %arg4[%c0_6, %c0_7, %c0_8] : memref<27x16x5xbf16, #tpu.memory_space<vmem>>, vector<1x16x5xbf16>
    %10 = vector.shape_cast %9 : vector<1x16x5xbf16> to vector<16x5xbf16>
    %cst = arith.constant dense<0.000000e+00> : vector<16x1024xf32>
    %11 = tpu.matmul %10, %8, %cst {dimension_numbers = #tpu.dot_dimension_numbers<[1], [0], [0], [1], [0, 0, 1, 1], [], []>} : vector<16x5xbf16>, vector<5x1024xbf16>, vector<16x1024xf32> -> vector<16x1024xf32>
    %12 = vector.extract_strided_slice %7 {offsets = [0, 1], sizes = [5, 1024], strides = [1, 1]} : vector<5x2048xbf16> to vector<5x1024xbf16>
    %c1 = arith.constant 1 : index
    %c0_9 = arith.constant 0 : index
    %c0_10 = arith.constant 0 : index
    %13 = vector.load %arg4[%c1, %c0_9, %c0_10] : memref<27x16x5xbf16, #tpu.memory_space<vmem>>, vector<1x16x5xbf16>
    %14 = vector.shape_cast %13 : vector<1x16x5xbf16> to vector<16x5xbf16>
    %cst_11 = arith.constant dense<0.000000e+00> : vector<16x1024xf32>
    %15 = tpu.matmul %14, %12, %cst_11 {dimension_numbers = #tpu.dot_dimension_numbers<[1], [0], [0], [1], [0, 0, 1, 1], [], []>} : vector<16x5xbf16>, vector<5x1024xbf16>, vector<16x1024xf32> -> vector<16x1024xf32>
    %16 = arith.addf %11, %15 : vector<16x1024xf32>
    %17 = vector.extract_strided_slice %7 {offsets = [0, 2], sizes = [5, 1024], strides = [1, 1]} : vector<5x2048xbf16> to vector<5x1024xbf16>
    %c2 = arith.constant 2 : index
    %c0_12 = arith.constant 0 : index
    %c0_13 = arith.constant 0 : index
    %18 = vector.load %arg4[%c2, %c0_12, %c0_13] : memref<27x16x5xbf16, #tpu.memory_space<vmem>>, vector<1x16x5xbf16>
    %19 = vector.shape_cast %18 : vector<1x16x5xbf16> to vector<16x5xbf16>
    %cst_14 = arith.constant dense<0.000000e+00> : vector<16x1024xf32>
    %20 = tpu.matmul %19, %17, %cst_14 {dimension_numbers = #tpu.dot_dimension_numbers<[1], [0], [0], [1], [0, 0, 1, 1], [], []>} : vector<16x5xbf16>, vector<5x1024xbf16>, vector<16x1024xf32> -> vector<16x1024xf32>
    %21 = arith.addf %16, %20 : vector<16x1024xf32>
    %22 = vector.extract_strided_slice %7 {offsets = [0, 16], sizes = [5, 1024], strides = [1, 1]} : vector<5x2048xbf16> to vector<5x1024xbf16>
    %c3 = arith.constant 3 : index
    %c0_15 = arith.constant 0 : index
    %c0_16 = arith.constant 0 : index
    %23 = vector.load %arg4[%c3, %c0_15, %c0_16] : memref<27x16x5xbf16, #tpu.memory_space<vmem>>, vector<1x16x5xbf16>
    %24 = vector.shape_cast %23 : vector<1x16x5xbf16> to vector<16x5xbf16>
    %cst_17 = arith.constant dense<0.000000e+00> : vector<16x1024xf32>
    %25 = tpu.matmul %24, %22, %cst_17 {dimension_numbers = #tpu.dot_dimension_numbers<[1], [0], [0], [1], [0, 0, 1, 1], [], []>} : vector<16x5xbf16>, vector<5x1024xbf16>, vector<16x1024xf32> -> vector<16x1024xf32>
    %26 = arith.addf %21, %25 : vector<16x1024xf32>
    %27 = vector.extract_strided_slice %7 {offsets = [0, 17], sizes = [5, 1024], strides = [1, 1]} : vector<5x2048xbf16> to vector<5x1024xbf16>
    %c4 = arith.constant 4 : index
    %c0_18 = arith.constant 0 : index
    %c0_19 = arith.constant 0 : index
    %28 = vector.load %arg4[%c4, %c0_18, %c0_19] : memref<27x16x5xbf16, #tpu.memory_space<vmem>>, vector<1x16x5xbf16>
    %29 = vector.shape_cast %28 : vector<1x16x5xbf16> to vector<16x5xbf16>
    %cst_20 = arith.constant dense<0.000000e+00> : vector<16x1024xf32>
    %30 = tpu.matmul %29, %27, %cst_20 {dimension_numbers = #tpu.dot_dimension_numbers<[1], [0], [0], [1], [0, 0, 1, 1], [], []>} : vector<16x5xbf16>, vector<5x1024xbf16>, vector<16x1024xf32> -> vector<16x1024xf32>
    %31 = arith.addf %26, %30 : vector<16x1024xf32>
    %32 = vector.extract_strided_slice %7 {offsets = [0, 18], sizes = [5, 1024], strides = [1, 1]} : vector<5x2048xbf16> to vector<5x1024xbf16>
    %c5 = arith.constant 5 : index
    %c0_21 = arith.constant 0 : index
    %c0_22 = arith.constant 0 : index
    %33 = vector.load %arg4[%c5, %c0_21, %c0_22] : memref<27x16x5xbf16, #tpu.memory_space<vmem>>, vector<1x16x5xbf16>
    %34 = vector.shape_cast %33 : vector<1x16x5xbf16> to vector<16x5xbf16>
    %cst_23 = arith.constant dense<0.000000e+00> : vector<16x1024xf32>
    %35 = tpu.matmul %34, %32, %cst_23 {dimension_numbers = #tpu.dot_dimension_numbers<[1], [0], [0], [1], [0, 0, 1, 1], [], []>} : vector<16x5xbf16>, vector<5x1024xbf16>, vector<16x1024xf32> -> vector<16x1024xf32>
    %36 = arith.addf %31, %35 : vector<16x1024xf32>
    %37 = vector.extract_strided_slice %7 {offsets = [0, 32], sizes = [5, 1024], strides = [1, 1]} : vector<5x2048xbf16> to vector<5x1024xbf16>
    %c6 = arith.constant 6 : index
    %c0_24 = arith.constant 0 : index
    %c0_25 = arith.constant 0 : index
    %38 = vector.load %arg4[%c6, %c0_24, %c0_25] : memref<27x16x5xbf16, #tpu.memory_space<vmem>>, vector<1x16x5xbf16>
    %39 = vector.shape_cast %38 : vector<1x16x5xbf16> to vector<16x5xbf16>
    %cst_26 = arith.constant dense<0.000000e+00> : vector<16x1024xf32>
    %40 = tpu.matmul %39, %37, %cst_26 {dimension_numbers = #tpu.dot_dimension_numbers<[1], [0], [0], [1], [0, 0, 1, 1], [], []>} : vector<16x5xbf16>, vector<5x1024xbf16>, vector<16x1024xf32> -> vector<16x1024xf32>
    %41 = arith.addf %36, %40 : vector<16x1024xf32>
    %42 = vector.extract_strided_slice %7 {offsets = [0, 33], sizes = [5, 1024], strides = [1, 1]} : vector<5x2048xbf16> to vector<5x1024xbf16>
    %c7 = arith.constant 7 : index
    %c0_27 = arith.constant 0 : index
    %c0_28 = arith.constant 0 : index
    %43 = vector.load %arg4[%c7, %c0_27, %c0_28] : memref<27x16x5xbf16, #tpu.memory_space<vmem>>, vector<1x16x5xbf16>
    %44 = vector.shape_cast %43 : vector<1x16x5xbf16> to vector<16x5xbf16>
    %cst_29 = arith.constant dense<0.000000e+00> : vector<16x1024xf32>
    %45 = tpu.matmul %44, %42, %cst_29 {dimension_numbers = #tpu.dot_dimension_numbers<[1], [0], [0], [1], [0, 0, 1, 1], [], []>} : vector<16x5xbf16>, vector<5x1024xbf16>, vector<16x1024xf32> -> vector<16x1024xf32>
    %46 = arith.addf %41, %45 : vector<16x1024xf32>
    %47 = vector.extract_strided_slice %7 {offsets = [0, 34], sizes = [5, 1024], strides = [1, 1]} : vector<5x2048xbf16> to vector<5x1024xbf16>
    %c8 = arith.constant 8 : index
    %c0_30 = arith.constant 0 : index
    %c0_31 = arith.constant 0 : index
    %48 = vector.load %arg4[%c8, %c0_30, %c0_31] : memref<27x16x5xbf16, #tpu.memory_space<vmem>>, vector<1x16x5xbf16>
    %49 = vector.shape_cast %48 : vector<1x16x5xbf16> to vector<16x5xbf16>
    %cst_32 = arith.constant dense<0.000000e+00> : vector<16x1024xf32>
    %50 = tpu.matmul %49, %47, %cst_32 {dimension_numbers = #tpu.dot_dimension_numbers<[1], [0], [0], [1], [0, 0, 1, 1], [], []>} : vector<16x5xbf16>, vector<5x1024xbf16>, vector<16x1024xf32> -> vector<16x1024xf32>
    %51 = arith.addf %46, %50 : vector<16x1024xf32>
    %52 = vector.extract_strided_slice %7 {offsets = [0, 256], sizes = [5, 1024], strides = [1, 1]} : vector<5x2048xbf16> to vector<5x1024xbf16>
    %c9 = arith.constant 9 : index
    %c0_33 = arith.constant 0 : index
    %c0_34 = arith.constant 0 : index
    %53 = vector.load %arg4[%c9, %c0_33, %c0_34] : memref<27x16x5xbf16, #tpu.memory_space<vmem>>, vector<1x16x5xbf16>
    %54 = vector.shape_cast %53 : vector<1x16x5xbf16> to vector<16x5xbf16>
    %cst_35 = arith.constant dense<0.000000e+00> : vector<16x1024xf32>
    %55 = tpu.matmul %54, %52, %cst_35 {dimension_numbers = #tpu.dot_dimension_numbers<[1], [0], [0], [1], [0, 0, 1, 1], [], []>} : vector<16x5xbf16>, vector<5x1024xbf16>, vector<16x1024xf32> -> vector<16x1024xf32>
    %56 = arith.addf %51, %55 : vector<16x1024xf32>
    %57 = vector.extract_strided_slice %7 {offsets = [0, 257], sizes = [5, 1024], strides = [1, 1]} : vector<5x2048xbf16> to vector<5x1024xbf16>
    %c10 = arith.constant 10 : index
    %c0_36 = arith.constant 0 : index
    %c0_37 = arith.constant 0 : index
    %58 = vector.load %arg4[%c10, %c0_36, %c0_37] : memref<27x16x5xbf16, #tpu.memory_space<vmem>>, vector<1x16x5xbf16>
    %59 = vector.shape_cast %58 : vector<1x16x5xbf16> to vector<16x5xbf16>
    %cst_38 = arith.constant dense<0.000000e+00> : vector<16x1024xf32>
    %60 = tpu.matmul %59, %57, %cst_38 {dimension_numbers = #tpu.dot_dimension_numbers<[1], [0], [0], [1], [0, 0, 1, 1], [], []>} : vector<16x5xbf16>, vector<5x1024xbf16>, vector<16x1024xf32> -> vector<16x1024xf32>
    %61 = arith.addf %56, %60 : vector<16x1024xf32>
    %62 = vector.extract_strided_slice %7 {offsets = [0, 258], sizes = [5, 1024], strides = [1, 1]} : vector<5x2048xbf16> to vector<5x1024xbf16>
    %c11 = arith.constant 11 : index
    %c0_39 = arith.constant 0 : index
    %c0_40 = arith.constant 0 : index
    %63 = vector.load %arg4[%c11, %c0_39, %c0_40] : memref<27x16x5xbf16, #tpu.memory_space<vmem>>, vector<1x16x5xbf16>
    %64 = vector.shape_cast %63 : vector<1x16x5xbf16> to vector<16x5xbf16>
    %cst_41 = arith.constant dense<0.000000e+00> : vector<16x1024xf32>
    %65 = tpu.matmul %64, %62, %cst_41 {dimension_numbers = #tpu.dot_dimension_numbers<[1], [0], [0], [1], [0, 0, 1, 1], [], []>} : vector<16x5xbf16>, vector<5x1024xbf16>, vector<16x1024xf32> -> vector<16x1024xf32>
    %66 = arith.addf %61, %65 : vector<16x1024xf32>
    %67 = vector.extract_strided_slice %7 {offsets = [0, 272], sizes = [5, 1024], strides = [1, 1]} : vector<5x2048xbf16> to vector<5x1024xbf16>
    %c12 = arith.constant 12 : index
    %c0_42 = arith.constant 0 : index
    %c0_43 = arith.constant 0 : index
    %68 = vector.load %arg4[%c12, %c0_42, %c0_43] : memref<27x16x5xbf16, #tpu.memory_space<vmem>>, vector<1x16x5xbf16>
    %69 = vector.shape_cast %68 : vector<1x16x5xbf16> to vector<16x5xbf16>
    %cst_44 = arith.constant dense<0.000000e+00> : vector<16x1024xf32>
    %70 = tpu.matmul %69, %67, %cst_44 {dimension_numbers = #tpu.dot_dimension_numbers<[1], [0], [0], [1], [0, 0, 1, 1], [], []>} : vector<16x5xbf16>, vector<5x1024xbf16>, vector<16x1024xf32> -> vector<16x1024xf32>
    %71 = arith.addf %66, %70 : vector<16x1024xf32>
    %72 = vector.extract_strided_slice %7 {offsets = [0, 273], sizes = [5, 1024], strides = [1, 1]} : vector<5x2048xbf16> to vector<5x1024xbf16>
    %c13 = arith.constant 13 : index
    %c0_45 = arith.constant 0 : index
    %c0_46 = arith.constant 0 : index
    %73 = vector.load %arg4[%c13, %c0_45, %c0_46] : memref<27x16x5xbf16, #tpu.memory_space<vmem>>, vector<1x16x5xbf16>
    %74 = vector.shape_cast %73 : vector<1x16x5xbf16> to vector<16x5xbf16>
    %cst_47 = arith.constant dense<0.000000e+00> : vector<16x1024xf32>
    %75 = tpu.matmul %74, %72, %cst_47 {dimension_numbers = #tpu.dot_dimension_numbers<[1], [0], [0], [1], [0, 0, 1, 1], [], []>} : vector<16x5xbf16>, vector<5x1024xbf16>, vector<16x1024xf32> -> vector<16x1024xf32>
    %76 = arith.addf %71, %75 : vector<16x1024xf32>
    %77 = vector.extract_strided_slice %7 {offsets = [0, 274], sizes = [5, 1024], strides = [1, 1]} : vector<5x2048xbf16> to vector<5x1024xbf16>
    %c14 = arith.constant 14 : index
    %c0_48 = arith.constant 0 : index
    %c0_49 = arith.constant 0 : index
    %78 = vector.load %arg4[%c14, %c0_48, %c0_49] : memref<27x16x5xbf16, #tpu.memory_space<vmem>>, vector<1x16x5xbf16>
    %79 = vector.shape_cast %78 : vector<1x16x5xbf16> to vector<16x5xbf16>
    %cst_50 = arith.constant dense<0.000000e+00> : vector<16x1024xf32>
    %80 = tpu.matmul %79, %77, %cst_50 {dimension_numbers = #tpu.dot_dimension_numbers<[1], [0], [0], [1], [0, 0, 1, 1], [], []>} : vector<16x5xbf16>, vector<5x1024xbf16>, vector<16x1024xf32> -> vector<16x1024xf32>
    %81 = arith.addf %76, %80 : vector<16x1024xf32>
    %82 = vector.extract_strided_slice %7 {offsets = [0, 288], sizes = [5, 1024], strides = [1, 1]} : vector<5x2048xbf16> to vector<5x1024xbf16>
    %c15 = arith.constant 15 : index
    %c0_51 = arith.constant 0 : index
    %c0_52 = arith.constant 0 : index
    %83 = vector.load %arg4[%c15, %c0_51, %c0_52] : memref<27x16x5xbf16, #tpu.memory_space<vmem>>, vector<1x16x5xbf16>
    %84 = vector.shape_cast %83 : vector<1x16x5xbf16> to vector<16x5xbf16>
    %cst_53 = arith.constant dense<0.000000e+00> : vector<16x1024xf32>
    %85 = tpu.matmul %84, %82, %cst_53 {dimension_numbers = #tpu.dot_dimension_numbers<[1], [0], [0], [1], [0, 0, 1, 1], [], []>} : vector<16x5xbf16>, vector<5x1024xbf16>, vector<16x1024xf32> -> vector<16x1024xf32>
    %86 = arith.addf %81, %85 : vector<16x1024xf32>
    %87 = vector.extract_strided_slice %7 {offsets = [0, 289], sizes = [5, 1024], strides = [1, 1]} : vector<5x2048xbf16> to vector<5x1024xbf16>
    %c16 = arith.constant 16 : index
    %c0_54 = arith.constant 0 : index
    %c0_55 = arith.constant 0 : index
    %88 = vector.load %arg4[%c16, %c0_54, %c0_55] : memref<27x16x5xbf16, #tpu.memory_space<vmem>>, vector<1x16x5xbf16>
    %89 = vector.shape_cast %88 : vector<1x16x5xbf16> to vector<16x5xbf16>
    %cst_56 = arith.constant dense<0.000000e+00> : vector<16x1024xf32>
    %90 = tpu.matmul %89, %87, %cst_56 {dimension_numbers = #tpu.dot_dimension_numbers<[1], [0], [0], [1], [0, 0, 1, 1], [], []>} : vector<16x5xbf16>, vector<5x1024xbf16>, vector<16x1024xf32> -> vector<16x1024xf32>
    %91 = arith.addf %86, %90 : vector<16x1024xf32>
    %92 = vector.extract_strided_slice %7 {offsets = [0, 290], sizes = [5, 1024], strides = [1, 1]} : vector<5x2048xbf16> to vector<5x1024xbf16>
    %c17 = arith.constant 17 : index
    %c0_57 = arith.constant 0 : index
    %c0_58 = arith.constant 0 : index
    %93 = vector.load %arg4[%c17, %c0_57, %c0_58] : memref<27x16x5xbf16, #tpu.memory_space<vmem>>, vector<1x16x5xbf16>
    %94 = vector.shape_cast %93 : vector<1x16x5xbf16> to vector<16x5xbf16>
    %cst_59 = arith.constant dense<0.000000e+00> : vector<16x1024xf32>
    %95 = tpu.matmul %94, %92, %cst_59 {dimension_numbers = #tpu.dot_dimension_numbers<[1], [0], [0], [1], [0, 0, 1, 1], [], []>} : vector<16x5xbf16>, vector<5x1024xbf16>, vector<16x1024xf32> -> vector<16x1024xf32>
    %96 = arith.addf %91, %95 : vector<16x1024xf32>
    %97 = vector.extract_strided_slice %7 {offsets = [0, 512], sizes = [5, 1024], strides = [1, 1]} : vector<5x2048xbf16> to vector<5x1024xbf16>
    %c18 = arith.constant 18 : index
    %c0_60 = arith.constant 0 : index
    %c0_61 = arith.constant 0 : index
    %98 = vector.load %arg4[%c18, %c0_60, %c0_61] : memref<27x16x5xbf16, #tpu.memory_space<vmem>>, vector<1x16x5xbf16>
    %99 = vector.shape_cast %98 : vector<1x16x5xbf16> to vector<16x5xbf16>
    %cst_62 = arith.constant dense<0.000000e+00> : vector<16x1024xf32>
    %100 = tpu.matmul %99, %97, %cst_62 {dimension_numbers = #tpu.dot_dimension_numbers<[1], [0], [0], [1], [0, 0, 1, 1], [], []>} : vector<16x5xbf16>, vector<5x1024xbf16>, vector<16x1024xf32> -> vector<16x1024xf32>
    %101 = arith.addf %96, %100 : vector<16x1024xf32>
    %102 = vector.extract_strided_slice %7 {offsets = [0, 513], sizes = [5, 1024], strides = [1, 1]} : vector<5x2048xbf16> to vector<5x1024xbf16>
    %c19 = arith.constant 19 : index
    %c0_63 = arith.constant 0 : index
    %c0_64 = arith.constant 0 : index
    %103 = vector.load %arg4[%c19, %c0_63, %c0_64] : memref<27x16x5xbf16, #tpu.memory_space<vmem>>, vector<1x16x5xbf16>
    %104 = vector.shape_cast %103 : vector<1x16x5xbf16> to vector<16x5xbf16>
    %cst_65 = arith.constant dense<0.000000e+00> : vector<16x1024xf32>
    %105 = tpu.matmul %104, %102, %cst_65 {dimension_numbers = #tpu.dot_dimension_numbers<[1], [0], [0], [1], [0, 0, 1, 1], [], []>} : vector<16x5xbf16>, vector<5x1024xbf16>, vector<16x1024xf32> -> vector<16x1024xf32>
    %106 = arith.addf %101, %105 : vector<16x1024xf32>
    %107 = vector.extract_strided_slice %7 {offsets = [0, 514], sizes = [5, 1024], strides = [1, 1]} : vector<5x2048xbf16> to vector<5x1024xbf16>
    %c20 = arith.constant 20 : index
    %c0_66 = arith.constant 0 : index
    %c0_67 = arith.constant 0 : index
    %108 = vector.load %arg4[%c20, %c0_66, %c0_67] : memref<27x16x5xbf16, #tpu.memory_space<vmem>>, vector<1x16x5xbf16>
    %109 = vector.shape_cast %108 : vector<1x16x5xbf16> to vector<16x5xbf16>
    %cst_68 = arith.constant dense<0.000000e+00> : vector<16x1024xf32>
    %110 = tpu.matmul %109, %107, %cst_68 {dimension_numbers = #tpu.dot_dimension_numbers<[1], [0], [0], [1], [0, 0, 1, 1], [], []>} : vector<16x5xbf16>, vector<5x1024xbf16>, vector<16x1024xf32> -> vector<16x1024xf32>
    %111 = arith.addf %106, %110 : vector<16x1024xf32>
    %112 = vector.extract_strided_slice %7 {offsets = [0, 528], sizes = [5, 1024], strides = [1, 1]} : vector<5x2048xbf16> to vector<5x1024xbf16>
    %c21 = arith.constant 21 : index
    %c0_69 = arith.constant 0 : index
    %c0_70 = arith.constant 0 : index
    %113 = vector.load %arg4[%c21, %c0_69, %c0_70] : memref<27x16x5xbf16, #tpu.memory_space<vmem>>, vector<1x16x5xbf16>
    %114 = vector.shape_cast %113 : vector<1x16x5xbf16> to vector<16x5xbf16>
    %cst_71 = arith.constant dense<0.000000e+00> : vector<16x1024xf32>
    %115 = tpu.matmul %114, %112, %cst_71 {dimension_numbers = #tpu.dot_dimension_numbers<[1], [0], [0], [1], [0, 0, 1, 1], [], []>} : vector<16x5xbf16>, vector<5x1024xbf16>, vector<16x1024xf32> -> vector<16x1024xf32>
    %116 = arith.addf %111, %115 : vector<16x1024xf32>
    %117 = vector.extract_strided_slice %7 {offsets = [0, 529], sizes = [5, 1024], strides = [1, 1]} : vector<5x2048xbf16> to vector<5x1024xbf16>
    %c22 = arith.constant 22 : index
    %c0_72 = arith.constant 0 : index
    %c0_73 = arith.constant 0 : index
    %118 = vector.load %arg4[%c22, %c0_72, %c0_73] : memref<27x16x5xbf16, #tpu.memory_space<vmem>>, vector<1x16x5xbf16>
    %119 = vector.shape_cast %118 : vector<1x16x5xbf16> to vector<16x5xbf16>
    %cst_74 = arith.constant dense<0.000000e+00> : vector<16x1024xf32>
    %120 = tpu.matmul %119, %117, %cst_74 {dimension_numbers = #tpu.dot_dimension_numbers<[1], [0], [0], [1], [0, 0, 1, 1], [], []>} : vector<16x5xbf16>, vector<5x1024xbf16>, vector<16x1024xf32> -> vector<16x1024xf32>
    %121 = arith.addf %116, %120 : vector<16x1024xf32>
    %122 = vector.extract_strided_slice %7 {offsets = [0, 530], sizes = [5, 1024], strides = [1, 1]} : vector<5x2048xbf16> to vector<5x1024xbf16>
    %c23 = arith.constant 23 : index
    %c0_75 = arith.constant 0 : index
    %c0_76 = arith.constant 0 : index
    %123 = vector.load %arg4[%c23, %c0_75, %c0_76] : memref<27x16x5xbf16, #tpu.memory_space<vmem>>, vector<1x16x5xbf16>
    %124 = vector.shape_cast %123 : vector<1x16x5xbf16> to vector<16x5xbf16>
    %cst_77 = arith.constant dense<0.000000e+00> : vector<16x1024xf32>
    %125 = tpu.matmul %124, %122, %cst_77 {dimension_numbers = #tpu.dot_dimension_numbers<[1], [0], [0], [1], [0, 0, 1, 1], [], []>} : vector<16x5xbf16>, vector<5x1024xbf16>, vector<16x1024xf32> -> vector<16x1024xf32>
    %126 = arith.addf %121, %125 : vector<16x1024xf32>
    %127 = vector.extract_strided_slice %7 {offsets = [0, 544], sizes = [5, 1024], strides = [1, 1]} : vector<5x2048xbf16> to vector<5x1024xbf16>
    %c24 = arith.constant 24 : index
    %c0_78 = arith.constant 0 : index
    %c0_79 = arith.constant 0 : index
    %128 = vector.load %arg4[%c24, %c0_78, %c0_79] : memref<27x16x5xbf16, #tpu.memory_space<vmem>>, vector<1x16x5xbf16>
    %129 = vector.shape_cast %128 : vector<1x16x5xbf16> to vector<16x5xbf16>
    %cst_80 = arith.constant dense<0.000000e+00> : vector<16x1024xf32>
    %130 = tpu.matmul %129, %127, %cst_80 {dimension_numbers = #tpu.dot_dimension_numbers<[1], [0], [0], [1], [0, 0, 1, 1], [], []>} : vector<16x5xbf16>, vector<5x1024xbf16>, vector<16x1024xf32> -> vector<16x1024xf32>
    %131 = arith.addf %126, %130 : vector<16x1024xf32>
    %132 = vector.extract_strided_slice %7 {offsets = [0, 545], sizes = [5, 1024], strides = [1, 1]} : vector<5x2048xbf16> to vector<5x1024xbf16>
    %c25 = arith.constant 25 : index
    %c0_81 = arith.constant 0 : index
    %c0_82 = arith.constant 0 : index
    %133 = vector.load %arg4[%c25, %c0_81, %c0_82] : memref<27x16x5xbf16, #tpu.memory_space<vmem>>, vector<1x16x5xbf16>
    %134 = vector.shape_cast %133 : vector<1x16x5xbf16> to vector<16x5xbf16>
    %cst_83 = arith.constant dense<0.000000e+00> : vector<16x1024xf32>
    %135 = tpu.matmul %134, %132, %cst_83 {dimension_numbers = #tpu.dot_dimension_numbers<[1], [0], [0], [1], [0, 0, 1, 1], [], []>} : vector<16x5xbf16>, vector<5x1024xbf16>, vector<16x1024xf32> -> vector<16x1024xf32>
    %136 = arith.addf %131, %135 : vector<16x1024xf32>
    %137 = vector.extract_strided_slice %7 {offsets = [0, 546], sizes = [5, 1024], strides = [1, 1]} : vector<5x2048xbf16> to vector<5x1024xbf16>
    %c26 = arith.constant 26 : index
    %c0_84 = arith.constant 0 : index
    %c0_85 = arith.constant 0 : index
    %138 = vector.load %arg4[%c26, %c0_84, %c0_85] : memref<27x16x5xbf16, #tpu.memory_space<vmem>>, vector<1x16x5xbf16>
    %139 = vector.shape_cast %138 : vector<1x16x5xbf16> to vector<16x5xbf16>
    %cst_86 = arith.constant dense<0.000000e+00> : vector<16x1024xf32>
    %140 = tpu.matmul %139, %137, %cst_86 {dimension_numbers = #tpu.dot_dimension_numbers<[1], [0], [0], [1], [0, 0, 1, 1], [], []>} : vector<16x5xbf16>, vector<5x1024xbf16>, vector<16x1024xf32> -> vector<16x1024xf32>
    %141 = arith.addf %136, %140 : vector<16x1024xf32>
    %142 = vector.extract_strided_slice %141 {offsets = [0, 0], sizes = [8, 1024], strides = [1, 1]} : vector<16x1024xf32> to vector<8x1024xf32>
    %143 = vector.extract_strided_slice %141 {offsets = [8, 0], sizes = [8, 1024], strides = [1, 1]} : vector<16x1024xf32> to vector<8x1024xf32>
    %c0_87 = arith.constant 0 : index
    %c0_88 = arith.constant 0 : index
    %144 = vector.load %arg5[%c0_87, %c0_88] : memref<1x1024xf32, #tpu.memory_space<vmem>>, vector<1x1024xf32>
    %145 = vector.broadcast %144 : vector<1x1024xf32> to vector<8x1024xf32>
    %146 = arith.addf %143, %145 : vector<8x1024xf32>
    %cst_89 = arith.constant dense<0xFF800000> : vector<8xf32>
    %147 = vector.multi_reduction <maximumf>, %146, %cst_89 [1] : vector<8x1024xf32> to vector<8xf32>
    %148 = vector.shape_cast %147 : vector<8xf32> to vector<8x1xf32>
    %c0_90 = arith.constant 0 : index
    %c0_91 = arith.constant 0 : index
    %c0_92 = arith.constant 0 : index
    %149 = vector.load %arg7[%c0_90, %c0_91, %c0_92] : memref<1x8x1xf32, #tpu.memory_space<vmem>>, vector<1x8x1xf32>
    %150 = vector.shape_cast %149 : vector<1x8x1xf32> to vector<8x1xf32>
    %151 = arith.maximumf %150, %148 : vector<8x1xf32>
    %c0_93 = arith.constant 0 : index
    %c0_94 = arith.constant 0 : index
    %c0_95 = arith.constant 0 : index
    %152 = vector.load %arg7[%c0_93, %c0_94, %c0_95] : memref<1x8x1xf32, #tpu.memory_space<vmem>>, vector<1x8x1xf32>
    %153 = vector.shape_cast %152 : vector<1x8x1xf32> to vector<8x1xf32>
    %154 = arith.subf %153, %151 : vector<8x1xf32>
    %155 = math.exp %154 : vector<8x1xf32>
    %156 = vector.broadcast %151 : vector<8x1xf32> to vector<8x1024xf32>
    %157 = arith.subf %146, %156 : vector<8x1024xf32>
    %158 = math.exp %157 : vector<8x1024xf32>
    %c0_96 = arith.constant 0 : index
    %c0_97 = arith.constant 0 : index
    %c0_98 = arith.constant 0 : index
    %159 = vector.load %arg8[%c0_96, %c0_97, %c0_98] : memref<1x8x1xf32, #tpu.memory_space<vmem>>, vector<1x8x1xf32>
    %160 = vector.shape_cast %159 : vector<1x8x1xf32> to vector<8x1xf32>
    %161 = arith.mulf %155, %160 : vector<8x1xf32>
    %cst_99 = arith.constant dense<0.000000e+00> : vector<8xf32>
    %162 = vector.multi_reduction <add>, %158, %cst_99 [1] : vector<8x1024xf32> to vector<8xf32>
    %163 = vector.shape_cast %162 : vector<8xf32> to vector<8x1xf32>
    %164 = arith.addf %161, %163 : vector<8x1xf32>
    %c0_100 = arith.constant 0 : index
    %c0_101 = arith.constant 0 : index
    %c0_102 = arith.constant 0 : index
    %165 = vector.load %arg8[%c0_100, %c0_101, %c0_102] : memref<1x8x1xf32, #tpu.memory_space<vmem>>, vector<1x8x1xf32>
    %166 = vector.shape_cast %165 : vector<1x8x1xf32> to vector<8x1xf32>
    %167 = vector.shape_cast %164 : vector<8x1xf32> to vector<1x8x1xf32>
    tpu.vector_store %arg8[%c0_100, %c0_101, %c0_102], %167 {strides = array<i32>} : memref<1x8x1xf32, #tpu.memory_space<vmem>>, vector<1x8x1xf32>,
    %c0_103 = arith.constant 0 : index
    %c0_104 = arith.constant 0 : index
    %c0_105 = arith.constant 0 : index
    %168 = vector.load %arg6[%c0_103, %c0_104, %c0_105] : memref<1x8x8xf32, #tpu.memory_space<vmem>>, vector<1x8x8xf32>
    %169 = vector.shape_cast %168 : vector<1x8x8xf32> to vector<8x8xf32>
    %170 = vector.broadcast %155 : vector<8x1xf32> to vector<8x8xf32>
    %171 = arith.mulf %170, %169 : vector<8x8xf32>
    %cst_106 = arith.constant dense<0.000000e+00> : vector<8x8xf32>
    %172 = tpu.matmul %158, %142, %cst_106 {dimension_numbers = #tpu.dot_dimension_numbers<[1], [1], [0], [0], [0, 0, 1, 0], [], []>} : vector<8x1024xf32>, vector<8x1024xf32>, vector<8x8xf32> -> vector<8x8xf32>
    %173 = arith.addf %171, %172 : vector<8x8xf32>
    %c0_107 = arith.constant 0 : index
    %c0_108 = arith.constant 0 : index
    %c0_109 = arith.constant 0 : index
    %174 = vector.load %arg6[%c0_107, %c0_108, %c0_109] : memref<1x8x8xf32, #tpu.memory_space<vmem>>, vector<1x8x8xf32>
    %175 = vector.shape_cast %174 : vector<1x8x8xf32> to vector<8x8xf32>
    %176 = vector.shape_cast %173 : vector<8x8xf32> to vector<1x8x8xf32>
    tpu.vector_store %arg6[%c0_107, %c0_108, %c0_109], %176 {strides = array<i32>} : memref<1x8x8xf32, #tpu.memory_space<vmem>>, vector<1x8x8xf32>,
    %c0_110 = arith.constant 0 : index
    %c0_111 = arith.constant 0 : index
    %c0_112 = arith.constant 0 : index
    %177 = vector.load %arg7[%c0_110, %c0_111, %c0_112] : memref<1x8x1xf32, #tpu.memory_space<vmem>>, vector<1x8x1xf32>
    %178 = vector.shape_cast %177 : vector<1x8x1xf32> to vector<8x1xf32>
    %179 = vector.shape_cast %151 : vector<8x1xf32> to vector<1x8x1xf32>
    tpu.vector_store %arg7[%c0_110, %c0_111, %c0_112], %179 {strides = array<i32>} : memref<1x8x1xf32, #tpu.memory_space<vmem>>, vector<1x8x1xf32>,
    %c1_i32 = arith.constant 1 : i32
    %180 = arith.cmpi eq, %arg1, %c1_i32 : i32
    %181 = arith.extui %180 : i1 to i32
    %c0_i32_113 = arith.constant 0 : i32
    %182 = arith.cmpi ne, %181, %c0_i32_113 : i32
    scf.if %182 {
      %c0_114 = arith.constant 0 : index
      %c0_115 = arith.constant 0 : index
      %c0_116 = arith.constant 0 : index
      %183 = vector.load %arg8[%c0_114, %c0_115, %c0_116] : memref<1x8x1xf32, #tpu.memory_space<vmem>>, vector<1x8x1xf32>
      %184 = vector.shape_cast %183 : vector<1x8x1xf32> to vector<8x1xf32>
      %cst_117 = arith.constant 1.000000e+00 : f32
      %185 = vector.broadcast %cst_117 : f32 to vector<8x1xf32>
      %186 = arith.divf %185, %184 : vector<8x1xf32>
      %c0_118 = arith.constant 0 : index
      %c0_119 = arith.constant 0 : index
      %c0_120 = arith.constant 0 : index
      %187 = vector.load %arg6[%c0_118, %c0_119, %c0_120] : memref<1x8x8xf32, #tpu.memory_space<vmem>>, vector<1x8x8xf32>
      %188 = vector.shape_cast %187 : vector<1x8x8xf32> to vector<8x8xf32>
      %189 = vector.broadcast %186 : vector<8x1xf32> to vector<8x8xf32>
      %190 = arith.mulf %188, %189 : vector<8x8xf32>
      %c0_121 = arith.constant 0 : index
      %c0_122 = arith.constant 0 : index
      %c0_123 = arith.constant 0 : index
      %191 = vector.load %arg6[%c0_121, %c0_122, %c0_123] : memref<1x8x8xf32, #tpu.memory_space<vmem>>, vector<1x8x8xf32>
      %192 = vector.shape_cast %191 : vector<1x8x8xf32> to vector<8x8xf32>
      %193 = vector.shape_cast %190 : vector<8x8xf32> to vector<1x8x8xf32>
      tpu.vector_store %arg6[%c0_121, %c0_122, %c0_123], %193 {strides = array<i32>} : memref<1x8x8xf32, #tpu.memory_space<vmem>>, vector<1x8x8xf32>,
      %c0_124 = arith.constant 0 : index
      %c0_125 = arith.constant 0 : index
      %c0_126 = arith.constant 0 : index
      %194 = vector.load %arg8[%c0_124, %c0_125, %c0_126] : memref<1x8x1xf32, #tpu.memory_space<vmem>>, vector<1x8x1xf32>
      %195 = vector.shape_cast %194 : vector<1x8x1xf32> to vector<8x1xf32>
      %196 = vector.shape_cast %186 : vector<8x1xf32> to vector<1x8x1xf32>
      tpu.vector_store %arg8[%c0_124, %c0_125, %c0_126], %196 {strides = array<i32>} : memref<1x8x1xf32, #tpu.memory_space<vmem>>, vector<1x8x1xf32>,
    } else {
    }
    return
  }
  func.func @transform_0(%arg0: i32, %arg1: i32) -> (i32, i32, i32) {
    %c0_i32 = arith.constant 0 : i32
    %c0_i32_0 = arith.constant 0 : i32
    return %arg0, %c0_i32, %arg1 : i32, i32, i32
  }
  func.func @transform_1(%arg0: i32, %arg1: i32) -> (i32, i32, i32) {
    %c1_i32 = arith.constant 1 : i32
    %0 = arith.addi %arg1, %c1_i32 : i32
    %c0_i32 = arith.constant 0 : i32
    %c0_i32_0 = arith.constant 0 : i32
    return %arg0, %c0_i32, %0 : i32, i32, i32
  }
  func.func @transform_2(%arg0: i32, %arg1: i32) -> (i32, i32, i32) {
    %c0_i32 = arith.constant 0 : i32
    %c0_i32_0 = arith.constant 0 : i32
    %c0_i32_1 = arith.constant 0 : i32
    %c0_i32_2 = arith.constant 0 : i32
    return %c0_i32, %c0_i32_0, %c0_i32_1 : i32, i32, i32
  }
  func.func @transform_3(%arg0: i32, %arg1: i32) -> (i32, i32) {
    %c0_i32 = arith.constant 0 : i32
    %c0_i32_0 = arith.constant 0 : i32
    return %c0_i32, %arg1 : i32, i32
  }
  func.func @transform_4(%arg0: i32, %arg1: i32) -> (i32, i32, i32) {
    %c0_i32 = arith.constant 0 : i32
    %c0_i32_0 = arith.constant 0 : i32
    %c0_i32_1 = arith.constant 0 : i32
    return %arg0, %c0_i32, %c0_i32_0 : i32, i32, i32
  }
  func.func @transform_5(%arg0: i32, %arg1: i32) -> (i32, i32, i32) {
    %c0_i32 = arith.constant 0 : i32
    %c0_i32_0 = arith.constant 0 : i32
    %c0_i32_1 = arith.constant 0 : i32
    return %arg0, %c0_i32, %c0_i32_0 : i32, i32, i32
  }
  func.func @transform_6(%arg0: i32, %arg1: i32) -> (i32, i32, i32) {
    %c0_i32 = arith.constant 0 : i32
    %c0_i32_0 = arith.constant 0 : i32
    %c0_i32_1 = arith.constant 0 : i32
    return %arg0, %c0_i32, %c0_i32_0 : i32, i32, i32
  }
}

</mosaic_0001>

<llo_original>
// kernel: a2net_forward.3
$region0: #{a2net_forward.3}
  #allocation0 [shape = 'u32[]', space=smem, size = 0x4, offset = 0x4, fixed_abs, tag = 'smem constant byte address 0x4 - core index']
  #allocation1 [shape = 'u32[72,128]{1,0:T(1,128)}', space=vmem, size = 0x9000, scoped, tag = 'internal scratch']
  %s0 = inlined_call_operand.vmem [shape: bf16[2,5,3072], index: 0, kind: input, shape index: {}, may-alias: {0,1}]
  %s1 = inlined_call_operand.vmem [shape: bf16[2,5,3072], index: 1, kind: input, shape index: {}, may-alias: {0,1}]
  %s2 = inlined_call_operand.vmem [shape: bf16[27,16,5], index: 2, kind: input, shape index: {}]
  %s3 = inlined_call_operand.vmem [shape: f32[1,2048], index: 3, kind: input, shape index: {}]
  %s4 = inlined_call_operand.vmem [shape: f32[2,8,8], index: 4, kind: input, shape index: {}]
  %s5 = inlined_call_operand.vmem [shape: f32[2,8,1], index: 5, kind: input, shape index: {}]
  %s6 = inlined_call_operand.vmem [shape: f32[2,8,1], index: 6, kind: input, shape index: {}]
  %s7 = inlined_call_operand.vmem [shape: bf16[2,8,2048], index: 7, kind: output, shape index: {0}]
  %s8 = inlined_call_operand.vmem [shape: bf16[2,8,2048], index: 8, kind: output, shape index: {1}]
  %9 = xla_tuple %s7, %s8
  %s10 = sld [smem:[#allocation0]]
  $region69: #{a2net_forward.3} parent=0
    _
  %s12 = ssub.s32 1, %s10
  %s13 = scalar_select 0, %s12, %s10
  loop: start=0, step=1, limit=6
  $region2: #{a2net_forward.3} parent=0 // loop_pre_header
    _
  $region3: #{a2net_forward.3} parent=0 // loop_header
    %s15 = sphi 0, %s19
    %p16 = scmp.ge.s32.totalorder %s15, 6
    %s22 = sphi 0, %s34
    %s23 = sphi 0, %s30
    %s24 = sphi 0, %s22
    %s25 = sphi 0, %s23
    %s26 = sphi 0, %s24
    %s27 = sphi 0, %s25
    %s39 = sphi 0, %s41
    %s42 = sphi 0, %s39
    %s43 = sphi 0, %s42
    %s59 = sphi 0, %s43
    %s69 = sphi 0, %s71
    %s72 = sphi 0, %s69
    %s73 = sphi 0, %s72
    %s89 = sphi 0, %s73
    %s93 = sphi 0, %s93
    %s95 = sphi 0, %s93
    %s96 = sphi 0, %s95
    %s110 = sphi 0, %s96
    %s116 = sphi 0, %s118
    %s119 = sphi 0, %s116
    %s120 = sphi 0, %s119
    %s136 = sphi 0, %s120
    %s142 = sphi 0, %s144
    %s145 = sphi 0, %s142
    %s146 = sphi 0, %s145
    %s162 = sphi 0, %s146
    %s168 = sphi 0, %s170
    %s171 = sphi 0, %s168
    %s172 = sphi 0, %s171
    %s188 = sphi 0, %s172
    %s194 = sphi 0, %s196
    %s197 = sphi 0, %s194
    %s198 = sphi 0, %s197
    %s214 = sphi 0, %s198
    %s222 = sphi 0, %s224
    %s225 = sphi 0, %s222
    %s226 = sphi 0, %s225
    %s242 = sphi 0, %s226
    %s250 = sphi 0, %s252
    %s253 = sphi 0, %s250
    %s254 = sphi 0, %s253
    %s270 = sphi 0, %s254
  $region4: #{a2net_forward.3} parent=0 // loop_header_branch
    %18 = sbr.rel (%p16) target = $region8
  $region5: #{a2net_forward.3} parent=0 // loop_body
    %s20 = ssub.s32 %s15, 1
    %s21 = ssub.s32 %s15, 2
    %s28 = sadd.s32 1, %s23
    %p29 = scmp.ge.s32.totalorder %s28, 2
    %s30 = scalar_select %p29, 0, %s28
    %s31 = sadd.s32 1, %s22
    %s32 = scalar_select %p29, %s31, %s22
    %p33 = scmp.ge.s32.totalorder %s32, 2
    %s34 = scalar_select %p33, 0, %s32
    %s35 = ssub.s32 %s22, %s34
    %s36 = ssub.s32 %s23, %s30
    %s37 = sor.u32 %s35, %s36
    %p38 = scmp.eq.s32.totalorder %s37, 0
    %s40 = sadd.s32 %s39, 1
    %s41 = scalar_select %p38, %s39, %s40
    %p44 = pneg %p38
    %p45 = scmp.eq.s32.totalorder %s15, 3
    %p46 = por %p44, %p45
    %p47 = scmp.ne.s32.totalorder %s39, %s42
    %p48 = scmp.eq.s32.totalorder %s15, 0
    %p49 = por %p47, %p48
    %p50 = scmp.ne.s32.totalorder %s39, %s42
    %p51 = scmp.eq.s32.totalorder %s20, 3
    %p52 = por %p50, %p51
    %p53 = scmp.ne.s32.totalorder %s42, %s43
    %p54 = scmp.eq.s32.totalorder %s20, 0
    %p55 = por %p53, %p54
    %p56 = scmp.ne.s32.totalorder %s42, %s43
    %p57 = scmp.eq.s32.totalorder %s21, 3
    %p58 = por %p56, %p57
    %p60 = scmp.ne.s32.totalorder %s43, %s59
    %p61 = scmp.eq.s32.totalorder %s21, 0
    %p62 = por %p60, %p61
    %s63 = sadd.s32 %s23, 1
    %s64 = sadd.s32 %s30, 1
    %s65 = ssub.s32 %s22, %s34
    %s66 = ssub.s32 %s63, %s64
    %s67 = sor.u32 %s65, %s66
    %p68 = scmp.eq.s32.totalorder %s67, 0
    %s70 = sadd.s32 %s69, 1
    %s71 = scalar_select %p68, %s69, %s70
    %p74 = pneg %p68
    %p75 = scmp.eq.s32.totalorder %s15, 3
    %p76 = por %p74, %p75
    %p77 = scmp.ne.s32.totalorder %s69, %s72
    %p78 = scmp.eq.s32.totalorder %s15, 0
    %p79 = por %p77, %p78
    %p80 = scmp.ne.s32.totalorder %s69, %s72
    %p81 = scmp.eq.s32.totalorder %s20, 3
    %p82 = por %p80, %p81
    %p83 = scmp.ne.s32.totalorder %s72, %s73
    %p84 = scmp.eq.s32.totalorder %s20, 0
    %p85 = por %p83, %p84
    %p86 = scmp.ne.s32.totalorder %s72, %s73
    %p87 = scmp.eq.s32.totalorder %s21, 3
    %p88 = por %p86, %p87
    %p90 = scmp.ne.s32.totalorder %s73, %s89
    %p91 = scmp.eq.s32.totalorder %s21, 0
    %p92 = por %p90, %p91
    %s94 = sadd.s32 %s93, 1
    %p97 = scmp.eq.s32.totalorder %s15, 3
    %p98 = scmp.ne.s32.totalorder %s93, %s95
    %p99 = scmp.eq.s32.totalorder %s15, 0
    %p100 = por %p98, %p99
    %p101 = scmp.ne.s32.totalorder %s93, %s95
    %p102 = scmp.eq.s32.totalorder %s20, 3
    %p103 = por %p101, %p102
    %p104 = scmp.ne.s32.totalorder %s95, %s96
    %p105 = scmp.eq.s32.totalorder %s20, 0
    %p106 = por %p104, %p105
    %p107 = scmp.ne.s32.totalorder %s95, %s96
    %p108 = scmp.eq.s32.totalorder %s21, 3
    %p109 = por %p107, %p108
    %p111 = scmp.ne.s32.totalorder %s96, %s110
    %p112 = scmp.eq.s32.totalorder %s21, 0
    %p113 = por %p111, %p112
    %s114 = ssub.s32 %s23, %s30
    %p115 = scmp.eq.s32.totalorder %s114, 0
    %s117 = sadd.s32 %s116, 1
    %s118 = scalar_select %p115, %s116, %s117
    %p121 = pneg %p115
    %p122 = scmp.eq.s32.totalorder %s15, 3
    %p123 = por %p121, %p122
    %p124 = scmp.ne.s32.totalorder %s116, %s119
    %p125 = scmp.eq.s32.totalorder %s15, 0
    %p126 = por %p124, %p125
    %p127 = scmp.ne.s32.totalorder %s116, %s119
    %p128 = scmp.eq.s32.totalorder %s20, 3
    %p129 = por %p127, %p128
    %p130 = scmp.ne.s32.totalorder %s119, %s120
    %p131 = scmp.eq.s32.totalorder %s20, 0
    %p132 = por %p130, %p131
    %p133 = scmp.ne.s32.totalorder %s119, %s120
    %p134 = scmp.eq.s32.totalorder %s21, 3
    %p135 = por %p133, %p134
    %p137 = scmp.ne.s32.totalorder %s120, %s136
    %p138 = scmp.eq.s32.totalorder %s21, 0
    %p139 = por %p137, %p138
    %s140 = ssub.s32 %s22, %s34
    %p141 = scmp.eq.s32.totalorder %s140, 0
    %s143 = sadd.s32 %s142, 1
    %s144 = scalar_select %p141, %s142, %s143
    %p147 = pneg %p141
    %p148 = scmp.eq.s32.totalorder %s15, 3
    %p149 = por %p147, %p148
    %p150 = scmp.ne.s32.totalorder %s142, %s145
    %p151 = scmp.eq.s32.totalorder %s15, 0
    %p152 = por %p150, %p151
    %p153 = scmp.ne.s32.totalorder %s142, %s145
    %p154 = scmp.eq.s32.totalorder %s20, 3
    %p155 = por %p153, %p154
    %p156 = scmp.ne.s32.totalorder %s145, %s146
    %p157 = scmp.eq.s32.totalorder %s20, 0
    %p158 = por %p156, %p157
    %p159 = scmp.ne.s32.totalorder %s145, %s146
    %p160 = scmp.eq.s32.totalorder %s21, 3
    %p161 = por %p159, %p160
    %p163 = scmp.ne.s32.totalorder %s146, %s162
    %p164 = scmp.eq.s32.totalorder %s21, 0
    %p165 = por %p163, %p164
    %s166 = ssub.s32 %s22, %s34
    %p167 = scmp.eq.s32.totalorder %s166, 0
    %s169 = sadd.s32 %s168, 1
    %s170 = scalar_select %p167, %s168, %s169
    %p173 = pneg %p167
    %p174 = scmp.eq.s32.totalorder %s15, 3
    %p175 = por %p173, %p174
    %p176 = scmp.ne.s32.totalorder %s168, %s171
    %p177 = scmp.eq.s32.totalorder %s15, 0
    %p178 = por %p176, %p177
    %p179 = scmp.ne.s32.totalorder %s168, %s171
    %p180 = scmp.eq.s32.totalorder %s20, 3
    %p181 = por %p179, %p180
    %p182 = scmp.ne.s32.totalorder %s171, %s172
    %p183 = scmp.eq.s32.totalorder %s20, 0
    %p184 = por %p182, %p183
    %p185 = scmp.ne.s32.totalorder %s171, %s172
    %p186 = scmp.eq.s32.totalorder %s21, 3
    %p187 = por %p185, %p186
    %p189 = scmp.ne.s32.totalorder %s172, %s188
    %p190 = scmp.eq.s32.totalorder %s21, 0
    %p191 = por %p189, %p190
    %s192 = ssub.s32 %s22, %s34
    %p193 = scmp.eq.s32.totalorder %s192, 0
    %s195 = sadd.s32 %s194, 1
    %s196 = scalar_select %p193, %s194, %s195
    %p199 = pneg %p193
    %p200 = scmp.eq.s32.totalorder %s15, 3
    %p201 = por %p199, %p200
    %p202 = scmp.ne.s32.totalorder %s194, %s197
    %p203 = scmp.eq.s32.totalorder %s15, 0
    %p204 = por %p202, %p203
    %p205 = scmp.ne.s32.totalorder %s194, %s197
    %p206 = scmp.eq.s32.totalorder %s20, 3
    %p207 = por %p205, %p206
    %p208 = scmp.ne.s32.totalorder %s197, %s198
    %p209 = scmp.eq.s32.totalorder %s20, 0
    %p210 = por %p208, %p209
    %p211 = scmp.ne.s32.totalorder %s197, %s198
    %p212 = scmp.eq.s32.totalorder %s21, 3
    %p213 = por %p211, %p212
    %p215 = scmp.ne.s32.totalorder %s198, %s214
    %p216 = scmp.eq.s32.totalorder %s21, 0
    %p217 = por %p215, %p216
    %s218 = ssub.s32 %s22, %s34
    %s219 = ssub.s32 %s23, %s30
    %s220 = sor.u32 %s218, %s219
    %p221 = scmp.eq.s32.totalorder %s220, 0
    %s223 = sadd.s32 %s222, 1
    %s224 = scalar_select %p221, %s222, %s223
    %p227 = pneg %p221
    %p228 = scmp.eq.s32.totalorder %s15, 3
    %p229 = por %p227, %p228
    %p230 = scmp.ne.s32.totalorder %s222, %s225
    %p231 = scmp.eq.s32.totalorder %s15, 0
    %p232 = por %p230, %p231
    %p233 = scmp.ne.s32.totalorder %s222, %s225
    %p234 = scmp.eq.s32.totalorder %s20, 3
    %p235 = por %p233, %p234
    %p236 = scmp.ne.s32.totalorder %s225, %s226
    %p237 = scmp.eq.s32.totalorder %s20, 0
    %p238 = por %p236, %p237
    %p239 = scmp.ne.s32.totalorder %s225, %s226
    %p240 = scmp.eq.s32.totalorder %s21, 3
    %p241 = por %p239, %p240
    %p243 = scmp.ne.s32.totalorder %s226, %s242
    %p244 = scmp.eq.s32.totalorder %s21, 0
    %p245 = por %p243, %p244
    %s246 = ssub.s32 %s22, %s34
    %s247 = ssub.s32 %s23, %s30
    %s248 = sor.u32 %s246, %s247
    %p249 = scmp.eq.s32.totalorder %s248, 0
    %s251 = sadd.s32 %s250, 1
    %s252 = scalar_select %p249, %s250, %s251
    %p255 = pneg %p249
    %p256 = scmp.eq.s32.totalorder %s15, 3
    %p257 = por %p255, %p256
    %p258 = scmp.ne.s32.totalorder %s250, %s253
    %p259 = scmp.eq.s32.totalorder %s15, 0
    %p260 = por %p258, %p259
    %p261 = scmp.ne.s32.totalorder %s250, %s253
    %p262 = scmp.eq.s32.totalorder %s20, 3
    %p263 = por %p261, %p262
    %p264 = scmp.ne.s32.totalorder %s253, %s254
    %p265 = scmp.eq.s32.totalorder %s20, 0
    %p266 = por %p264, %p265
    %p267 = scmp.ne.s32.totalorder %s253, %s254
    %p268 = scmp.eq.s32.totalorder %s21, 3
    %p269 = por %p267, %p268
    %p271 = scmp.ne.s32.totalorder %s254, %s270
    %p272 = scmp.eq.s32.totalorder %s21, 0
    %p273 = por %p271, %p272
    %p274 = scmp.le.s32.totalorder 1, %s15
    %p275 = scmp.lt.s32.totalorder %s15, 5
    %p276 = pnand %p274, %p275
    %p277 = pneg %p276
    // Predicated region
    $region9: #{a2net_forward.3} parent=5 // pred_check
      _
    $region10: #{a2net_forward.3} parent=5 // pred_check_branch
      %279 = sbr.rel (%p276) target = $region12
    $region11: #{a2net_forward.3} parent=5 // pred_region
      %s280 = ssub.s32 %s15, 1
      // Predicated region
      $region13: #{a2net_forward.3} parent=11 // pred_check
        %p281 = pneg %p106
      $region14: #{a2net_forward.3} parent=11 // pred_check_branch
        %283 = sbr.rel (%p281) target = $region16
      $region15: #{a2net_forward.3} parent=11 // pred_region
        _
      $region16: #{a2net_forward.3} parent=11 // pred_fallthru
        _
    $region12: #{a2net_forward.3} parent=5 // pred_fallthru
      _
    %p284 = scmp.lt.s32.totalorder %s15, 4
    // Predicated region
    $region17: #{a2net_forward.3} parent=5 // pred_check
      %p285 = pneg %p284
    $region18: #{a2net_forward.3} parent=5 // pred_check_branch
      %287 = sbr.rel (%p285) target = $region20
    $region19: #{a2net_forward.3} parent=5 // pred_region
      // Predicated region
      $region21: #{a2net_forward.3} parent=19 // pred_check
        %p288 = pneg %p49
      $region22: #{a2net_forward.3} parent=19 // pred_check_branch
        %290 = sbr.rel (%p288) target = $region24
      $region23: #{a2net_forward.3} parent=19 // pred_region
        %s291 = smul.u32 8, %s23
        %p292 = scmp.lt.s32.totalorder %s22, 1
        %s293 = scalar_select %p292, %s22, 1
        %p294 = scmp.lt.s32.totalorder %s291, 23
        %s295 = scalar_select %p294, %s291, 23
        %s296 = smul.addr %s293, 24
        %s297 = sadd.s32 %s295, %s296
        %s298 = smul.addr %s297, 4
        %s299 = scalar_lea.vmem %s0, %s298
        %s300 = smul.u32 8, %s23
      $region24: #{a2net_forward.3} parent=19 // pred_fallthru
        _
      // Predicated region
      $region25: #{a2net_forward.3} parent=19 // pred_check
        %p301 = pneg %p79
      $region26: #{a2net_forward.3} parent=19 // pred_check_branch
        %303 = sbr.rel (%p301) target = $region28
      $region27: #{a2net_forward.3} parent=19 // pred_region
        %s304 = sadd.s32 %s23, 1
        %s305 = smul.u32 8, %s304
        %p306 = scmp.lt.s32.totalorder %s22, 1
        %s307 = scalar_select %p306, %s22, 1
        %p308 = scmp.lt.s32.totalorder %s305, 23
        %s309 = scalar_select %p308, %s305, 23
        %s310 = smul.addr %s307, 24
        %s311 = sadd.s32 %s309, %s310
        %s312 = smul.addr %s311, 4
        %s313 = scalar_lea.vmem %s1, %s312
        %s314 = sadd.s32 %s23, 1
        %s315 = smul.u32 8, %s314
      $region28: #{a2net_forward.3} parent=19 // pred_fallthru
        _
      // Predicated region
      $region29: #{a2net_forward.3} parent=19 // pred_check
        %p316 = pneg %p126
      $region30: #{a2net_forward.3} parent=19 // pred_check_branch
        %318 = sbr.rel (%p316) target = $region32
      $region31: #{a2net_forward.3} parent=19 // pred_region
        %s319 = smul.u32 8, %s23
        %p320 = scmp.lt.s32.totalorder %s319, 15
        %s321 = scalar_select %p320, %s319, 15
        %s322 = scalar_lea.vmem %s3, %s321
        %s323 = smul.u32 8, %s23
      $region32: #{a2net_forward.3} parent=19 // pred_fallthru
        _
      // Predicated region
      $region33: #{a2net_forward.3} parent=19 // pred_check
        %p324 = pneg %p152
      $region34: #{a2net_forward.3} parent=19 // pred_check_branch
        %326 = sbr.rel (%p324) target = $region36
      $region35: #{a2net_forward.3} parent=19 // pred_region
        %p327 = scmp.lt.s32.totalorder %s22, 1
        %s328 = scalar_select %p327, %s22, 1
        %s329 = smul.addr %s328, 8
        %s330 = scalar_lea.vmem %s4, %s329
      $region36: #{a2net_forward.3} parent=19 // pred_fallthru
        _
      // Predicated region
      $region37: #{a2net_forward.3} parent=19 // pred_check
        %p331 = pneg %p178
      $region38: #{a2net_forward.3} parent=19 // pred_check_branch
        %333 = sbr.rel (%p331) target = $region40
      $region39: #{a2net_forward.3} parent=19 // pred_region
        %p334 = scmp.lt.s32.totalorder %s22, 1
        %s335 = scalar_select %p334, %s22, 1
        %s336 = smul.addr %s335, 8
        %s337 = scalar_lea.vmem %s5, %s336
      $region40: #{a2net_forward.3} parent=19 // pred_fallthru
        _
      // Predicated region
      $region41: #{a2net_forward.3} parent=19 // pred_check
        %p338 = pneg %p204
      $region42: #{a2net_forward.3} parent=19 // pred_check_branch
        %340 = sbr.rel (%p338) target = $region44
      $region43: #{a2net_forward.3} parent=19 // pred_region
        %p341 = scmp.lt.s32.totalorder %s22, 1
        %s342 = scalar_select %p341, %s22, 1
        %s343 = smul.addr %s342, 8
        %s344 = scalar_lea.vmem %s6, %s343
      $region44: #{a2net_forward.3} parent=19 // pred_fallthru
        _
    $region20: #{a2net_forward.3} parent=5 // pred_fallthru
      _
    %p345 = scmp.le.s32.totalorder 1, %s15
    %p346 = scmp.lt.s32.totalorder %s15, 5
    %p347 = pnand %p345, %p346
    %p348 = pneg %p347
    // Predicated region
    $region45: #{a2net_forward.3} parent=5 // pred_check
      _
    $region46: #{a2net_forward.3} parent=5 // pred_check_branch
      %350 = sbr.rel (%p347) target = $region48
    $region47: #{a2net_forward.3} parent=5 // pred_region
      %s351 = ssub.s32 %s15, 1
      %s352 = smul.u32 8, %s25
      %p353 = scmp.lt.s32.totalorder %s24, 1
      %s354 = scalar_select %p353, %s24, 1
      %p355 = scmp.lt.s32.totalorder %s352, 23
      %s356 = scalar_select %p355, %s352, 23
      %s357 = smul.addr %s354, 24
      %s358 = sadd.s32 %s356, %s357
      %s359 = smul.addr %s358, 4
      %s360 = scalar_lea.vmem %s0, %s359
      %p361 = pneg %p55
      %p362 = pneg %p52
      %s363 = sadd.s32 %s25, 1
      %s364 = smul.u32 8, %s363
      %p365 = scmp.lt.s32.totalorder %s24, 1
      %s366 = scalar_select %p365, %s24, 1
      %p367 = scmp.lt.s32.totalorder %s364, 23
      %s368 = scalar_select %p367, %s364, 23
      %s369 = smul.addr %s366, 24
      %s370 = sadd.s32 %s368, %s369
      %s371 = smul.addr %s370, 4
      %s372 = scalar_lea.vmem %s1, %s371
      %p373 = pneg %p85
      %p374 = pneg %p82
      %p375 = pneg %p106
      %p376 = pneg %p103
      %s377 = smul.u32 8, %s25
      %p378 = scmp.lt.s32.totalorder %s377, 15
      %s379 = scalar_select %p378, %s377, 15
      %s380 = scalar_lea.vmem %s3, %s379
      %p381 = pneg %p132
      %p382 = pneg %p129
      %p383 = scmp.lt.s32.totalorder %s24, 1
      %s384 = scalar_select %p383, %s24, 1
      %s385 = smul.addr %s384, 8
      %s386 = scalar_lea.vmem %s4, %s385
      %p387 = pneg %p158
      %p388 = pneg %p155
      %p389 = scmp.lt.s32.totalorder %s24, 1
      %s390 = scalar_select %p389, %s24, 1
      %s391 = smul.addr %s390, 8
      %s392 = scalar_lea.vmem %s5, %s391
      %p393 = pneg %p184
      %p394 = pneg %p181
      %p395 = scmp.lt.s32.totalorder %s24, 1
      %s396 = scalar_select %p395, %s24, 1
      %s397 = smul.addr %s396, 8
      %s398 = scalar_lea.vmem %s6, %s397
      %p399 = pneg %p210
      %p400 = pneg %p207
      %p401 = pneg %p238
      %p402 = pneg %p235
      %s403 = smul.u32 8, %s25
      %p404 = scmp.lt.s32.totalorder %s24, 1
      %s405 = scalar_select %p404, %s24, 1
      %p406 = scmp.lt.s32.totalorder %s403, 15
      %s407 = scalar_select %p406, %s403, 15
      %s408 = smul.addr %s405, 16
      %s409 = sadd.s32 %s407, %s408
      %s410 = smul.addr %s409, 4
      %s411 = scalar_lea.vmem %s7, %s410
      %p412 = pneg %p266
      %p413 = pneg %p263
      %s414 = smul.u32 8, %s25
      %p415 = scmp.lt.s32.totalorder %s24, 1
      %s416 = scalar_select %p415, %s24, 1
      %p417 = scmp.lt.s32.totalorder %s414, 15
      %s418 = scalar_select %p417, %s414, 15
      %s419 = smul.addr %s416, 16
      %s420 = sadd.s32 %s418, %s419
      %s421 = smul.addr %s420, 4
      %s422 = scalar_lea.vmem %s8, %s421
      %s423 = smul.u32 8, %s25
      %p424 = scmp.lt.s32.totalorder %s24, 1
      %s425 = scalar_select %p424, %s24, 1
      %p426 = scmp.lt.s32.totalorder %s423, 23
      %s427 = scalar_select %p426, %s423, 23
      %s428 = smul.addr %s425, 24
      %s429 = sadd.s32 %s427, %s428
      %s430 = smul.addr %s429, 4
      %s431 = scalar_lea.vmem %s0, %s430
      %s432 = smul.u32 8, %s25
      %s433 = sadd.s32 %s25, 1
      %s434 = smul.u32 8, %s433
      %p435 = scmp.lt.s32.totalorder %s24, 1
      %s436 = scalar_select %p435, %s24, 1
      %p437 = scmp.lt.s32.totalorder %s434, 23
      %s438 = scalar_select %p437, %s434, 23
      %s439 = smul.addr %s436, 24
      %s440 = sadd.s32 %s438, %s439
      %s441 = smul.addr %s440, 4
      %s442 = scalar_lea.vmem %s1, %s441
      %s443 = sadd.s32 %s25, 1
      %s444 = smul.u32 8, %s443
      %s445 = smul.u32 8, %s25
      %p446 = scmp.lt.s32.totalorder %s445, 15
      %s447 = scalar_select %p446, %s445, 15
      %s448 = scalar_lea.vmem %s3, %s447
      %s449 = smul.u32 8, %s25
      %p450 = scmp.lt.s32.totalorder %s24, 1
      %s451 = scalar_select %p450, %s24, 1
      %s452 = smul.addr %s451, 8
      %s453 = scalar_lea.vmem %s4, %s452
      %p454 = scmp.lt.s32.totalorder %s24, 1
      %s455 = scalar_select %p454, %s24, 1
      %s456 = smul.addr %s455, 8
      %s457 = scalar_lea.vmem %s5, %s456
      %p458 = scmp.lt.s32.totalorder %s24, 1
      %s459 = scalar_select %p458, %s24, 1
      %s460 = smul.addr %s459, 8
      %s461 = scalar_lea.vmem %s6, %s460
      %s462 = smul.u32 8, %s25
      %p463 = scmp.lt.s32.totalorder %s24, 1
      %s464 = scalar_select %p463, %s24, 1
      %p465 = scmp.lt.s32.totalorder %s462, 15
      %s466 = scalar_select %p465, %s462, 15
      %s467 = smul.addr %s464, 16
      %s468 = sadd.s32 %s466, %s467
      %s469 = smul.addr %s468, 4
      %s470 = scalar_lea.vmem %s7, %s469
      %s471 = smul.u32 8, %s25
      %s472 = smul.u32 8, %s25
      %p473 = scmp.lt.s32.totalorder %s24, 1
      %s474 = scalar_select %p473, %s24, 1
      %p475 = scmp.lt.s32.totalorder %s472, 15
      %s476 = scalar_select %p475, %s472, 15
      %s477 = smul.addr %s474, 16
      %s478 = sadd.s32 %s476, %s477
      %s479 = smul.addr %s478, 4
      %s480 = scalar_lea.vmem %s8, %s479
      %s481 = smul.u32 8, %s25
      %v483 = vld [vmem:[%s431] sm:$0x77]
      %v484 = vld [vmem:[%s431 + $0x8] sm:$0x77]
      %v485 = vld [vmem:[%s431 + $0x10] sm:$0x77]
      %v486 = vld [vmem:[%s431 + $0x18] sm:$0x77]
      %v487 = vld [vmem:[%s442] sm:$0x77]
      %v488 = vld [vmem:[%s442 + $0x8] sm:$0x77]
      %v489 = vld [vmem:[%s442 + $0x10] sm:$0x77]
      %v494 = vunpack.c.l.b16 %v483
      %v495 = vunpack.c.h.b16 %v483
      %v496 = vunpack.c.l.b16 %v484
      %v497 = vunpack.c.h.b16 %v484
      %v498 = vunpack.c.l.b16 %v485
      %v499 = vunpack.c.h.b16 %v485
      %v500 = vunpack.c.l.b16 %v486
      %v501 = vunpack.c.h.b16 %v486
      %v502 = vpack.c.b16 %v494, %v494
      %v503 = vpack.c.b16 %v495, %v495
      %v504 = vpack.c.b16 %v496, %v496
      %v505 = vpack.c.b16 %v497, %v497
      %v506 = vpack.c.b16 %v498, %v498
      %v507 = vpack.c.b16 %v499, %v499
      %v508 = vpack.c.b16 %v500, %v500
      %v509 = vpack.c.b16 %v501, %v501
      %v513 = vunpack.c.l.b16 %v487
      %v514 = vunpack.c.h.b16 %v487
      %v515 = vunpack.c.l.b16 %v488
      %v516 = vunpack.c.h.b16 %v488
      %v517 = vunpack.c.l.b16 %v489
      %v518 = vpack.c.b16 %v513, %v513
      %v519 = vpack.c.b16 %v514, %v514
      %v520 = vpack.c.b16 %v515, %v515
      %v521 = vpack.c.b16 %v516, %v516
      %v522 = vpack.c.b16 %v517, %v517
      %v523 = vld [vmem:[%s2] sm:$0xf]
      %v524 = vld [vmem:[%s2 + $0x4] sm:$0xf]
      %s525 = scalar_lea.vmem %s2, 8
      %v526 = vld [vmem:[%s525] sm:$0xf]
      %v527 = vld [vmem:[%s525 + $0x4] sm:$0xf]
      %v530 = vunpack.c.l.b16 %v526
      %v531 = vunpack.c.l.b16 %v527
      %v532 = vpack.c.b16 %v531, %v530
      %533 = vrot.lane.b32.xlu0 %v502, 127
      %v534 = vpop.permute.xlu0 %533
      %535 = vrot.lane.b32.xlu0 %v503, 127
      %v536 = vpop.permute.xlu0 %535
      %537 = vrot.lane.b32.xlu0 %v504, 127
      %v538 = vpop.permute.xlu0 %537
      %539 = vrot.lane.b32.xlu0 %v505, 127
      %v540 = vpop.permute.xlu0 %539
      %541 = vrot.lane.b32.xlu0 %v506, 127
      %v542 = vpop.permute.xlu0 %541
      %543 = vrot.lane.b32.xlu0 %v507, 127
      %v544 = vpop.permute.xlu0 %543
      %545 = vrot.lane.b32.xlu0 %v508, 127
      %v546 = vpop.permute.xlu0 %545
      %547 = vrot.lane.b32.xlu0 %v509, 127
      %v548 = vpop.permute.xlu0 %547
      %549 = vrot.lane.b32.xlu0 %v518, 127
      %v550 = vpop.permute.xlu0 %549
      %vm551 = vcmask 1039360
      %v552 = vsel %vm551, %v534, %v536
      %v553 = vsel %vm551, %v536, %v538
      %v554 = vsel %vm551, %v538, %v540
      %v555 = vsel %vm551, %v540, %v542
      %v556 = vsel %vm551, %v542, %v544
      %v557 = vsel %vm551, %v544, %v546
      %v558 = vsel %vm551, %v546, %v548
      %v559 = vsel %vm551, %v548, %v550
      %vm560 = vcmask 39936
      %v562 = vsel %vm560, %v532, 0
      %vm564 = vcmask 1041408
      %vm565 = vcmask 1042432
      %v566 = vsel %vm564, 4294967295, 65535
      %v567 = vsel %vm565, %v566, 0
      %v569 = vand.u32 %v552, %v567
      %v572 = vand.u32 %v553, %v567
      %v575 = vand.u32 %v554, %v567
      %v578 = vand.u32 %v555, %v567
      %v581 = vand.u32 %v556, %v567
      %v584 = vand.u32 %v557, %v567
      %v587 = vand.u32 %v558, %v567
      %v590 = vand.u32 %v559, %v567
      %592 = vmatpush.bf16.msra.mxu0 0
      %593 = vmatpush.bf16.msra.mxu0 0
      %594 = vmatpush.bf16.msra.mxu0 0
      %595 = vmatpush.bf16.msra.mxu0 0
      %596 = vmatpush.bf16.msra.mxu0 0
      %597 = vmatpush.bf16.msra.mxu0 0
      %598 = vmatpush.bf16.msra.mxu0 0
      %599 = vmatpush.bf16.msra.mxu0 %v569
      %600 = vmatmul.bf16.gmra.mxu0 %v562
      %v601 = vpop.f32.mrf.mxu0
      %v602 = vadd.f32 0.0, %v601
      %v603 = vpop.f32.mrf.mxu0
      %v604 = vadd.f32 0.0, %v603
      %605 = vdwg.mxu0
      %606 = vmatpush.bf16.msra.mxu0 0
      %607 = vmatpush.bf16.msra.mxu0 0
      %608 = vmatpush.bf16.msra.mxu0 0
      %609 = vmatpush.bf16.msra.mxu0 0
      %610 = vmatpush.bf16.msra.mxu0 0
      %611 = vmatpush.bf16.msra.mxu0 0
      %612 = vmatpush.bf16.msra.mxu0 0
      %613 = vmatpush.bf16.msra.mxu0 %v572
      %614 = vmatmul.bf16.gmra.mxu0 %v562
      %v615 = vpop.f32.mrf.mxu0
      %v616 = vadd.f32 0.0, %v615
      %v617 = vpop.f32.mrf.mxu0
      %v618 = vadd.f32 0.0, %v617
      %619 = vdwg.mxu0
      %620 = vmatpush.bf16.msra.mxu0 0
      %621 = vmatpush.bf16.msra.mxu0 0
      %622 = vmatpush.bf16.msra.mxu0 0
      %623 = vmatpush.bf16.msra.mxu0 0
      %624 = vmatpush.bf16.msra.mxu0 0
      %625 = vmatpush.bf16.msra.mxu0 0
      %626 = vmatpush.bf16.msra.mxu0 0
      %627 = vmatpush.bf16.msra.mxu0 %v575
      %628 = vmatmul.bf16.gmra.mxu0 %v562
      %v629 = vpop.f32.mrf.mxu0
      %v630 = vadd.f32 0.0, %v629
      %v631 = vpop.f32.mrf.mxu0
      %v632 = vadd.f32 0.0, %v631
      %633 = vdwg.mxu0
      %634 = vmatpush.bf16.msra.mxu0 0
      %635 = vmatpush.bf16.msra.mxu0 0
      %636 = vmatpush.bf16.msra.mxu0 0
      %637 = vmatpush.bf16.msra.mxu0 0
      %638 = vmatpush.bf16.msra.mxu0 0
      %639 = vmatpush.bf16.msra.mxu0 0
      %640 = vmatpush.bf16.msra.mxu0 0
      %641 = vmatpush.bf16.msra.mxu0 %v578
      %642 = vmatmul.bf16.gmra.mxu0 %v562
      %v643 = vpop.f32.mrf.mxu0
      %v644 = vadd.f32 0.0, %v643
      %v645 = vpop.f32.mrf.mxu0
      %v646 = vadd.f32 0.0, %v645
      %647 = vdwg.mxu0
      %648 = vmatpush.bf16.msra.mxu0 0
      %649 = vmatpush.bf16.msra.mxu0 0
      %650 = vmatpush.bf16.msra.mxu0 0
      %651 = vmatpush.bf16.msra.mxu0 0
      %652 = vmatpush.bf16.msra.mxu0 0
      %653 = vmatpush.bf16.msra.mxu0 0
      %654 = vmatpush.bf16.msra.mxu0 0
      %655 = vmatpush.bf16.msra.mxu0 %v581
      %656 = vmatmul.bf16.gmra.mxu0 %v562
      %v657 = vpop.f32.mrf.mxu0
      %v658 = vadd.f32 0.0, %v657
      %v659 = vpop.f32.mrf.mxu0
      %v660 = vadd.f32 0.0, %v659
      %661 = vdwg.mxu0
      %662 = vmatpush.bf16.msra.mxu0 0
      %663 = vmatpush.bf16.msra.mxu0 0
      %664 = vmatpush.bf16.msra.mxu0 0
      %665 = vmatpush.bf16.msra.mxu0 0
      %666 = vmatpush.bf16.msra.mxu0 0
      %667 = vmatpush.bf16.msra.mxu0 0
      %668 = vmatpush.bf16.msra.mxu0 0
      %669 = vmatpush.bf16.msra.mxu0 %v584
      %670 = vmatmul.bf16.gmra.mxu0 %v562
      %v671 = vpop.f32.mrf.mxu0
      %v672 = vadd.f32 0.0, %v671
      %v673 = vpop.f32.mrf.mxu0
      %v674 = vadd.f32 0.0, %v673
      %675 = vdwg.mxu0
      %676 = vmatpush.bf16.msra.mxu0 0
      %677 = vmatpush.bf16.msra.mxu0 0
      %678 = vmatpush.bf16.msra.mxu0 0
      %679 = vmatpush.bf16.msra.mxu0 0
      %680 = vmatpush.bf16.msra.mxu0 0
      %681 = vmatpush.bf16.msra.mxu0 0
      %682 = vmatpush.bf16.msra.mxu0 0
      %683 = vmatpush.bf16.msra.mxu0 %v587
      %684 = vmatmul.bf16.gmra.mxu0 %v562
      %v685 = vpop.f32.mrf.mxu0
      %v686 = vadd.f32 0.0, %v685
      %v687 = vpop.f32.mrf.mxu0
      %v688 = vadd.f32 0.0, %v687
      %689 = vdwg.mxu0
      %690 = vmatpush.bf16.msra.mxu0 0
      %691 = vmatpush.bf16.msra.mxu0 0
      %692 = vmatpush.bf16.msra.mxu0 0
      %693 = vmatpush.bf16.msra.mxu0 0
      %694 = vmatpush.bf16.msra.mxu0 0
      %695 = vmatpush.bf16.msra.mxu0 0
      %696 = vmatpush.bf16.msra.mxu0 0
      %697 = vmatpush.bf16.msra.mxu0 %v590
      %698 = vmatmul.bf16.gmra.mxu0 %v562
      %v699 = vpop.f32.mrf.mxu0
      %v700 = vadd.f32 0.0, %v699
      %v701 = vpop.f32.mrf.mxu0
      %v702 = vadd.f32 0.0, %v701
      %703 = vdwg.mxu0
      %v706 = vunpack.c.l.b16 %v523
      %v707 = vunpack.c.l.b16 %v524
      %v708 = vpack.c.b16 %v707, %v706
      %v710 = vsel %vm560, %v708, 0
      %v713 = vand.u32 %v502, %v567
      %v716 = vand.u32 %v503, %v567
      %v719 = vand.u32 %v504, %v567
      %v722 = vand.u32 %v505, %v567
      %v725 = vand.u32 %v506, %v567
      %v728 = vand.u32 %v507, %v567
      %v731 = vand.u32 %v508, %v567
      %v734 = vand.u32 %v509, %v567
      %736 = vmatpush.bf16.msra.mxu0 0
      %737 = vmatpush.bf16.msra.mxu0 0
      %738 = vmatpush.bf16.msra.mxu0 0
      %739 = vmatpush.bf16.msra.mxu0 0
      %740 = vmatpush.bf16.msra.mxu0 0
      %741 = vmatpush.bf16.msra.mxu0 0
      %742 = vmatpush.bf16.msra.mxu0 0
      %743 = vmatpush.bf16.msra.mxu0 %v713
      %744 = vmatmul.bf16.gmra.mxu0 %v710
      %v745 = vpop.f32.mrf.mxu0
      %v746 = vadd.f32 %v602, %v745
      %v747 = vpop.f32.mrf.mxu0
      %v748 = vadd.f32 %v604, %v747
      %749 = vdwg.mxu0
      %750 = vmatpush.bf16.msra.mxu0 0
      %751 = vmatpush.bf16.msra.mxu0 0
      %752 = vmatpush.bf16.msra.mxu0 0
      %753 = vmatpush.bf16.msra.mxu0 0
      %754 = vmatpush.bf16.msra.mxu0 0
      %755 = vmatpush.bf16.msra.mxu0 0
      %756 = vmatpush.bf16.msra.mxu0 0
      %757 = vmatpush.bf16.msra.mxu0 %v716
      %758 = vmatmul.bf16.gmra.mxu0 %v710
      %v759 = vpop.f32.mrf.mxu0
      %v760 = vadd.f32 %v616, %v759
      %v761 = vpop.f32.mrf.mxu0
      %v762 = vadd.f32 %v618, %v761
      %763 = vdwg.mxu0
      %764 = vmatpush.bf16.msra.mxu0 0
      %765 = vmatpush.bf16.msra.mxu0 0
      %766 = vmatpush.bf16.msra.mxu0 0
      %767 = vmatpush.bf16.msra.mxu0 0
      %768 = vmatpush.bf16.msra.mxu0 0
      %769 = vmatpush.bf16.msra.mxu0 0
      %770 = vmatpush.bf16.msra.mxu0 0
      %771 = vmatpush.bf16.msra.mxu0 %v719
      %772 = vmatmul.bf16.gmra.mxu0 %v710
      %v773 = vpop.f32.mrf.mxu0
      %v774 = vadd.f32 %v630, %v773
      %v775 = vpop.f32.mrf.mxu0
      %v776 = vadd.f32 %v632, %v775
      %777 = vdwg.mxu0
      %778 = vmatpush.bf16.msra.mxu0 0
      %779 = vmatpush.bf16.msra.mxu0 0
      %780 = vmatpush.bf16.msra.mxu0 0
      %781 = vmatpush.bf16.msra.mxu0 0
      %782 = vmatpush.bf16.msra.mxu0 0
      %783 = vmatpush.bf16.msra.mxu0 0
      %784 = vmatpush.bf16.msra.mxu0 0
      %785 = vmatpush.bf16.msra.mxu0 %v722
      %786 = vmatmul.bf16.gmra.mxu0 %v710
      %v787 = vpop.f32.mrf.mxu0
      %v788 = vadd.f32 %v644, %v787
      %v789 = vpop.f32.mrf.mxu0
      %v790 = vadd.f32 %v646, %v789
      %791 = vdwg.mxu0
      %792 = vmatpush.bf16.msra.mxu0 0
      %793 = vmatpush.bf16.msra.mxu0 0
      %794 = vmatpush.bf16.msra.mxu0 0
      %795 = vmatpush.bf16.msra.mxu0 0
      %796 = vmatpush.bf16.msra.mxu0 0
      %797 = vmatpush.bf16.msra.mxu0 0
      %798 = vmatpush.bf16.msra.mxu0 0
      %799 = vmatpush.bf16.msra.mxu0 %v725
      %800 = vmatmul.bf16.gmra.mxu0 %v710
      %v801 = vpop.f32.mrf.mxu0
      %v802 = vadd.f32 %v658, %v801
      %v803 = vpop.f32.mrf.mxu0
      %v804 = vadd.f32 %v660, %v803
      %805 = vdwg.mxu0
      %806 = vmatpush.bf16.msra.mxu0 0
      %807 = vmatpush.bf16.msra.mxu0 0
      %808 = vmatpush.bf16.msra.mxu0 0
      %809 = vmatpush.bf16.msra.mxu0 0
      %810 = vmatpush.bf16.msra.mxu0 0
      %811 = vmatpush.bf16.msra.mxu0 0
      %812 = vmatpush.bf16.msra.mxu0 0
      %813 = vmatpush.bf16.msra.mxu0 %v728
      %814 = vmatmul.bf16.gmra.mxu0 %v710
      %v815 = vpop.f32.mrf.mxu0
      %v816 = vadd.f32 %v672, %v815
      %v817 = vpop.f32.mrf.mxu0
      %v818 = vadd.f32 %v674, %v817
      %819 = vdwg.mxu0
      %820 = vmatpush.bf16.msra.mxu0 0
      %821 = vmatpush.bf16.msra.mxu0 0
      %822 = vmatpush.bf16.msra.mxu0 0
      %823 = vmatpush.bf16.msra.mxu0 0
      %824 = vmatpush.bf16.msra.mxu0 0
      %825 = vmatpush.bf16.msra.mxu0 0
      %826 = vmatpush.bf16.msra.mxu0 0
      %827 = vmatpush.bf16.msra.mxu0 %v731
      %828 = vmatmul.bf16.gmra.mxu0 %v710
      %v829 = vpop.f32.mrf.mxu0
      %v830 = vadd.f32 %v686, %v829
      %v831 = vpop.f32.mrf.mxu0
      %v832 = vadd.f32 %v688, %v831
      %833 = vdwg.mxu0
      %834 = vmatpush.bf16.msra.mxu0 0
      %835 = vmatpush.bf16.msra.mxu0 0
      %836 = vmatpush.bf16.msra.mxu0 0
      %837 = vmatpush.bf16.msra.mxu0 0
      %838 = vmatpush.bf16.msra.mxu0 0
      %839 = vmatpush.bf16.msra.mxu0 0
      %840 = vmatpush.bf16.msra.mxu0 0
      %841 = vmatpush.bf16.msra.mxu0 %v734
      %842 = vmatmul.bf16.gmra.mxu0 %v710
      %v843 = vpop.f32.mrf.mxu0
      %v844 = vadd.f32 %v700, %v843
      %v845 = vpop.f32.mrf.mxu0
      %v846 = vadd.f32 %v702, %v845
      %847 = vdwg.mxu0
      %s848 = scalar_lea.vmem %s2, 16
      %v849 = vld [vmem:[%s848] sm:$0xf]
      %v850 = vld [vmem:[%s848 + $0x4] sm:$0xf]
      %v853 = vunpack.c.l.b16 %v849
      %v854 = vunpack.c.l.b16 %v850
      %v855 = vpack.c.b16 %v854, %v853
      %856 = vrot.lane.b32.xlu0 %v502, 126
      %v857 = vpop.permute.xlu0 %856
      %858 = vrot.lane.b32.xlu0 %v503, 126
      %v859 = vpop.permute.xlu0 %858
      %860 = vrot.lane.b32.xlu0 %v504, 126
      %v861 = vpop.permute.xlu0 %860
      %862 = vrot.lane.b32.xlu0 %v505, 126
      %v863 = vpop.permute.xlu0 %862
      %864 = vrot.lane.b32.xlu0 %v506, 126
      %v865 = vpop.permute.xlu0 %864
      %866 = vrot.lane.b32.xlu0 %v507, 126
      %v867 = vpop.permute.xlu0 %866
      %868 = vrot.lane.b32.xlu0 %v508, 126
      %v869 = vpop.permute.xlu0 %868
      %870 = vrot.lane.b32.xlu0 %v509, 126
      %v871 = vpop.permute.xlu0 %870
      %872 = vrot.lane.b32.xlu0 %v518, 126
      %v873 = vpop.permute.xlu0 %872
      %vm874 = vcmask 1031168
      %v875 = vsel %vm874, %v857, %v859
      %v876 = vsel %vm874, %v859, %v861
      %v877 = vsel %vm874, %v861, %v863
      %v878 = vsel %vm874, %v863, %v865
      %v879 = vsel %vm874, %v865, %v867
      %v880 = vsel %vm874, %v867, %v869
      %v881 = vsel %vm874, %v869, %v871
      %v882 = vsel %vm874, %v871, %v873
      %v884 = vsel %vm560, %v855, 0
      %v887 = vand.u32 %v875, %v567
      %v890 = vand.u32 %v876, %v567
      %v893 = vand.u32 %v877, %v567
      %v896 = vand.u32 %v878, %v567
      %v899 = vand.u32 %v879, %v567
      %v902 = vand.u32 %v880, %v567
      %v905 = vand.u32 %v881, %v567
      %v908 = vand.u32 %v882, %v567
      %910 = vmatpush.bf16.msra.mxu0 0
      %911 = vmatpush.bf16.msra.mxu0 0
      %912 = vmatpush.bf16.msra.mxu0 0
      %913 = vmatpush.bf16.msra.mxu0 0
      %914 = vmatpush.bf16.msra.mxu0 0
      %915 = vmatpush.bf16.msra.mxu0 0
      %916 = vmatpush.bf16.msra.mxu0 0
      %917 = vmatpush.bf16.msra.mxu0 %v887
      %918 = vmatmul.bf16.gmra.mxu0 %v884
      %v919 = vpop.f32.mrf.mxu0
      %v920 = vadd.f32 0.0, %v919
      %v921 = vpop.f32.mrf.mxu0
      %v922 = vadd.f32 0.0, %v921
      %923 = vdwg.mxu0
      %924 = vmatpush.bf16.msra.mxu0 0
      %925 = vmatpush.bf16.msra.mxu0 0
      %926 = vmatpush.bf16.msra.mxu0 0
      %927 = vmatpush.bf16.msra.mxu0 0
      %928 = vmatpush.bf16.msra.mxu0 0
      %929 = vmatpush.bf16.msra.mxu0 0
      %930 = vmatpush.bf16.msra.mxu0 0
      %931 = vmatpush.bf16.msra.mxu0 %v890
      %932 = vmatmul.bf16.gmra.mxu0 %v884
      %v933 = vpop.f32.mrf.mxu0
      %v934 = vadd.f32 0.0, %v933
      %v935 = vpop.f32.mrf.mxu0
      %v936 = vadd.f32 0.0, %v935
      %937 = vdwg.mxu0
      %938 = vmatpush.bf16.msra.mxu0 0
      %939 = vmatpush.bf16.msra.mxu0 0
      %940 = vmatpush.bf16.msra.mxu0 0
      %941 = vmatpush.bf16.msra.mxu0 0
      %942 = vmatpush.bf16.msra.mxu0 0
      %943 = vmatpush.bf16.msra.mxu0 0
      %944 = vmatpush.bf16.msra.mxu0 0
      %945 = vmatpush.bf16.msra.mxu0 %v893
      %946 = vmatmul.bf16.gmra.mxu0 %v884
      %v947 = vpop.f32.mrf.mxu0
      %v948 = vadd.f32 0.0, %v947
      %v949 = vpop.f32.mrf.mxu0
      %v950 = vadd.f32 0.0, %v949
      %951 = vdwg.mxu0
      %952 = vmatpush.bf16.msra.mxu0 0
      %953 = vmatpush.bf16.msra.mxu0 0
      %954 = vmatpush.bf16.msra.mxu0 0
      %955 = vmatpush.bf16.msra.mxu0 0
      %956 = vmatpush.bf16.msra.mxu0 0
      %957 = vmatpush.bf16.msra.mxu0 0
      %958 = vmatpush.bf16.msra.mxu0 0
      %959 = vmatpush.bf16.msra.mxu0 %v896
      %960 = vmatmul.bf16.gmra.mxu0 %v884
      %v961 = vpop.f32.mrf.mxu0
      %v962 = vadd.f32 0.0, %v961
      %v963 = vpop.f32.mrf.mxu0
      %v964 = vadd.f32 0.0, %v963
      %965 = vdwg.mxu0
      %966 = vmatpush.bf16.msra.mxu0 0
      %967 = vmatpush.bf16.msra.mxu0 0
      %968 = vmatpush.bf16.msra.mxu0 0
      %969 = vmatpush.bf16.msra.mxu0 0
      %970 = vmatpush.bf16.msra.mxu0 0
      %971 = vmatpush.bf16.msra.mxu0 0
      %972 = vmatpush.bf16.msra.mxu0 0
      %973 = vmatpush.bf16.msra.mxu0 %v899
      %974 = vmatmul.bf16.gmra.mxu0 %v884
      %v975 = vpop.f32.mrf.mxu0
      %v976 = vadd.f32 0.0, %v975
      %v977 = vpop.f32.mrf.mxu0
      %v978 = vadd.f32 0.0, %v977
      %979 = vdwg.mxu0
      %980 = vmatpush.bf16.msra.mxu0 0
      %981 = vmatpush.bf16.msra.mxu0 0
      %982 = vmatpush.bf16.msra.mxu0 0
      %983 = vmatpush.bf16.msra.mxu0 0
      %984 = vmatpush.bf16.msra.mxu0 0
      %985 = vmatpush.bf16.msra.mxu0 0
      %986 = vmatpush.bf16.msra.mxu0 0
      %987 = vmatpush.bf16.msra.mxu0 %v902
      %988 = vmatmul.bf16.gmra.mxu0 %v884
      %v989 = vpop.f32.mrf.mxu0
      %v990 = vadd.f32 0.0, %v989
      %v991 = vpop.f32.mrf.mxu0
      %v992 = vadd.f32 0.0, %v991
      %993 = vdwg.mxu0
      %994 = vmatpush.bf16.msra.mxu0 0
      %995 = vmatpush.bf16.msra.mxu0 0
      %996 = vmatpush.bf16.msra.mxu0 0
      %997 = vmatpush.bf16.msra.mxu0 0
      %998 = vmatpush.bf16.msra.mxu0 0
      %999 = vmatpush.bf16.msra.mxu0 0
      %1000 = vmatpush.bf16.msra.mxu0 0
      %1001 = vmatpush.bf16.msra.mxu0 %v905
      %1002 = vmatmul.bf16.gmra.mxu0 %v884
      %v1003 = vpop.f32.mrf.mxu0
      %v1004 = vadd.f32 0.0, %v1003
      %v1005 = vpop.f32.mrf.mxu0
      %v1006 = vadd.f32 0.0, %v1005
      %1007 = vdwg.mxu0
      %1008 = vmatpush.bf16.msra.mxu0 0
      %1009 = vmatpush.bf16.msra.mxu0 0
      %1010 = vmatpush.bf16.msra.mxu0 0
      %1011 = vmatpush.bf16.msra.mxu0 0
      %1012 = vmatpush.bf16.msra.mxu0 0
      %1013 = vmatpush.bf16.msra.mxu0 0
      %1014 = vmatpush.bf16.msra.mxu0 0
      %1015 = vmatpush.bf16.msra.mxu0 %v908
      %1016 = vmatmul.bf16.gmra.mxu0 %v884
      %v1017 = vpop.f32.mrf.mxu0
      %v1018 = vadd.f32 0.0, %v1017
      %v1019 = vpop.f32.mrf.mxu0
      %v1020 = vadd.f32 0.0, %v1019
      %1021 = vdwg.mxu0
      %v1022 = vadd.f32 %v746, %v920
      %v1023 = vadd.f32 %v760, %v934
      %v1024 = vadd.f32 %v774, %v948
      %v1025 = vadd.f32 %v788, %v962
      %v1026 = vadd.f32 %v802, %v976
      %v1027 = vadd.f32 %v816, %v990
      %v1028 = vadd.f32 %v830, %v1004
      %v1029 = vadd.f32 %v844, %v1018
      %v1030 = vadd.f32 %v748, %v922
      %v1031 = vadd.f32 %v762, %v936
      %v1032 = vadd.f32 %v776, %v950
      %v1033 = vadd.f32 %v790, %v964
      %v1034 = vadd.f32 %v804, %v978
      %v1035 = vadd.f32 %v818, %v992
      %v1036 = vadd.f32 %v832, %v1006
      %v1037 = vadd.f32 %v846, %v1020
      %s1038 = scalar_lea.vmem %s2, 24
      %v1039 = vld [vmem:[%s1038] sm:$0xf]
      %v1040 = vld [vmem:[%s1038 + $0x4] sm:$0xf]
      %v1043 = vunpack.c.l.b16 %v1039
      %v1044 = vunpack.c.l.b16 %v1040
      %v1045 = vpack.c.b16 %v1044, %v1043
      %1046 = vrot.lane.b32.xlu0 %v502, 112
      %v1047 = vpop.permute.xlu0 %1046
      %1048 = vrot.lane.b32.xlu0 %v503, 112
      %v1049 = vpop.permute.xlu0 %1048
      %1050 = vrot.lane.b32.xlu0 %v504, 112
      %v1051 = vpop.permute.xlu0 %1050
      %1052 = vrot.lane.b32.xlu0 %v505, 112
      %v1053 = vpop.permute.xlu0 %1052
      %1054 = vrot.lane.b32.xlu0 %v506, 112
      %v1055 = vpop.permute.xlu0 %1054
      %1056 = vrot.lane.b32.xlu0 %v507, 112
      %v1057 = vpop.permute.xlu0 %1056
      %1058 = vrot.lane.b32.xlu0 %v508, 112
      %v1059 = vpop.permute.xlu0 %1058
      %1060 = vrot.lane.b32.xlu0 %v509, 112
      %v1061 = vpop.permute.xlu0 %1060
      %1062 = vrot.lane.b32.xlu0 %v518, 112
      %v1063 = vpop.permute.xlu0 %1062
      %vm1064 = vcmask 916480
      %v1065 = vsel %vm1064, %v1047, %v1049
      %v1066 = vsel %vm1064, %v1049, %v1051
      %v1067 = vsel %vm1064, %v1051, %v1053
      %v1068 = vsel %vm1064, %v1053, %v1055
      %v1069 = vsel %vm1064, %v1055, %v1057
      %v1070 = vsel %vm1064, %v1057, %v1059
      %v1071 = vsel %vm1064, %v1059, %v1061
      %v1072 = vsel %vm1064, %v1061, %v1063
      %v1074 = vsel %vm560, %v1045, 0
      %v1077 = vand.u32 %v1065, %v567
      %v1080 = vand.u32 %v1066, %v567
      %v1083 = vand.u32 %v1067, %v567
      %v1086 = vand.u32 %v1068, %v567
      %v1089 = vand.u32 %v1069, %v567
      %v1092 = vand.u32 %v1070, %v567
      %v1095 = vand.u32 %v1071, %v567
      %v1098 = vand.u32 %v1072, %v567
      %1100 = vmatpush.bf16.msra.mxu0 0
      %1101 = vmatpush.bf16.msra.mxu0 0
      %1102 = vmatpush.bf16.msra.mxu0 0
      %1103 = vmatpush.bf16.msra.mxu0 0
      %1104 = vmatpush.bf16.msra.mxu0 0
      %1105 = vmatpush.bf16.msra.mxu0 0
      %1106 = vmatpush.bf16.msra.mxu0 0
      %1107 = vmatpush.bf16.msra.mxu0 %v1077
      %1108 = vmatmul.bf16.gmra.mxu0 %v1074
      %v1109 = vpop.f32.mrf.mxu0
      %v1110 = vadd.f32 0.0, %v1109
      %v1111 = vpop.f32.mrf.mxu0
      %v1112 = vadd.f32 0.0, %v1111
      %1113 = vdwg.mxu0
      %1114 = vmatpush.bf16.msra.mxu0 0
      %1115 = vmatpush.bf16.msra.mxu0 0
      %1116 = vmatpush.bf16.msra.mxu0 0
      %1117 = vmatpush.bf16.msra.mxu0 0
      %1118 = vmatpush.bf16.msra.mxu0 0
      %1119 = vmatpush.bf16.msra.mxu0 0
      %1120 = vmatpush.bf16.msra.mxu0 0
      %1121 = vmatpush.bf16.msra.mxu0 %v1080
      %1122 = vmatmul.bf16.gmra.mxu0 %v1074
      %v1123 = vpop.f32.mrf.mxu0
      %v1124 = vadd.f32 0.0, %v1123
      %v1125 = vpop.f32.mrf.mxu0
      %v1126 = vadd.f32 0.0, %v1125
      %1127 = vdwg.mxu0
      %1128 = vmatpush.bf16.msra.mxu0 0
      %1129 = vmatpush.bf16.msra.mxu0 0
      %1130 = vmatpush.bf16.msra.mxu0 0
      %1131 = vmatpush.bf16.msra.mxu0 0
      %1132 = vmatpush.bf16.msra.mxu0 0
      %1133 = vmatpush.bf16.msra.mxu0 0
      %1134 = vmatpush.bf16.msra.mxu0 0
      %1135 = vmatpush.bf16.msra.mxu0 %v1083
      %1136 = vmatmul.bf16.gmra.mxu0 %v1074
      %v1137 = vpop.f32.mrf.mxu0
      %v1138 = vadd.f32 0.0, %v1137
      %v1139 = vpop.f32.mrf.mxu0
      %v1140 = vadd.f32 0.0, %v1139
      %1141 = vdwg.mxu0
      %1142 = vmatpush.bf16.msra.mxu0 0
      %1143 = vmatpush.bf16.msra.mxu0 0
      %1144 = vmatpush.bf16.msra.mxu0 0
      %1145 = vmatpush.bf16.msra.mxu0 0
      %1146 = vmatpush.bf16.msra.mxu0 0
      %1147 = vmatpush.bf16.msra.mxu0 0
      %1148 = vmatpush.bf16.msra.mxu0 0
      %1149 = vmatpush.bf16.msra.mxu0 %v1086
      %1150 = vmatmul.bf16.gmra.mxu0 %v1074
      %v1151 = vpop.f32.mrf.mxu0
      %v1152 = vadd.f32 0.0, %v1151
      %v1153 = vpop.f32.mrf.mxu0
      %v1154 = vadd.f32 0.0, %v1153
      %1155 = vdwg.mxu0
      %1156 = vmatpush.bf16.msra.mxu0 0
      %1157 = vmatpush.bf16.msra.mxu0 0
      %1158 = vmatpush.bf16.msra.mxu0 0
      %1159 = vmatpush.bf16.msra.mxu0 0
      %1160 = vmatpush.bf16.msra.mxu0 0
      %1161 = vmatpush.bf16.msra.mxu0 0
      %1162 = vmatpush.bf16.msra.mxu0 0
      %1163 = vmatpush.bf16.msra.mxu0 %v1089
      %1164 = vmatmul.bf16.gmra.mxu0 %v1074
      %v1165 = vpop.f32.mrf.mxu0
      %v1166 = vadd.f32 0.0, %v1165
      %v1167 = vpop.f32.mrf.mxu0
      %v1168 = vadd.f32 0.0, %v1167
      %1169 = vdwg.mxu0
      %1170 = vmatpush.bf16.msra.mxu0 0
      %1171 = vmatpush.bf16.msra.mxu0 0
      %1172 = vmatpush.bf16.msra.mxu0 0
      %1173 = vmatpush.bf16.msra.mxu0 0
      %1174 = vmatpush.bf16.msra.mxu0 0
      %1175 = vmatpush.bf16.msra.mxu0 0
      %1176 = vmatpush.bf16.msra.mxu0 0
      %1177 = vmatpush.bf16.msra.mxu0 %v1092
      %1178 = vmatmul.bf16.gmra.mxu0 %v1074
      %v1179 = vpop.f32.mrf.mxu0
      %v1180 = vadd.f32 0.0, %v1179
      %v1181 = vpop.f32.mrf.mxu0
      %v1182 = vadd.f32 0.0, %v1181
      %1183 = vdwg.mxu0
      %1184 = vmatpush.bf16.msra.mxu0 0
      %1185 = vmatpush.bf16.msra.mxu0 0
      %1186 = vmatpush.bf16.msra.mxu0 0
      %1187 = vmatpush.bf16.msra.mxu0 0
      %1188 = vmatpush.bf16.msra.mxu0 0
      %1189 = vmatpush.bf16.msra.mxu0 0
      %1190 = vmatpush.bf16.msra.mxu0 0
      %1191 = vmatpush.bf16.msra.mxu0 %v1095
      %1192 = vmatmul.bf16.gmra.mxu0 %v1074
      %v1193 = vpop.f32.mrf.mxu0
      %v1194 = vadd.f32 0.0, %v1193
      %v1195 = vpop.f32.mrf.mxu0
      %v1196 = vadd.f32 0.0, %v1195
      %1197 = vdwg.mxu0
      %1198 = vmatpush.bf16.msra.mxu0 0
      %1199 = vmatpush.bf16.msra.mxu0 0
      %1200 = vmatpush.bf16.msra.mxu0 0
      %1201 = vmatpush.bf16.msra.mxu0 0
      %1202 = vmatpush.bf16.msra.mxu0 0
      %1203 = vmatpush.bf16.msra.mxu0 0
      %1204 = vmatpush.bf16.msra.mxu0 0
      %1205 = vmatpush.bf16.msra.mxu0 %v1098
      %1206 = vmatmul.bf16.gmra.mxu0 %v1074
      %v1207 = vpop.f32.mrf.mxu0
      %v1208 = vadd.f32 0.0, %v1207
      %v1209 = vpop.f32.mrf.mxu0
      %v1210 = vadd.f32 0.0, %v1209
      %1211 = vdwg.mxu0
      %v1212 = vadd.f32 %v1022, %v1110
      %v1213 = vadd.f32 %v1023, %v1124
      %v1214 = vadd.f32 %v1024, %v1138
      %v1215 = vadd.f32 %v1025, %v1152
      %v1216 = vadd.f32 %v1026, %v1166
      %v1217 = vadd.f32 %v1027, %v1180
      %v1218 = vadd.f32 %v1028, %v1194
      %v1219 = vadd.f32 %v1029, %v1208
      %v1220 = vadd.f32 %v1030, %v1112
      %v1221 = vadd.f32 %v1031, %v1126
      %v1222 = vadd.f32 %v1032, %v1140
      %v1223 = vadd.f32 %v1033, %v1154
      %v1224 = vadd.f32 %v1034, %v1168
      %v1225 = vadd.f32 %v1035, %v1182
      %v1226 = vadd.f32 %v1036, %v1196
      %v1227 = vadd.f32 %v1037, %v1210
      %s1228 = scalar_lea.vmem %s2, 32
      %v1229 = vld [vmem:[%s1228] sm:$0xf]
      %v1230 = vld [vmem:[%s1228 + $0x4] sm:$0xf]
      %v1233 = vunpack.c.l.b16 %v1229
      %v1234 = vunpack.c.l.b16 %v1230
      %v1235 = vpack.c.b16 %v1234, %v1233
      %1236 = vrot.lane.b32.xlu0 %v502, 111
      %v1237 = vpop.permute.xlu0 %1236
      %1238 = vrot.lane.b32.xlu0 %v503, 111
      %v1239 = vpop.permute.xlu0 %1238
      %1240 = vrot.lane.b32.xlu0 %v504, 111
      %v1241 = vpop.permute.xlu0 %1240
      %1242 = vrot.lane.b32.xlu0 %v505, 111
      %v1243 = vpop.permute.xlu0 %1242
      %1244 = vrot.lane.b32.xlu0 %v506, 111
      %v1245 = vpop.permute.xlu0 %1244
      %1246 = vrot.lane.b32.xlu0 %v507, 111
      %v1247 = vpop.permute.xlu0 %1246
      %1248 = vrot.lane.b32.xlu0 %v508, 111
      %v1249 = vpop.permute.xlu0 %1248
      %1250 = vrot.lane.b32.xlu0 %v509, 111
      %v1251 = vpop.permute.xlu0 %1250
      %1252 = vrot.lane.b32.xlu0 %v518, 111
      %v1253 = vpop.permute.xlu0 %1252
      %vm1254 = vcmask 908288
      %v1255 = vsel %vm1254, %v1237, %v1239
      %v1256 = vsel %vm1254, %v1239, %v1241
      %v1257 = vsel %vm1254, %v1241, %v1243
      %v1258 = vsel %vm1254, %v1243, %v1245
      %v1259 = vsel %vm1254, %v1245, %v1247
      %v1260 = vsel %vm1254, %v1247, %v1249
      %v1261 = vsel %vm1254, %v1249, %v1251
      %v1262 = vsel %vm1254, %v1251, %v1253
      %v1264 = vsel %vm560, %v1235, 0
      %v1267 = vand.u32 %v1255, %v567
      %v1270 = vand.u32 %v1256, %v567
      %v1273 = vand.u32 %v1257, %v567
      %v1276 = vand.u32 %v1258, %v567
      %v1279 = vand.u32 %v1259, %v567
      %v1282 = vand.u32 %v1260, %v567
      %v1285 = vand.u32 %v1261, %v567
      %v1288 = vand.u32 %v1262, %v567
      %1290 = vmatpush.bf16.msra.mxu0 0
      %1291 = vmatpush.bf16.msra.mxu0 0
      %1292 = vmatpush.bf16.msra.mxu0 0
      %1293 = vmatpush.bf16.msra.mxu0 0
      %1294 = vmatpush.bf16.msra.mxu0 0
      %1295 = vmatpush.bf16.msra.mxu0 0
      %1296 = vmatpush.bf16.msra.mxu0 0
      %1297 = vmatpush.bf16.msra.mxu0 %v1267
      %1298 = vmatmul.bf16.gmra.mxu0 %v1264
      %v1299 = vpop.f32.mrf.mxu0
      %v1300 = vadd.f32 0.0, %v1299
      %v1301 = vpop.f32.mrf.mxu0
      %v1302 = vadd.f32 0.0, %v1301
      %1303 = vdwg.mxu0
      %1304 = vmatpush.bf16.msra.mxu0 0
      %1305 = vmatpush.bf16.msra.mxu0 0
      %1306 = vmatpush.bf16.msra.mxu0 0
      %1307 = vmatpush.bf16.msra.mxu0 0
      %1308 = vmatpush.bf16.msra.mxu0 0
      %1309 = vmatpush.bf16.msra.mxu0 0
      %1310 = vmatpush.bf16.msra.mxu0 0
      %1311 = vmatpush.bf16.msra.mxu0 %v1270
      %1312 = vmatmul.bf16.gmra.mxu0 %v1264
      %v1313 = vpop.f32.mrf.mxu0
      %v1314 = vadd.f32 0.0, %v1313
      %v1315 = vpop.f32.mrf.mxu0
      %v1316 = vadd.f32 0.0, %v1315
      %1317 = vdwg.mxu0
      %1318 = vmatpush.bf16.msra.mxu0 0
      %1319 = vmatpush.bf16.msra.mxu0 0
      %1320 = vmatpush.bf16.msra.mxu0 0
      %1321 = vmatpush.bf16.msra.mxu0 0
      %1322 = vmatpush.bf16.msra.mxu0 0
      %1323 = vmatpush.bf16.msra.mxu0 0
      %1324 = vmatpush.bf16.msra.mxu0 0
      %1325 = vmatpush.bf16.msra.mxu0 %v1273
      %1326 = vmatmul.bf16.gmra.mxu0 %v1264
      %v1327 = vpop.f32.mrf.mxu0
      %v1328 = vadd.f32 0.0, %v1327
      %v1329 = vpop.f32.mrf.mxu0
      %v1330 = vadd.f32 0.0, %v1329
      %1331 = vdwg.mxu0
      %1332 = vmatpush.bf16.msra.mxu0 0
      %1333 = vmatpush.bf16.msra.mxu0 0
      %1334 = vmatpush.bf16.msra.mxu0 0
      %1335 = vmatpush.bf16.msra.mxu0 0
      %1336 = vmatpush.bf16.msra.mxu0 0
      %1337 = vmatpush.bf16.msra.mxu0 0
      %1338 = vmatpush.bf16.msra.mxu0 0
      %1339 = vmatpush.bf16.msra.mxu0 %v1276
      %1340 = vmatmul.bf16.gmra.mxu0 %v1264
      %v1341 = vpop.f32.mrf.mxu0
      %v1342 = vadd.f32 0.0, %v1341
      %v1343 = vpop.f32.mrf.mxu0
      %v1344 = vadd.f32 0.0, %v1343
      %1345 = vdwg.mxu0
      %1346 = vmatpush.bf16.msra.mxu0 0
      %1347 = vmatpush.bf16.msra.mxu0 0
      %1348 = vmatpush.bf16.msra.mxu0 0
      %1349 = vmatpush.bf16.msra.mxu0 0
      %1350 = vmatpush.bf16.msra.mxu0 0
      %1351 = vmatpush.bf16.msra.mxu0 0
      %1352 = vmatpush.bf16.msra.mxu0 0
      %1353 = vmatpush.bf16.msra.mxu0 %v1279
      %1354 = vmatmul.bf16.gmra.mxu0 %v1264
      %v1355 = vpop.f32.mrf.mxu0
      %v1356 = vadd.f32 0.0, %v1355
      %v1357 = vpop.f32.mrf.mxu0
      %v1358 = vadd.f32 0.0, %v1357
      %1359 = vdwg.mxu0
      %1360 = vmatpush.bf16.msra.mxu0 0
      %1361 = vmatpush.bf16.msra.mxu0 0
      %1362 = vmatpush.bf16.msra.mxu0 0
      %1363 = vmatpush.bf16.msra.mxu0 0
      %1364 = vmatpush.bf16.msra.mxu0 0
      %1365 = vmatpush.bf16.msra.mxu0 0
      %1366 = vmatpush.bf16.msra.mxu0 0
      %1367 = vmatpush.bf16.msra.mxu0 %v1282
      %1368 = vmatmul.bf16.gmra.mxu0 %v1264
      %v1369 = vpop.f32.mrf.mxu0
      %v1370 = vadd.f32 0.0, %v1369
      %v1371 = vpop.f32.mrf.mxu0
      %v1372 = vadd.f32 0.0, %v1371
      %1373 = vdwg.mxu0
      %1374 = vmatpush.bf16.msra.mxu0 0
      %1375 = vmatpush.bf16.msra.mxu0 0
      %1376 = vmatpush.bf16.msra.mxu0 0
      %1377 = vmatpush.bf16.msra.mxu0 0
      %1378 = vmatpush.bf16.msra.mxu0 0
      %1379 = vmatpush.bf16.msra.mxu0 0
      %1380 = vmatpush.bf16.msra.mxu0 0
      %1381 = vmatpush.bf16.msra.mxu0 %v1285
      %1382 = vmatmul.bf16.gmra.mxu0 %v1264
      %v1383 = vpop.f32.mrf.mxu0
      %v1384 = vadd.f32 0.0, %v1383
      %v1385 = vpop.f32.mrf.mxu0
      %v1386 = vadd.f32 0.0, %v1385
      %1387 = vdwg.mxu0
      %1388 = vmatpush.bf16.msra.mxu0 0
      %1389 = vmatpush.bf16.msra.mxu0 0
      %1390 = vmatpush.bf16.msra.mxu0 0
      %1391 = vmatpush.bf16.msra.mxu0 0
      %1392 = vmatpush.bf16.msra.mxu0 0
      %1393 = vmatpush.bf16.msra.mxu0 0
      %1394 = vmatpush.bf16.msra.mxu0 0
      %1395 = vmatpush.bf16.msra.mxu0 %v1288
      %1396 = vmatmul.bf16.gmra.mxu0 %v1264
      %v1397 = vpop.f32.mrf.mxu0
      %v1398 = vadd.f32 0.0, %v1397
      %v1399 = vpop.f32.mrf.mxu0
      %v1400 = vadd.f32 0.0, %v1399
      %1401 = vdwg.mxu0
      %v1402 = vadd.f32 %v1212, %v1300
      %v1403 = vadd.f32 %v1213, %v1314
      %v1404 = vadd.f32 %v1214, %v1328
      %v1405 = vadd.f32 %v1215, %v1342
      %v1406 = vadd.f32 %v1216, %v1356
      %v1407 = vadd.f32 %v1217, %v1370
      %v1408 = vadd.f32 %v1218, %v1384
      %v1409 = vadd.f32 %v1219, %v1398
      %v1410 = vadd.f32 %v1220, %v1302
      %v1411 = vadd.f32 %v1221, %v1316
      %v1412 = vadd.f32 %v1222, %v1330
      %v1413 = vadd.f32 %v1223, %v1344
      %v1414 = vadd.f32 %v1224, %v1358
      %v1415 = vadd.f32 %v1225, %v1372
      %v1416 = vadd.f32 %v1226, %v1386
      %v1417 = vadd.f32 %v1227, %v1400
      %s1418 = scalar_lea.vmem %s2, 40
      %v1419 = vld [vmem:[%s1418] sm:$0xf]
      %v1420 = vld [vmem:[%s1418 + $0x4] sm:$0xf]
      %v1423 = vunpack.c.l.b16 %v1419
      %v1424 = vunpack.c.l.b16 %v1420
      %v1425 = vpack.c.b16 %v1424, %v1423
      %1426 = vrot.lane.b32.xlu0 %v502, 110
      %v1427 = vpop.permute.xlu0 %1426
      %1428 = vrot.lane.b32.xlu0 %v503, 110
      %v1429 = vpop.permute.xlu0 %1428
      %1430 = vrot.lane.b32.xlu0 %v504, 110
      %v1431 = vpop.permute.xlu0 %1430
      %1432 = vrot.lane.b32.xlu0 %v505, 110
      %v1433 = vpop.permute.xlu0 %1432
      %1434 = vrot.lane.b32.xlu0 %v506, 110
      %v1435 = vpop.permute.xlu0 %1434
      %1436 = vrot.lane.b32.xlu0 %v507, 110
      %v1437 = vpop.permute.xlu0 %1436
      %1438 = vrot.lane.b32.xlu0 %v508, 110
      %v1439 = vpop.permute.xlu0 %1438
      %1440 = vrot.lane.b32.xlu0 %v509, 110
      %v1441 = vpop.permute.xlu0 %1440
      %1442 = vrot.lane.b32.xlu0 %v518, 110
      %v1443 = vpop.permute.xlu0 %1442
      %vm1444 = vcmask 900096
      %v1445 = vsel %vm1444, %v1427, %v1429
      %v1446 = vsel %vm1444, %v1429, %v1431
      %v1447 = vsel %vm1444, %v1431, %v1433
      %v1448 = vsel %vm1444, %v1433, %v1435
      %v1449 = vsel %vm1444, %v1435, %v1437
      %v1450 = vsel %vm1444, %v1437, %v1439
      %v1451 = vsel %vm1444, %v1439, %v1441
      %v1452 = vsel %vm1444, %v1441, %v1443
      %v1454 = vsel %vm560, %v1425, 0
      %v1457 = vand.u32 %v1445, %v567
      %v1460 = vand.u32 %v1446, %v567
      %v1463 = vand.u32 %v1447, %v567
      %v1466 = vand.u32 %v1448, %v567
      %v1469 = vand.u32 %v1449, %v567
      %v1472 = vand.u32 %v1450, %v567
      %v1475 = vand.u32 %v1451, %v567
      %v1478 = vand.u32 %v1452, %v567
      %1480 = vmatpush.bf16.msra.mxu0 0
      %1481 = vmatpush.bf16.msra.mxu0 0
      %1482 = vmatpush.bf16.msra.mxu0 0
      %1483 = vmatpush.bf16.msra.mxu0 0
      %1484 = vmatpush.bf16.msra.mxu0 0
      %1485 = vmatpush.bf16.msra.mxu0 0
      %1486 = vmatpush.bf16.msra.mxu0 0
      %1487 = vmatpush.bf16.msra.mxu0 %v1457
      %1488 = vmatmul.bf16.gmra.mxu0 %v1454
      %v1489 = vpop.f32.mrf.mxu0
      %v1490 = vadd.f32 0.0, %v1489
      %v1491 = vpop.f32.mrf.mxu0
      %v1492 = vadd.f32 0.0, %v1491
      %1493 = vdwg.mxu0
      %1494 = vmatpush.bf16.msra.mxu0 0
      %1495 = vmatpush.bf16.msra.mxu0 0
      %1496 = vmatpush.bf16.msra.mxu0 0
      %1497 = vmatpush.bf16.msra.mxu0 0
      %1498 = vmatpush.bf16.msra.mxu0 0
      %1499 = vmatpush.bf16.msra.mxu0 0
      %1500 = vmatpush.bf16.msra.mxu0 0
      %1501 = vmatpush.bf16.msra.mxu0 %v1460
      %1502 = vmatmul.bf16.gmra.mxu0 %v1454
      %v1503 = vpop.f32.mrf.mxu0
      %v1504 = vadd.f32 0.0, %v1503
      %v1505 = vpop.f32.mrf.mxu0
      %v1506 = vadd.f32 0.0, %v1505
      %1507 = vdwg.mxu0
      %1508 = vmatpush.bf16.msra.mxu0 0
      %1509 = vmatpush.bf16.msra.mxu0 0
      %1510 = vmatpush.bf16.msra.mxu0 0
      %1511 = vmatpush.bf16.msra.mxu0 0
      %1512 = vmatpush.bf16.msra.mxu0 0
      %1513 = vmatpush.bf16.msra.mxu0 0
      %1514 = vmatpush.bf16.msra.mxu0 0
      %1515 = vmatpush.bf16.msra.mxu0 %v1463
      %1516 = vmatmul.bf16.gmra.mxu0 %v1454
      %v1517 = vpop.f32.mrf.mxu0
      %v1518 = vadd.f32 0.0, %v1517
      %v1519 = vpop.f32.mrf.mxu0
      %v1520 = vadd.f32 0.0, %v1519
      %1521 = vdwg.mxu0
      %1522 = vmatpush.bf16.msra.mxu0 0
      %1523 = vmatpush.bf16.msra.mxu0 0
      %1524 = vmatpush.bf16.msra.mxu0 0
      %1525 = vmatpush.bf16.msra.mxu0 0
      %1526 = vmatpush.bf16.msra.mxu0 0
      %1527 = vmatpush.bf16.msra.mxu0 0
      %1528 = vmatpush.bf16.msra.mxu0 0
      %1529 = vmatpush.bf16.msra.mxu0 %v1466
      %1530 = vmatmul.bf16.gmra.mxu0 %v1454
      %v1531 = vpop.f32.mrf.mxu0
      %v1532 = vadd.f32 0.0, %v1531
      %v1533 = vpop.f32.mrf.mxu0
      %v1534 = vadd.f32 0.0, %v1533
      %1535 = vdwg.mxu0
      %1536 = vmatpush.bf16.msra.mxu0 0
      %1537 = vmatpush.bf16.msra.mxu0 0
      %1538 = vmatpush.bf16.msra.mxu0 0
      %1539 = vmatpush.bf16.msra.mxu0 0
      %1540 = vmatpush.bf16.msra.mxu0 0
      %1541 = vmatpush.bf16.msra.mxu0 0
      %1542 = vmatpush.bf16.msra.mxu0 0
      %1543 = vmatpush.bf16.msra.mxu0 %v1469
      %1544 = vmatmul.bf16.gmra.mxu0 %v1454
      %v1545 = vpop.f32.mrf.mxu0
      %v1546 = vadd.f32 0.0, %v1545
      %v1547 = vpop.f32.mrf.mxu0
      %v1548 = vadd.f32 0.0, %v1547
      %1549 = vdwg.mxu0
      %1550 = vmatpush.bf16.msra.mxu0 0
      %1551 = vmatpush.bf16.msra.mxu0 0
      %1552 = vmatpush.bf16.msra.mxu0 0
      %1553 = vmatpush.bf16.msra.mxu0 0
      %1554 = vmatpush.bf16.msra.mxu0 0
      %1555 = vmatpush.bf16.msra.mxu0 0
      %1556 = vmatpush.bf16.msra.mxu0 0
      %1557 = vmatpush.bf16.msra.mxu0 %v1472
      %1558 = vmatmul.bf16.gmra.mxu0 %v1454
      %v1559 = vpop.f32.mrf.mxu0
      %v1560 = vadd.f32 0.0, %v1559
      %v1561 = vpop.f32.mrf.mxu0
      %v1562 = vadd.f32 0.0, %v1561
      %1563 = vdwg.mxu0
      %1564 = vmatpush.bf16.msra.mxu0 0
      %1565 = vmatpush.bf16.msra.mxu0 0
      %1566 = vmatpush.bf16.msra.mxu0 0
      %1567 = vmatpush.bf16.msra.mxu0 0
      %1568 = vmatpush.bf16.msra.mxu0 0
      %1569 = vmatpush.bf16.msra.mxu0 0
      %1570 = vmatpush.bf16.msra.mxu0 0
      %1571 = vmatpush.bf16.msra.mxu0 %v1475
      %1572 = vmatmul.bf16.gmra.mxu0 %v1454
      %v1573 = vpop.f32.mrf.mxu0
      %v1574 = vadd.f32 0.0, %v1573
      %v1575 = vpop.f32.mrf.mxu0
      %v1576 = vadd.f32 0.0, %v1575
      %1577 = vdwg.mxu0
      %1578 = vmatpush.bf16.msra.mxu0 0
      %1579 = vmatpush.bf16.msra.mxu0 0
      %1580 = vmatpush.bf16.msra.mxu0 0
      %1581 = vmatpush.bf16.msra.mxu0 0
      %1582 = vmatpush.bf16.msra.mxu0 0
      %1583 = vmatpush.bf16.msra.mxu0 0
      %1584 = vmatpush.bf16.msra.mxu0 0
      %1585 = vmatpush.bf16.msra.mxu0 %v1478
      %1586 = vmatmul.bf16.gmra.mxu0 %v1454
      %v1587 = vpop.f32.mrf.mxu0
      %v1588 = vadd.f32 0.0, %v1587
      %v1589 = vpop.f32.mrf.mxu0
      %v1590 = vadd.f32 0.0, %v1589
      %1591 = vdwg.mxu0
      %v1592 = vadd.f32 %v1402, %v1490
      %v1593 = vadd.f32 %v1403, %v1504
      %v1594 = vadd.f32 %v1404, %v1518
      %v1595 = vadd.f32 %v1405, %v1532
      %v1596 = vadd.f32 %v1406, %v1546
      %v1597 = vadd.f32 %v1407, %v1560
      %v1598 = vadd.f32 %v1408, %v1574
      %v1599 = vadd.f32 %v1409, %v1588
      %v1600 = vadd.f32 %v1410, %v1492
      %v1601 = vadd.f32 %v1411, %v1506
      %v1602 = vadd.f32 %v1412, %v1520
      %v1603 = vadd.f32 %v1413, %v1534
      %v1604 = vadd.f32 %v1414, %v1548
      %v1605 = vadd.f32 %v1415, %v1562
      %v1606 = vadd.f32 %v1416, %v1576
      %v1607 = vadd.f32 %v1417, %v1590
      %s1608 = scalar_lea.vmem %s2, 48
      %v1609 = vld [vmem:[%s1608] sm:$0xf]
      %v1610 = vld [vmem:[%s1608 + $0x4] sm:$0xf]
      %v1613 = vunpack.c.l.b16 %v1609
      %v1614 = vunpack.c.l.b16 %v1610
      %v1615 = vpack.c.b16 %v1614, %v1613
      %1616 = vrot.lane.b32.xlu0 %v502, 96
      %v1617 = vpop.permute.xlu0 %1616
      %1618 = vrot.lane.b32.xlu0 %v503, 96
      %v1619 = vpop.permute.xlu0 %1618
      %1620 = vrot.lane.b32.xlu0 %v504, 96
      %v1621 = vpop.permute.xlu0 %1620
      %1622 = vrot.lane.b32.xlu0 %v505, 96
      %v1623 = vpop.permute.xlu0 %1622
      %1624 = vrot.lane.b32.xlu0 %v506, 96
      %v1625 = vpop.permute.xlu0 %1624
      %1626 = vrot.lane.b32.xlu0 %v507, 96
      %v1627 = vpop.permute.xlu0 %1626
      %1628 = vrot.lane.b32.xlu0 %v508, 96
      %v1629 = vpop.permute.xlu0 %1628
      %1630 = vrot.lane.b32.xlu0 %v509, 96
      %v1631 = vpop.permute.xlu0 %1630
      %1632 = vrot.lane.b32.xlu0 %v518, 96
      %v1633 = vpop.permute.xlu0 %1632
      %vm1634 = vcmask 785408
      %v1635 = vsel %vm1634, %v1617, %v1619
      %v1636 = vsel %vm1634, %v1619, %v1621
      %v1637 = vsel %vm1634, %v1621, %v1623
      %v1638 = vsel %vm1634, %v1623, %v1625
      %v1639 = vsel %vm1634, %v1625, %v1627
      %v1640 = vsel %vm1634, %v1627, %v1629
      %v1641 = vsel %vm1634, %v1629, %v1631
      %v1642 = vsel %vm1634, %v1631, %v1633
      %v1644 = vsel %vm560, %v1615, 0
      %v1647 = vand.u32 %v1635, %v567
      %v1650 = vand.u32 %v1636, %v567
      %v1653 = vand.u32 %v1637, %v567
      %v1656 = vand.u32 %v1638, %v567
      %v1659 = vand.u32 %v1639, %v567
      %v1662 = vand.u32 %v1640, %v567
      %v1665 = vand.u32 %v1641, %v567
      %v1668 = vand.u32 %v1642, %v567
      %1670 = vmatpush.bf16.msra.mxu0 0
      %1671 = vmatpush.bf16.msra.mxu0 0
      %1672 = vmatpush.bf16.msra.mxu0 0
      %1673 = vmatpush.bf16.msra.mxu0 0
      %1674 = vmatpush.bf16.msra.mxu0 0
      %1675 = vmatpush.bf16.msra.mxu0 0
      %1676 = vmatpush.bf16.msra.mxu0 0
      %1677 = vmatpush.bf16.msra.mxu0 %v1647
      %1678 = vmatmul.bf16.gmra.mxu0 %v1644
      %v1679 = vpop.f32.mrf.mxu0
      %v1680 = vadd.f32 0.0, %v1679
      %v1681 = vpop.f32.mrf.mxu0
      %v1682 = vadd.f32 0.0, %v1681
      %1683 = vdwg.mxu0
      %1684 = vmatpush.bf16.msra.mxu0 0
      %1685 = vmatpush.bf16.msra.mxu0 0
      %1686 = vmatpush.bf16.msra.mxu0 0
      %1687 = vmatpush.bf16.msra.mxu0 0
      %1688 = vmatpush.bf16.msra.mxu0 0
      %1689 = vmatpush.bf16.msra.mxu0 0
      %1690 = vmatpush.bf16.msra.mxu0 0
      %1691 = vmatpush.bf16.msra.mxu0 %v1650
      %1692 = vmatmul.bf16.gmra.mxu0 %v1644
      %v1693 = vpop.f32.mrf.mxu0
      %v1694 = vadd.f32 0.0, %v1693
      %v1695 = vpop.f32.mrf.mxu0
      %v1696 = vadd.f32 0.0, %v1695
      %1697 = vdwg.mxu0
      %1698 = vmatpush.bf16.msra.mxu0 0
      %1699 = vmatpush.bf16.msra.mxu0 0
      %1700 = vmatpush.bf16.msra.mxu0 0
      %1701 = vmatpush.bf16.msra.mxu0 0
      %1702 = vmatpush.bf16.msra.mxu0 0
      %1703 = vmatpush.bf16.msra.mxu0 0
      %1704 = vmatpush.bf16.msra.mxu0 0
      %1705 = vmatpush.bf16.msra.mxu0 %v1653
      %1706 = vmatmul.bf16.gmra.mxu0 %v1644
      %v1707 = vpop.f32.mrf.mxu0
      %v1708 = vadd.f32 0.0, %v1707
      %v1709 = vpop.f32.mrf.mxu0
      %v1710 = vadd.f32 0.0, %v1709
      %1711 = vdwg.mxu0
      %1712 = vmatpush.bf16.msra.mxu0 0
      %1713 = vmatpush.bf16.msra.mxu0 0
      %1714 = vmatpush.bf16.msra.mxu0 0
      %1715 = vmatpush.bf16.msra.mxu0 0
      %1716 = vmatpush.bf16.msra.mxu0 0
      %1717 = vmatpush.bf16.msra.mxu0 0
      %1718 = vmatpush.bf16.msra.mxu0 0
      %1719 = vmatpush.bf16.msra.mxu0 %v1656
      %1720 = vmatmul.bf16.gmra.mxu0 %v1644
      %v1721 = vpop.f32.mrf.mxu0
      %v1722 = vadd.f32 0.0, %v1721
      %v1723 = vpop.f32.mrf.mxu0
      %v1724 = vadd.f32 0.0, %v1723
      %1725 = vdwg.mxu0
      %1726 = vmatpush.bf16.msra.mxu0 0
      %1727 = vmatpush.bf16.msra.mxu0 0
      %1728 = vmatpush.bf16.msra.mxu0 0
      %1729 = vmatpush.bf16.msra.mxu0 0
      %1730 = vmatpush.bf16.msra.mxu0 0
      %1731 = vmatpush.bf16.msra.mxu0 0
      %1732 = vmatpush.bf16.msra.mxu0 0
      %1733 = vmatpush.bf16.msra.mxu0 %v1659
      %1734 = vmatmul.bf16.gmra.mxu0 %v1644
      %v1735 = vpop.f32.mrf.mxu0
      %v1736 = vadd.f32 0.0, %v1735
      %v1737 = vpop.f32.mrf.mxu0
      %v1738 = vadd.f32 0.0, %v1737
      %1739 = vdwg.mxu0
      %1740 = vmatpush.bf16.msra.mxu0 0
      %1741 = vmatpush.bf16.msra.mxu0 0
      %1742 = vmatpush.bf16.msra.mxu0 0
      %1743 = vmatpush.bf16.msra.mxu0 0
      %1744 = vmatpush.bf16.msra.mxu0 0
      %1745 = vmatpush.bf16.msra.mxu0 0
      %1746 = vmatpush.bf16.msra.mxu0 0
      %1747 = vmatpush.bf16.msra.mxu0 %v1662
      %1748 = vmatmul.bf16.gmra.mxu0 %v1644
      %v1749 = vpop.f32.mrf.mxu0
      %v1750 = vadd.f32 0.0, %v1749
      %v1751 = vpop.f32.mrf.mxu0
      %v1752 = vadd.f32 0.0, %v1751
      %1753 = vdwg.mxu0
      %1754 = vmatpush.bf16.msra.mxu0 0
      %1755 = vmatpush.bf16.msra.mxu0 0
      %1756 = vmatpush.bf16.msra.mxu0 0
      %1757 = vmatpush.bf16.msra.mxu0 0
      %1758 = vmatpush.bf16.msra.mxu0 0
      %1759 = vmatpush.bf16.msra.mxu0 0
      %1760 = vmatpush.bf16.msra.mxu0 0
      %1761 = vmatpush.bf16.msra.mxu0 %v1665
      %1762 = vmatmul.bf16.gmra.mxu0 %v1644
      %v1763 = vpop.f32.mrf.mxu0
      %v1764 = vadd.f32 0.0, %v1763
      %v1765 = vpop.f32.mrf.mxu0
      %v1766 = vadd.f32 0.0, %v1765
      %1767 = vdwg.mxu0
      %1768 = vmatpush.bf16.msra.mxu0 0
      %1769 = vmatpush.bf16.msra.mxu0 0
      %1770 = vmatpush.bf16.msra.mxu0 0
      %1771 = vmatpush.bf16.msra.mxu0 0
      %1772 = vmatpush.bf16.msra.mxu0 0
      %1773 = vmatpush.bf16.msra.mxu0 0
      %1774 = vmatpush.bf16.msra.mxu0 0
      %1775 = vmatpush.bf16.msra.mxu0 %v1668
      %1776 = vmatmul.bf16.gmra.mxu0 %v1644
      %v1777 = vpop.f32.mrf.mxu0
      %v1778 = vadd.f32 0.0, %v1777
      %v1779 = vpop.f32.mrf.mxu0
      %v1780 = vadd.f32 0.0, %v1779
      %1781 = vdwg.mxu0
      %v1782 = vadd.f32 %v1592, %v1680
      %v1783 = vadd.f32 %v1593, %v1694
      %v1784 = vadd.f32 %v1594, %v1708
      %v1785 = vadd.f32 %v1595, %v1722
      %v1786 = vadd.f32 %v1596, %v1736
      %v1787 = vadd.f32 %v1597, %v1750
      %v1788 = vadd.f32 %v1598, %v1764
      %v1789 = vadd.f32 %v1599, %v1778
      %v1790 = vadd.f32 %v1600, %v1682
      %v1791 = vadd.f32 %v1601, %v1696
      %v1792 = vadd.f32 %v1602, %v1710
      %v1793 = vadd.f32 %v1603, %v1724
      %v1794 = vadd.f32 %v1604, %v1738
      %v1795 = vadd.f32 %v1605, %v1752
      %v1796 = vadd.f32 %v1606, %v1766
      %v1797 = vadd.f32 %v1607, %v1780
      %s1798 = scalar_lea.vmem %s2, 56
      %v1799 = vld [vmem:[%s1798] sm:$0xf]
      %v1800 = vld [vmem:[%s1798 + $0x4] sm:$0xf]
      %v1803 = vunpack.c.l.b16 %v1799
      %v1804 = vunpack.c.l.b16 %v1800
      %v1805 = vpack.c.b16 %v1804, %v1803
      %1806 = vrot.lane.b32.xlu0 %v502, 95
      %v1807 = vpop.permute.xlu0 %1806
      %1808 = vrot.lane.b32.xlu0 %v503, 95
      %v1809 = vpop.permute.xlu0 %1808
      %1810 = vrot.lane.b32.xlu0 %v504, 95
      %v1811 = vpop.permute.xlu0 %1810
      %1812 = vrot.lane.b32.xlu0 %v505, 95
      %v1813 = vpop.permute.xlu0 %1812
      %1814 = vrot.lane.b32.xlu0 %v506, 95
      %v1815 = vpop.permute.xlu0 %1814
      %1816 = vrot.lane.b32.xlu0 %v507, 95
      %v1817 = vpop.permute.xlu0 %1816
      %1818 = vrot.lane.b32.xlu0 %v508, 95
      %v1819 = vpop.permute.xlu0 %1818
      %1820 = vrot.lane.b32.xlu0 %v509, 95
      %v1821 = vpop.permute.xlu0 %1820
      %1822 = vrot.lane.b32.xlu0 %v518, 95
      %v1823 = vpop.permute.xlu0 %1822
      %vm1824 = vcmask 777216
      %v1825 = vsel %vm1824, %v1807, %v1809
      %v1826 = vsel %vm1824, %v1809, %v1811
      %v1827 = vsel %vm1824, %v1811, %v1813
      %v1828 = vsel %vm1824, %v1813, %v1815
      %v1829 = vsel %vm1824, %v1815, %v1817
      %v1830 = vsel %vm1824, %v1817, %v1819
      %v1831 = vsel %vm1824, %v1819, %v1821
      %v1832 = vsel %vm1824, %v1821, %v1823
      %v1834 = vsel %vm560, %v1805, 0
      %v1837 = vand.u32 %v1825, %v567
      %v1840 = vand.u32 %v1826, %v567
      %v1843 = vand.u32 %v1827, %v567
      %v1846 = vand.u32 %v1828, %v567
      %v1849 = vand.u32 %v1829, %v567
      %v1852 = vand.u32 %v1830, %v567
      %v1855 = vand.u32 %v1831, %v567
      %v1858 = vand.u32 %v1832, %v567
      %1860 = vmatpush.bf16.msra.mxu0 0
      %1861 = vmatpush.bf16.msra.mxu0 0
      %1862 = vmatpush.bf16.msra.mxu0 0
      %1863 = vmatpush.bf16.msra.mxu0 0
      %1864 = vmatpush.bf16.msra.mxu0 0
      %1865 = vmatpush.bf16.msra.mxu0 0
      %1866 = vmatpush.bf16.msra.mxu0 0
      %1867 = vmatpush.bf16.msra.mxu0 %v1837
      %1868 = vmatmul.bf16.gmra.mxu0 %v1834
      %v1869 = vpop.f32.mrf.mxu0
      %v1870 = vadd.f32 0.0, %v1869
      %v1871 = vpop.f32.mrf.mxu0
      %v1872 = vadd.f32 0.0, %v1871
      %1873 = vdwg.mxu0
      %1874 = vmatpush.bf16.msra.mxu0 0
      %1875 = vmatpush.bf16.msra.mxu0 0
      %1876 = vmatpush.bf16.msra.mxu0 0
      %1877 = vmatpush.bf16.msra.mxu0 0
      %1878 = vmatpush.bf16.msra.mxu0 0
      %1879 = vmatpush.bf16.msra.mxu0 0
      %1880 = vmatpush.bf16.msra.mxu0 0
      %1881 = vmatpush.bf16.msra.mxu0 %v1840
      %1882 = vmatmul.bf16.gmra.mxu0 %v1834
      %v1883 = vpop.f32.mrf.mxu0
      %v1884 = vadd.f32 0.0, %v1883
      %v1885 = vpop.f32.mrf.mxu0
      %v1886 = vadd.f32 0.0, %v1885
      %1887 = vdwg.mxu0
      %1888 = vmatpush.bf16.msra.mxu0 0
      %1889 = vmatpush.bf16.msra.mxu0 0
      %1890 = vmatpush.bf16.msra.mxu0 0
      %1891 = vmatpush.bf16.msra.mxu0 0
      %1892 = vmatpush.bf16.msra.mxu0 0
      %1893 = vmatpush.bf16.msra.mxu0 0
      %1894 = vmatpush.bf16.msra.mxu0 0
      %1895 = vmatpush.bf16.msra.mxu0 %v1843
      %1896 = vmatmul.bf16.gmra.mxu0 %v1834
      %v1897 = vpop.f32.mrf.mxu0
      %v1898 = vadd.f32 0.0, %v1897
      %v1899 = vpop.f32.mrf.mxu0
      %v1900 = vadd.f32 0.0, %v1899
      %1901 = vdwg.mxu0
      %1902 = vmatpush.bf16.msra.mxu0 0
      %1903 = vmatpush.bf16.msra.mxu0 0
      %1904 = vmatpush.bf16.msra.mxu0 0
      %1905 = vmatpush.bf16.msra.mxu0 0
      %1906 = vmatpush.bf16.msra.mxu0 0
      %1907 = vmatpush.bf16.msra.mxu0 0
      %1908 = vmatpush.bf16.msra.mxu0 0
      %1909 = vmatpush.bf16.msra.mxu0 %v1846
      %1910 = vmatmul.bf16.gmra.mxu0 %v1834
      %v1911 = vpop.f32.mrf.mxu0
      %v1912 = vadd.f32 0.0, %v1911
      %v1913 = vpop.f32.mrf.mxu0
      %v1914 = vadd.f32 0.0, %v1913
      %1915 = vdwg.mxu0
      %1916 = vmatpush.bf16.msra.mxu0 0
      %1917 = vmatpush.bf16.msra.mxu0 0
      %1918 = vmatpush.bf16.msra.mxu0 0
      %1919 = vmatpush.bf16.msra.mxu0 0
      %1920 = vmatpush.bf16.msra.mxu0 0
      %1921 = vmatpush.bf16.msra.mxu0 0
      %1922 = vmatpush.bf16.msra.mxu0 0
      %1923 = vmatpush.bf16.msra.mxu0 %v1849
      %1924 = vmatmul.bf16.gmra.mxu0 %v1834
      %v1925 = vpop.f32.mrf.mxu0
      %v1926 = vadd.f32 0.0, %v1925
      %v1927 = vpop.f32.mrf.mxu0
      %v1928 = vadd.f32 0.0, %v1927
      %1929 = vdwg.mxu0
      %1930 = vmatpush.bf16.msra.mxu0 0
      %1931 = vmatpush.bf16.msra.mxu0 0
      %1932 = vmatpush.bf16.msra.mxu0 0
      %1933 = vmatpush.bf16.msra.mxu0 0
      %1934 = vmatpush.bf16.msra.mxu0 0
      %1935 = vmatpush.bf16.msra.mxu0 0
      %1936 = vmatpush.bf16.msra.mxu0 0
      %1937 = vmatpush.bf16.msra.mxu0 %v1852
      %1938 = vmatmul.bf16.gmra.mxu0 %v1834
      %v1939 = vpop.f32.mrf.mxu0
      %v1940 = vadd.f32 0.0, %v1939
      %v1941 = vpop.f32.mrf.mxu0
      %v1942 = vadd.f32 0.0, %v1941
      %1943 = vdwg.mxu0
      %1944 = vmatpush.bf16.msra.mxu0 0
      %1945 = vmatpush.bf16.msra.mxu0 0
      %1946 = vmatpush.bf16.msra.mxu0 0
      %1947 = vmatpush.bf16.msra.mxu0 0
      %1948 = vmatpush.bf16.msra.mxu0 0
      %1949 = vmatpush.bf16.msra.mxu0 0
      %1950 = vmatpush.bf16.msra.mxu0 0
      %1951 = vmatpush.bf16.msra.mxu0 %v1855
      %1952 = vmatmul.bf16.gmra.mxu0 %v1834
      %v1953 = vpop.f32.mrf.mxu0
      %v1954 = vadd.f32 0.0, %v1953
      %v1955 = vpop.f32.mrf.mxu0
      %v1956 = vadd.f32 0.0, %v1955
      %1957 = vdwg.mxu0
      %1958 = vmatpush.bf16.msra.mxu0 0
      %1959 = vmatpush.bf16.msra.mxu0 0
      %1960 = vmatpush.bf16.msra.mxu0 0
      %1961 = vmatpush.bf16.msra.mxu0 0
      %1962 = vmatpush.bf16.msra.mxu0 0
      %1963 = vmatpush.bf16.msra.mxu0 0
      %1964 = vmatpush.bf16.msra.mxu0 0
      %1965 = vmatpush.bf16.msra.mxu0 %v1858
      %1966 = vmatmul.bf16.gmra.mxu0 %v1834
      %v1967 = vpop.f32.mrf.mxu0
      %v1968 = vadd.f32 0.0, %v1967
      %v1969 = vpop.f32.mrf.mxu0
      %v1970 = vadd.f32 0.0, %v1969
      %1971 = vdwg.mxu0
      %v1972 = vadd.f32 %v1782, %v1870
      %v1973 = vadd.f32 %v1783, %v1884
      %v1974 = vadd.f32 %v1784, %v1898
      %v1975 = vadd.f32 %v1785, %v1912
      %v1976 = vadd.f32 %v1786, %v1926
      %v1977 = vadd.f32 %v1787, %v1940
      %v1978 = vadd.f32 %v1788, %v1954
      %v1979 = vadd.f32 %v1789, %v1968
      %v1980 = vadd.f32 %v1790, %v1872
      %v1981 = vadd.f32 %v1791, %v1886
      %v1982 = vadd.f32 %v1792, %v1900
      %v1983 = vadd.f32 %v1793, %v1914
      %v1984 = vadd.f32 %v1794, %v1928
      %v1985 = vadd.f32 %v1795, %v1942
      %v1986 = vadd.f32 %v1796, %v1956
      %v1987 = vadd.f32 %v1797, %v1970
      %s1988 = scalar_lea.vmem %s2, 64
      %v1989 = vld [vmem:[%s1988] sm:$0xf]
      %v1990 = vld [vmem:[%s1988 + $0x4] sm:$0xf]
      %v1993 = vunpack.c.l.b16 %v1989
      %v1994 = vunpack.c.l.b16 %v1990
      %v1995 = vpack.c.b16 %v1994, %v1993
      %1996 = vrot.lane.b32.xlu0 %v502, 94
      %v1997 = vpop.permute.xlu0 %1996
      %1998 = vrot.lane.b32.xlu0 %v503, 94
      %v1999 = vpop.permute.xlu0 %1998
      %2000 = vrot.lane.b32.xlu0 %v504, 94
      %v2001 = vpop.permute.xlu0 %2000
      %2002 = vrot.lane.b32.xlu0 %v505, 94
      %v2003 = vpop.permute.xlu0 %2002
      %2004 = vrot.lane.b32.xlu0 %v506, 94
      %v2005 = vpop.permute.xlu0 %2004
      %2006 = vrot.lane.b32.xlu0 %v507, 94
      %v2007 = vpop.permute.xlu0 %2006
      %2008 = vrot.lane.b32.xlu0 %v508, 94
      %v2009 = vpop.permute.xlu0 %2008
      %2010 = vrot.lane.b32.xlu0 %v509, 94
      %v2011 = vpop.permute.xlu0 %2010
      %2012 = vrot.lane.b32.xlu0 %v518, 94
      %v2013 = vpop.permute.xlu0 %2012
      %vm2014 = vcmask 769024
      %v2015 = vsel %vm2014, %v1997, %v1999
      %v2016 = vsel %vm2014, %v1999, %v2001
      %v2017 = vsel %vm2014, %v2001, %v2003
      %v2018 = vsel %vm2014, %v2003, %v2005
      %v2019 = vsel %vm2014, %v2005, %v2007
      %v2020 = vsel %vm2014, %v2007, %v2009
      %v2021 = vsel %vm2014, %v2009, %v2011
      %v2022 = vsel %vm2014, %v2011, %v2013
      %v2024 = vsel %vm560, %v1995, 0
      %v2027 = vand.u32 %v2015, %v567
      %v2030 = vand.u32 %v2016, %v567
      %v2033 = vand.u32 %v2017, %v567
      %v2036 = vand.u32 %v2018, %v567
      %v2039 = vand.u32 %v2019, %v567
      %v2042 = vand.u32 %v2020, %v567
      %v2045 = vand.u32 %v2021, %v567
      %v2048 = vand.u32 %v2022, %v567
      %2050 = vmatpush.bf16.msra.mxu0 0
      %2051 = vmatpush.bf16.msra.mxu0 0
      %2052 = vmatpush.bf16.msra.mxu0 0
      %2053 = vmatpush.bf16.msra.mxu0 0
      %2054 = vmatpush.bf16.msra.mxu0 0
      %2055 = vmatpush.bf16.msra.mxu0 0
      %2056 = vmatpush.bf16.msra.mxu0 0
      %2057 = vmatpush.bf16.msra.mxu0 %v2027
      %2058 = vmatmul.bf16.gmra.mxu0 %v2024
      %v2059 = vpop.f32.mrf.mxu0
      %v2060 = vadd.f32 0.0, %v2059
      %v2061 = vpop.f32.mrf.mxu0
      %v2062 = vadd.f32 0.0, %v2061
      %2063 = vdwg.mxu0
      %2064 = vmatpush.bf16.msra.mxu0 0
      %2065 = vmatpush.bf16.msra.mxu0 0
      %2066 = vmatpush.bf16.msra.mxu0 0
      %2067 = vmatpush.bf16.msra.mxu0 0
      %2068 = vmatpush.bf16.msra.mxu0 0
      %2069 = vmatpush.bf16.msra.mxu0 0
      %2070 = vmatpush.bf16.msra.mxu0 0
      %2071 = vmatpush.bf16.msra.mxu0 %v2030
      %2072 = vmatmul.bf16.gmra.mxu0 %v2024
      %v2073 = vpop.f32.mrf.mxu0
      %v2074 = vadd.f32 0.0, %v2073
      %v2075 = vpop.f32.mrf.mxu0
      %v2076 = vadd.f32 0.0, %v2075
      %2077 = vdwg.mxu0
      %2078 = vmatpush.bf16.msra.mxu0 0
      %2079 = vmatpush.bf16.msra.mxu0 0
      %2080 = vmatpush.bf16.msra.mxu0 0
      %2081 = vmatpush.bf16.msra.mxu0 0
      %2082 = vmatpush.bf16.msra.mxu0 0
      %2083 = vmatpush.bf16.msra.mxu0 0
      %2084 = vmatpush.bf16.msra.mxu0 0
      %2085 = vmatpush.bf16.msra.mxu0 %v2033
      %2086 = vmatmul.bf16.gmra.mxu0 %v2024
      %v2087 = vpop.f32.mrf.mxu0
      %v2088 = vadd.f32 0.0, %v2087
      %v2089 = vpop.f32.mrf.mxu0
      %v2090 = vadd.f32 0.0, %v2089
      %2091 = vdwg.mxu0
      %2092 = vmatpush.bf16.msra.mxu0 0
      %2093 = vmatpush.bf16.msra.mxu0 0
      %2094 = vmatpush.bf16.msra.mxu0 0
      %2095 = vmatpush.bf16.msra.mxu0 0
      %2096 = vmatpush.bf16.msra.mxu0 0
      %2097 = vmatpush.bf16.msra.mxu0 0
      %2098 = vmatpush.bf16.msra.mxu0 0
      %2099 = vmatpush.bf16.msra.mxu0 %v2036
      %2100 = vmatmul.bf16.gmra.mxu0 %v2024
      %v2101 = vpop.f32.mrf.mxu0
      %v2102 = vadd.f32 0.0, %v2101
      %v2103 = vpop.f32.mrf.mxu0
      %v2104 = vadd.f32 0.0, %v2103
      %2105 = vdwg.mxu0
      %2106 = vmatpush.bf16.msra.mxu0 0
      %2107 = vmatpush.bf16.msra.mxu0 0
      %2108 = vmatpush.bf16.msra.mxu0 0
      %2109 = vmatpush.bf16.msra.mxu0 0
      %2110 = vmatpush.bf16.msra.mxu0 0
      %2111 = vmatpush.bf16.msra.mxu0 0
      %2112 = vmatpush.bf16.msra.mxu0 0
      %2113 = vmatpush.bf16.msra.mxu0 %v2039
      %2114 = vmatmul.bf16.gmra.mxu0 %v2024
      %v2115 = vpop.f32.mrf.mxu0
      %v2116 = vadd.f32 0.0, %v2115
      %v2117 = vpop.f32.mrf.mxu0
      %v2118 = vadd.f32 0.0, %v2117
      %2119 = vdwg.mxu0
      %2120 = vmatpush.bf16.msra.mxu0 0
      %2121 = vmatpush.bf16.msra.mxu0 0
      %2122 = vmatpush.bf16.msra.mxu0 0
      %2123 = vmatpush.bf16.msra.mxu0 0
      %2124 = vmatpush.bf16.msra.mxu0 0
      %2125 = vmatpush.bf16.msra.mxu0 0
      %2126 = vmatpush.bf16.msra.mxu0 0
      %2127 = vmatpush.bf16.msra.mxu0 %v2042
      %2128 = vmatmul.bf16.gmra.mxu0 %v2024
      %v2129 = vpop.f32.mrf.mxu0
      %v2130 = vadd.f32 0.0, %v2129
      %v2131 = vpop.f32.mrf.mxu0
      %v2132 = vadd.f32 0.0, %v2131
      %2133 = vdwg.mxu0
      %2134 = vmatpush.bf16.msra.mxu0 0
      %2135 = vmatpush.bf16.msra.mxu0 0
      %2136 = vmatpush.bf16.msra.mxu0 0
      %2137 = vmatpush.bf16.msra.mxu0 0
      %2138 = vmatpush.bf16.msra.mxu0 0
      %2139 = vmatpush.bf16.msra.mxu0 0
      %2140 = vmatpush.bf16.msra.mxu0 0
      %2141 = vmatpush.bf16.msra.mxu0 %v2045
      %2142 = vmatmul.bf16.gmra.mxu0 %v2024
      %v2143 = vpop.f32.mrf.mxu0
      %v2144 = vadd.f32 0.0, %v2143
      %v2145 = vpop.f32.mrf.mxu0
      %v2146 = vadd.f32 0.0, %v2145
      %2147 = vdwg.mxu0
      %2148 = vmatpush.bf16.msra.mxu0 0
      %2149 = vmatpush.bf16.msra.mxu0 0
      %2150 = vmatpush.bf16.msra.mxu0 0
      %2151 = vmatpush.bf16.msra.mxu0 0
      %2152 = vmatpush.bf16.msra.mxu0 0
      %2153 = vmatpush.bf16.msra.mxu0 0
      %2154 = vmatpush.bf16.msra.mxu0 0
      %2155 = vmatpush.bf16.msra.mxu0 %v2048
      %2156 = vmatmul.bf16.gmra.mxu0 %v2024
      %v2157 = vpop.f32.mrf.mxu0
      %v2158 = vadd.f32 0.0, %v2157
      %v2159 = vpop.f32.mrf.mxu0
      %v2160 = vadd.f32 0.0, %v2159
      %2161 = vdwg.mxu0
      %v2162 = vadd.f32 %v1972, %v2060
      %v2163 = vadd.f32 %v1973, %v2074
      %v2164 = vadd.f32 %v1974, %v2088
      %v2165 = vadd.f32 %v1975, %v2102
      %v2166 = vadd.f32 %v1976, %v2116
      %v2167 = vadd.f32 %v1977, %v2130
      %v2168 = vadd.f32 %v1978, %v2144
      %v2169 = vadd.f32 %v1979, %v2158
      %v2170 = vadd.f32 %v1980, %v2062
      %v2171 = vadd.f32 %v1981, %v2076
      %v2172 = vadd.f32 %v1982, %v2090
      %v2173 = vadd.f32 %v1983, %v2104
      %v2174 = vadd.f32 %v1984, %v2118
      %v2175 = vadd.f32 %v1985, %v2132
      %v2176 = vadd.f32 %v1986, %v2146
      %v2177 = vadd.f32 %v1987, %v2160
      %s2178 = scalar_lea.vmem %s2, 72
      %v2179 = vld [vmem:[%s2178] sm:$0xf]
      %v2180 = vld [vmem:[%s2178 + $0x4] sm:$0xf]
      %v2183 = vunpack.c.l.b16 %v2179
      %v2184 = vunpack.c.l.b16 %v2180
      %v2185 = vpack.c.b16 %v2184, %v2183
      %v2187 = vsel %vm560, %v2185, 0
      %v2190 = vand.u32 %v518, %v567
      %v2193 = vand.u32 %v519, %v567
      %2195 = vmatpush.bf16.msra.mxu0 0
      %2196 = vmatpush.bf16.msra.mxu0 0
      %2197 = vmatpush.bf16.msra.mxu0 0
      %2198 = vmatpush.bf16.msra.mxu0 0
      %2199 = vmatpush.bf16.msra.mxu0 0
      %2200 = vmatpush.bf16.msra.mxu0 0
      %2201 = vmatpush.bf16.msra.mxu0 0
      %2202 = vmatpush.bf16.msra.mxu0 %v719
      %2203 = vmatmul.bf16.gmra.mxu0 %v2187
      %v2204 = vpop.f32.mrf.mxu0
      %v2205 = vadd.f32 0.0, %v2204
      %v2206 = vpop.f32.mrf.mxu0
      %v2207 = vadd.f32 0.0, %v2206
      %2208 = vdwg.mxu0
      %2209 = vmatpush.bf16.msra.mxu0 0
      %2210 = vmatpush.bf16.msra.mxu0 0
      %2211 = vmatpush.bf16.msra.mxu0 0
      %2212 = vmatpush.bf16.msra.mxu0 0
      %2213 = vmatpush.bf16.msra.mxu0 0
      %2214 = vmatpush.bf16.msra.mxu0 0
      %2215 = vmatpush.bf16.msra.mxu0 0
      %2216 = vmatpush.bf16.msra.mxu0 %v722
      %2217 = vmatmul.bf16.gmra.mxu0 %v2187
      %v2218 = vpop.f32.mrf.mxu0
      %v2219 = vadd.f32 0.0, %v2218
      %v2220 = vpop.f32.mrf.mxu0
      %v2221 = vadd.f32 0.0, %v2220
      %2222 = vdwg.mxu0
      %2223 = vmatpush.bf16.msra.mxu0 0
      %2224 = vmatpush.bf16.msra.mxu0 0
      %2225 = vmatpush.bf16.msra.mxu0 0
      %2226 = vmatpush.bf16.msra.mxu0 0
      %2227 = vmatpush.bf16.msra.mxu0 0
      %2228 = vmatpush.bf16.msra.mxu0 0
      %2229 = vmatpush.bf16.msra.mxu0 0
      %2230 = vmatpush.bf16.msra.mxu0 %v725
      %2231 = vmatmul.bf16.gmra.mxu0 %v2187
      %v2232 = vpop.f32.mrf.mxu0
      %v2233 = vadd.f32 0.0, %v2232
      %v2234 = vpop.f32.mrf.mxu0
      %v2235 = vadd.f32 0.0, %v2234
      %2236 = vdwg.mxu0
      %2237 = vmatpush.bf16.msra.mxu0 0
      %2238 = vmatpush.bf16.msra.mxu0 0
      %2239 = vmatpush.bf16.msra.mxu0 0
      %2240 = vmatpush.bf16.msra.mxu0 0
      %2241 = vmatpush.bf16.msra.mxu0 0
      %2242 = vmatpush.bf16.msra.mxu0 0
      %2243 = vmatpush.bf16.msra.mxu0 0
      %2244 = vmatpush.bf16.msra.mxu0 %v728
      %2245 = vmatmul.bf16.gmra.mxu0 %v2187
      %v2246 = vpop.f32.mrf.mxu0
      %v2247 = vadd.f32 0.0, %v2246
      %v2248 = vpop.f32.mrf.mxu0
      %v2249 = vadd.f32 0.0, %v2248
      %2250 = vdwg.mxu0
      %2251 = vmatpush.bf16.msra.mxu0 0
      %2252 = vmatpush.bf16.msra.mxu0 0
      %2253 = vmatpush.bf16.msra.mxu0 0
      %2254 = vmatpush.bf16.msra.mxu0 0
      %2255 = vmatpush.bf16.msra.mxu0 0
      %2256 = vmatpush.bf16.msra.mxu0 0
      %2257 = vmatpush.bf16.msra.mxu0 0
      %2258 = vmatpush.bf16.msra.mxu0 %v731
      %2259 = vmatmul.bf16.gmra.mxu0 %v2187
      %v2260 = vpop.f32.mrf.mxu0
      %v2261 = vadd.f32 0.0, %v2260
      %v2262 = vpop.f32.mrf.mxu0
      %v2263 = vadd.f32 0.0, %v2262
      %2264 = vdwg.mxu0
      %2265 = vmatpush.bf16.msra.mxu0 0
      %2266 = vmatpush.bf16.msra.mxu0 0
      %2267 = vmatpush.bf16.msra.mxu0 0
      %2268 = vmatpush.bf16.msra.mxu0 0
      %2269 = vmatpush.bf16.msra.mxu0 0
      %2270 = vmatpush.bf16.msra.mxu0 0
      %2271 = vmatpush.bf16.msra.mxu0 0
      %2272 = vmatpush.bf16.msra.mxu0 %v734
      %2273 = vmatmul.bf16.gmra.mxu0 %v2187
      %v2274 = vpop.f32.mrf.mxu0
      %v2275 = vadd.f32 0.0, %v2274
      %v2276 = vpop.f32.mrf.mxu0
      %v2277 = vadd.f32 0.0, %v2276
      %2278 = vdwg.mxu0
      %2279 = vmatpush.bf16.msra.mxu0 0
      %2280 = vmatpush.bf16.msra.mxu0 0
      %2281 = vmatpush.bf16.msra.mxu0 0
      %2282 = vmatpush.bf16.msra.mxu0 0
      %2283 = vmatpush.bf16.msra.mxu0 0
      %2284 = vmatpush.bf16.msra.mxu0 0
      %2285 = vmatpush.bf16.msra.mxu0 0
      %2286 = vmatpush.bf16.msra.mxu0 %v2190
      %2287 = vmatmul.bf16.gmra.mxu0 %v2187
      %v2288 = vpop.f32.mrf.mxu0
      %v2289 = vadd.f32 0.0, %v2288
      %v2290 = vpop.f32.mrf.mxu0
      %v2291 = vadd.f32 0.0, %v2290
      %2292 = vdwg.mxu0
      %2293 = vmatpush.bf16.msra.mxu0 0
      %2294 = vmatpush.bf16.msra.mxu0 0
      %2295 = vmatpush.bf16.msra.mxu0 0
      %2296 = vmatpush.bf16.msra.mxu0 0
      %2297 = vmatpush.bf16.msra.mxu0 0
      %2298 = vmatpush.bf16.msra.mxu0 0
      %2299 = vmatpush.bf16.msra.mxu0 0
      %2300 = vmatpush.bf16.msra.mxu0 %v2193
      %2301 = vmatmul.bf16.gmra.mxu0 %v2187
      %v2302 = vpop.f32.mrf.mxu0
      %v2303 = vadd.f32 0.0, %v2302
      %v2304 = vpop.f32.mrf.mxu0
      %v2305 = vadd.f32 0.0, %v2304
      %2306 = vdwg.mxu0
      %v2307 = vadd.f32 %v2162, %v2205
      %v2308 = vadd.f32 %v2163, %v2219
      %v2309 = vadd.f32 %v2164, %v2233
      %v2310 = vadd.f32 %v2165, %v2247
      %v2311 = vadd.f32 %v2166, %v2261
      %v2312 = vadd.f32 %v2167, %v2275
      %v2313 = vadd.f32 %v2168, %v2289
      %v2314 = vadd.f32 %v2169, %v2303
      %v2315 = vadd.f32 %v2170, %v2207
      %v2316 = vadd.f32 %v2171, %v2221
      %v2317 = vadd.f32 %v2172, %v2235
      %v2318 = vadd.f32 %v2173, %v2249
      %v2319 = vadd.f32 %v2174, %v2263
      %v2320 = vadd.f32 %v2175, %v2277
      %v2321 = vadd.f32 %v2176, %v2291
      %v2322 = vadd.f32 %v2177, %v2305
      %s2323 = scalar_lea.vmem %s2, 80
      %v2324 = vld [vmem:[%s2323] sm:$0xf]
      %v2325 = vld [vmem:[%s2323 + $0x4] sm:$0xf]
      %v2328 = vunpack.c.l.b16 %v2324
      %v2329 = vunpack.c.l.b16 %v2325
      %v2330 = vpack.c.b16 %v2329, %v2328
      %2331 = vrot.lane.b32.xlu0 %v519, 127
      %v2332 = vpop.permute.xlu0 %2331
      %2333 = vrot.lane.b32.xlu0 %v520, 127
      %v2334 = vpop.permute.xlu0 %2333
      %v2335 = vsel %vm551, %v550, %v2332
      %v2336 = vsel %vm551, %v2332, %v2334
      %v2338 = vsel %vm560, %v2330, 0
      %v2341 = vand.u32 %v2335, %v567
      %v2344 = vand.u32 %v2336, %v567
      %2346 = vmatpush.bf16.msra.mxu0 0
      %2347 = vmatpush.bf16.msra.mxu0 0
      %2348 = vmatpush.bf16.msra.mxu0 0
      %2349 = vmatpush.bf16.msra.mxu0 0
      %2350 = vmatpush.bf16.msra.mxu0 0
      %2351 = vmatpush.bf16.msra.mxu0 0
      %2352 = vmatpush.bf16.msra.mxu0 0
      %2353 = vmatpush.bf16.msra.mxu0 %v575
      %2354 = vmatmul.bf16.gmra.mxu0 %v2338
      %v2355 = vpop.f32.mrf.mxu0
      %v2356 = vadd.f32 0.0, %v2355
      %v2357 = vpop.f32.mrf.mxu0
      %v2358 = vadd.f32 0.0, %v2357
      %2359 = vdwg.mxu0
      %2360 = vmatpush.bf16.msra.mxu0 0
      %2361 = vmatpush.bf16.msra.mxu0 0
      %2362 = vmatpush.bf16.msra.mxu0 0
      %2363 = vmatpush.bf16.msra.mxu0 0
      %2364 = vmatpush.bf16.msra.mxu0 0
      %2365 = vmatpush.bf16.msra.mxu0 0
      %2366 = vmatpush.bf16.msra.mxu0 0
      %2367 = vmatpush.bf16.msra.mxu0 %v578
      %2368 = vmatmul.bf16.gmra.mxu0 %v2338
      %v2369 = vpop.f32.mrf.mxu0
      %v2370 = vadd.f32 0.0, %v2369
      %v2371 = vpop.f32.mrf.mxu0
      %v2372 = vadd.f32 0.0, %v2371
      %2373 = vdwg.mxu0
      %2374 = vmatpush.bf16.msra.mxu0 0
      %2375 = vmatpush.bf16.msra.mxu0 0
      %2376 = vmatpush.bf16.msra.mxu0 0
      %2377 = vmatpush.bf16.msra.mxu0 0
      %2378 = vmatpush.bf16.msra.mxu0 0
      %2379 = vmatpush.bf16.msra.mxu0 0
      %2380 = vmatpush.bf16.msra.mxu0 0
      %2381 = vmatpush.bf16.msra.mxu0 %v581
      %2382 = vmatmul.bf16.gmra.mxu0 %v2338
      %v2383 = vpop.f32.mrf.mxu0
      %v2384 = vadd.f32 0.0, %v2383
      %v2385 = vpop.f32.mrf.mxu0
      %v2386 = vadd.f32 0.0, %v2385
      %2387 = vdwg.mxu0
      %2388 = vmatpush.bf16.msra.mxu0 0
      %2389 = vmatpush.bf16.msra.mxu0 0
      %2390 = vmatpush.bf16.msra.mxu0 0
      %2391 = vmatpush.bf16.msra.mxu0 0
      %2392 = vmatpush.bf16.msra.mxu0 0
      %2393 = vmatpush.bf16.msra.mxu0 0
      %2394 = vmatpush.bf16.msra.mxu0 0
      %2395 = vmatpush.bf16.msra.mxu0 %v584
      %2396 = vmatmul.bf16.gmra.mxu0 %v2338
      %v2397 = vpop.f32.mrf.mxu0
      %v2398 = vadd.f32 0.0, %v2397
      %v2399 = vpop.f32.mrf.mxu0
      %v2400 = vadd.f32 0.0, %v2399
      %2401 = vdwg.mxu0
      %2402 = vmatpush.bf16.msra.mxu0 0
      %2403 = vmatpush.bf16.msra.mxu0 0
      %2404 = vmatpush.bf16.msra.mxu0 0
      %2405 = vmatpush.bf16.msra.mxu0 0
      %2406 = vmatpush.bf16.msra.mxu0 0
      %2407 = vmatpush.bf16.msra.mxu0 0
      %2408 = vmatpush.bf16.msra.mxu0 0
      %2409 = vmatpush.bf16.msra.mxu0 %v587
      %2410 = vmatmul.bf16.gmra.mxu0 %v2338
      %v2411 = vpop.f32.mrf.mxu0
      %v2412 = vadd.f32 0.0, %v2411
      %v2413 = vpop.f32.mrf.mxu0
      %v2414 = vadd.f32 0.0, %v2413
      %2415 = vdwg.mxu0
      %2416 = vmatpush.bf16.msra.mxu0 0
      %2417 = vmatpush.bf16.msra.mxu0 0
      %2418 = vmatpush.bf16.msra.mxu0 0
      %2419 = vmatpush.bf16.msra.mxu0 0
      %2420 = vmatpush.bf16.msra.mxu0 0
      %2421 = vmatpush.bf16.msra.mxu0 0
      %2422 = vmatpush.bf16.msra.mxu0 0
      %2423 = vmatpush.bf16.msra.mxu0 %v590
      %2424 = vmatmul.bf16.gmra.mxu0 %v2338
      %v2425 = vpop.f32.mrf.mxu0
      %v2426 = vadd.f32 0.0, %v2425
      %v2427 = vpop.f32.mrf.mxu0
      %v2428 = vadd.f32 0.0, %v2427
      %2429 = vdwg.mxu0
      %2430 = vmatpush.bf16.msra.mxu0 0
      %2431 = vmatpush.bf16.msra.mxu0 0
      %2432 = vmatpush.bf16.msra.mxu0 0
      %2433 = vmatpush.bf16.msra.mxu0 0
      %2434 = vmatpush.bf16.msra.mxu0 0
      %2435 = vmatpush.bf16.msra.mxu0 0
      %2436 = vmatpush.bf16.msra.mxu0 0
      %2437 = vmatpush.bf16.msra.mxu0 %v2341
      %2438 = vmatmul.bf16.gmra.mxu0 %v2338
      %v2439 = vpop.f32.mrf.mxu0
      %v2440 = vadd.f32 0.0, %v2439
      %v2441 = vpop.f32.mrf.mxu0
      %v2442 = vadd.f32 0.0, %v2441
      %2443 = vdwg.mxu0
      %2444 = vmatpush.bf16.msra.mxu0 0
      %2445 = vmatpush.bf16.msra.mxu0 0
      %2446 = vmatpush.bf16.msra.mxu0 0
      %2447 = vmatpush.bf16.msra.mxu0 0
      %2448 = vmatpush.bf16.msra.mxu0 0
      %2449 = vmatpush.bf16.msra.mxu0 0
      %2450 = vmatpush.bf16.msra.mxu0 0
      %2451 = vmatpush.bf16.msra.mxu0 %v2344
      %2452 = vmatmul.bf16.gmra.mxu0 %v2338
      %v2453 = vpop.f32.mrf.mxu0
      %v2454 = vadd.f32 0.0, %v2453
      %v2455 = vpop.f32.mrf.mxu0
      %v2456 = vadd.f32 0.0, %v2455
      %2457 = vdwg.mxu0
      %v2458 = vadd.f32 %v2307, %v2356
      %v2459 = vadd.f32 %v2308, %v2370
      %v2460 = vadd.f32 %v2309, %v2384
      %v2461 = vadd.f32 %v2310, %v2398
      %v2462 = vadd.f32 %v2311, %v2412
      %v2463 = vadd.f32 %v2312, %v2426
      %v2464 = vadd.f32 %v2313, %v2440
      %v2465 = vadd.f32 %v2314, %v2454
      %v2466 = vadd.f32 %v2315, %v2358
      %v2467 = vadd.f32 %v2316, %v2372
      %v2468 = vadd.f32 %v2317, %v2386
      %v2469 = vadd.f32 %v2318, %v2400
      %v2470 = vadd.f32 %v2319, %v2414
      %v2471 = vadd.f32 %v2320, %v2428
      %v2472 = vadd.f32 %v2321, %v2442
      %v2473 = vadd.f32 %v2322, %v2456
      %s2474 = scalar_lea.vmem %s2, 88
      %v2475 = vld [vmem:[%s2474] sm:$0xf]
      %v2476 = vld [vmem:[%s2474 + $0x4] sm:$0xf]
      %v2479 = vunpack.c.l.b16 %v2475
      %v2480 = vunpack.c.l.b16 %v2476
      %v2481 = vpack.c.b16 %v2480, %v2479
      %2482 = vrot.lane.b32.xlu0 %v519, 126
      %v2483 = vpop.permute.xlu0 %2482
      %2484 = vrot.lane.b32.xlu0 %v520, 126
      %v2485 = vpop.permute.xlu0 %2484
      %v2486 = vsel %vm874, %v873, %v2483
      %v2487 = vsel %vm874, %v2483, %v2485
      %v2489 = vsel %vm560, %v2481, 0
      %v2492 = vand.u32 %v2486, %v567
      %v2495 = vand.u32 %v2487, %v567
      %2497 = vmatpush.bf16.msra.mxu0 0
      %2498 = vmatpush.bf16.msra.mxu0 0
      %2499 = vmatpush.bf16.msra.mxu0 0
      %2500 = vmatpush.bf16.msra.mxu0 0
      %2501 = vmatpush.bf16.msra.mxu0 0
      %2502 = vmatpush.bf16.msra.mxu0 0
      %2503 = vmatpush.bf16.msra.mxu0 0
      %2504 = vmatpush.bf16.msra.mxu0 %v893
      %2505 = vmatmul.bf16.gmra.mxu0 %v2489
      %v2506 = vpop.f32.mrf.mxu0
      %v2507 = vadd.f32 0.0, %v2506
      %v2508 = vpop.f32.mrf.mxu0
      %v2509 = vadd.f32 0.0, %v2508
      %2510 = vdwg.mxu0
      %2511 = vmatpush.bf16.msra.mxu0 0
      %2512 = vmatpush.bf16.msra.mxu0 0
      %2513 = vmatpush.bf16.msra.mxu0 0
      %2514 = vmatpush.bf16.msra.mxu0 0
      %2515 = vmatpush.bf16.msra.mxu0 0
      %2516 = vmatpush.bf16.msra.mxu0 0
      %2517 = vmatpush.bf16.msra.mxu0 0
      %2518 = vmatpush.bf16.msra.mxu0 %v896
      %2519 = vmatmul.bf16.gmra.mxu0 %v2489
      %v2520 = vpop.f32.mrf.mxu0
      %v2521 = vadd.f32 0.0, %v2520
      %v2522 = vpop.f32.mrf.mxu0
      %v2523 = vadd.f32 0.0, %v2522
      %2524 = vdwg.mxu0
      %2525 = vmatpush.bf16.msra.mxu0 0
      %2526 = vmatpush.bf16.msra.mxu0 0
      %2527 = vmatpush.bf16.msra.mxu0 0
      %2528 = vmatpush.bf16.msra.mxu0 0
      %2529 = vmatpush.bf16.msra.mxu0 0
      %2530 = vmatpush.bf16.msra.mxu0 0
      %2531 = vmatpush.bf16.msra.mxu0 0
      %2532 = vmatpush.bf16.msra.mxu0 %v899
      %2533 = vmatmul.bf16.gmra.mxu0 %v2489
      %v2534 = vpop.f32.mrf.mxu0
      %v2535 = vadd.f32 0.0, %v2534
      %v2536 = vpop.f32.mrf.mxu0
      %v2537 = vadd.f32 0.0, %v2536
      %2538 = vdwg.mxu0
      %2539 = vmatpush.bf16.msra.mxu0 0
      %2540 = vmatpush.bf16.msra.mxu0 0
      %2541 = vmatpush.bf16.msra.mxu0 0
      %2542 = vmatpush.bf16.msra.mxu0 0
      %2543 = vmatpush.bf16.msra.mxu0 0
      %2544 = vmatpush.bf16.msra.mxu0 0
      %2545 = vmatpush.bf16.msra.mxu0 0
      %2546 = vmatpush.bf16.msra.mxu0 %v902
      %2547 = vmatmul.bf16.gmra.mxu0 %v2489
      %v2548 = vpop.f32.mrf.mxu0
      %v2549 = vadd.f32 0.0, %v2548
      %v2550 = vpop.f32.mrf.mxu0
      %v2551 = vadd.f32 0.0, %v2550
      %2552 = vdwg.mxu0
      %2553 = vmatpush.bf16.msra.mxu0 0
      %2554 = vmatpush.bf16.msra.mxu0 0
      %2555 = vmatpush.bf16.msra.mxu0 0
      %2556 = vmatpush.bf16.msra.mxu0 0
      %2557 = vmatpush.bf16.msra.mxu0 0
      %2558 = vmatpush.bf16.msra.mxu0 0
      %2559 = vmatpush.bf16.msra.mxu0 0
      %2560 = vmatpush.bf16.msra.mxu0 %v905
      %2561 = vmatmul.bf16.gmra.mxu0 %v2489
      %v2562 = vpop.f32.mrf.mxu0
      %v2563 = vadd.f32 0.0, %v2562
      %v2564 = vpop.f32.mrf.mxu0
      %v2565 = vadd.f32 0.0, %v2564
      %2566 = vdwg.mxu0
      %2567 = vmatpush.bf16.msra.mxu0 0
      %2568 = vmatpush.bf16.msra.mxu0 0
      %2569 = vmatpush.bf16.msra.mxu0 0
      %2570 = vmatpush.bf16.msra.mxu0 0
      %2571 = vmatpush.bf16.msra.mxu0 0
      %2572 = vmatpush.bf16.msra.mxu0 0
      %2573 = vmatpush.bf16.msra.mxu0 0
      %2574 = vmatpush.bf16.msra.mxu0 %v908
      %2575 = vmatmul.bf16.gmra.mxu0 %v2489
      %v2576 = vpop.f32.mrf.mxu0
      %v2577 = vadd.f32 0.0, %v2576
      %v2578 = vpop.f32.mrf.mxu0
      %v2579 = vadd.f32 0.0, %v2578
      %2580 = vdwg.mxu0
      %2581 = vmatpush.bf16.msra.mxu0 0
      %2582 = vmatpush.bf16.msra.mxu0 0
      %2583 = vmatpush.bf16.msra.mxu0 0
      %2584 = vmatpush.bf16.msra.mxu0 0
      %2585 = vmatpush.bf16.msra.mxu0 0
      %2586 = vmatpush.bf16.msra.mxu0 0
      %2587 = vmatpush.bf16.msra.mxu0 0
      %2588 = vmatpush.bf16.msra.mxu0 %v2492
      %2589 = vmatmul.bf16.gmra.mxu0 %v2489
      %v2590 = vpop.f32.mrf.mxu0
      %v2591 = vadd.f32 0.0, %v2590
      %v2592 = vpop.f32.mrf.mxu0
      %v2593 = vadd.f32 0.0, %v2592
      %2594 = vdwg.mxu0
      %2595 = vmatpush.bf16.msra.mxu0 0
      %2596 = vmatpush.bf16.msra.mxu0 0
      %2597 = vmatpush.bf16.msra.mxu0 0
      %2598 = vmatpush.bf16.msra.mxu0 0
      %2599 = vmatpush.bf16.msra.mxu0 0
      %2600 = vmatpush.bf16.msra.mxu0 0
      %2601 = vmatpush.bf16.msra.mxu0 0
      %2602 = vmatpush.bf16.msra.mxu0 %v2495
      %2603 = vmatmul.bf16.gmra.mxu0 %v2489
      %v2604 = vpop.f32.mrf.mxu0
      %v2605 = vadd.f32 0.0, %v2604
      %v2606 = vpop.f32.mrf.mxu0
      %v2607 = vadd.f32 0.0, %v2606
      %2608 = vdwg.mxu0
      %v2609 = vadd.f32 %v2458, %v2507
      %v2610 = vadd.f32 %v2459, %v2521
      %v2611 = vadd.f32 %v2460, %v2535
      %v2612 = vadd.f32 %v2461, %v2549
      %v2613 = vadd.f32 %v2462, %v2563
      %v2614 = vadd.f32 %v2463, %v2577
      %v2615 = vadd.f32 %v2464, %v2591
      %v2616 = vadd.f32 %v2465, %v2605
      %v2617 = vadd.f32 %v2466, %v2509
      %v2618 = vadd.f32 %v2467, %v2523
      %v2619 = vadd.f32 %v2468, %v2537
      %v2620 = vadd.f32 %v2469, %v2551
      %v2621 = vadd.f32 %v2470, %v2565
      %v2622 = vadd.f32 %v2471, %v2579
      %v2623 = vadd.f32 %v2472, %v2593
      %v2624 = vadd.f32 %v2473, %v2607
      %s2625 = scalar_lea.vmem %s2, 96
      %v2626 = vld [vmem:[%s2625] sm:$0xf]
      %v2627 = vld [vmem:[%s2625 + $0x4] sm:$0xf]
      %v2630 = vunpack.c.l.b16 %v2626
      %v2631 = vunpack.c.l.b16 %v2627
      %v2632 = vpack.c.b16 %v2631, %v2630
      %2633 = vrot.lane.b32.xlu0 %v519, 112
      %v2634 = vpop.permute.xlu0 %2633
      %2635 = vrot.lane.b32.xlu0 %v520, 112
      %v2636 = vpop.permute.xlu0 %2635
      %v2637 = vsel %vm1064, %v1063, %v2634
      %v2638 = vsel %vm1064, %v2634, %v2636
      %v2640 = vsel %vm560, %v2632, 0
      %v2643 = vand.u32 %v2637, %v567
      %v2646 = vand.u32 %v2638, %v567
      %2648 = vmatpush.bf16.msra.mxu0 0
      %2649 = vmatpush.bf16.msra.mxu0 0
      %2650 = vmatpush.bf16.msra.mxu0 0
      %2651 = vmatpush.bf16.msra.mxu0 0
      %2652 = vmatpush.bf16.msra.mxu0 0
      %2653 = vmatpush.bf16.msra.mxu0 0
      %2654 = vmatpush.bf16.msra.mxu0 0
      %2655 = vmatpush.bf16.msra.mxu0 %v1083
      %2656 = vmatmul.bf16.gmra.mxu0 %v2640
      %v2657 = vpop.f32.mrf.mxu0
      %v2658 = vadd.f32 0.0, %v2657
      %v2659 = vpop.f32.mrf.mxu0
      %v2660 = vadd.f32 0.0, %v2659
      %2661 = vdwg.mxu0
      %2662 = vmatpush.bf16.msra.mxu0 0
      %2663 = vmatpush.bf16.msra.mxu0 0
      %2664 = vmatpush.bf16.msra.mxu0 0
      %2665 = vmatpush.bf16.msra.mxu0 0
      %2666 = vmatpush.bf16.msra.mxu0 0
      %2667 = vmatpush.bf16.msra.mxu0 0
      %2668 = vmatpush.bf16.msra.mxu0 0
      %2669 = vmatpush.bf16.msra.mxu0 %v1086
      %2670 = vmatmul.bf16.gmra.mxu0 %v2640
      %v2671 = vpop.f32.mrf.mxu0
      %v2672 = vadd.f32 0.0, %v2671
      %v2673 = vpop.f32.mrf.mxu0
      %v2674 = vadd.f32 0.0, %v2673
      %2675 = vdwg.mxu0
      %2676 = vmatpush.bf16.msra.mxu0 0
      %2677 = vmatpush.bf16.msra.mxu0 0
      %2678 = vmatpush.bf16.msra.mxu0 0
      %2679 = vmatpush.bf16.msra.mxu0 0
      %2680 = vmatpush.bf16.msra.mxu0 0
      %2681 = vmatpush.bf16.msra.mxu0 0
      %2682 = vmatpush.bf16.msra.mxu0 0
      %2683 = vmatpush.bf16.msra.mxu0 %v1089
      %2684 = vmatmul.bf16.gmra.mxu0 %v2640
      %v2685 = vpop.f32.mrf.mxu0
      %v2686 = vadd.f32 0.0, %v2685
      %v2687 = vpop.f32.mrf.mxu0
      %v2688 = vadd.f32 0.0, %v2687
      %2689 = vdwg.mxu0
      %2690 = vmatpush.bf16.msra.mxu0 0
      %2691 = vmatpush.bf16.msra.mxu0 0
      %2692 = vmatpush.bf16.msra.mxu0 0
      %2693 = vmatpush.bf16.msra.mxu0 0
      %2694 = vmatpush.bf16.msra.mxu0 0
      %2695 = vmatpush.bf16.msra.mxu0 0
      %2696 = vmatpush.bf16.msra.mxu0 0
      %2697 = vmatpush.bf16.msra.mxu0 %v1092
      %2698 = vmatmul.bf16.gmra.mxu0 %v2640
      %v2699 = vpop.f32.mrf.mxu0
      %v2700 = vadd.f32 0.0, %v2699
      %v2701 = vpop.f32.mrf.mxu0
      %v2702 = vadd.f32 0.0, %v2701
      %2703 = vdwg.mxu0
      %2704 = vmatpush.bf16.msra.mxu0 0
      %2705 = vmatpush.bf16.msra.mxu0 0
      %2706 = vmatpush.bf16.msra.mxu0 0
      %2707 = vmatpush.bf16.msra.mxu0 0
      %2708 = vmatpush.bf16.msra.mxu0 0
      %2709 = vmatpush.bf16.msra.mxu0 0
      %2710 = vmatpush.bf16.msra.mxu0 0
      %2711 = vmatpush.bf16.msra.mxu0 %v1095
      %2712 = vmatmul.bf16.gmra.mxu0 %v2640
      %v2713 = vpop.f32.mrf.mxu0
      %v2714 = vadd.f32 0.0, %v2713
      %v2715 = vpop.f32.mrf.mxu0
      %v2716 = vadd.f32 0.0, %v2715
      %2717 = vdwg.mxu0
      %2718 = vmatpush.bf16.msra.mxu0 0
      %2719 = vmatpush.bf16.msra.mxu0 0
      %2720 = vmatpush.bf16.msra.mxu0 0
      %2721 = vmatpush.bf16.msra.mxu0 0
      %2722 = vmatpush.bf16.msra.mxu0 0
      %2723 = vmatpush.bf16.msra.mxu0 0
      %2724 = vmatpush.bf16.msra.mxu0 0
      %2725 = vmatpush.bf16.msra.mxu0 %v1098
      %2726 = vmatmul.bf16.gmra.mxu0 %v2640
      %v2727 = vpop.f32.mrf.mxu0
      %v2728 = vadd.f32 0.0, %v2727
      %v2729 = vpop.f32.mrf.mxu0
      %v2730 = vadd.f32 0.0, %v2729
      %2731 = vdwg.mxu0
      %2732 = vmatpush.bf16.msra.mxu0 0
      %2733 = vmatpush.bf16.msra.mxu0 0
      %2734 = vmatpush.bf16.msra.mxu0 0
      %2735 = vmatpush.bf16.msra.mxu0 0
      %2736 = vmatpush.bf16.msra.mxu0 0
      %2737 = vmatpush.bf16.msra.mxu0 0
      %2738 = vmatpush.bf16.msra.mxu0 0
      %2739 = vmatpush.bf16.msra.mxu0 %v2643
      %2740 = vmatmul.bf16.gmra.mxu0 %v2640
      %v2741 = vpop.f32.mrf.mxu0
      %v2742 = vadd.f32 0.0, %v2741
      %v2743 = vpop.f32.mrf.mxu0
      %v2744 = vadd.f32 0.0, %v2743
      %2745 = vdwg.mxu0
      %2746 = vmatpush.bf16.msra.mxu0 0
      %2747 = vmatpush.bf16.msra.mxu0 0
      %2748 = vmatpush.bf16.msra.mxu0 0
      %2749 = vmatpush.bf16.msra.mxu0 0
      %2750 = vmatpush.bf16.msra.mxu0 0
      %2751 = vmatpush.bf16.msra.mxu0 0
      %2752 = vmatpush.bf16.msra.mxu0 0
      %2753 = vmatpush.bf16.msra.mxu0 %v2646
      %2754 = vmatmul.bf16.gmra.mxu0 %v2640
      %v2755 = vpop.f32.mrf.mxu0
      %v2756 = vadd.f32 0.0, %v2755
      %v2757 = vpop.f32.mrf.mxu0
      %v2758 = vadd.f32 0.0, %v2757
      %2759 = vdwg.mxu0
      %v2760 = vadd.f32 %v2609, %v2658
      %v2761 = vadd.f32 %v2610, %v2672
      %v2762 = vadd.f32 %v2611, %v2686
      %v2763 = vadd.f32 %v2612, %v2700
      %v2764 = vadd.f32 %v2613, %v2714
      %v2765 = vadd.f32 %v2614, %v2728
      %v2766 = vadd.f32 %v2615, %v2742
      %v2767 = vadd.f32 %v2616, %v2756
      %v2768 = vadd.f32 %v2617, %v2660
      %v2769 = vadd.f32 %v2618, %v2674
      %v2770 = vadd.f32 %v2619, %v2688
      %v2771 = vadd.f32 %v2620, %v2702
      %v2772 = vadd.f32 %v2621, %v2716
      %v2773 = vadd.f32 %v2622, %v2730
      %v2774 = vadd.f32 %v2623, %v2744
      %v2775 = vadd.f32 %v2624, %v2758
      %s2776 = scalar_lea.vmem %s2, 104
      %v2777 = vld [vmem:[%s2776] sm:$0xf]
      %v2778 = vld [vmem:[%s2776 + $0x4] sm:$0xf]
      %v2781 = vunpack.c.l.b16 %v2777
      %v2782 = vunpack.c.l.b16 %v2778
      %v2783 = vpack.c.b16 %v2782, %v2781
      %2784 = vrot.lane.b32.xlu0 %v519, 111
      %v2785 = vpop.permute.xlu0 %2784
      %2786 = vrot.lane.b32.xlu0 %v520, 111
      %v2787 = vpop.permute.xlu0 %2786
      %v2788 = vsel %vm1254, %v1253, %v2785
      %v2789 = vsel %vm1254, %v2785, %v2787
      %v2791 = vsel %vm560, %v2783, 0
      %v2794 = vand.u32 %v2788, %v567
      %v2797 = vand.u32 %v2789, %v567
      %2799 = vmatpush.bf16.msra.mxu0 0
      %2800 = vmatpush.bf16.msra.mxu0 0
      %2801 = vmatpush.bf16.msra.mxu0 0
      %2802 = vmatpush.bf16.msra.mxu0 0
      %2803 = vmatpush.bf16.msra.mxu0 0
      %2804 = vmatpush.bf16.msra.mxu0 0
      %2805 = vmatpush.bf16.msra.mxu0 0
      %2806 = vmatpush.bf16.msra.mxu0 %v1273
      %2807 = vmatmul.bf16.gmra.mxu0 %v2791
      %v2808 = vpop.f32.mrf.mxu0
      %v2809 = vadd.f32 0.0, %v2808
      %v2810 = vpop.f32.mrf.mxu0
      %v2811 = vadd.f32 0.0, %v2810
      %2812 = vdwg.mxu0
      %2813 = vmatpush.bf16.msra.mxu0 0
      %2814 = vmatpush.bf16.msra.mxu0 0
      %2815 = vmatpush.bf16.msra.mxu0 0
      %2816 = vmatpush.bf16.msra.mxu0 0
      %2817 = vmatpush.bf16.msra.mxu0 0
      %2818 = vmatpush.bf16.msra.mxu0 0
      %2819 = vmatpush.bf16.msra.mxu0 0
      %2820 = vmatpush.bf16.msra.mxu0 %v1276
      %2821 = vmatmul.bf16.gmra.mxu0 %v2791
      %v2822 = vpop.f32.mrf.mxu0
      %v2823 = vadd.f32 0.0, %v2822
      %v2824 = vpop.f32.mrf.mxu0
      %v2825 = vadd.f32 0.0, %v2824
      %2826 = vdwg.mxu0
      %2827 = vmatpush.bf16.msra.mxu0 0
      %2828 = vmatpush.bf16.msra.mxu0 0
      %2829 = vmatpush.bf16.msra.mxu0 0
      %2830 = vmatpush.bf16.msra.mxu0 0
      %2831 = vmatpush.bf16.msra.mxu0 0
      %2832 = vmatpush.bf16.msra.mxu0 0
      %2833 = vmatpush.bf16.msra.mxu0 0
      %2834 = vmatpush.bf16.msra.mxu0 %v1279
      %2835 = vmatmul.bf16.gmra.mxu0 %v2791
      %v2836 = vpop.f32.mrf.mxu0
      %v2837 = vadd.f32 0.0, %v2836
      %v2838 = vpop.f32.mrf.mxu0
      %v2839 = vadd.f32 0.0, %v2838
      %2840 = vdwg.mxu0
      %2841 = vmatpush.bf16.msra.mxu0 0
      %2842 = vmatpush.bf16.msra.mxu0 0
      %2843 = vmatpush.bf16.msra.mxu0 0
      %2844 = vmatpush.bf16.msra.mxu0 0
      %2845 = vmatpush.bf16.msra.mxu0 0
      %2846 = vmatpush.bf16.msra.mxu0 0
      %2847 = vmatpush.bf16.msra.mxu0 0
      %2848 = vmatpush.bf16.msra.mxu0 %v1282
      %2849 = vmatmul.bf16.gmra.mxu0 %v2791
      %v2850 = vpop.f32.mrf.mxu0
      %v2851 = vadd.f32 0.0, %v2850
      %v2852 = vpop.f32.mrf.mxu0
      %v2853 = vadd.f32 0.0, %v2852
      %2854 = vdwg.mxu0
      %2855 = vmatpush.bf16.msra.mxu0 0
      %2856 = vmatpush.bf16.msra.mxu0 0
      %2857 = vmatpush.bf16.msra.mxu0 0
      %2858 = vmatpush.bf16.msra.mxu0 0
      %2859 = vmatpush.bf16.msra.mxu0 0
      %2860 = vmatpush.bf16.msra.mxu0 0
      %2861 = vmatpush.bf16.msra.mxu0 0
      %2862 = vmatpush.bf16.msra.mxu0 %v1285
      %2863 = vmatmul.bf16.gmra.mxu0 %v2791
      %v2864 = vpop.f32.mrf.mxu0
      %v2865 = vadd.f32 0.0, %v2864
      %v2866 = vpop.f32.mrf.mxu0
      %v2867 = vadd.f32 0.0, %v2866
      %2868 = vdwg.mxu0
      %2869 = vmatpush.bf16.msra.mxu0 0
      %2870 = vmatpush.bf16.msra.mxu0 0
      %2871 = vmatpush.bf16.msra.mxu0 0
      %2872 = vmatpush.bf16.msra.mxu0 0
      %2873 = vmatpush.bf16.msra.mxu0 0
      %2874 = vmatpush.bf16.msra.mxu0 0
      %2875 = vmatpush.bf16.msra.mxu0 0
      %2876 = vmatpush.bf16.msra.mxu0 %v1288
      %2877 = vmatmul.bf16.gmra.mxu0 %v2791
      %v2878 = vpop.f32.mrf.mxu0
      %v2879 = vadd.f32 0.0, %v2878
      %v2880 = vpop.f32.mrf.mxu0
      %v2881 = vadd.f32 0.0, %v2880
      %2882 = vdwg.mxu0
      %2883 = vmatpush.bf16.msra.mxu0 0
      %2884 = vmatpush.bf16.msra.mxu0 0
      %2885 = vmatpush.bf16.msra.mxu0 0
      %2886 = vmatpush.bf16.msra.mxu0 0
      %2887 = vmatpush.bf16.msra.mxu0 0
      %2888 = vmatpush.bf16.msra.mxu0 0
      %2889 = vmatpush.bf16.msra.mxu0 0
      %2890 = vmatpush.bf16.msra.mxu0 %v2794
      %2891 = vmatmul.bf16.gmra.mxu0 %v2791
      %v2892 = vpop.f32.mrf.mxu0
      %v2893 = vadd.f32 0.0, %v2892
      %v2894 = vpop.f32.mrf.mxu0
      %v2895 = vadd.f32 0.0, %v2894
      %2896 = vdwg.mxu0
      %2897 = vmatpush.bf16.msra.mxu0 0
      %2898 = vmatpush.bf16.msra.mxu0 0
      %2899 = vmatpush.bf16.msra.mxu0 0
      %2900 = vmatpush.bf16.msra.mxu0 0
      %2901 = vmatpush.bf16.msra.mxu0 0
      %2902 = vmatpush.bf16.msra.mxu0 0
      %2903 = vmatpush.bf16.msra.mxu0 0
      %2904 = vmatpush.bf16.msra.mxu0 %v2797
      %2905 = vmatmul.bf16.gmra.mxu0 %v2791
      %v2906 = vpop.f32.mrf.mxu0
      %v2907 = vadd.f32 0.0, %v2906
      %v2908 = vpop.f32.mrf.mxu0
      %v2909 = vadd.f32 0.0, %v2908
      %2910 = vdwg.mxu0
      %v2911 = vadd.f32 %v2760, %v2809
      %v2912 = vadd.f32 %v2761, %v2823
      %v2913 = vadd.f32 %v2762, %v2837
      %v2914 = vadd.f32 %v2763, %v2851
      %v2915 = vadd.f32 %v2764, %v2865
      %v2916 = vadd.f32 %v2765, %v2879
      %v2917 = vadd.f32 %v2766, %v2893
      %v2918 = vadd.f32 %v2767, %v2907
      %v2919 = vadd.f32 %v2768, %v2811
      %v2920 = vadd.f32 %v2769, %v2825
      %v2921 = vadd.f32 %v2770, %v2839
      %v2922 = vadd.f32 %v2771, %v2853
      %v2923 = vadd.f32 %v2772, %v2867
      %v2924 = vadd.f32 %v2773, %v2881
      %v2925 = vadd.f32 %v2774, %v2895
      %v2926 = vadd.f32 %v2775, %v2909
      %s2927 = scalar_lea.vmem %s2, 112
      %v2928 = vld [vmem:[%s2927] sm:$0xf]
      %v2929 = vld [vmem:[%s2927 + $0x4] sm:$0xf]
      %v2932 = vunpack.c.l.b16 %v2928
      %v2933 = vunpack.c.l.b16 %v2929
      %v2934 = vpack.c.b16 %v2933, %v2932
      %2935 = vrot.lane.b32.xlu0 %v519, 110
      %v2936 = vpop.permute.xlu0 %2935
      %2937 = vrot.lane.b32.xlu0 %v520, 110
      %v2938 = vpop.permute.xlu0 %2937
      %v2939 = vsel %vm1444, %v1443, %v2936
      %v2940 = vsel %vm1444, %v2936, %v2938
      %v2942 = vsel %vm560, %v2934, 0
      %v2945 = vand.u32 %v2939, %v567
      %v2948 = vand.u32 %v2940, %v567
      %2950 = vmatpush.bf16.msra.mxu0 0
      %2951 = vmatpush.bf16.msra.mxu0 0
      %2952 = vmatpush.bf16.msra.mxu0 0
      %2953 = vmatpush.bf16.msra.mxu0 0
      %2954 = vmatpush.bf16.msra.mxu0 0
      %2955 = vmatpush.bf16.msra.mxu0 0
      %2956 = vmatpush.bf16.msra.mxu0 0
      %2957 = vmatpush.bf16.msra.mxu0 %v1463
      %2958 = vmatmul.bf16.gmra.mxu0 %v2942
      %v2959 = vpop.f32.mrf.mxu0
      %v2960 = vadd.f32 0.0, %v2959
      %v2961 = vpop.f32.mrf.mxu0
      %v2962 = vadd.f32 0.0, %v2961
      %2963 = vdwg.mxu0
      %2964 = vmatpush.bf16.msra.mxu0 0
      %2965 = vmatpush.bf16.msra.mxu0 0
      %2966 = vmatpush.bf16.msra.mxu0 0
      %2967 = vmatpush.bf16.msra.mxu0 0
      %2968 = vmatpush.bf16.msra.mxu0 0
      %2969 = vmatpush.bf16.msra.mxu0 0
      %2970 = vmatpush.bf16.msra.mxu0 0
      %2971 = vmatpush.bf16.msra.mxu0 %v1466
      %2972 = vmatmul.bf16.gmra.mxu0 %v2942
      %v2973 = vpop.f32.mrf.mxu0
      %v2974 = vadd.f32 0.0, %v2973
      %v2975 = vpop.f32.mrf.mxu0
      %v2976 = vadd.f32 0.0, %v2975
      %2977 = vdwg.mxu0
      %2978 = vmatpush.bf16.msra.mxu0 0
      %2979 = vmatpush.bf16.msra.mxu0 0
      %2980 = vmatpush.bf16.msra.mxu0 0
      %2981 = vmatpush.bf16.msra.mxu0 0
      %2982 = vmatpush.bf16.msra.mxu0 0
      %2983 = vmatpush.bf16.msra.mxu0 0
      %2984 = vmatpush.bf16.msra.mxu0 0
      %2985 = vmatpush.bf16.msra.mxu0 %v1469
      %2986 = vmatmul.bf16.gmra.mxu0 %v2942
      %v2987 = vpop.f32.mrf.mxu0
      %v2988 = vadd.f32 0.0, %v2987
      %v2989 = vpop.f32.mrf.mxu0
      %v2990 = vadd.f32 0.0, %v2989
      %2991 = vdwg.mxu0
      %2992 = vmatpush.bf16.msra.mxu0 0
      %2993 = vmatpush.bf16.msra.mxu0 0
      %2994 = vmatpush.bf16.msra.mxu0 0
      %2995 = vmatpush.bf16.msra.mxu0 0
      %2996 = vmatpush.bf16.msra.mxu0 0
      %2997 = vmatpush.bf16.msra.mxu0 0
      %2998 = vmatpush.bf16.msra.mxu0 0
      %2999 = vmatpush.bf16.msra.mxu0 %v1472
      %3000 = vmatmul.bf16.gmra.mxu0 %v2942
      %v3001 = vpop.f32.mrf.mxu0
      %v3002 = vadd.f32 0.0, %v3001
      %v3003 = vpop.f32.mrf.mxu0
      %v3004 = vadd.f32 0.0, %v3003
      %3005 = vdwg.mxu0
      %3006 = vmatpush.bf16.msra.mxu0 0
      %3007 = vmatpush.bf16.msra.mxu0 0
      %3008 = vmatpush.bf16.msra.mxu0 0
      %3009 = vmatpush.bf16.msra.mxu0 0
      %3010 = vmatpush.bf16.msra.mxu0 0
      %3011 = vmatpush.bf16.msra.mxu0 0
      %3012 = vmatpush.bf16.msra.mxu0 0
      %3013 = vmatpush.bf16.msra.mxu0 %v1475
      %3014 = vmatmul.bf16.gmra.mxu0 %v2942
      %v3015 = vpop.f32.mrf.mxu0
      %v3016 = vadd.f32 0.0, %v3015
      %v3017 = vpop.f32.mrf.mxu0
      %v3018 = vadd.f32 0.0, %v3017
      %3019 = vdwg.mxu0
      %3020 = vmatpush.bf16.msra.mxu0 0
      %3021 = vmatpush.bf16.msra.mxu0 0
      %3022 = vmatpush.bf16.msra.mxu0 0
      %3023 = vmatpush.bf16.msra.mxu0 0
      %3024 = vmatpush.bf16.msra.mxu0 0
      %3025 = vmatpush.bf16.msra.mxu0 0
      %3026 = vmatpush.bf16.msra.mxu0 0
      %3027 = vmatpush.bf16.msra.mxu0 %v1478
      %3028 = vmatmul.bf16.gmra.mxu0 %v2942
      %v3029 = vpop.f32.mrf.mxu0
      %v3030 = vadd.f32 0.0, %v3029
      %v3031 = vpop.f32.mrf.mxu0
      %v3032 = vadd.f32 0.0, %v3031
      %3033 = vdwg.mxu0
      %3034 = vmatpush.bf16.msra.mxu0 0
      %3035 = vmatpush.bf16.msra.mxu0 0
      %3036 = vmatpush.bf16.msra.mxu0 0
      %3037 = vmatpush.bf16.msra.mxu0 0
      %3038 = vmatpush.bf16.msra.mxu0 0
      %3039 = vmatpush.bf16.msra.mxu0 0
      %3040 = vmatpush.bf16.msra.mxu0 0
      %3041 = vmatpush.bf16.msra.mxu0 %v2945
      %3042 = vmatmul.bf16.gmra.mxu0 %v2942
      %v3043 = vpop.f32.mrf.mxu0
      %v3044 = vadd.f32 0.0, %v3043
      %v3045 = vpop.f32.mrf.mxu0
      %v3046 = vadd.f32 0.0, %v3045
      %3047 = vdwg.mxu0
      %3048 = vmatpush.bf16.msra.mxu0 0
      %3049 = vmatpush.bf16.msra.mxu0 0
      %3050 = vmatpush.bf16.msra.mxu0 0
      %3051 = vmatpush.bf16.msra.mxu0 0
      %3052 = vmatpush.bf16.msra.mxu0 0
      %3053 = vmatpush.bf16.msra.mxu0 0
      %3054 = vmatpush.bf16.msra.mxu0 0
      %3055 = vmatpush.bf16.msra.mxu0 %v2948
      %3056 = vmatmul.bf16.gmra.mxu0 %v2942
      %v3057 = vpop.f32.mrf.mxu0
      %v3058 = vadd.f32 0.0, %v3057
      %v3059 = vpop.f32.mrf.mxu0
      %v3060 = vadd.f32 0.0, %v3059
      %3061 = vdwg.mxu0
      %v3062 = vadd.f32 %v2911, %v2960
      %v3063 = vadd.f32 %v2912, %v2974
      %v3064 = vadd.f32 %v2913, %v2988
      %v3065 = vadd.f32 %v2914, %v3002
      %v3066 = vadd.f32 %v2915, %v3016
      %v3067 = vadd.f32 %v2916, %v3030
      %v3068 = vadd.f32 %v2917, %v3044
      %v3069 = vadd.f32 %v2918, %v3058
      %v3070 = vadd.f32 %v2919, %v2962
      %v3071 = vadd.f32 %v2920, %v2976
      %v3072 = vadd.f32 %v2921, %v2990
      %v3073 = vadd.f32 %v2922, %v3004
      %v3074 = vadd.f32 %v2923, %v3018
      %v3075 = vadd.f32 %v2924, %v3032
      %v3076 = vadd.f32 %v2925, %v3046
      %v3077 = vadd.f32 %v2926, %v3060
      %s3078 = scalar_lea.vmem %s2, 120
      %v3079 = vld [vmem:[%s3078] sm:$0xf]
      %v3080 = vld [vmem:[%s3078 + $0x4] sm:$0xf]
      %v3083 = vunpack.c.l.b16 %v3079
      %v3084 = vunpack.c.l.b16 %v3080
      %v3085 = vpack.c.b16 %v3084, %v3083
      %3086 = vrot.lane.b32.xlu0 %v519, 96
      %v3087 = vpop.permute.xlu0 %3086
      %3088 = vrot.lane.b32.xlu0 %v520, 96
      %v3089 = vpop.permute.xlu0 %3088
      %v3090 = vsel %vm1634, %v1633, %v3087
      %v3091 = vsel %vm1634, %v3087, %v3089
      %v3093 = vsel %vm560, %v3085, 0
      %v3096 = vand.u32 %v3090, %v567
      %v3099 = vand.u32 %v3091, %v567
      %3101 = vmatpush.bf16.msra.mxu0 0
      %3102 = vmatpush.bf16.msra.mxu0 0
      %3103 = vmatpush.bf16.msra.mxu0 0
      %3104 = vmatpush.bf16.msra.mxu0 0
      %3105 = vmatpush.bf16.msra.mxu0 0
      %3106 = vmatpush.bf16.msra.mxu0 0
      %3107 = vmatpush.bf16.msra.mxu0 0
      %3108 = vmatpush.bf16.msra.mxu0 %v1653
      %3109 = vmatmul.bf16.gmra.mxu0 %v3093
      %v3110 = vpop.f32.mrf.mxu0
      %v3111 = vadd.f32 0.0, %v3110
      %v3112 = vpop.f32.mrf.mxu0
      %v3113 = vadd.f32 0.0, %v3112
      %3114 = vdwg.mxu0
      %3115 = vmatpush.bf16.msra.mxu0 0
      %3116 = vmatpush.bf16.msra.mxu0 0
      %3117 = vmatpush.bf16.msra.mxu0 0
      %3118 = vmatpush.bf16.msra.mxu0 0
      %3119 = vmatpush.bf16.msra.mxu0 0
      %3120 = vmatpush.bf16.msra.mxu0 0
      %3121 = vmatpush.bf16.msra.mxu0 0
      %3122 = vmatpush.bf16.msra.mxu0 %v1656
      %3123 = vmatmul.bf16.gmra.mxu0 %v3093
      %v3124 = vpop.f32.mrf.mxu0
      %v3125 = vadd.f32 0.0, %v3124
      %v3126 = vpop.f32.mrf.mxu0
      %v3127 = vadd.f32 0.0, %v3126
      %3128 = vdwg.mxu0
      %3129 = vmatpush.bf16.msra.mxu0 0
      %3130 = vmatpush.bf16.msra.mxu0 0
      %3131 = vmatpush.bf16.msra.mxu0 0
      %3132 = vmatpush.bf16.msra.mxu0 0
      %3133 = vmatpush.bf16.msra.mxu0 0
      %3134 = vmatpush.bf16.msra.mxu0 0
      %3135 = vmatpush.bf16.msra.mxu0 0
      %3136 = vmatpush.bf16.msra.mxu0 %v1659
      %3137 = vmatmul.bf16.gmra.mxu0 %v3093
      %v3138 = vpop.f32.mrf.mxu0
      %v3139 = vadd.f32 0.0, %v3138
      %v3140 = vpop.f32.mrf.mxu0
      %v3141 = vadd.f32 0.0, %v3140
      %3142 = vdwg.mxu0
      %3143 = vmatpush.bf16.msra.mxu0 0
      %3144 = vmatpush.bf16.msra.mxu0 0
      %3145 = vmatpush.bf16.msra.mxu0 0
      %3146 = vmatpush.bf16.msra.mxu0 0
      %3147 = vmatpush.bf16.msra.mxu0 0
      %3148 = vmatpush.bf16.msra.mxu0 0
      %3149 = vmatpush.bf16.msra.mxu0 0
      %3150 = vmatpush.bf16.msra.mxu0 %v1662
      %3151 = vmatmul.bf16.gmra.mxu0 %v3093
      %v3152 = vpop.f32.mrf.mxu0
      %v3153 = vadd.f32 0.0, %v3152
      %v3154 = vpop.f32.mrf.mxu0
      %v3155 = vadd.f32 0.0, %v3154
      %3156 = vdwg.mxu0
      %3157 = vmatpush.bf16.msra.mxu0 0
      %3158 = vmatpush.bf16.msra.mxu0 0
      %3159 = vmatpush.bf16.msra.mxu0 0
      %3160 = vmatpush.bf16.msra.mxu0 0
      %3161 = vmatpush.bf16.msra.mxu0 0
      %3162 = vmatpush.bf16.msra.mxu0 0
      %3163 = vmatpush.bf16.msra.mxu0 0
      %3164 = vmatpush.bf16.msra.mxu0 %v1665
      %3165 = vmatmul.bf16.gmra.mxu0 %v3093
      %v3166 = vpop.f32.mrf.mxu0
      %v3167 = vadd.f32 0.0, %v3166
      %v3168 = vpop.f32.mrf.mxu0
      %v3169 = vadd.f32 0.0, %v3168
      %3170 = vdwg.mxu0
      %3171 = vmatpush.bf16.msra.mxu0 0
      %3172 = vmatpush.bf16.msra.mxu0 0
      %3173 = vmatpush.bf16.msra.mxu0 0
      %3174 = vmatpush.bf16.msra.mxu0 0
      %3175 = vmatpush.bf16.msra.mxu0 0
      %3176 = vmatpush.bf16.msra.mxu0 0
      %3177 = vmatpush.bf16.msra.mxu0 0
      %3178 = vmatpush.bf16.msra.mxu0 %v1668
      %3179 = vmatmul.bf16.gmra.mxu0 %v3093
      %v3180 = vpop.f32.mrf.mxu0
      %v3181 = vadd.f32 0.0, %v3180
      %v3182 = vpop.f32.mrf.mxu0
      %v3183 = vadd.f32 0.0, %v3182
      %3184 = vdwg.mxu0
      %3185 = vmatpush.bf16.msra.mxu0 0
      %3186 = vmatpush.bf16.msra.mxu0 0
      %3187 = vmatpush.bf16.msra.mxu0 0
      %3188 = vmatpush.bf16.msra.mxu0 0
      %3189 = vmatpush.bf16.msra.mxu0 0
      %3190 = vmatpush.bf16.msra.mxu0 0
      %3191 = vmatpush.bf16.msra.mxu0 0
      %3192 = vmatpush.bf16.msra.mxu0 %v3096
      %3193 = vmatmul.bf16.gmra.mxu0 %v3093
      %v3194 = vpop.f32.mrf.mxu0
      %v3195 = vadd.f32 0.0, %v3194
      %v3196 = vpop.f32.mrf.mxu0
      %v3197 = vadd.f32 0.0, %v3196
      %3198 = vdwg.mxu0
      %3199 = vmatpush.bf16.msra.mxu0 0
      %3200 = vmatpush.bf16.msra.mxu0 0
      %3201 = vmatpush.bf16.msra.mxu0 0
      %3202 = vmatpush.bf16.msra.mxu0 0
      %3203 = vmatpush.bf16.msra.mxu0 0
      %3204 = vmatpush.bf16.msra.mxu0 0
      %3205 = vmatpush.bf16.msra.mxu0 0
      %3206 = vmatpush.bf16.msra.mxu0 %v3099
      %3207 = vmatmul.bf16.gmra.mxu0 %v3093
      %v3208 = vpop.f32.mrf.mxu0
      %v3209 = vadd.f32 0.0, %v3208
      %v3210 = vpop.f32.mrf.mxu0
      %v3211 = vadd.f32 0.0, %v3210
      %3212 = vdwg.mxu0
      %v3213 = vadd.f32 %v3062, %v3111
      %v3214 = vadd.f32 %v3063, %v3125
      %v3215 = vadd.f32 %v3064, %v3139
      %v3216 = vadd.f32 %v3065, %v3153
      %v3217 = vadd.f32 %v3066, %v3167
      %v3218 = vadd.f32 %v3067, %v3181
      %v3219 = vadd.f32 %v3068, %v3195
      %v3220 = vadd.f32 %v3069, %v3209
      %v3221 = vadd.f32 %v3070, %v3113
      %v3222 = vadd.f32 %v3071, %v3127
      %v3223 = vadd.f32 %v3072, %v3141
      %v3224 = vadd.f32 %v3073, %v3155
      %v3225 = vadd.f32 %v3074, %v3169
      %v3226 = vadd.f32 %v3075, %v3183
      %v3227 = vadd.f32 %v3076, %v3197
      %v3228 = vadd.f32 %v3077, %v3211
      %s3229 = scalar_lea.vmem %s2, 128
      %v3230 = vld [vmem:[%s3229] sm:$0xf]
      %v3231 = vld [vmem:[%s3229 + $0x4] sm:$0xf]
      %v3234 = vunpack.c.l.b16 %v3230
      %v3235 = vunpack.c.l.b16 %v3231
      %v3236 = vpack.c.b16 %v3235, %v3234
      %3237 = vrot.lane.b32.xlu0 %v519, 95
      %v3238 = vpop.permute.xlu0 %3237
      %3239 = vrot.lane.b32.xlu0 %v520, 95
      %v3240 = vpop.permute.xlu0 %3239
      %v3241 = vsel %vm1824, %v1823, %v3238
      %v3242 = vsel %vm1824, %v3238, %v3240
      %v3244 = vsel %vm560, %v3236, 0
      %v3247 = vand.u32 %v3241, %v567
      %v3250 = vand.u32 %v3242, %v567
      %3252 = vmatpush.bf16.msra.mxu0 0
      %3253 = vmatpush.bf16.msra.mxu0 0
      %3254 = vmatpush.bf16.msra.mxu0 0
      %3255 = vmatpush.bf16.msra.mxu0 0
      %3256 = vmatpush.bf16.msra.mxu0 0
      %3257 = vmatpush.bf16.msra.mxu0 0
      %3258 = vmatpush.bf16.msra.mxu0 0
      %3259 = vmatpush.bf16.msra.mxu0 %v1843
      %3260 = vmatmul.bf16.gmra.mxu0 %v3244
      %v3261 = vpop.f32.mrf.mxu0
      %v3262 = vadd.f32 0.0, %v3261
      %v3263 = vpop.f32.mrf.mxu0
      %v3264 = vadd.f32 0.0, %v3263
      %3265 = vdwg.mxu0
      %3266 = vmatpush.bf16.msra.mxu0 0
      %3267 = vmatpush.bf16.msra.mxu0 0
      %3268 = vmatpush.bf16.msra.mxu0 0
      %3269 = vmatpush.bf16.msra.mxu0 0
      %3270 = vmatpush.bf16.msra.mxu0 0
      %3271 = vmatpush.bf16.msra.mxu0 0
      %3272 = vmatpush.bf16.msra.mxu0 0
      %3273 = vmatpush.bf16.msra.mxu0 %v1846
      %3274 = vmatmul.bf16.gmra.mxu0 %v3244
      %v3275 = vpop.f32.mrf.mxu0
      %v3276 = vadd.f32 0.0, %v3275
      %v3277 = vpop.f32.mrf.mxu0
      %v3278 = vadd.f32 0.0, %v3277
      %3279 = vdwg.mxu0
      %3280 = vmatpush.bf16.msra.mxu0 0
      %3281 = vmatpush.bf16.msra.mxu0 0
      %3282 = vmatpush.bf16.msra.mxu0 0
      %3283 = vmatpush.bf16.msra.mxu0 0
      %3284 = vmatpush.bf16.msra.mxu0 0
      %3285 = vmatpush.bf16.msra.mxu0 0
      %3286 = vmatpush.bf16.msra.mxu0 0
      %3287 = vmatpush.bf16.msra.mxu0 %v1849
      %3288 = vmatmul.bf16.gmra.mxu0 %v3244
      %v3289 = vpop.f32.mrf.mxu0
      %v3290 = vadd.f32 0.0, %v3289
      %v3291 = vpop.f32.mrf.mxu0
      %v3292 = vadd.f32 0.0, %v3291
      %3293 = vdwg.mxu0
      %3294 = vmatpush.bf16.msra.mxu0 0
      %3295 = vmatpush.bf16.msra.mxu0 0
      %3296 = vmatpush.bf16.msra.mxu0 0
      %3297 = vmatpush.bf16.msra.mxu0 0
      %3298 = vmatpush.bf16.msra.mxu0 0
      %3299 = vmatpush.bf16.msra.mxu0 0
      %3300 = vmatpush.bf16.msra.mxu0 0
      %3301 = vmatpush.bf16.msra.mxu0 %v1852
      %3302 = vmatmul.bf16.gmra.mxu0 %v3244
      %v3303 = vpop.f32.mrf.mxu0
      %v3304 = vadd.f32 0.0, %v3303
      %v3305 = vpop.f32.mrf.mxu0
      %v3306 = vadd.f32 0.0, %v3305
      %3307 = vdwg.mxu0
      %3308 = vmatpush.bf16.msra.mxu0 0
      %3309 = vmatpush.bf16.msra.mxu0 0
      %3310 = vmatpush.bf16.msra.mxu0 0
      %3311 = vmatpush.bf16.msra.mxu0 0
      %3312 = vmatpush.bf16.msra.mxu0 0
      %3313 = vmatpush.bf16.msra.mxu0 0
      %3314 = vmatpush.bf16.msra.mxu0 0
      %3315 = vmatpush.bf16.msra.mxu0 %v1855
      %3316 = vmatmul.bf16.gmra.mxu0 %v3244
      %v3317 = vpop.f32.mrf.mxu0
      %v3318 = vadd.f32 0.0, %v3317
      %v3319 = vpop.f32.mrf.mxu0
      %v3320 = vadd.f32 0.0, %v3319
      %3321 = vdwg.mxu0
      %3322 = vmatpush.bf16.msra.mxu0 0
      %3323 = vmatpush.bf16.msra.mxu0 0
      %3324 = vmatpush.bf16.msra.mxu0 0
      %3325 = vmatpush.bf16.msra.mxu0 0
      %3326 = vmatpush.bf16.msra.mxu0 0
      %3327 = vmatpush.bf16.msra.mxu0 0
      %3328 = vmatpush.bf16.msra.mxu0 0
      %3329 = vmatpush.bf16.msra.mxu0 %v1858
      %3330 = vmatmul.bf16.gmra.mxu0 %v3244
      %v3331 = vpop.f32.mrf.mxu0
      %v3332 = vadd.f32 0.0, %v3331
      %v3333 = vpop.f32.mrf.mxu0
      %v3334 = vadd.f32 0.0, %v3333
      %3335 = vdwg.mxu0
      %3336 = vmatpush.bf16.msra.mxu0 0
      %3337 = vmatpush.bf16.msra.mxu0 0
      %3338 = vmatpush.bf16.msra.mxu0 0
      %3339 = vmatpush.bf16.msra.mxu0 0
      %3340 = vmatpush.bf16.msra.mxu0 0
      %3341 = vmatpush.bf16.msra.mxu0 0
      %3342 = vmatpush.bf16.msra.mxu0 0
      %3343 = vmatpush.bf16.msra.mxu0 %v3247
      %3344 = vmatmul.bf16.gmra.mxu0 %v3244
      %v3345 = vpop.f32.mrf.mxu0
      %v3346 = vadd.f32 0.0, %v3345
      %v3347 = vpop.f32.mrf.mxu0
      %v3348 = vadd.f32 0.0, %v3347
      %3349 = vdwg.mxu0
      %3350 = vmatpush.bf16.msra.mxu0 0
      %3351 = vmatpush.bf16.msra.mxu0 0
      %3352 = vmatpush.bf16.msra.mxu0 0
      %3353 = vmatpush.bf16.msra.mxu0 0
      %3354 = vmatpush.bf16.msra.mxu0 0
      %3355 = vmatpush.bf16.msra.mxu0 0
      %3356 = vmatpush.bf16.msra.mxu0 0
      %3357 = vmatpush.bf16.msra.mxu0 %v3250
      %3358 = vmatmul.bf16.gmra.mxu0 %v3244
      %v3359 = vpop.f32.mrf.mxu0
      %v3360 = vadd.f32 0.0, %v3359
      %v3361 = vpop.f32.mrf.mxu0
      %v3362 = vadd.f32 0.0, %v3361
      %3363 = vdwg.mxu0
      %v3364 = vadd.f32 %v3213, %v3262
      %v3365 = vadd.f32 %v3214, %v3276
      %v3366 = vadd.f32 %v3215, %v3290
      %v3367 = vadd.f32 %v3216, %v3304
      %v3368 = vadd.f32 %v3217, %v3318
      %v3369 = vadd.f32 %v3218, %v3332
      %v3370 = vadd.f32 %v3219, %v3346
      %v3371 = vadd.f32 %v3220, %v3360
      %v3372 = vadd.f32 %v3221, %v3264
      %v3373 = vadd.f32 %v3222, %v3278
      %v3374 = vadd.f32 %v3223, %v3292
      %v3375 = vadd.f32 %v3224, %v3306
      %v3376 = vadd.f32 %v3225, %v3320
      %v3377 = vadd.f32 %v3226, %v3334
      %v3378 = vadd.f32 %v3227, %v3348
      %v3379 = vadd.f32 %v3228, %v3362
      %s3380 = scalar_lea.vmem %s2, 136
      %v3381 = vld [vmem:[%s3380] sm:$0xf]
      %v3382 = vld [vmem:[%s3380 + $0x4] sm:$0xf]
      %v3385 = vunpack.c.l.b16 %v3381
      %v3386 = vunpack.c.l.b16 %v3382
      %v3387 = vpack.c.b16 %v3386, %v3385
      %3388 = vrot.lane.b32.xlu0 %v519, 94
      %v3389 = vpop.permute.xlu0 %3388
      %3390 = vrot.lane.b32.xlu0 %v520, 94
      %v3391 = vpop.permute.xlu0 %3390
      %v3392 = vsel %vm2014, %v2013, %v3389
      %v3393 = vsel %vm2014, %v3389, %v3391
      %v3395 = vsel %vm560, %v3387, 0
      %v3398 = vand.u32 %v3392, %v567
      %v3401 = vand.u32 %v3393, %v567
      %3403 = vmatpush.bf16.msra.mxu0 0
      %3404 = vmatpush.bf16.msra.mxu0 0
      %3405 = vmatpush.bf16.msra.mxu0 0
      %3406 = vmatpush.bf16.msra.mxu0 0
      %3407 = vmatpush.bf16.msra.mxu0 0
      %3408 = vmatpush.bf16.msra.mxu0 0
      %3409 = vmatpush.bf16.msra.mxu0 0
      %3410 = vmatpush.bf16.msra.mxu0 %v2033
      %3411 = vmatmul.bf16.gmra.mxu0 %v3395
      %v3412 = vpop.f32.mrf.mxu0
      %v3413 = vadd.f32 0.0, %v3412
      %v3414 = vpop.f32.mrf.mxu0
      %v3415 = vadd.f32 0.0, %v3414
      %3416 = vdwg.mxu0
      %3417 = vmatpush.bf16.msra.mxu0 0
      %3418 = vmatpush.bf16.msra.mxu0 0
      %3419 = vmatpush.bf16.msra.mxu0 0
      %3420 = vmatpush.bf16.msra.mxu0 0
      %3421 = vmatpush.bf16.msra.mxu0 0
      %3422 = vmatpush.bf16.msra.mxu0 0
      %3423 = vmatpush.bf16.msra.mxu0 0
      %3424 = vmatpush.bf16.msra.mxu0 %v2036
      %3425 = vmatmul.bf16.gmra.mxu0 %v3395
      %v3426 = vpop.f32.mrf.mxu0
      %v3427 = vadd.f32 0.0, %v3426
      %v3428 = vpop.f32.mrf.mxu0
      %v3429 = vadd.f32 0.0, %v3428
      %3430 = vdwg.mxu0
      %3431 = vmatpush.bf16.msra.mxu0 0
      %3432 = vmatpush.bf16.msra.mxu0 0
      %3433 = vmatpush.bf16.msra.mxu0 0
      %3434 = vmatpush.bf16.msra.mxu0 0
      %3435 = vmatpush.bf16.msra.mxu0 0
      %3436 = vmatpush.bf16.msra.mxu0 0
      %3437 = vmatpush.bf16.msra.mxu0 0
      %3438 = vmatpush.bf16.msra.mxu0 %v2039
      %3439 = vmatmul.bf16.gmra.mxu0 %v3395
      %v3440 = vpop.f32.mrf.mxu0
      %v3441 = vadd.f32 0.0, %v3440
      %v3442 = vpop.f32.mrf.mxu0
      %v3443 = vadd.f32 0.0, %v3442
      %3444 = vdwg.mxu0
      %3445 = vmatpush.bf16.msra.mxu0 0
      %3446 = vmatpush.bf16.msra.mxu0 0
      %3447 = vmatpush.bf16.msra.mxu0 0
      %3448 = vmatpush.bf16.msra.mxu0 0
      %3449 = vmatpush.bf16.msra.mxu0 0
      %3450 = vmatpush.bf16.msra.mxu0 0
      %3451 = vmatpush.bf16.msra.mxu0 0
      %3452 = vmatpush.bf16.msra.mxu0 %v2042
      %3453 = vmatmul.bf16.gmra.mxu0 %v3395
      %v3454 = vpop.f32.mrf.mxu0
      %v3455 = vadd.f32 0.0, %v3454
      %v3456 = vpop.f32.mrf.mxu0
      %v3457 = vadd.f32 0.0, %v3456
      %3458 = vdwg.mxu0
      %3459 = vmatpush.bf16.msra.mxu0 0
      %3460 = vmatpush.bf16.msra.mxu0 0
      %3461 = vmatpush.bf16.msra.mxu0 0
      %3462 = vmatpush.bf16.msra.mxu0 0
      %3463 = vmatpush.bf16.msra.mxu0 0
      %3464 = vmatpush.bf16.msra.mxu0 0
      %3465 = vmatpush.bf16.msra.mxu0 0
      %3466 = vmatpush.bf16.msra.mxu0 %v2045
      %3467 = vmatmul.bf16.gmra.mxu0 %v3395
      %v3468 = vpop.f32.mrf.mxu0
      %v3469 = vadd.f32 0.0, %v3468
      %v3470 = vpop.f32.mrf.mxu0
      %v3471 = vadd.f32 0.0, %v3470
      %3472 = vdwg.mxu0
      %3473 = vmatpush.bf16.msra.mxu0 0
      %3474 = vmatpush.bf16.msra.mxu0 0
      %3475 = vmatpush.bf16.msra.mxu0 0
      %3476 = vmatpush.bf16.msra.mxu0 0
      %3477 = vmatpush.bf16.msra.mxu0 0
      %3478 = vmatpush.bf16.msra.mxu0 0
      %3479 = vmatpush.bf16.msra.mxu0 0
      %3480 = vmatpush.bf16.msra.mxu0 %v2048
      %3481 = vmatmul.bf16.gmra.mxu0 %v3395
      %v3482 = vpop.f32.mrf.mxu0
      %v3483 = vadd.f32 0.0, %v3482
      %v3484 = vpop.f32.mrf.mxu0
      %v3485 = vadd.f32 0.0, %v3484
      %3486 = vdwg.mxu0
      %3487 = vmatpush.bf16.msra.mxu0 0
      %3488 = vmatpush.bf16.msra.mxu0 0
      %3489 = vmatpush.bf16.msra.mxu0 0
      %3490 = vmatpush.bf16.msra.mxu0 0
      %3491 = vmatpush.bf16.msra.mxu0 0
      %3492 = vmatpush.bf16.msra.mxu0 0
      %3493 = vmatpush.bf16.msra.mxu0 0
      %3494 = vmatpush.bf16.msra.mxu0 %v3398
      %3495 = vmatmul.bf16.gmra.mxu0 %v3395
      %v3496 = vpop.f32.mrf.mxu0
      %v3497 = vadd.f32 0.0, %v3496
      %v3498 = vpop.f32.mrf.mxu0
      %v3499 = vadd.f32 0.0, %v3498
      %3500 = vdwg.mxu0
      %3501 = vmatpush.bf16.msra.mxu0 0
      %3502 = vmatpush.bf16.msra.mxu0 0
      %3503 = vmatpush.bf16.msra.mxu0 0
      %3504 = vmatpush.bf16.msra.mxu0 0
      %3505 = vmatpush.bf16.msra.mxu0 0
      %3506 = vmatpush.bf16.msra.mxu0 0
      %3507 = vmatpush.bf16.msra.mxu0 0
      %3508 = vmatpush.bf16.msra.mxu0 %v3401
      %3509 = vmatmul.bf16.gmra.mxu0 %v3395
      %v3510 = vpop.f32.mrf.mxu0
      %v3511 = vadd.f32 0.0, %v3510
      %v3512 = vpop.f32.mrf.mxu0
      %v3513 = vadd.f32 0.0, %v3512
      %3514 = vdwg.mxu0
      %v3515 = vadd.f32 %v3364, %v3413
      %v3516 = vadd.f32 %v3365, %v3427
      %v3517 = vadd.f32 %v3366, %v3441
      %v3518 = vadd.f32 %v3367, %v3455
      %v3519 = vadd.f32 %v3368, %v3469
      %v3520 = vadd.f32 %v3369, %v3483
      %v3521 = vadd.f32 %v3370, %v3497
      %v3522 = vadd.f32 %v3371, %v3511
      %v3523 = vadd.f32 %v3372, %v3415
      %v3524 = vadd.f32 %v3373, %v3429
      %v3525 = vadd.f32 %v3374, %v3443
      %v3526 = vadd.f32 %v3375, %v3457
      %v3527 = vadd.f32 %v3376, %v3471
      %v3528 = vadd.f32 %v3377, %v3485
      %v3529 = vadd.f32 %v3378, %v3499
      %v3530 = vadd.f32 %v3379, %v3513
      %s3531 = scalar_lea.vmem %s2, 144
      %v3532 = vld [vmem:[%s3531] sm:$0xf]
      %v3533 = vld [vmem:[%s3531 + $0x4] sm:$0xf]
      %v3536 = vunpack.c.l.b16 %v3532
      %v3537 = vunpack.c.l.b16 %v3533
      %v3538 = vpack.c.b16 %v3537, %v3536
      %v3540 = vsel %vm560, %v3538, 0
      %v3543 = vand.u32 %v520, %v567
      %v3546 = vand.u32 %v521, %v567
      %3548 = vmatpush.bf16.msra.mxu0 0
      %3549 = vmatpush.bf16.msra.mxu0 0
      %3550 = vmatpush.bf16.msra.mxu0 0
      %3551 = vmatpush.bf16.msra.mxu0 0
      %3552 = vmatpush.bf16.msra.mxu0 0
      %3553 = vmatpush.bf16.msra.mxu0 0
      %3554 = vmatpush.bf16.msra.mxu0 0
      %3555 = vmatpush.bf16.msra.mxu0 %v725
      %3556 = vmatmul.bf16.gmra.mxu0 %v3540
      %v3557 = vpop.f32.mrf.mxu0
      %v3558 = vadd.f32 0.0, %v3557
      %v3559 = vpop.f32.mrf.mxu0
      %v3560 = vadd.f32 0.0, %v3559
      %3561 = vdwg.mxu0
      %3562 = vmatpush.bf16.msra.mxu0 0
      %3563 = vmatpush.bf16.msra.mxu0 0
      %3564 = vmatpush.bf16.msra.mxu0 0
      %3565 = vmatpush.bf16.msra.mxu0 0
      %3566 = vmatpush.bf16.msra.mxu0 0
      %3567 = vmatpush.bf16.msra.mxu0 0
      %3568 = vmatpush.bf16.msra.mxu0 0
      %3569 = vmatpush.bf16.msra.mxu0 %v728
      %3570 = vmatmul.bf16.gmra.mxu0 %v3540
      %v3571 = vpop.f32.mrf.mxu0
      %v3572 = vadd.f32 0.0, %v3571
      %v3573 = vpop.f32.mrf.mxu0
      %v3574 = vadd.f32 0.0, %v3573
      %3575 = vdwg.mxu0
      %3576 = vmatpush.bf16.msra.mxu0 0
      %3577 = vmatpush.bf16.msra.mxu0 0
      %3578 = vmatpush.bf16.msra.mxu0 0
      %3579 = vmatpush.bf16.msra.mxu0 0
      %3580 = vmatpush.bf16.msra.mxu0 0
      %3581 = vmatpush.bf16.msra.mxu0 0
      %3582 = vmatpush.bf16.msra.mxu0 0
      %3583 = vmatpush.bf16.msra.mxu0 %v731
      %3584 = vmatmul.bf16.gmra.mxu0 %v3540
      %v3585 = vpop.f32.mrf.mxu0
      %v3586 = vadd.f32 0.0, %v3585
      %v3587 = vpop.f32.mrf.mxu0
      %v3588 = vadd.f32 0.0, %v3587
      %3589 = vdwg.mxu0
      %3590 = vmatpush.bf16.msra.mxu0 0
      %3591 = vmatpush.bf16.msra.mxu0 0
      %3592 = vmatpush.bf16.msra.mxu0 0
      %3593 = vmatpush.bf16.msra.mxu0 0
      %3594 = vmatpush.bf16.msra.mxu0 0
      %3595 = vmatpush.bf16.msra.mxu0 0
      %3596 = vmatpush.bf16.msra.mxu0 0
      %3597 = vmatpush.bf16.msra.mxu0 %v734
      %3598 = vmatmul.bf16.gmra.mxu0 %v3540
      %v3599 = vpop.f32.mrf.mxu0
      %v3600 = vadd.f32 0.0, %v3599
      %v3601 = vpop.f32.mrf.mxu0
      %v3602 = vadd.f32 0.0, %v3601
      %3603 = vdwg.mxu0
      %3604 = vmatpush.bf16.msra.mxu0 0
      %3605 = vmatpush.bf16.msra.mxu0 0
      %3606 = vmatpush.bf16.msra.mxu0 0
      %3607 = vmatpush.bf16.msra.mxu0 0
      %3608 = vmatpush.bf16.msra.mxu0 0
      %3609 = vmatpush.bf16.msra.mxu0 0
      %3610 = vmatpush.bf16.msra.mxu0 0
      %3611 = vmatpush.bf16.msra.mxu0 %v2190
      %3612 = vmatmul.bf16.gmra.mxu0 %v3540
      %v3613 = vpop.f32.mrf.mxu0
      %v3614 = vadd.f32 0.0, %v3613
      %v3615 = vpop.f32.mrf.mxu0
      %v3616 = vadd.f32 0.0, %v3615
      %3617 = vdwg.mxu0
      %3618 = vmatpush.bf16.msra.mxu0 0
      %3619 = vmatpush.bf16.msra.mxu0 0
      %3620 = vmatpush.bf16.msra.mxu0 0
      %3621 = vmatpush.bf16.msra.mxu0 0
      %3622 = vmatpush.bf16.msra.mxu0 0
      %3623 = vmatpush.bf16.msra.mxu0 0
      %3624 = vmatpush.bf16.msra.mxu0 0
      %3625 = vmatpush.bf16.msra.mxu0 %v2193
      %3626 = vmatmul.bf16.gmra.mxu0 %v3540
      %v3627 = vpop.f32.mrf.mxu0
      %v3628 = vadd.f32 0.0, %v3627
      %v3629 = vpop.f32.mrf.mxu0
      %v3630 = vadd.f32 0.0, %v3629
      %3631 = vdwg.mxu0
      %3632 = vmatpush.bf16.msra.mxu0 0
      %3633 = vmatpush.bf16.msra.mxu0 0
      %3634 = vmatpush.bf16.msra.mxu0 0
      %3635 = vmatpush.bf16.msra.mxu0 0
      %3636 = vmatpush.bf16.msra.mxu0 0
      %3637 = vmatpush.bf16.msra.mxu0 0
      %3638 = vmatpush.bf16.msra.mxu0 0
      %3639 = vmatpush.bf16.msra.mxu0 %v3543
      %3640 = vmatmul.bf16.gmra.mxu0 %v3540
      %v3641 = vpop.f32.mrf.mxu0
      %v3642 = vadd.f32 0.0, %v3641
      %v3643 = vpop.f32.mrf.mxu0
      %v3644 = vadd.f32 0.0, %v3643
      %3645 = vdwg.mxu0
      %3646 = vmatpush.bf16.msra.mxu0 0
      %3647 = vmatpush.bf16.msra.mxu0 0
      %3648 = vmatpush.bf16.msra.mxu0 0
      %3649 = vmatpush.bf16.msra.mxu0 0
      %3650 = vmatpush.bf16.msra.mxu0 0
      %3651 = vmatpush.bf16.msra.mxu0 0
      %3652 = vmatpush.bf16.msra.mxu0 0
      %3653 = vmatpush.bf16.msra.mxu0 %v3546
      %3654 = vmatmul.bf16.gmra.mxu0 %v3540
      %v3655 = vpop.f32.mrf.mxu0
      %v3656 = vadd.f32 0.0, %v3655
      %v3657 = vpop.f32.mrf.mxu0
      %v3658 = vadd.f32 0.0, %v3657
      %3659 = vdwg.mxu0
      %v3660 = vadd.f32 %v3515, %v3558
      %v3661 = vadd.f32 %v3516, %v3572
      %v3662 = vadd.f32 %v3517, %v3586
      %v3663 = vadd.f32 %v3518, %v3600
      %v3664 = vadd.f32 %v3519, %v3614
      %v3665 = vadd.f32 %v3520, %v3628
      %v3666 = vadd.f32 %v3521, %v3642
      %v3667 = vadd.f32 %v3522, %v3656
      %v3668 = vadd.f32 %v3523, %v3560
      %v3669 = vadd.f32 %v3524, %v3574
      %v3670 = vadd.f32 %v3525, %v3588
      %v3671 = vadd.f32 %v3526, %v3602
      %v3672 = vadd.f32 %v3527, %v3616
      %v3673 = vadd.f32 %v3528, %v3630
      %v3674 = vadd.f32 %v3529, %v3644
      %v3675 = vadd.f32 %v3530, %v3658
      %s3676 = scalar_lea.vmem %s2, 152
      %v3677 = vld [vmem:[%s3676] sm:$0xf]
      %v3678 = vld [vmem:[%s3676 + $0x4] sm:$0xf]
      %v3681 = vunpack.c.l.b16 %v3677
      %v3682 = vunpack.c.l.b16 %v3678
      %v3683 = vpack.c.b16 %v3682, %v3681
      %3684 = vrot.lane.b32.xlu0 %v521, 127
      %v3685 = vpop.permute.xlu0 %3684
      %3686 = vrot.lane.b32.xlu0 %v522, 127
      %v3687 = vpop.permute.xlu0 %3686
      %v3688 = vsel %vm551, %v2334, %v3685
      %v3689 = vsel %vm551, %v3685, %v3687
      %v3691 = vsel %vm560, %v3683, 0
      %v3694 = vand.u32 %v3688, %v567
      %v3697 = vand.u32 %v3689, %v567
      %3699 = vmatpush.bf16.msra.mxu0 0
      %3700 = vmatpush.bf16.msra.mxu0 0
      %3701 = vmatpush.bf16.msra.mxu0 0
      %3702 = vmatpush.bf16.msra.mxu0 0
      %3703 = vmatpush.bf16.msra.mxu0 0
      %3704 = vmatpush.bf16.msra.mxu0 0
      %3705 = vmatpush.bf16.msra.mxu0 0
      %3706 = vmatpush.bf16.msra.mxu0 %v581
      %3707 = vmatmul.bf16.gmra.mxu0 %v3691
      %v3708 = vpop.f32.mrf.mxu0
      %v3709 = vadd.f32 0.0, %v3708
      %v3710 = vpop.f32.mrf.mxu0
      %v3711 = vadd.f32 0.0, %v3710
      %3712 = vdwg.mxu0
      %3713 = vmatpush.bf16.msra.mxu0 0
      %3714 = vmatpush.bf16.msra.mxu0 0
      %3715 = vmatpush.bf16.msra.mxu0 0
      %3716 = vmatpush.bf16.msra.mxu0 0
      %3717 = vmatpush.bf16.msra.mxu0 0
      %3718 = vmatpush.bf16.msra.mxu0 0
      %3719 = vmatpush.bf16.msra.mxu0 0
      %3720 = vmatpush.bf16.msra.mxu0 %v584
      %3721 = vmatmul.bf16.gmra.mxu0 %v3691
      %v3722 = vpop.f32.mrf.mxu0
      %v3723 = vadd.f32 0.0, %v3722
      %v3724 = vpop.f32.mrf.mxu0
      %v3725 = vadd.f32 0.0, %v3724
      %3726 = vdwg.mxu0
      %3727 = vmatpush.bf16.msra.mxu0 0
      %3728 = vmatpush.bf16.msra.mxu0 0
      %3729 = vmatpush.bf16.msra.mxu0 0
      %3730 = vmatpush.bf16.msra.mxu0 0
      %3731 = vmatpush.bf16.msra.mxu0 0
      %3732 = vmatpush.bf16.msra.mxu0 0
      %3733 = vmatpush.bf16.msra.mxu0 0
      %3734 = vmatpush.bf16.msra.mxu0 %v587
      %3735 = vmatmul.bf16.gmra.mxu0 %v3691
      %v3736 = vpop.f32.mrf.mxu0
      %v3737 = vadd.f32 0.0, %v3736
      %v3738 = vpop.f32.mrf.mxu0
      %v3739 = vadd.f32 0.0, %v3738
      %3740 = vdwg.mxu0
      %3741 = vmatpush.bf16.msra.mxu0 0
      %3742 = vmatpush.bf16.msra.mxu0 0
      %3743 = vmatpush.bf16.msra.mxu0 0
      %3744 = vmatpush.bf16.msra.mxu0 0
      %3745 = vmatpush.bf16.msra.mxu0 0
      %3746 = vmatpush.bf16.msra.mxu0 0
      %3747 = vmatpush.bf16.msra.mxu0 0
      %3748 = vmatpush.bf16.msra.mxu0 %v590
      %3749 = vmatmul.bf16.gmra.mxu0 %v3691
      %v3750 = vpop.f32.mrf.mxu0
      %v3751 = vadd.f32 0.0, %v3750
      %v3752 = vpop.f32.mrf.mxu0
      %v3753 = vadd.f32 0.0, %v3752
      %3754 = vdwg.mxu0
      %3755 = vmatpush.bf16.msra.mxu0 0
      %3756 = vmatpush.bf16.msra.mxu0 0
      %3757 = vmatpush.bf16.msra.mxu0 0
      %3758 = vmatpush.bf16.msra.mxu0 0
      %3759 = vmatpush.bf16.msra.mxu0 0
      %3760 = vmatpush.bf16.msra.mxu0 0
      %3761 = vmatpush.bf16.msra.mxu0 0
      %3762 = vmatpush.bf16.msra.mxu0 %v2341
      %3763 = vmatmul.bf16.gmra.mxu0 %v3691
      %v3764 = vpop.f32.mrf.mxu0
      %v3765 = vadd.f32 0.0, %v3764
      %v3766 = vpop.f32.mrf.mxu0
      %v3767 = vadd.f32 0.0, %v3766
      %3768 = vdwg.mxu0
      %3769 = vmatpush.bf16.msra.mxu0 0
      %3770 = vmatpush.bf16.msra.mxu0 0
      %3771 = vmatpush.bf16.msra.mxu0 0
      %3772 = vmatpush.bf16.msra.mxu0 0
      %3773 = vmatpush.bf16.msra.mxu0 0
      %3774 = vmatpush.bf16.msra.mxu0 0
      %3775 = vmatpush.bf16.msra.mxu0 0
      %3776 = vmatpush.bf16.msra.mxu0 %v2344
      %3777 = vmatmul.bf16.gmra.mxu0 %v3691
      %v3778 = vpop.f32.mrf.mxu0
      %v3779 = vadd.f32 0.0, %v3778
      %v3780 = vpop.f32.mrf.mxu0
      %v3781 = vadd.f32 0.0, %v3780
      %3782 = vdwg.mxu0
      %3783 = vmatpush.bf16.msra.mxu0 0
      %3784 = vmatpush.bf16.msra.mxu0 0
      %3785 = vmatpush.bf16.msra.mxu0 0
      %3786 = vmatpush.bf16.msra.mxu0 0
      %3787 = vmatpush.bf16.msra.mxu0 0
      %3788 = vmatpush.bf16.msra.mxu0 0
      %3789 = vmatpush.bf16.msra.mxu0 0
      %3790 = vmatpush.bf16.msra.mxu0 %v3694
      %3791 = vmatmul.bf16.gmra.mxu0 %v3691
      %v3792 = vpop.f32.mrf.mxu0
      %v3793 = vadd.f32 0.0, %v3792
      %v3794 = vpop.f32.mrf.mxu0
      %v3795 = vadd.f32 0.0, %v3794
      %3796 = vdwg.mxu0
      %3797 = vmatpush.bf16.msra.mxu0 0
      %3798 = vmatpush.bf16.msra.mxu0 0
      %3799 = vmatpush.bf16.msra.mxu0 0
      %3800 = vmatpush.bf16.msra.mxu0 0
      %3801 = vmatpush.bf16.msra.mxu0 0
      %3802 = vmatpush.bf16.msra.mxu0 0
      %3803 = vmatpush.bf16.msra.mxu0 0
      %3804 = vmatpush.bf16.msra.mxu0 %v3697
      %3805 = vmatmul.bf16.gmra.mxu0 %v3691
      %v3806 = vpop.f32.mrf.mxu0
      %v3807 = vadd.f32 0.0, %v3806
      %v3808 = vpop.f32.mrf.mxu0
      %v3809 = vadd.f32 0.0, %v3808
      %3810 = vdwg.mxu0
      %v3811 = vadd.f32 %v3660, %v3709
      %v3812 = vadd.f32 %v3661, %v3723
      %v3813 = vadd.f32 %v3662, %v3737
      %v3814 = vadd.f32 %v3663, %v3751
      %v3815 = vadd.f32 %v3664, %v3765
      %v3816 = vadd.f32 %v3665, %v3779
      %v3817 = vadd.f32 %v3666, %v3793
      %v3818 = vadd.f32 %v3667, %v3807
      %v3819 = vadd.f32 %v3668, %v3711
      %v3820 = vadd.f32 %v3669, %v3725
      %v3821 = vadd.f32 %v3670, %v3739
      %v3822 = vadd.f32 %v3671, %v3753
      %v3823 = vadd.f32 %v3672, %v3767
      %v3824 = vadd.f32 %v3673, %v3781
      %v3825 = vadd.f32 %v3674, %v3795
      %v3826 = vadd.f32 %v3675, %v3809
      %s3827 = scalar_lea.vmem %s2, 160
      %v3828 = vld [vmem:[%s3827] sm:$0xf]
      %v3829 = vld [vmem:[%s3827 + $0x4] sm:$0xf]
      %v3832 = vunpack.c.l.b16 %v3828
      %v3833 = vunpack.c.l.b16 %v3829
      %v3834 = vpack.c.b16 %v3833, %v3832
      %3835 = vrot.lane.b32.xlu0 %v521, 126
      %v3836 = vpop.permute.xlu0 %3835
      %3837 = vrot.lane.b32.xlu0 %v522, 126
      %v3838 = vpop.permute.xlu0 %3837
      %v3839 = vsel %vm874, %v2485, %v3836
      %v3840 = vsel %vm874, %v3836, %v3838
      %v3842 = vsel %vm560, %v3834, 0
      %v3845 = vand.u32 %v3839, %v567
      %v3848 = vand.u32 %v3840, %v567
      %3850 = vmatpush.bf16.msra.mxu0 0
      %3851 = vmatpush.bf16.msra.mxu0 0
      %3852 = vmatpush.bf16.msra.mxu0 0
      %3853 = vmatpush.bf16.msra.mxu0 0
      %3854 = vmatpush.bf16.msra.mxu0 0
      %3855 = vmatpush.bf16.msra.mxu0 0
      %3856 = vmatpush.bf16.msra.mxu0 0
      %3857 = vmatpush.bf16.msra.mxu0 %v899
      %3858 = vmatmul.bf16.gmra.mxu0 %v3842
      %v3859 = vpop.f32.mrf.mxu0
      %v3860 = vadd.f32 0.0, %v3859
      %v3861 = vpop.f32.mrf.mxu0
      %v3862 = vadd.f32 0.0, %v3861
      %3863 = vdwg.mxu0
      %3864 = vmatpush.bf16.msra.mxu0 0
      %3865 = vmatpush.bf16.msra.mxu0 0
      %3866 = vmatpush.bf16.msra.mxu0 0
      %3867 = vmatpush.bf16.msra.mxu0 0
      %3868 = vmatpush.bf16.msra.mxu0 0
      %3869 = vmatpush.bf16.msra.mxu0 0
      %3870 = vmatpush.bf16.msra.mxu0 0
      %3871 = vmatpush.bf16.msra.mxu0 %v902
      %3872 = vmatmul.bf16.gmra.mxu0 %v3842
      %v3873 = vpop.f32.mrf.mxu0
      %v3874 = vadd.f32 0.0, %v3873
      %v3875 = vpop.f32.mrf.mxu0
      %v3876 = vadd.f32 0.0, %v3875
      %3877 = vdwg.mxu0
      %3878 = vmatpush.bf16.msra.mxu0 0
      %3879 = vmatpush.bf16.msra.mxu0 0
      %3880 = vmatpush.bf16.msra.mxu0 0
      %3881 = vmatpush.bf16.msra.mxu0 0
      %3882 = vmatpush.bf16.msra.mxu0 0
      %3883 = vmatpush.bf16.msra.mxu0 0
      %3884 = vmatpush.bf16.msra.mxu0 0
      %3885 = vmatpush.bf16.msra.mxu0 %v905
      %3886 = vmatmul.bf16.gmra.mxu0 %v3842
      %v3887 = vpop.f32.mrf.mxu0
      %v3888 = vadd.f32 0.0, %v3887
      %v3889 = vpop.f32.mrf.mxu0
      %v3890 = vadd.f32 0.0, %v3889
      %3891 = vdwg.mxu0
      %3892 = vmatpush.bf16.msra.mxu0 0
      %3893 = vmatpush.bf16.msra.mxu0 0
      %3894 = vmatpush.bf16.msra.mxu0 0
      %3895 = vmatpush.bf16.msra.mxu0 0
      %3896 = vmatpush.bf16.msra.mxu0 0
      %3897 = vmatpush.bf16.msra.mxu0 0
      %3898 = vmatpush.bf16.msra.mxu0 0
      %3899 = vmatpush.bf16.msra.mxu0 %v908
      %3900 = vmatmul.bf16.gmra.mxu0 %v3842
      %v3901 = vpop.f32.mrf.mxu0
      %v3902 = vadd.f32 0.0, %v3901
      %v3903 = vpop.f32.mrf.mxu0
      %v3904 = vadd.f32 0.0, %v3903
      %3905 = vdwg.mxu0
      %3906 = vmatpush.bf16.msra.mxu0 0
      %3907 = vmatpush.bf16.msra.mxu0 0
      %3908 = vmatpush.bf16.msra.mxu0 0
      %3909 = vmatpush.bf16.msra.mxu0 0
      %3910 = vmatpush.bf16.msra.mxu0 0
      %3911 = vmatpush.bf16.msra.mxu0 0
      %3912 = vmatpush.bf16.msra.mxu0 0
      %3913 = vmatpush.bf16.msra.mxu0 %v2492
      %3914 = vmatmul.bf16.gmra.mxu0 %v3842
      %v3915 = vpop.f32.mrf.mxu0
      %v3916 = vadd.f32 0.0, %v3915
      %v3917 = vpop.f32.mrf.mxu0
      %v3918 = vadd.f32 0.0, %v3917
      %3919 = vdwg.mxu0
      %3920 = vmatpush.bf16.msra.mxu0 0
      %3921 = vmatpush.bf16.msra.mxu0 0
      %3922 = vmatpush.bf16.msra.mxu0 0
      %3923 = vmatpush.bf16.msra.mxu0 0
      %3924 = vmatpush.bf16.msra.mxu0 0
      %3925 = vmatpush.bf16.msra.mxu0 0
      %3926 = vmatpush.bf16.msra.mxu0 0
      %3927 = vmatpush.bf16.msra.mxu0 %v2495
      %3928 = vmatmul.bf16.gmra.mxu0 %v3842
      %v3929 = vpop.f32.mrf.mxu0
      %v3930 = vadd.f32 0.0, %v3929
      %v3931 = vpop.f32.mrf.mxu0
      %v3932 = vadd.f32 0.0, %v3931
      %3933 = vdwg.mxu0
      %3934 = vmatpush.bf16.msra.mxu0 0
      %3935 = vmatpush.bf16.msra.mxu0 0
      %3936 = vmatpush.bf16.msra.mxu0 0
      %3937 = vmatpush.bf16.msra.mxu0 0
      %3938 = vmatpush.bf16.msra.mxu0 0
      %3939 = vmatpush.bf16.msra.mxu0 0
      %3940 = vmatpush.bf16.msra.mxu0 0
      %3941 = vmatpush.bf16.msra.mxu0 %v3845
      %3942 = vmatmul.bf16.gmra.mxu0 %v3842
      %v3943 = vpop.f32.mrf.mxu0
      %v3944 = vadd.f32 0.0, %v3943
      %v3945 = vpop.f32.mrf.mxu0
      %v3946 = vadd.f32 0.0, %v3945
      %3947 = vdwg.mxu0
      %3948 = vmatpush.bf16.msra.mxu0 0
      %3949 = vmatpush.bf16.msra.mxu0 0
      %3950 = vmatpush.bf16.msra.mxu0 0
      %3951 = vmatpush.bf16.msra.mxu0 0
      %3952 = vmatpush.bf16.msra.mxu0 0
      %3953 = vmatpush.bf16.msra.mxu0 0
      %3954 = vmatpush.bf16.msra.mxu0 0
      %3955 = vmatpush.bf16.msra.mxu0 %v3848
      %3956 = vmatmul.bf16.gmra.mxu0 %v3842
      %v3957 = vpop.f32.mrf.mxu0
      %v3958 = vadd.f32 0.0, %v3957
      %v3959 = vpop.f32.mrf.mxu0
      %v3960 = vadd.f32 0.0, %v3959
      %3961 = vdwg.mxu0
      %v3962 = vadd.f32 %v3811, %v3860
      %v3963 = vadd.f32 %v3812, %v3874
      %v3964 = vadd.f32 %v3813, %v3888
      %v3965 = vadd.f32 %v3814, %v3902
      %v3966 = vadd.f32 %v3815, %v3916
      %v3967 = vadd.f32 %v3816, %v3930
      %v3968 = vadd.f32 %v3817, %v3944
      %v3969 = vadd.f32 %v3818, %v3958
      %v3970 = vadd.f32 %v3819, %v3862
      %v3971 = vadd.f32 %v3820, %v3876
      %v3972 = vadd.f32 %v3821, %v3890
      %v3973 = vadd.f32 %v3822, %v3904
      %v3974 = vadd.f32 %v3823, %v3918
      %v3975 = vadd.f32 %v3824, %v3932
      %v3976 = vadd.f32 %v3825, %v3946
      %v3977 = vadd.f32 %v3826, %v3960
      %s3978 = scalar_lea.vmem %s2, 168
      %v3979 = vld [vmem:[%s3978] sm:$0xf]
      %v3980 = vld [vmem:[%s3978 + $0x4] sm:$0xf]
      %v3983 = vunpack.c.l.b16 %v3979
      %v3984 = vunpack.c.l.b16 %v3980
      %v3985 = vpack.c.b16 %v3984, %v3983
      %3986 = vrot.lane.b32.xlu0 %v521, 112
      %v3987 = vpop.permute.xlu0 %3986
      %3988 = vrot.lane.b32.xlu0 %v522, 112
      %v3989 = vpop.permute.xlu0 %3988
      %v3990 = vsel %vm1064, %v2636, %v3987
      %v3991 = vsel %vm1064, %v3987, %v3989
      %v3993 = vsel %vm560, %v3985, 0
      %v3996 = vand.u32 %v3990, %v567
      %v3999 = vand.u32 %v3991, %v567
      %4001 = vmatpush.bf16.msra.mxu0 0
      %4002 = vmatpush.bf16.msra.mxu0 0
      %4003 = vmatpush.bf16.msra.mxu0 0
      %4004 = vmatpush.bf16.msra.mxu0 0
      %4005 = vmatpush.bf16.msra.mxu0 0
      %4006 = vmatpush.bf16.msra.mxu0 0
      %4007 = vmatpush.bf16.msra.mxu0 0
      %4008 = vmatpush.bf16.msra.mxu0 %v1089
      %4009 = vmatmul.bf16.gmra.mxu0 %v3993
      %v4010 = vpop.f32.mrf.mxu0
      %v4011 = vadd.f32 0.0, %v4010
      %v4012 = vpop.f32.mrf.mxu0
      %v4013 = vadd.f32 0.0, %v4012
      %4014 = vdwg.mxu0
      %4015 = vmatpush.bf16.msra.mxu0 0
      %4016 = vmatpush.bf16.msra.mxu0 0
      %4017 = vmatpush.bf16.msra.mxu0 0
      %4018 = vmatpush.bf16.msra.mxu0 0
      %4019 = vmatpush.bf16.msra.mxu0 0
      %4020 = vmatpush.bf16.msra.mxu0 0
      %4021 = vmatpush.bf16.msra.mxu0 0
      %4022 = vmatpush.bf16.msra.mxu0 %v1092
      %4023 = vmatmul.bf16.gmra.mxu0 %v3993
      %v4024 = vpop.f32.mrf.mxu0
      %v4025 = vadd.f32 0.0, %v4024
      %v4026 = vpop.f32.mrf.mxu0
      %v4027 = vadd.f32 0.0, %v4026
      %4028 = vdwg.mxu0
      %4029 = vmatpush.bf16.msra.mxu0 0
      %4030 = vmatpush.bf16.msra.mxu0 0
      %4031 = vmatpush.bf16.msra.mxu0 0
      %4032 = vmatpush.bf16.msra.mxu0 0
      %4033 = vmatpush.bf16.msra.mxu0 0
      %4034 = vmatpush.bf16.msra.mxu0 0
      %4035 = vmatpush.bf16.msra.mxu0 0
      %4036 = vmatpush.bf16.msra.mxu0 %v1095
      %4037 = vmatmul.bf16.gmra.mxu0 %v3993
      %v4038 = vpop.f32.mrf.mxu0
      %v4039 = vadd.f32 0.0, %v4038
      %v4040 = vpop.f32.mrf.mxu0
      %v4041 = vadd.f32 0.0, %v4040
      %4042 = vdwg.mxu0
      %4043 = vmatpush.bf16.msra.mxu0 0
      %4044 = vmatpush.bf16.msra.mxu0 0
      %4045 = vmatpush.bf16.msra.mxu0 0
      %4046 = vmatpush.bf16.msra.mxu0 0
      %4047 = vmatpush.bf16.msra.mxu0 0
      %4048 = vmatpush.bf16.msra.mxu0 0
      %4049 = vmatpush.bf16.msra.mxu0 0
      %4050 = vmatpush.bf16.msra.mxu0 %v1098
      %4051 = vmatmul.bf16.gmra.mxu0 %v3993
      %v4052 = vpop.f32.mrf.mxu0
      %v4053 = vadd.f32 0.0, %v4052
      %v4054 = vpop.f32.mrf.mxu0
      %v4055 = vadd.f32 0.0, %v4054
      %4056 = vdwg.mxu0
      %4057 = vmatpush.bf16.msra.mxu0 0
      %4058 = vmatpush.bf16.msra.mxu0 0
      %4059 = vmatpush.bf16.msra.mxu0 0
      %4060 = vmatpush.bf16.msra.mxu0 0
      %4061 = vmatpush.bf16.msra.mxu0 0
      %4062 = vmatpush.bf16.msra.mxu0 0
      %4063 = vmatpush.bf16.msra.mxu0 0
      %4064 = vmatpush.bf16.msra.mxu0 %v2643
      %4065 = vmatmul.bf16.gmra.mxu0 %v3993
      %v4066 = vpop.f32.mrf.mxu0
      %v4067 = vadd.f32 0.0, %v4066
      %v4068 = vpop.f32.mrf.mxu0
      %v4069 = vadd.f32 0.0, %v4068
      %4070 = vdwg.mxu0
      %4071 = vmatpush.bf16.msra.mxu0 0
      %4072 = vmatpush.bf16.msra.mxu0 0
      %4073 = vmatpush.bf16.msra.mxu0 0
      %4074 = vmatpush.bf16.msra.mxu0 0
      %4075 = vmatpush.bf16.msra.mxu0 0
      %4076 = vmatpush.bf16.msra.mxu0 0
      %4077 = vmatpush.bf16.msra.mxu0 0
      %4078 = vmatpush.bf16.msra.mxu0 %v2646
      %4079 = vmatmul.bf16.gmra.mxu0 %v3993
      %v4080 = vpop.f32.mrf.mxu0
      %v4081 = vadd.f32 0.0, %v4080
      %v4082 = vpop.f32.mrf.mxu0
      %v4083 = vadd.f32 0.0, %v4082
      %4084 = vdwg.mxu0
      %4085 = vmatpush.bf16.msra.mxu0 0
      %4086 = vmatpush.bf16.msra.mxu0 0
      %4087 = vmatpush.bf16.msra.mxu0 0
      %4088 = vmatpush.bf16.msra.mxu0 0
      %4089 = vmatpush.bf16.msra.mxu0 0
      %4090 = vmatpush.bf16.msra.mxu0 0
      %4091 = vmatpush.bf16.msra.mxu0 0
      %4092 = vmatpush.bf16.msra.mxu0 %v3996
      %4093 = vmatmul.bf16.gmra.mxu0 %v3993
      %v4094 = vpop.f32.mrf.mxu0
      %v4095 = vadd.f32 0.0, %v4094
      %v4096 = vpop.f32.mrf.mxu0
      %v4097 = vadd.f32 0.0, %v4096
      %4098 = vdwg.mxu0
      %4099 = vmatpush.bf16.msra.mxu0 0
      %4100 = vmatpush.bf16.msra.mxu0 0
      %4101 = vmatpush.bf16.msra.mxu0 0
      %4102 = vmatpush.bf16.msra.mxu0 0
      %4103 = vmatpush.bf16.msra.mxu0 0
      %4104 = vmatpush.bf16.msra.mxu0 0
      %4105 = vmatpush.bf16.msra.mxu0 0
      %4106 = vmatpush.bf16.msra.mxu0 %v3999
      %4107 = vmatmul.bf16.gmra.mxu0 %v3993
      %v4108 = vpop.f32.mrf.mxu0
      %v4109 = vadd.f32 0.0, %v4108
      %v4110 = vpop.f32.mrf.mxu0
      %v4111 = vadd.f32 0.0, %v4110
      %4112 = vdwg.mxu0
      %v4113 = vadd.f32 %v3962, %v4011
      %v4114 = vadd.f32 %v3963, %v4025
      %v4115 = vadd.f32 %v3964, %v4039
      %v4116 = vadd.f32 %v3965, %v4053
      %v4117 = vadd.f32 %v3966, %v4067
      %v4118 = vadd.f32 %v3967, %v4081
      %v4119 = vadd.f32 %v3968, %v4095
      %v4120 = vadd.f32 %v3969, %v4109
      %v4121 = vadd.f32 %v3970, %v4013
      %v4122 = vadd.f32 %v3971, %v4027
      %v4123 = vadd.f32 %v3972, %v4041
      %v4124 = vadd.f32 %v3973, %v4055
      %v4125 = vadd.f32 %v3974, %v4069
      %v4126 = vadd.f32 %v3975, %v4083
      %v4127 = vadd.f32 %v3976, %v4097
      %v4128 = vadd.f32 %v3977, %v4111
      %s4129 = scalar_lea.vmem %s2, 176
      %v4130 = vld [vmem:[%s4129] sm:$0xf]
      %v4131 = vld [vmem:[%s4129 + $0x4] sm:$0xf]
      %v4134 = vunpack.c.l.b16 %v4130
      %v4135 = vunpack.c.l.b16 %v4131
      %v4136 = vpack.c.b16 %v4135, %v4134
      %4137 = vrot.lane.b32.xlu0 %v521, 111
      %v4138 = vpop.permute.xlu0 %4137
      %4139 = vrot.lane.b32.xlu0 %v522, 111
      %v4140 = vpop.permute.xlu0 %4139
      %v4141 = vsel %vm1254, %v2787, %v4138
      %v4142 = vsel %vm1254, %v4138, %v4140
      %v4144 = vsel %vm560, %v4136, 0
      %v4147 = vand.u32 %v4141, %v567
      %v4150 = vand.u32 %v4142, %v567
      %4152 = vmatpush.bf16.msra.mxu0 0
      %4153 = vmatpush.bf16.msra.mxu0 0
      %4154 = vmatpush.bf16.msra.mxu0 0
      %4155 = vmatpush.bf16.msra.mxu0 0
      %4156 = vmatpush.bf16.msra.mxu0 0
      %4157 = vmatpush.bf16.msra.mxu0 0
      %4158 = vmatpush.bf16.msra.mxu0 0
      %4159 = vmatpush.bf16.msra.mxu0 %v1279
      %4160 = vmatmul.bf16.gmra.mxu0 %v4144
      %v4161 = vpop.f32.mrf.mxu0
      %v4162 = vadd.f32 0.0, %v4161
      %v4163 = vpop.f32.mrf.mxu0
      %v4164 = vadd.f32 0.0, %v4163
      %4165 = vdwg.mxu0
      %4166 = vmatpush.bf16.msra.mxu0 0
      %4167 = vmatpush.bf16.msra.mxu0 0
      %4168 = vmatpush.bf16.msra.mxu0 0
      %4169 = vmatpush.bf16.msra.mxu0 0
      %4170 = vmatpush.bf16.msra.mxu0 0
      %4171 = vmatpush.bf16.msra.mxu0 0
      %4172 = vmatpush.bf16.msra.mxu0 0
      %4173 = vmatpush.bf16.msra.mxu0 %v1282
      %4174 = vmatmul.bf16.gmra.mxu0 %v4144
      %v4175 = vpop.f32.mrf.mxu0
      %v4176 = vadd.f32 0.0, %v4175
      %v4177 = vpop.f32.mrf.mxu0
      %v4178 = vadd.f32 0.0, %v4177
      %4179 = vdwg.mxu0
      %4180 = vmatpush.bf16.msra.mxu0 0
      %4181 = vmatpush.bf16.msra.mxu0 0
      %4182 = vmatpush.bf16.msra.mxu0 0
      %4183 = vmatpush.bf16.msra.mxu0 0
      %4184 = vmatpush.bf16.msra.mxu0 0
      %4185 = vmatpush.bf16.msra.mxu0 0
      %4186 = vmatpush.bf16.msra.mxu0 0
      %4187 = vmatpush.bf16.msra.mxu0 %v1285
      %4188 = vmatmul.bf16.gmra.mxu0 %v4144
      %v4189 = vpop.f32.mrf.mxu0
      %v4190 = vadd.f32 0.0, %v4189
      %v4191 = vpop.f32.mrf.mxu0
      %v4192 = vadd.f32 0.0, %v4191
      %4193 = vdwg.mxu0
      %4194 = vmatpush.bf16.msra.mxu0 0
      %4195 = vmatpush.bf16.msra.mxu0 0
      %4196 = vmatpush.bf16.msra.mxu0 0
      %4197 = vmatpush.bf16.msra.mxu0 0
      %4198 = vmatpush.bf16.msra.mxu0 0
      %4199 = vmatpush.bf16.msra.mxu0 0
      %4200 = vmatpush.bf16.msra.mxu0 0
      %4201 = vmatpush.bf16.msra.mxu0 %v1288
      %4202 = vmatmul.bf16.gmra.mxu0 %v4144
      %v4203 = vpop.f32.mrf.mxu0
      %v4204 = vadd.f32 0.0, %v4203
      %v4205 = vpop.f32.mrf.mxu0
      %v4206 = vadd.f32 0.0, %v4205
      %4207 = vdwg.mxu0
      %4208 = vmatpush.bf16.msra.mxu0 0
      %4209 = vmatpush.bf16.msra.mxu0 0
      %4210 = vmatpush.bf16.msra.mxu0 0
      %4211 = vmatpush.bf16.msra.mxu0 0
      %4212 = vmatpush.bf16.msra.mxu0 0
      %4213 = vmatpush.bf16.msra.mxu0 0
      %4214 = vmatpush.bf16.msra.mxu0 0
      %4215 = vmatpush.bf16.msra.mxu0 %v2794
      %4216 = vmatmul.bf16.gmra.mxu0 %v4144
      %v4217 = vpop.f32.mrf.mxu0
      %v4218 = vadd.f32 0.0, %v4217
      %v4219 = vpop.f32.mrf.mxu0
      %v4220 = vadd.f32 0.0, %v4219
      %4221 = vdwg.mxu0
      %4222 = vmatpush.bf16.msra.mxu0 0
      %4223 = vmatpush.bf16.msra.mxu0 0
      %4224 = vmatpush.bf16.msra.mxu0 0
      %4225 = vmatpush.bf16.msra.mxu0 0
      %4226 = vmatpush.bf16.msra.mxu0 0
      %4227 = vmatpush.bf16.msra.mxu0 0
      %4228 = vmatpush.bf16.msra.mxu0 0
      %4229 = vmatpush.bf16.msra.mxu0 %v2797
      %4230 = vmatmul.bf16.gmra.mxu0 %v4144
      %v4231 = vpop.f32.mrf.mxu0
      %v4232 = vadd.f32 0.0, %v4231
      %v4233 = vpop.f32.mrf.mxu0
      %v4234 = vadd.f32 0.0, %v4233
      %4235 = vdwg.mxu0
      %4236 = vmatpush.bf16.msra.mxu0 0
      %4237 = vmatpush.bf16.msra.mxu0 0
      %4238 = vmatpush.bf16.msra.mxu0 0
      %4239 = vmatpush.bf16.msra.mxu0 0
      %4240 = vmatpush.bf16.msra.mxu0 0
      %4241 = vmatpush.bf16.msra.mxu0 0
      %4242 = vmatpush.bf16.msra.mxu0 0
      %4243 = vmatpush.bf16.msra.mxu0 %v4147
      %4244 = vmatmul.bf16.gmra.mxu0 %v4144
      %v4245 = vpop.f32.mrf.mxu0
      %v4246 = vadd.f32 0.0, %v4245
      %v4247 = vpop.f32.mrf.mxu0
      %v4248 = vadd.f32 0.0, %v4247
      %4249 = vdwg.mxu0
      %4250 = vmatpush.bf16.msra.mxu0 0
      %4251 = vmatpush.bf16.msra.mxu0 0
      %4252 = vmatpush.bf16.msra.mxu0 0
      %4253 = vmatpush.bf16.msra.mxu0 0
      %4254 = vmatpush.bf16.msra.mxu0 0
      %4255 = vmatpush.bf16.msra.mxu0 0
      %4256 = vmatpush.bf16.msra.mxu0 0
      %4257 = vmatpush.bf16.msra.mxu0 %v4150
      %4258 = vmatmul.bf16.gmra.mxu0 %v4144
      %v4259 = vpop.f32.mrf.mxu0
      %v4260 = vadd.f32 0.0, %v4259
      %v4261 = vpop.f32.mrf.mxu0
      %v4262 = vadd.f32 0.0, %v4261
      %4263 = vdwg.mxu0
      %v4264 = vadd.f32 %v4113, %v4162
      %v4265 = vadd.f32 %v4114, %v4176
      %v4266 = vadd.f32 %v4115, %v4190
      %v4267 = vadd.f32 %v4116, %v4204
      %v4268 = vadd.f32 %v4117, %v4218
      %v4269 = vadd.f32 %v4118, %v4232
      %v4270 = vadd.f32 %v4119, %v4246
      %v4271 = vadd.f32 %v4120, %v4260
      %v4272 = vadd.f32 %v4121, %v4164
      %v4273 = vadd.f32 %v4122, %v4178
      %v4274 = vadd.f32 %v4123, %v4192
      %v4275 = vadd.f32 %v4124, %v4206
      %v4276 = vadd.f32 %v4125, %v4220
      %v4277 = vadd.f32 %v4126, %v4234
      %v4278 = vadd.f32 %v4127, %v4248
      %v4279 = vadd.f32 %v4128, %v4262
      %s4280 = scalar_lea.vmem %s2, 184
      %v4281 = vld [vmem:[%s4280] sm:$0xf]
      %v4282 = vld [vmem:[%s4280 + $0x4] sm:$0xf]
      %v4285 = vunpack.c.l.b16 %v4281
      %v4286 = vunpack.c.l.b16 %v4282
      %v4287 = vpack.c.b16 %v4286, %v4285
      %4288 = vrot.lane.b32.xlu0 %v521, 110
      %v4289 = vpop.permute.xlu0 %4288
      %4290 = vrot.lane.b32.xlu0 %v522, 110
      %v4291 = vpop.permute.xlu0 %4290
      %v4292 = vsel %vm1444, %v2938, %v4289
      %v4293 = vsel %vm1444, %v4289, %v4291
      %v4295 = vsel %vm560, %v4287, 0
      %v4298 = vand.u32 %v4292, %v567
      %v4301 = vand.u32 %v4293, %v567
      %4303 = vmatpush.bf16.msra.mxu0 0
      %4304 = vmatpush.bf16.msra.mxu0 0
      %4305 = vmatpush.bf16.msra.mxu0 0
      %4306 = vmatpush.bf16.msra.mxu0 0
      %4307 = vmatpush.bf16.msra.mxu0 0
      %4308 = vmatpush.bf16.msra.mxu0 0
      %4309 = vmatpush.bf16.msra.mxu0 0
      %4310 = vmatpush.bf16.msra.mxu0 %v1469
      %4311 = vmatmul.bf16.gmra.mxu0 %v4295
      %v4312 = vpop.f32.mrf.mxu0
      %v4313 = vadd.f32 0.0, %v4312
      %v4314 = vpop.f32.mrf.mxu0
      %v4315 = vadd.f32 0.0, %v4314
      %4316 = vdwg.mxu0
      %4317 = vmatpush.bf16.msra.mxu0 0
      %4318 = vmatpush.bf16.msra.mxu0 0
      %4319 = vmatpush.bf16.msra.mxu0 0
      %4320 = vmatpush.bf16.msra.mxu0 0
      %4321 = vmatpush.bf16.msra.mxu0 0
      %4322 = vmatpush.bf16.msra.mxu0 0
      %4323 = vmatpush.bf16.msra.mxu0 0
      %4324 = vmatpush.bf16.msra.mxu0 %v1472
      %4325 = vmatmul.bf16.gmra.mxu0 %v4295
      %v4326 = vpop.f32.mrf.mxu0
      %v4327 = vadd.f32 0.0, %v4326
      %v4328 = vpop.f32.mrf.mxu0
      %v4329 = vadd.f32 0.0, %v4328
      %4330 = vdwg.mxu0
      %4331 = vmatpush.bf16.msra.mxu0 0
      %4332 = vmatpush.bf16.msra.mxu0 0
      %4333 = vmatpush.bf16.msra.mxu0 0
      %4334 = vmatpush.bf16.msra.mxu0 0
      %4335 = vmatpush.bf16.msra.mxu0 0
      %4336 = vmatpush.bf16.msra.mxu0 0
      %4337 = vmatpush.bf16.msra.mxu0 0
      %4338 = vmatpush.bf16.msra.mxu0 %v1475
      %4339 = vmatmul.bf16.gmra.mxu0 %v4295
      %v4340 = vpop.f32.mrf.mxu0
      %v4341 = vadd.f32 0.0, %v4340
      %v4342 = vpop.f32.mrf.mxu0
      %v4343 = vadd.f32 0.0, %v4342
      %4344 = vdwg.mxu0
      %4345 = vmatpush.bf16.msra.mxu0 0
      %4346 = vmatpush.bf16.msra.mxu0 0
      %4347 = vmatpush.bf16.msra.mxu0 0
      %4348 = vmatpush.bf16.msra.mxu0 0
      %4349 = vmatpush.bf16.msra.mxu0 0
      %4350 = vmatpush.bf16.msra.mxu0 0
      %4351 = vmatpush.bf16.msra.mxu0 0
      %4352 = vmatpush.bf16.msra.mxu0 %v1478
      %4353 = vmatmul.bf16.gmra.mxu0 %v4295
      %v4354 = vpop.f32.mrf.mxu0
      %v4355 = vadd.f32 0.0, %v4354
      %v4356 = vpop.f32.mrf.mxu0
      %v4357 = vadd.f32 0.0, %v4356
      %4358 = vdwg.mxu0
      %4359 = vmatpush.bf16.msra.mxu0 0
      %4360 = vmatpush.bf16.msra.mxu0 0
      %4361 = vmatpush.bf16.msra.mxu0 0
      %4362 = vmatpush.bf16.msra.mxu0 0
      %4363 = vmatpush.bf16.msra.mxu0 0
      %4364 = vmatpush.bf16.msra.mxu0 0
      %4365 = vmatpush.bf16.msra.mxu0 0
      %4366 = vmatpush.bf16.msra.mxu0 %v2945
      %4367 = vmatmul.bf16.gmra.mxu0 %v4295
      %v4368 = vpop.f32.mrf.mxu0
      %v4369 = vadd.f32 0.0, %v4368
      %v4370 = vpop.f32.mrf.mxu0
      %v4371 = vadd.f32 0.0, %v4370
      %4372 = vdwg.mxu0
      %4373 = vmatpush.bf16.msra.mxu0 0
      %4374 = vmatpush.bf16.msra.mxu0 0
      %4375 = vmatpush.bf16.msra.mxu0 0
      %4376 = vmatpush.bf16.msra.mxu0 0
      %4377 = vmatpush.bf16.msra.mxu0 0
      %4378 = vmatpush.bf16.msra.mxu0 0
      %4379 = vmatpush.bf16.msra.mxu0 0
      %4380 = vmatpush.bf16.msra.mxu0 %v2948
      %4381 = vmatmul.bf16.gmra.mxu0 %v4295
      %v4382 = vpop.f32.mrf.mxu0
      %v4383 = vadd.f32 0.0, %v4382
      %v4384 = vpop.f32.mrf.mxu0
      %v4385 = vadd.f32 0.0, %v4384
      %4386 = vdwg.mxu0
      %4387 = vmatpush.bf16.msra.mxu0 0
      %4388 = vmatpush.bf16.msra.mxu0 0
      %4389 = vmatpush.bf16.msra.mxu0 0
      %4390 = vmatpush.bf16.msra.mxu0 0
      %4391 = vmatpush.bf16.msra.mxu0 0
      %4392 = vmatpush.bf16.msra.mxu0 0
      %4393 = vmatpush.bf16.msra.mxu0 0
      %4394 = vmatpush.bf16.msra.mxu0 %v4298
      %4395 = vmatmul.bf16.gmra.mxu0 %v4295
      %v4396 = vpop.f32.mrf.mxu0
      %v4397 = vadd.f32 0.0, %v4396
      %v4398 = vpop.f32.mrf.mxu0
      %v4399 = vadd.f32 0.0, %v4398
      %4400 = vdwg.mxu0
      %4401 = vmatpush.bf16.msra.mxu0 0
      %4402 = vmatpush.bf16.msra.mxu0 0
      %4403 = vmatpush.bf16.msra.mxu0 0
      %4404 = vmatpush.bf16.msra.mxu0 0
      %4405 = vmatpush.bf16.msra.mxu0 0
      %4406 = vmatpush.bf16.msra.mxu0 0
      %4407 = vmatpush.bf16.msra.mxu0 0
      %4408 = vmatpush.bf16.msra.mxu0 %v4301
      %4409 = vmatmul.bf16.gmra.mxu0 %v4295
      %v4410 = vpop.f32.mrf.mxu0
      %v4411 = vadd.f32 0.0, %v4410
      %v4412 = vpop.f32.mrf.mxu0
      %v4413 = vadd.f32 0.0, %v4412
      %4414 = vdwg.mxu0
      %v4415 = vadd.f32 %v4264, %v4313
      %v4416 = vadd.f32 %v4265, %v4327
      %v4417 = vadd.f32 %v4266, %v4341
      %v4418 = vadd.f32 %v4267, %v4355
      %v4419 = vadd.f32 %v4268, %v4369
      %v4420 = vadd.f32 %v4269, %v4383
      %v4421 = vadd.f32 %v4270, %v4397
      %v4422 = vadd.f32 %v4271, %v4411
      %v4423 = vadd.f32 %v4272, %v4315
      %v4424 = vadd.f32 %v4273, %v4329
      %v4425 = vadd.f32 %v4274, %v4343
      %v4426 = vadd.f32 %v4275, %v4357
      %v4427 = vadd.f32 %v4276, %v4371
      %v4428 = vadd.f32 %v4277, %v4385
      %v4429 = vadd.f32 %v4278, %v4399
      %v4430 = vadd.f32 %v4279, %v4413
      %s4431 = scalar_lea.vmem %s2, 192
      %v4432 = vld [vmem:[%s4431] sm:$0xf]
      %v4433 = vld [vmem:[%s4431 + $0x4] sm:$0xf]
      %v4436 = vunpack.c.l.b16 %v4432
      %v4437 = vunpack.c.l.b16 %v4433
      %v4438 = vpack.c.b16 %v4437, %v4436
      %4439 = vrot.lane.b32.xlu0 %v521, 96
      %v4440 = vpop.permute.xlu0 %4439
      %4441 = vrot.lane.b32.xlu0 %v522, 96
      %v4442 = vpop.permute.xlu0 %4441
      %v4443 = vsel %vm1634, %v3089, %v4440
      %v4444 = vsel %vm1634, %v4440, %v4442
      %v4446 = vsel %vm560, %v4438, 0
      %v4449 = vand.u32 %v4443, %v567
      %v4452 = vand.u32 %v4444, %v567
      %4454 = vmatpush.bf16.msra.mxu0 0
      %4455 = vmatpush.bf16.msra.mxu0 0
      %4456 = vmatpush.bf16.msra.mxu0 0
      %4457 = vmatpush.bf16.msra.mxu0 0
      %4458 = vmatpush.bf16.msra.mxu0 0
      %4459 = vmatpush.bf16.msra.mxu0 0
      %4460 = vmatpush.bf16.msra.mxu0 0
      %4461 = vmatpush.bf16.msra.mxu0 %v1659
      %4462 = vmatmul.bf16.gmra.mxu0 %v4446
      %v4463 = vpop.f32.mrf.mxu0
      %v4464 = vadd.f32 0.0, %v4463
      %v4465 = vpop.f32.mrf.mxu0
      %v4466 = vadd.f32 0.0, %v4465
      %4467 = vdwg.mxu0
      %4468 = vmatpush.bf16.msra.mxu0 0
      %4469 = vmatpush.bf16.msra.mxu0 0
      %4470 = vmatpush.bf16.msra.mxu0 0
      %4471 = vmatpush.bf16.msra.mxu0 0
      %4472 = vmatpush.bf16.msra.mxu0 0
      %4473 = vmatpush.bf16.msra.mxu0 0
      %4474 = vmatpush.bf16.msra.mxu0 0
      %4475 = vmatpush.bf16.msra.mxu0 %v1662
      %4476 = vmatmul.bf16.gmra.mxu0 %v4446
      %v4477 = vpop.f32.mrf.mxu0
      %v4478 = vadd.f32 0.0, %v4477
      %v4479 = vpop.f32.mrf.mxu0
      %v4480 = vadd.f32 0.0, %v4479
      %4481 = vdwg.mxu0
      %4482 = vmatpush.bf16.msra.mxu0 0
      %4483 = vmatpush.bf16.msra.mxu0 0
      %4484 = vmatpush.bf16.msra.mxu0 0
      %4485 = vmatpush.bf16.msra.mxu0 0
      %4486 = vmatpush.bf16.msra.mxu0 0
      %4487 = vmatpush.bf16.msra.mxu0 0
      %4488 = vmatpush.bf16.msra.mxu0 0
      %4489 = vmatpush.bf16.msra.mxu0 %v1665
      %4490 = vmatmul.bf16.gmra.mxu0 %v4446
      %v4491 = vpop.f32.mrf.mxu0
      %v4492 = vadd.f32 0.0, %v4491
      %v4493 = vpop.f32.mrf.mxu0
      %v4494 = vadd.f32 0.0, %v4493
      %4495 = vdwg.mxu0
      %4496 = vmatpush.bf16.msra.mxu0 0
      %4497 = vmatpush.bf16.msra.mxu0 0
      %4498 = vmatpush.bf16.msra.mxu0 0
      %4499 = vmatpush.bf16.msra.mxu0 0
      %4500 = vmatpush.bf16.msra.mxu0 0
      %4501 = vmatpush.bf16.msra.mxu0 0
      %4502 = vmatpush.bf16.msra.mxu0 0
      %4503 = vmatpush.bf16.msra.mxu0 %v1668
      %4504 = vmatmul.bf16.gmra.mxu0 %v4446
      %v4505 = vpop.f32.mrf.mxu0
      %v4506 = vadd.f32 0.0, %v4505
      %v4507 = vpop.f32.mrf.mxu0
      %v4508 = vadd.f32 0.0, %v4507
      %4509 = vdwg.mxu0
      %4510 = vmatpush.bf16.msra.mxu0 0
      %4511 = vmatpush.bf16.msra.mxu0 0
      %4512 = vmatpush.bf16.msra.mxu0 0
      %4513 = vmatpush.bf16.msra.mxu0 0
      %4514 = vmatpush.bf16.msra.mxu0 0
      %4515 = vmatpush.bf16.msra.mxu0 0
      %4516 = vmatpush.bf16.msra.mxu0 0
      %4517 = vmatpush.bf16.msra.mxu0 %v3096
      %4518 = vmatmul.bf16.gmra.mxu0 %v4446
      %v4519 = vpop.f32.mrf.mxu0
      %v4520 = vadd.f32 0.0, %v4519
      %v4521 = vpop.f32.mrf.mxu0
      %v4522 = vadd.f32 0.0, %v4521
      %4523 = vdwg.mxu0
      %4524 = vmatpush.bf16.msra.mxu0 0
      %4525 = vmatpush.bf16.msra.mxu0 0
      %4526 = vmatpush.bf16.msra.mxu0 0
      %4527 = vmatpush.bf16.msra.mxu0 0
      %4528 = vmatpush.bf16.msra.mxu0 0
      %4529 = vmatpush.bf16.msra.mxu0 0
      %4530 = vmatpush.bf16.msra.mxu0 0
      %4531 = vmatpush.bf16.msra.mxu0 %v3099
      %4532 = vmatmul.bf16.gmra.mxu0 %v4446
      %v4533 = vpop.f32.mrf.mxu0
      %v4534 = vadd.f32 0.0, %v4533
      %v4535 = vpop.f32.mrf.mxu0
      %v4536 = vadd.f32 0.0, %v4535
      %4537 = vdwg.mxu0
      %4538 = vmatpush.bf16.msra.mxu0 0
      %4539 = vmatpush.bf16.msra.mxu0 0
      %4540 = vmatpush.bf16.msra.mxu0 0
      %4541 = vmatpush.bf16.msra.mxu0 0
      %4542 = vmatpush.bf16.msra.mxu0 0
      %4543 = vmatpush.bf16.msra.mxu0 0
      %4544 = vmatpush.bf16.msra.mxu0 0
      %4545 = vmatpush.bf16.msra.mxu0 %v4449
      %4546 = vmatmul.bf16.gmra.mxu0 %v4446
      %v4547 = vpop.f32.mrf.mxu0
      %v4548 = vadd.f32 0.0, %v4547
      %v4549 = vpop.f32.mrf.mxu0
      %v4550 = vadd.f32 0.0, %v4549
      %4551 = vdwg.mxu0
      %4552 = vmatpush.bf16.msra.mxu0 0
      %4553 = vmatpush.bf16.msra.mxu0 0
      %4554 = vmatpush.bf16.msra.mxu0 0
      %4555 = vmatpush.bf16.msra.mxu0 0
      %4556 = vmatpush.bf16.msra.mxu0 0
      %4557 = vmatpush.bf16.msra.mxu0 0
      %4558 = vmatpush.bf16.msra.mxu0 0
      %4559 = vmatpush.bf16.msra.mxu0 %v4452
      %4560 = vmatmul.bf16.gmra.mxu0 %v4446
      %v4561 = vpop.f32.mrf.mxu0
      %v4562 = vadd.f32 0.0, %v4561
      %v4563 = vpop.f32.mrf.mxu0
      %v4564 = vadd.f32 0.0, %v4563
      %4565 = vdwg.mxu0
      %v4566 = vadd.f32 %v4415, %v4464
      %v4567 = vadd.f32 %v4416, %v4478
      %v4568 = vadd.f32 %v4417, %v4492
      %v4569 = vadd.f32 %v4418, %v4506
      %v4570 = vadd.f32 %v4419, %v4520
      %v4571 = vadd.f32 %v4420, %v4534
      %v4572 = vadd.f32 %v4421, %v4548
      %v4573 = vadd.f32 %v4422, %v4562
      %v4574 = vadd.f32 %v4423, %v4466
      %v4575 = vadd.f32 %v4424, %v4480
      %v4576 = vadd.f32 %v4425, %v4494
      %v4577 = vadd.f32 %v4426, %v4508
      %v4578 = vadd.f32 %v4427, %v4522
      %v4579 = vadd.f32 %v4428, %v4536
      %v4580 = vadd.f32 %v4429, %v4550
      %v4581 = vadd.f32 %v4430, %v4564
      %s4582 = scalar_lea.vmem %s2, 200
      %v4583 = vld [vmem:[%s4582] sm:$0xf]
      %v4584 = vld [vmem:[%s4582 + $0x4] sm:$0xf]
      %v4587 = vunpack.c.l.b16 %v4583
      %v4588 = vunpack.c.l.b16 %v4584
      %v4589 = vpack.c.b16 %v4588, %v4587
      %4590 = vrot.lane.b32.xlu0 %v521, 95
      %v4591 = vpop.permute.xlu0 %4590
      %4592 = vrot.lane.b32.xlu0 %v522, 95
      %v4593 = vpop.permute.xlu0 %4592
      %v4594 = vsel %vm1824, %v3240, %v4591
      %v4595 = vsel %vm1824, %v4591, %v4593
      %v4597 = vsel %vm560, %v4589, 0
      %v4600 = vand.u32 %v4594, %v567
      %v4603 = vand.u32 %v4595, %v567
      %4605 = vmatpush.bf16.msra.mxu0 0
      %4606 = vmatpush.bf16.msra.mxu0 0
      %4607 = vmatpush.bf16.msra.mxu0 0
      %4608 = vmatpush.bf16.msra.mxu0 0
      %4609 = vmatpush.bf16.msra.mxu0 0
      %4610 = vmatpush.bf16.msra.mxu0 0
      %4611 = vmatpush.bf16.msra.mxu0 0
      %4612 = vmatpush.bf16.msra.mxu0 %v1849
      %4613 = vmatmul.bf16.gmra.mxu0 %v4597
      %v4614 = vpop.f32.mrf.mxu0
      %v4615 = vadd.f32 0.0, %v4614
      %v4616 = vpop.f32.mrf.mxu0
      %v4617 = vadd.f32 0.0, %v4616
      %4618 = vdwg.mxu0
      %4619 = vmatpush.bf16.msra.mxu0 0
      %4620 = vmatpush.bf16.msra.mxu0 0
      %4621 = vmatpush.bf16.msra.mxu0 0
      %4622 = vmatpush.bf16.msra.mxu0 0
      %4623 = vmatpush.bf16.msra.mxu0 0
      %4624 = vmatpush.bf16.msra.mxu0 0
      %4625 = vmatpush.bf16.msra.mxu0 0
      %4626 = vmatpush.bf16.msra.mxu0 %v1852
      %4627 = vmatmul.bf16.gmra.mxu0 %v4597
      %v4628 = vpop.f32.mrf.mxu0
      %v4629 = vadd.f32 0.0, %v4628
      %v4630 = vpop.f32.mrf.mxu0
      %v4631 = vadd.f32 0.0, %v4630
      %4632 = vdwg.mxu0
      %4633 = vmatpush.bf16.msra.mxu0 0
      %4634 = vmatpush.bf16.msra.mxu0 0
      %4635 = vmatpush.bf16.msra.mxu0 0
      %4636 = vmatpush.bf16.msra.mxu0 0
      %4637 = vmatpush.bf16.msra.mxu0 0
      %4638 = vmatpush.bf16.msra.mxu0 0
      %4639 = vmatpush.bf16.msra.mxu0 0
      %4640 = vmatpush.bf16.msra.mxu0 %v1855
      %4641 = vmatmul.bf16.gmra.mxu0 %v4597
      %v4642 = vpop.f32.mrf.mxu0
      %v4643 = vadd.f32 0.0, %v4642
      %v4644 = vpop.f32.mrf.mxu0
      %v4645 = vadd.f32 0.0, %v4644
      %4646 = vdwg.mxu0
      %4647 = vmatpush.bf16.msra.mxu0 0
      %4648 = vmatpush.bf16.msra.mxu0 0
      %4649 = vmatpush.bf16.msra.mxu0 0
      %4650 = vmatpush.bf16.msra.mxu0 0
      %4651 = vmatpush.bf16.msra.mxu0 0
      %4652 = vmatpush.bf16.msra.mxu0 0
      %4653 = vmatpush.bf16.msra.mxu0 0
      %4654 = vmatpush.bf16.msra.mxu0 %v1858
      %4655 = vmatmul.bf16.gmra.mxu0 %v4597
      %v4656 = vpop.f32.mrf.mxu0
      %v4657 = vadd.f32 0.0, %v4656
      %v4658 = vpop.f32.mrf.mxu0
      %v4659 = vadd.f32 0.0, %v4658
      %4660 = vdwg.mxu0
      %4661 = vmatpush.bf16.msra.mxu0 0
      %4662 = vmatpush.bf16.msra.mxu0 0
      %4663 = vmatpush.bf16.msra.mxu0 0
      %4664 = vmatpush.bf16.msra.mxu0 0
      %4665 = vmatpush.bf16.msra.mxu0 0
      %4666 = vmatpush.bf16.msra.mxu0 0
      %4667 = vmatpush.bf16.msra.mxu0 0
      %4668 = vmatpush.bf16.msra.mxu0 %v3247
      %4669 = vmatmul.bf16.gmra.mxu0 %v4597
      %v4670 = vpop.f32.mrf.mxu0
      %v4671 = vadd.f32 0.0, %v4670
      %v4672 = vpop.f32.mrf.mxu0
      %v4673 = vadd.f32 0.0, %v4672
      %4674 = vdwg.mxu0
      %4675 = vmatpush.bf16.msra.mxu0 0
      %4676 = vmatpush.bf16.msra.mxu0 0
      %4677 = vmatpush.bf16.msra.mxu0 0
      %4678 = vmatpush.bf16.msra.mxu0 0
      %4679 = vmatpush.bf16.msra.mxu0 0
      %4680 = vmatpush.bf16.msra.mxu0 0
      %4681 = vmatpush.bf16.msra.mxu0 0
      %4682 = vmatpush.bf16.msra.mxu0 %v3250
      %4683 = vmatmul.bf16.gmra.mxu0 %v4597
      %v4684 = vpop.f32.mrf.mxu0
      %v4685 = vadd.f32 0.0, %v4684
      %v4686 = vpop.f32.mrf.mxu0
      %v4687 = vadd.f32 0.0, %v4686
      %4688 = vdwg.mxu0
      %4689 = vmatpush.bf16.msra.mxu0 0
      %4690 = vmatpush.bf16.msra.mxu0 0
      %4691 = vmatpush.bf16.msra.mxu0 0
      %4692 = vmatpush.bf16.msra.mxu0 0
      %4693 = vmatpush.bf16.msra.mxu0 0
      %4694 = vmatpush.bf16.msra.mxu0 0
      %4695 = vmatpush.bf16.msra.mxu0 0
      %4696 = vmatpush.bf16.msra.mxu0 %v4600
      %4697 = vmatmul.bf16.gmra.mxu0 %v4597
      %v4698 = vpop.f32.mrf.mxu0
      %v4699 = vadd.f32 0.0, %v4698
      %v4700 = vpop.f32.mrf.mxu0
      %v4701 = vadd.f32 0.0, %v4700
      %4702 = vdwg.mxu0
      %4703 = vmatpush.bf16.msra.mxu0 0
      %4704 = vmatpush.bf16.msra.mxu0 0
      %4705 = vmatpush.bf16.msra.mxu0 0
      %4706 = vmatpush.bf16.msra.mxu0 0
      %4707 = vmatpush.bf16.msra.mxu0 0
      %4708 = vmatpush.bf16.msra.mxu0 0
      %4709 = vmatpush.bf16.msra.mxu0 0
      %4710 = vmatpush.bf16.msra.mxu0 %v4603
      %4711 = vmatmul.bf16.gmra.mxu0 %v4597
      %v4712 = vpop.f32.mrf.mxu0
      %v4713 = vadd.f32 0.0, %v4712
      %v4714 = vpop.f32.mrf.mxu0
      %v4715 = vadd.f32 0.0, %v4714
      %4716 = vdwg.mxu0
      %v4717 = vadd.f32 %v4566, %v4615
      %v4718 = vadd.f32 %v4567, %v4629
      %v4719 = vadd.f32 %v4568, %v4643
      %v4720 = vadd.f32 %v4569, %v4657
      %v4721 = vadd.f32 %v4570, %v4671
      %v4722 = vadd.f32 %v4571, %v4685
      %v4723 = vadd.f32 %v4572, %v4699
      %v4724 = vadd.f32 %v4573, %v4713
      %v4725 = vadd.f32 %v4574, %v4617
      %v4726 = vadd.f32 %v4575, %v4631
      %v4727 = vadd.f32 %v4576, %v4645
      %v4728 = vadd.f32 %v4577, %v4659
      %v4729 = vadd.f32 %v4578, %v4673
      %v4730 = vadd.f32 %v4579, %v4687
      %v4731 = vadd.f32 %v4580, %v4701
      %v4732 = vadd.f32 %v4581, %v4715
      %s4733 = scalar_lea.vmem %s2, 208
      %v4734 = vld [vmem:[%s4733] sm:$0xf]
      %v4735 = vld [vmem:[%s4733 + $0x4] sm:$0xf]
      %v4738 = vunpack.c.l.b16 %v4734
      %v4739 = vunpack.c.l.b16 %v4735
      %v4740 = vpack.c.b16 %v4739, %v4738
      %4741 = vrot.lane.b32.xlu0 %v521, 94
      %v4742 = vpop.permute.xlu0 %4741
      %4743 = vrot.lane.b32.xlu0 %v522, 94
      %v4744 = vpop.permute.xlu0 %4743
      %v4745 = vsel %vm2014, %v3391, %v4742
      %v4746 = vsel %vm2014, %v4742, %v4744
      %v4748 = vsel %vm560, %v4740, 0
      %v4751 = vand.u32 %v4745, %v567
      %v4754 = vand.u32 %v4746, %v567
      %4756 = vmatpush.bf16.msra.mxu0 0
      %4757 = vmatpush.bf16.msra.mxu0 0
      %4758 = vmatpush.bf16.msra.mxu0 0
      %4759 = vmatpush.bf16.msra.mxu0 0
      %4760 = vmatpush.bf16.msra.mxu0 0
      %4761 = vmatpush.bf16.msra.mxu0 0
      %4762 = vmatpush.bf16.msra.mxu0 0
      %4763 = vmatpush.bf16.msra.mxu0 %v2039
      %4764 = vmatmul.bf16.gmra.mxu0 %v4748
      %v4765 = vpop.f32.mrf.mxu0
      %v4766 = vadd.f32 0.0, %v4765
      %v4767 = vpop.f32.mrf.mxu0
      %v4768 = vadd.f32 0.0, %v4767
      %4769 = vdwg.mxu0
      %4770 = vmatpush.bf16.msra.mxu0 0
      %4771 = vmatpush.bf16.msra.mxu0 0
      %4772 = vmatpush.bf16.msra.mxu0 0
      %4773 = vmatpush.bf16.msra.mxu0 0
      %4774 = vmatpush.bf16.msra.mxu0 0
      %4775 = vmatpush.bf16.msra.mxu0 0
      %4776 = vmatpush.bf16.msra.mxu0 0
      %4777 = vmatpush.bf16.msra.mxu0 %v2042
      %4778 = vmatmul.bf16.gmra.mxu0 %v4748
      %v4779 = vpop.f32.mrf.mxu0
      %v4780 = vadd.f32 0.0, %v4779
      %v4781 = vpop.f32.mrf.mxu0
      %v4782 = vadd.f32 0.0, %v4781
      %4783 = vdwg.mxu0
      %4784 = vmatpush.bf16.msra.mxu0 0
      %4785 = vmatpush.bf16.msra.mxu0 0
      %4786 = vmatpush.bf16.msra.mxu0 0
      %4787 = vmatpush.bf16.msra.mxu0 0
      %4788 = vmatpush.bf16.msra.mxu0 0
      %4789 = vmatpush.bf16.msra.mxu0 0
      %4790 = vmatpush.bf16.msra.mxu0 0
      %4791 = vmatpush.bf16.msra.mxu0 %v2045
      %4792 = vmatmul.bf16.gmra.mxu0 %v4748
      %v4793 = vpop.f32.mrf.mxu0
      %v4794 = vadd.f32 0.0, %v4793
      %v4795 = vpop.f32.mrf.mxu0
      %v4796 = vadd.f32 0.0, %v4795
      %4797 = vdwg.mxu0
      %4798 = vmatpush.bf16.msra.mxu0 0
      %4799 = vmatpush.bf16.msra.mxu0 0
      %4800 = vmatpush.bf16.msra.mxu0 0
      %4801 = vmatpush.bf16.msra.mxu0 0
      %4802 = vmatpush.bf16.msra.mxu0 0
      %4803 = vmatpush.bf16.msra.mxu0 0
      %4804 = vmatpush.bf16.msra.mxu0 0
      %4805 = vmatpush.bf16.msra.mxu0 %v2048
      %4806 = vmatmul.bf16.gmra.mxu0 %v4748
      %v4807 = vpop.f32.mrf.mxu0
      %v4808 = vadd.f32 0.0, %v4807
      %v4809 = vpop.f32.mrf.mxu0
      %v4810 = vadd.f32 0.0, %v4809
      %4811 = vdwg.mxu0
      %4812 = vmatpush.bf16.msra.mxu0 0
      %4813 = vmatpush.bf16.msra.mxu0 0
      %4814 = vmatpush.bf16.msra.mxu0 0
      %4815 = vmatpush.bf16.msra.mxu0 0
      %4816 = vmatpush.bf16.msra.mxu0 0
      %4817 = vmatpush.bf16.msra.mxu0 0
      %4818 = vmatpush.bf16.msra.mxu0 0
      %4819 = vmatpush.bf16.msra.mxu0 %v3398
      %4820 = vmatmul.bf16.gmra.mxu0 %v4748
      %v4821 = vpop.f32.mrf.mxu0
      %v4822 = vadd.f32 0.0, %v4821
      %v4823 = vpop.f32.mrf.mxu0
      %v4824 = vadd.f32 0.0, %v4823
      %4825 = vdwg.mxu0
      %4826 = vmatpush.bf16.msra.mxu0 0
      %4827 = vmatpush.bf16.msra.mxu0 0
      %4828 = vmatpush.bf16.msra.mxu0 0
      %4829 = vmatpush.bf16.msra.mxu0 0
      %4830 = vmatpush.bf16.msra.mxu0 0
      %4831 = vmatpush.bf16.msra.mxu0 0
      %4832 = vmatpush.bf16.msra.mxu0 0
      %4833 = vmatpush.bf16.msra.mxu0 %v3401
      %4834 = vmatmul.bf16.gmra.mxu0 %v4748
      %v4835 = vpop.f32.mrf.mxu0
      %v4836 = vadd.f32 0.0, %v4835
      %v4837 = vpop.f32.mrf.mxu0
      %v4838 = vadd.f32 0.0, %v4837
      %4839 = vdwg.mxu0
      %4840 = vmatpush.bf16.msra.mxu0 0
      %4841 = vmatpush.bf16.msra.mxu0 0
      %4842 = vmatpush.bf16.msra.mxu0 0
      %4843 = vmatpush.bf16.msra.mxu0 0
      %4844 = vmatpush.bf16.msra.mxu0 0
      %4845 = vmatpush.bf16.msra.mxu0 0
      %4846 = vmatpush.bf16.msra.mxu0 0
      %4847 = vmatpush.bf16.msra.mxu0 %v4751
      %4848 = vmatmul.bf16.gmra.mxu0 %v4748
      %v4849 = vpop.f32.mrf.mxu0
      %v4850 = vadd.f32 0.0, %v4849
      %v4851 = vpop.f32.mrf.mxu0
      %v4852 = vadd.f32 0.0, %v4851
      %4853 = vdwg.mxu0
      %4854 = vmatpush.bf16.msra.mxu0 0
      %4855 = vmatpush.bf16.msra.mxu0 0
      %4856 = vmatpush.bf16.msra.mxu0 0
      %4857 = vmatpush.bf16.msra.mxu0 0
      %4858 = vmatpush.bf16.msra.mxu0 0
      %4859 = vmatpush.bf16.msra.mxu0 0
      %4860 = vmatpush.bf16.msra.mxu0 0
      %4861 = vmatpush.bf16.msra.mxu0 %v4754
      %4862 = vmatmul.bf16.gmra.mxu0 %v4748
      %v4863 = vpop.f32.mrf.mxu0
      %v4864 = vadd.f32 0.0, %v4863
      %v4865 = vpop.f32.mrf.mxu0
      %v4866 = vadd.f32 0.0, %v4865
      %4867 = vdwg.mxu0
      %v4868 = vadd.f32 %v4717, %v4766
      %v4869 = vadd.f32 %v4718, %v4780
      %v4870 = vadd.f32 %v4719, %v4794
      %v4871 = vadd.f32 %v4720, %v4808
      %v4872 = vadd.f32 %v4721, %v4822
      %v4873 = vadd.f32 %v4722, %v4836
      %v4874 = vadd.f32 %v4723, %v4850
      %v4875 = vadd.f32 %v4724, %v4864
      %v4876 = vadd.f32 %v4725, %v4768
      %v4877 = vadd.f32 %v4726, %v4782
      %v4878 = vadd.f32 %v4727, %v4796
      %v4879 = vadd.f32 %v4728, %v4810
      %v4880 = vadd.f32 %v4729, %v4824
      %v4881 = vadd.f32 %v4730, %v4838
      %v4882 = vadd.f32 %v4731, %v4852
      %v4883 = vadd.f32 %v4732, %v4866
      %v4884 = vld [vmem:[%s448] sm:$0xff]
      %v4886 = vperm.slane %v4884, 0
      %v4887 = vperm.slane %v4884, 1
      %v4888 = vperm.slane %v4884, 2
      %v4889 = vperm.slane %v4884, 3
      %v4890 = vperm.slane %v4884, 4
      %v4891 = vperm.slane %v4884, 5
      %v4892 = vperm.slane %v4884, 6
      %v4893 = vperm.slane %v4884, 7
      %v4902 = vadd.f32 %v4868, %v4886
      %v4903 = vadd.f32 %v4869, %v4887
      %v4904 = vadd.f32 %v4870, %v4888
      %v4905 = vadd.f32 %v4871, %v4889
      %v4906 = vadd.f32 %v4872, %v4890
      %v4907 = vadd.f32 %v4873, %v4891
      %v4908 = vadd.f32 %v4874, %v4892
      %v4909 = vadd.f32 %v4875, %v4893
      %v4910 = vld [vmem:[%s457] sm:$0xff]
      %4912 = vset.pattern.permute.xlu0 0
      %4913 = vperm.xlu0 %4912, %v4910
      %v4914 = vpop.permute.xlu0 %4913
      %v4916 = vsub.f32 %v4902, %v4914
      %v4917 = vsub.f32 %v4903, %v4914
      %v4918 = vsub.f32 %v4904, %v4914
      %v4919 = vsub.f32 %v4905, %v4914
      %v4920 = vsub.f32 %v4906, %v4914
      %v4921 = vsub.f32 %v4907, %v4914
      %v4922 = vsub.f32 %v4908, %v4914
      %v4923 = vsub.f32 %v4909, %v4914
      %v4924 = vmul.f32 %v4916, 1.442695
      %v4925 = vpow.pop %v4924
      %v4926 = vmul.f32 %v4917, 1.442695
      %v4927 = vpow.pop %v4926
      %v4928 = vmul.f32 %v4918, 1.442695
      %v4929 = vpow.pop %v4928
      %v4930 = vmul.f32 %v4919, 1.442695
      %v4931 = vpow.pop %v4930
      %v4932 = vmul.f32 %v4920, 1.442695
      %v4933 = vpow.pop %v4932
      %v4934 = vmul.f32 %v4921, 1.442695
      %v4935 = vpow.pop %v4934
      %v4936 = vmul.f32 %v4922, 1.442695
      %v4937 = vpow.pop %v4936
      %v4938 = vmul.f32 %v4923, 1.442695
      %v4939 = vpow.pop %v4938
      %v4940 = vrot.slane %v4876, 4
      %v4941 = vmax.f32 %v4876, %v4940
      %v4942 = vrot.slane %v4941, 2
      %v4943 = vmax.f32 %v4941, %v4942
      %v4944 = vrot.slane %v4943, 1
      %v4945 = vmax.f32 %v4943, %v4944
      %v4946 = vrot.slane %v4877, 4
      %v4947 = vmax.f32 %v4877, %v4946
      %v4948 = vrot.slane %v4947, 2
      %v4949 = vmax.f32 %v4947, %v4948
      %v4950 = vrot.slane %v4949, 1
      %v4951 = vmax.f32 %v4949, %v4950
      %v4952 = vrot.slane %v4878, 4
      %v4953 = vmax.f32 %v4878, %v4952
      %v4954 = vrot.slane %v4953, 2
      %v4955 = vmax.f32 %v4953, %v4954
      %v4956 = vrot.slane %v4955, 1
      %v4957 = vmax.f32 %v4955, %v4956
      %v4958 = vrot.slane %v4879, 4
      %v4959 = vmax.f32 %v4879, %v4958
      %v4960 = vrot.slane %v4959, 2
      %v4961 = vmax.f32 %v4959, %v4960
      %v4962 = vrot.slane %v4961, 1
      %v4963 = vmax.f32 %v4961, %v4962
      %v4964 = vrot.slane %v4880, 4
      %v4965 = vmax.f32 %v4880, %v4964
      %v4966 = vrot.slane %v4965, 2
      %v4967 = vmax.f32 %v4965, %v4966
      %v4968 = vrot.slane %v4967, 1
      %v4969 = vmax.f32 %v4967, %v4968
      %v4970 = vrot.slane %v4881, 4
      %v4971 = vmax.f32 %v4881, %v4970
      %v4972 = vrot.slane %v4971, 2
      %v4973 = vmax.f32 %v4971, %v4972
      %v4974 = vrot.slane %v4973, 1
      %v4975 = vmax.f32 %v4973, %v4974
      %v4976 = vrot.slane %v4882, 4
      %v4977 = vmax.f32 %v4882, %v4976
      %v4978 = vrot.slane %v4977, 2
      %v4979 = vmax.f32 %v4977, %v4978
      %v4980 = vrot.slane %v4979, 1
      %v4981 = vmax.f32 %v4979, %v4980
      %v4982 = vrot.slane %v4883, 4
      %v4983 = vmax.f32 %v4883, %v4982
      %v4984 = vrot.slane %v4983, 2
      %v4985 = vmax.f32 %v4983, %v4984
      %v4986 = vrot.slane %v4985, 1
      %v4987 = vmax.f32 %v4985, %v4986
      %v4988 = vsub.f32 %v4876, %v4945
      %v4989 = vsub.f32 %v4877, %v4951
      %v4990 = vsub.f32 %v4878, %v4957
      %v4991 = vsub.f32 %v4879, %v4963
      %v4992 = vsub.f32 %v4880, %v4969
      %v4993 = vsub.f32 %v4881, %v4975
      %v4994 = vsub.f32 %v4882, %v4981
      %v4995 = vsub.f32 %v4883, %v4987
      %v4996 = vmul.f32 %v4988, 1.442695
      %v4997 = vpow.pop %v4996
      %v4998 = vmul.f32 %v4989, 1.442695
      %v4999 = vpow.pop %v4998
      %v5000 = vmul.f32 %v4990, 1.442695
      %v5001 = vpow.pop %v5000
      %v5002 = vmul.f32 %v4991, 1.442695
      %v5003 = vpow.pop %v5002
      %v5004 = vmul.f32 %v4992, 1.442695
      %v5005 = vpow.pop %v5004
      %v5006 = vmul.f32 %v4993, 1.442695
      %v5007 = vpow.pop %v5006
      %v5008 = vmul.f32 %v4994, 1.442695
      %v5009 = vpow.pop %v5008
      %v5010 = vmul.f32 %v4995, 1.442695
      %v5011 = vpow.pop %v5010
      %v5012 = vrot.slane %v4997, 4
      %v5013 = vadd.f32 %v4997, %v5012
      %v5014 = vrot.slane %v5013, 2
      %v5015 = vadd.f32 %v5013, %v5014
      %v5016 = vrot.slane %v5015, 1
      %v5017 = vadd.f32 %v5015, %v5016
      %v5018 = vrot.slane %v4999, 4
      %v5019 = vadd.f32 %v4999, %v5018
      %v5020 = vrot.slane %v5019, 2
      %v5021 = vadd.f32 %v5019, %v5020
      %v5022 = vrot.slane %v5021, 1
      %v5023 = vadd.f32 %v5021, %v5022
      %v5024 = vrot.slane %v5001, 4
      %v5025 = vadd.f32 %v5001, %v5024
      %v5026 = vrot.slane %v5025, 2
      %v5027 = vadd.f32 %v5025, %v5026
      %v5028 = vrot.slane %v5027, 1
      %v5029 = vadd.f32 %v5027, %v5028
      %v5030 = vrot.slane %v5003, 4
      %v5031 = vadd.f32 %v5003, %v5030
      %v5032 = vrot.slane %v5031, 2
      %v5033 = vadd.f32 %v5031, %v5032
      %v5034 = vrot.slane %v5033, 1
      %v5035 = vadd.f32 %v5033, %v5034
      %v5036 = vrot.slane %v5005, 4
      %v5037 = vadd.f32 %v5005, %v5036
      %v5038 = vrot.slane %v5037, 2
      %v5039 = vadd.f32 %v5037, %v5038
      %v5040 = vrot.slane %v5039, 1
      %v5041 = vadd.f32 %v5039, %v5040
      %v5042 = vrot.slane %v5007, 4
      %v5043 = vadd.f32 %v5007, %v5042
      %v5044 = vrot.slane %v5043, 2
      %v5045 = vadd.f32 %v5043, %v5044
      %v5046 = vrot.slane %v5045, 1
      %v5047 = vadd.f32 %v5045, %v5046
      %v5048 = vrot.slane %v5009, 4
      %v5049 = vadd.f32 %v5009, %v5048
      %v5050 = vrot.slane %v5049, 2
      %v5051 = vadd.f32 %v5049, %v5050
      %v5052 = vrot.slane %v5051, 1
      %v5053 = vadd.f32 %v5051, %v5052
      %v5054 = vrot.slane %v5011, 4
      %v5055 = vadd.f32 %v5011, %v5054
      %v5056 = vrot.slane %v5055, 2
      %v5057 = vadd.f32 %v5055, %v5056
      %v5058 = vrot.slane %v5057, 1
      %v5059 = vadd.f32 %v5057, %v5058
      %v5060 = vrcp.pop %v5017
      %v5061 = vmul.f32 %v5017, %v5060
      %v5062 = vsub.f32 1.0, %v5061
      %v5063 = vmul.f32 %v5060, %v5062
      %v5064 = vadd.f32 %v5060, %v5063
      %vm5065 = vweird.f32 %v5017
      %vm5066 = vweird.f32 %v5060
      %vm5067 = vmor %vm5065, %vm5066
      %v5068 = vsel %vm5067, %v5060, %v5064
      %v5069 = vand.u32 2147483647, %v5017
      %vm5070 = vcmp.eq.f32.partialorder %v5069, 8.507059e+37
      %v5071 = vand.u32 %v5017, 2147483648
      %v5072 = vor.u32 1.1754944e-38, %v5071
      %v5073 = vsel %vm5070, %v5072, %v5068
      %v5074 = vmul.f32 %v4997, %v5073
      %v5075 = vrcp.pop %v5023
      %v5076 = vmul.f32 %v5023, %v5075
      %v5077 = vsub.f32 1.0, %v5076
      %v5078 = vmul.f32 %v5075, %v5077
      %v5079 = vadd.f32 %v5075, %v5078
      %vm5080 = vweird.f32 %v5023
      %vm5081 = vweird.f32 %v5075
      %vm5082 = vmor %vm5080, %vm5081
      %v5083 = vsel %vm5082, %v5075, %v5079
      %v5084 = vand.u32 2147483647, %v5023
      %vm5085 = vcmp.eq.f32.partialorder %v5084, 8.507059e+37
      %v5086 = vand.u32 %v5023, 2147483648
      %v5087 = vor.u32 1.1754944e-38, %v5086
      %v5088 = vsel %vm5085, %v5087, %v5083
      %v5089 = vmul.f32 %v4999, %v5088
      %v5090 = vrcp.pop %v5029
      %v5091 = vmul.f32 %v5029, %v5090
      %v5092 = vsub.f32 1.0, %v5091
      %v5093 = vmul.f32 %v5090, %v5092
      %v5094 = vadd.f32 %v5090, %v5093
      %vm5095 = vweird.f32 %v5029
      %vm5096 = vweird.f32 %v5090
      %vm5097 = vmor %vm5095, %vm5096
      %v5098 = vsel %vm5097, %v5090, %v5094
      %v5099 = vand.u32 2147483647, %v5029
      %vm5100 = vcmp.eq.f32.partialorder %v5099, 8.507059e+37
      %v5101 = vand.u32 %v5029, 2147483648
      %v5102 = vor.u32 1.1754944e-38, %v5101
      %v5103 = vsel %vm5100, %v5102, %v5098
      %v5104 = vmul.f32 %v5001, %v5103
      %v5105 = vrcp.pop %v5035
      %v5106 = vmul.f32 %v5035, %v5105
      %v5107 = vsub.f32 1.0, %v5106
      %v5108 = vmul.f32 %v5105, %v5107
      %v5109 = vadd.f32 %v5105, %v5108
      %vm5110 = vweird.f32 %v5035
      %vm5111 = vweird.f32 %v5105
      %vm5112 = vmor %vm5110, %vm5111
      %v5113 = vsel %vm5112, %v5105, %v5109
      %v5114 = vand.u32 2147483647, %v5035
      %vm5115 = vcmp.eq.f32.partialorder %v5114, 8.507059e+37
      %v5116 = vand.u32 %v5035, 2147483648
      %v5117 = vor.u32 1.1754944e-38, %v5116
      %v5118 = vsel %vm5115, %v5117, %v5113
      %v5119 = vmul.f32 %v5003, %v5118
      %v5120 = vrcp.pop %v5041
      %v5121 = vmul.f32 %v5041, %v5120
      %v5122 = vsub.f32 1.0, %v5121
      %v5123 = vmul.f32 %v5120, %v5122
      %v5124 = vadd.f32 %v5120, %v5123
      %vm5125 = vweird.f32 %v5041
      %vm5126 = vweird.f32 %v5120
      %vm5127 = vmor %vm5125, %vm5126
      %v5128 = vsel %vm5127, %v5120, %v5124
      %v5129 = vand.u32 2147483647, %v5041
      %vm5130 = vcmp.eq.f32.partialorder %v5129, 8.507059e+37
      %v5131 = vand.u32 %v5041, 2147483648
      %v5132 = vor.u32 1.1754944e-38, %v5131
      %v5133 = vsel %vm5130, %v5132, %v5128
      %v5134 = vmul.f32 %v5005, %v5133
      %v5135 = vrcp.pop %v5047
      %v5136 = vmul.f32 %v5047, %v5135
      %v5137 = vsub.f32 1.0, %v5136
      %v5138 = vmul.f32 %v5135, %v5137
      %v5139 = vadd.f32 %v5135, %v5138
      %vm5140 = vweird.f32 %v5047
      %vm5141 = vweird.f32 %v5135
      %vm5142 = vmor %vm5140, %vm5141
      %v5143 = vsel %vm5142, %v5135, %v5139
      %v5144 = vand.u32 2147483647, %v5047
      %vm5145 = vcmp.eq.f32.partialorder %v5144, 8.507059e+37
      %v5146 = vand.u32 %v5047, 2147483648
      %v5147 = vor.u32 1.1754944e-38, %v5146
      %v5148 = vsel %vm5145, %v5147, %v5143
      %v5149 = vmul.f32 %v5007, %v5148
      %v5150 = vrcp.pop %v5053
      %v5151 = vmul.f32 %v5053, %v5150
      %v5152 = vsub.f32 1.0, %v5151
      %v5153 = vmul.f32 %v5150, %v5152
      %v5154 = vadd.f32 %v5150, %v5153
      %vm5155 = vweird.f32 %v5053
      %vm5156 = vweird.f32 %v5150
      %vm5157 = vmor %vm5155, %vm5156
      %v5158 = vsel %vm5157, %v5150, %v5154
      %v5159 = vand.u32 2147483647, %v5053
      %vm5160 = vcmp.eq.f32.partialorder %v5159, 8.507059e+37
      %v5161 = vand.u32 %v5053, 2147483648
      %v5162 = vor.u32 1.1754944e-38, %v5161
      %v5163 = vsel %vm5160, %v5162, %v5158
      %v5164 = vmul.f32 %v5009, %v5163
      %v5165 = vrcp.pop %v5059
      %v5166 = vmul.f32 %v5059, %v5165
      %v5167 = vsub.f32 1.0, %v5166
      %v5168 = vmul.f32 %v5165, %v5167
      %v5169 = vadd.f32 %v5165, %v5168
      %vm5170 = vweird.f32 %v5059
      %vm5171 = vweird.f32 %v5165
      %vm5172 = vmor %vm5170, %vm5171
      %v5173 = vsel %vm5172, %v5165, %v5169
      %v5174 = vand.u32 2147483647, %v5059
      %vm5175 = vcmp.eq.f32.partialorder %v5174, 8.507059e+37
      %v5176 = vand.u32 %v5059, 2147483648
      %v5177 = vor.u32 1.1754944e-38, %v5176
      %v5178 = vsel %vm5175, %v5177, %v5173
      %v5179 = vmul.f32 %v5011, %v5178
      %v5180 = vld [vmem:[%s453] sm:$0xff]
      %5181 = vxpose.xlu0.b32.start [1/16] %v5180, 128
      %5182 = vxpose.xlu0.b32.cont [2/16] 0.0, 128
      %5183 = vxpose.xlu0.b32.cont [3/16] 0.0, 128
      %5184 = vxpose.xlu0.b32.cont [4/16] 0.0, 128
      %5185 = vxpose.xlu0.b32.cont [5/16] 0.0, 128
      %5186 = vxpose.xlu0.b32.cont [6/16] 0.0, 128
      %5187 = vxpose.xlu0.b32.cont [7/16] 0.0, 128
      %5188 = vxpose.xlu0.b32.cont [8/16] 0.0, 128
      %5189 = vxpose.xlu0.b32.cont [9/16] 0.0, 128
      %5190 = vxpose.xlu0.b32.cont [10/16] 0.0, 128
      %5191 = vxpose.xlu0.b32.cont [11/16] 0.0, 128
      %5192 = vxpose.xlu0.b32.cont [12/16] 0.0, 128
      %5193 = vxpose.xlu0.b32.cont [13/16] 0.0, 128
      %5194 = vxpose.xlu0.b32.cont [14/16] 0.0, 128
      %5195 = vxpose.xlu0.b32.cont [15/16] 0.0, 128
      %5196 = vxpose.xlu0.b32.end [16/16] 0.0, 128
      %v5197 = vpop.trf.xlu0
      %v5198 = vpop.trf.xlu0
      %v5199 = vpop.trf.xlu0
      %v5200 = vpop.trf.xlu0
      %v5201 = vpop.trf.xlu0
      %v5202 = vpop.trf.xlu0
      %v5203 = vpop.trf.xlu0
      %v5204 = vpop.trf.xlu0
      %v5205 = vpop.trf.xlu0
      %v5206 = vpop.trf.xlu0
      %v5207 = vpop.trf.xlu0
      %v5208 = vpop.trf.xlu0
      %v5209 = vpop.trf.xlu0
      %v5210 = vpop.trf.xlu0
      %v5211 = vpop.trf.xlu0
      %v5212 = vpop.trf.xlu0
      %vm5213 = vcmask 64512
      %v5215 = vsel %vm5213, %v5197, 0
      %5217 = vmatpush.msra.mxu0 0.0
      %5218 = vmatpush.msra.mxu0 0.0
      %5219 = vmatpush.msra.mxu0 0.0
      %5220 = vmatpush.msra.mxu0 0.0
      %5221 = vmatpush.msra.mxu0 0.0
      %5222 = vmatpush.msra.mxu0 0.0
      %5223 = vmatpush.msra.mxu0 0.0
      %5224 = vmatpush.msra.mxu0 0.0
      %5225 = vmatpush.msra.mxu0 0.0
      %5226 = vmatpush.msra.mxu0 0.0
      %5227 = vmatpush.msra.mxu0 0.0
      %5228 = vmatpush.msra.mxu0 0.0
      %5229 = vmatpush.msra.mxu0 0.0
      %5230 = vmatpush.msra.mxu0 0.0
      %5231 = vmatpush.msra.mxu0 0.0
      %5232 = vmatpush.msra.mxu0 %v5074
      %5233 = vmatmul.f32.gmra.mxu0 %v5215
      %v5234 = vpop.f32.mrf.mxu0
      %v5235 = vadd.f32 0.0, %v5234
      %5236 = vdwg.mxu0
      %5237 = vmatpush.msra.mxu0 0.0
      %5238 = vmatpush.msra.mxu0 0.0
      %5239 = vmatpush.msra.mxu0 0.0
      %5240 = vmatpush.msra.mxu0 0.0
      %5241 = vmatpush.msra.mxu0 0.0
      %5242 = vmatpush.msra.mxu0 0.0
      %5243 = vmatpush.msra.mxu0 0.0
      %5244 = vmatpush.msra.mxu0 0.0
      %5245 = vmatpush.msra.mxu0 0.0
      %5246 = vmatpush.msra.mxu0 0.0
      %5247 = vmatpush.msra.mxu0 0.0
      %5248 = vmatpush.msra.mxu0 0.0
      %5249 = vmatpush.msra.mxu0 0.0
      %5250 = vmatpush.msra.mxu0 0.0
      %5251 = vmatpush.msra.mxu0 0.0
      %5252 = vmatpush.msra.mxu0 %v5089
      %5253 = vmatmul.f32.gmra.mxu0 %v5215
      %v5254 = vpop.f32.mrf.mxu0
      %v5255 = vadd.f32 0.0, %v5254
      %5256 = vdwg.mxu0
      %5257 = vmatpush.msra.mxu0 0.0
      %5258 = vmatpush.msra.mxu0 0.0
      %5259 = vmatpush.msra.mxu0 0.0
      %5260 = vmatpush.msra.mxu0 0.0
      %5261 = vmatpush.msra.mxu0 0.0
      %5262 = vmatpush.msra.mxu0 0.0
      %5263 = vmatpush.msra.mxu0 0.0
      %5264 = vmatpush.msra.mxu0 0.0
      %5265 = vmatpush.msra.mxu0 0.0
      %5266 = vmatpush.msra.mxu0 0.0
      %5267 = vmatpush.msra.mxu0 0.0
      %5268 = vmatpush.msra.mxu0 0.0
      %5269 = vmatpush.msra.mxu0 0.0
      %5270 = vmatpush.msra.mxu0 0.0
      %5271 = vmatpush.msra.mxu0 0.0
      %5272 = vmatpush.msra.mxu0 %v5104
      %5273 = vmatmul.f32.gmra.mxu0 %v5215
      %v5274 = vpop.f32.mrf.mxu0
      %v5275 = vadd.f32 0.0, %v5274
      %5276 = vdwg.mxu0
      %5277 = vmatpush.msra.mxu0 0.0
      %5278 = vmatpush.msra.mxu0 0.0
      %5279 = vmatpush.msra.mxu0 0.0
      %5280 = vmatpush.msra.mxu0 0.0
      %5281 = vmatpush.msra.mxu0 0.0
      %5282 = vmatpush.msra.mxu0 0.0
      %5283 = vmatpush.msra.mxu0 0.0
      %5284 = vmatpush.msra.mxu0 0.0
      %5285 = vmatpush.msra.mxu0 0.0
      %5286 = vmatpush.msra.mxu0 0.0
      %5287 = vmatpush.msra.mxu0 0.0
      %5288 = vmatpush.msra.mxu0 0.0
      %5289 = vmatpush.msra.mxu0 0.0
      %5290 = vmatpush.msra.mxu0 0.0
      %5291 = vmatpush.msra.mxu0 0.0
      %5292 = vmatpush.msra.mxu0 %v5119
      %5293 = vmatmul.f32.gmra.mxu0 %v5215
      %v5294 = vpop.f32.mrf.mxu0
      %v5295 = vadd.f32 0.0, %v5294
      %5296 = vdwg.mxu0
      %5297 = vmatpush.msra.mxu0 0.0
      %5298 = vmatpush.msra.mxu0 0.0
      %5299 = vmatpush.msra.mxu0 0.0
      %5300 = vmatpush.msra.mxu0 0.0
      %5301 = vmatpush.msra.mxu0 0.0
      %5302 = vmatpush.msra.mxu0 0.0
      %5303 = vmatpush.msra.mxu0 0.0
      %5304 = vmatpush.msra.mxu0 0.0
      %5305 = vmatpush.msra.mxu0 0.0
      %5306 = vmatpush.msra.mxu0 0.0
      %5307 = vmatpush.msra.mxu0 0.0
      %5308 = vmatpush.msra.mxu0 0.0
      %5309 = vmatpush.msra.mxu0 0.0
      %5310 = vmatpush.msra.mxu0 0.0
      %5311 = vmatpush.msra.mxu0 0.0
      %5312 = vmatpush.msra.mxu0 %v5134
      %5313 = vmatmul.f32.gmra.mxu0 %v5215
      %v5314 = vpop.f32.mrf.mxu0
      %v5315 = vadd.f32 0.0, %v5314
      %5316 = vdwg.mxu0
      %5317 = vmatpush.msra.mxu0 0.0
      %5318 = vmatpush.msra.mxu0 0.0
      %5319 = vmatpush.msra.mxu0 0.0
      %5320 = vmatpush.msra.mxu0 0.0
      %5321 = vmatpush.msra.mxu0 0.0
      %5322 = vmatpush.msra.mxu0 0.0
      %5323 = vmatpush.msra.mxu0 0.0
      %5324 = vmatpush.msra.mxu0 0.0
      %5325 = vmatpush.msra.mxu0 0.0
      %5326 = vmatpush.msra.mxu0 0.0
      %5327 = vmatpush.msra.mxu0 0.0
      %5328 = vmatpush.msra.mxu0 0.0
      %5329 = vmatpush.msra.mxu0 0.0
      %5330 = vmatpush.msra.mxu0 0.0
      %5331 = vmatpush.msra.mxu0 0.0
      %5332 = vmatpush.msra.mxu0 %v5149
      %5333 = vmatmul.f32.gmra.mxu0 %v5215
      %v5334 = vpop.f32.mrf.mxu0
      %v5335 = vadd.f32 0.0, %v5334
      %5336 = vdwg.mxu0
      %5337 = vmatpush.msra.mxu0 0.0
      %5338 = vmatpush.msra.mxu0 0.0
      %5339 = vmatpush.msra.mxu0 0.0
      %5340 = vmatpush.msra.mxu0 0.0
      %5341 = vmatpush.msra.mxu0 0.0
      %5342 = vmatpush.msra.mxu0 0.0
      %5343 = vmatpush.msra.mxu0 0.0
      %5344 = vmatpush.msra.mxu0 0.0
      %5345 = vmatpush.msra.mxu0 0.0
      %5346 = vmatpush.msra.mxu0 0.0
      %5347 = vmatpush.msra.mxu0 0.0
      %5348 = vmatpush.msra.mxu0 0.0
      %5349 = vmatpush.msra.mxu0 0.0
      %5350 = vmatpush.msra.mxu0 0.0
      %5351 = vmatpush.msra.mxu0 0.0
      %5352 = vmatpush.msra.mxu0 %v5164
      %5353 = vmatmul.f32.gmra.mxu0 %v5215
      %v5354 = vpop.f32.mrf.mxu0
      %v5355 = vadd.f32 0.0, %v5354
      %5356 = vdwg.mxu0
      %5357 = vmatpush.msra.mxu0 0.0
      %5358 = vmatpush.msra.mxu0 0.0
      %5359 = vmatpush.msra.mxu0 0.0
      %5360 = vmatpush.msra.mxu0 0.0
      %5361 = vmatpush.msra.mxu0 0.0
      %5362 = vmatpush.msra.mxu0 0.0
      %5363 = vmatpush.msra.mxu0 0.0
      %5364 = vmatpush.msra.mxu0 0.0
      %5365 = vmatpush.msra.mxu0 0.0
      %5366 = vmatpush.msra.mxu0 0.0
      %5367 = vmatpush.msra.mxu0 0.0
      %5368 = vmatpush.msra.mxu0 0.0
      %5369 = vmatpush.msra.mxu0 0.0
      %5370 = vmatpush.msra.mxu0 0.0
      %5371 = vmatpush.msra.mxu0 0.0
      %5372 = vmatpush.msra.mxu0 %v5179
      %5373 = vmatmul.f32.gmra.mxu0 %v5215
      %v5374 = vpop.f32.mrf.mxu0
      %v5375 = vadd.f32 0.0, %v5374
      %5376 = vdwg.mxu0
      %v5377 = vpack.c.bf16 %v5255, %v5235
      %v5378 = vpack.c.bf16 %v5295, %v5275
      %v5379 = vpack.c.bf16 %v5335, %v5315
      %v5380 = vpack.c.bf16 %v5375, %v5355
      %5381 = vst [vmem:[%s470] sm:$0xff] %v5377
      %5382 = vst [vmem:[%s470 + $0x8] sm:$0xff] %v5378
      %5383 = vst [vmem:[%s470 + $0x10] sm:$0xff] %v5379
      %5384 = vst [vmem:[%s470 + $0x18] sm:$0xff] %v5380
      %v5385 = vld [vmem:[%s461] sm:$0xff]
      %5387 = vset.pattern.permute.xlu0 0
      %5388 = vperm.xlu0 %5387, %v5385
      %v5389 = vpop.permute.xlu0 %5388
      %v5391 = vmul.f32 %v4925, %v5389
      %v5392 = vmul.f32 %v4927, %v5389
      %v5393 = vmul.f32 %v4929, %v5389
      %v5394 = vmul.f32 %v4931, %v5389
      %v5395 = vmul.f32 %v4933, %v5389
      %v5396 = vmul.f32 %v4935, %v5389
      %v5397 = vmul.f32 %v4937, %v5389
      %v5398 = vmul.f32 %v4939, %v5389
      %v5399 = vmul.f32 %v5391, %v5074
      %v5400 = vmul.f32 %v5392, %v5089
      %v5401 = vmul.f32 %v5393, %v5104
      %v5402 = vmul.f32 %v5394, %v5119
      %v5403 = vmul.f32 %v5395, %v5134
      %v5404 = vmul.f32 %v5396, %v5149
      %v5405 = vmul.f32 %v5397, %v5164
      %v5406 = vmul.f32 %v5398, %v5179
      %v5407 = vpack.c.bf16 %v5400, %v5399
      %v5408 = vpack.c.bf16 %v5402, %v5401
      %v5409 = vpack.c.bf16 %v5404, %v5403
      %v5410 = vpack.c.bf16 %v5406, %v5405
      %5411 = vst [vmem:[%s480] sm:$0xff] %v5407
      %5412 = vst [vmem:[%s480 + $0x8] sm:$0xff] %v5408
      %5413 = vst [vmem:[%s480 + $0x10] sm:$0xff] %v5409
      %5414 = vst [vmem:[%s480 + $0x18] sm:$0xff] %v5410
      %s5415 = smul.u32 8, %s25
      %p5416 = scmp.lt.s32.totalorder %s24, 1
      %s5417 = scalar_select %p5416, %s24, 1
      %p5418 = scmp.lt.s32.totalorder %s5415, 15
      %s5419 = scalar_select %p5418, %s5415, 15
      %s5420 = smul.addr %s5417, 16
      %s5421 = sadd.s32 %s5419, %s5420
      %s5422 = smul.addr %s5421, 4
      %s5423 = scalar_lea.vmem %s7, %s5422
      %s5424 = smul.u32 8, %s25
      %p5425 = scmp.lt.s32.totalorder %s24, 1
      %s5426 = scalar_select %p5425, %s24, 1
      %p5427 = scmp.lt.s32.totalorder %s5424, 15
      %s5428 = scalar_select %p5427, %s5424, 15
      %s5429 = smul.addr %s5426, 16
      %s5430 = sadd.s32 %s5428, %s5429
      %s5431 = smul.addr %s5430, 4
      %s5432 = scalar_lea.vmem %s8, %s5431
      // Predicated region
      $region49: #{a2net_forward.3} parent=47 // pred_check
        %p5433 = pneg %p235
      $region50: #{a2net_forward.3} parent=47 // pred_check_branch
        %5435 = sbr.rel (%p5433) target = $region52
      $region51: #{a2net_forward.3} parent=47 // pred_region
        %s5436 = smul.u32 8, %s25
      $region52: #{a2net_forward.3} parent=47 // pred_fallthru
        _
      // Predicated region
      $region53: #{a2net_forward.3} parent=47 // pred_check
        %p5437 = pneg %p263
      $region54: #{a2net_forward.3} parent=47 // pred_check_branch
        %5439 = sbr.rel (%p5437) target = $region56
      $region55: #{a2net_forward.3} parent=47 // pred_region
        %s5440 = smul.u32 8, %s25
      $region56: #{a2net_forward.3} parent=47 // pred_fallthru
        _
    $region48: #{a2net_forward.3} parent=5 // pred_fallthru
      _
    %p5441 = scmp.le.s32.totalorder 2, %s15
    // Predicated region
    $region57: #{a2net_forward.3} parent=5 // pred_check
      %p5442 = pneg %p5441
    $region58: #{a2net_forward.3} parent=5 // pred_check_branch
      %5444 = sbr.rel (%p5442) target = $region60
    $region59: #{a2net_forward.3} parent=5 // pred_region
      %s5445 = ssub.s32 %s15, 2
      // Predicated region
      $region61: #{a2net_forward.3} parent=59 // pred_check
        %p5446 = pneg %p241
      $region62: #{a2net_forward.3} parent=59 // pred_check_branch
        %5448 = sbr.rel (%p5446) target = $region64
      $region63: #{a2net_forward.3} parent=59 // pred_region
        %s5449 = smul.u32 8, %s27
        %p5450 = scmp.lt.s32.totalorder %s26, 1
        %s5451 = scalar_select %p5450, %s26, 1
        %p5452 = scmp.lt.s32.totalorder %s5449, 15
        %s5453 = scalar_select %p5452, %s5449, 15
        %s5454 = smul.addr %s5451, 16
        %s5455 = sadd.s32 %s5453, %s5454
        %s5456 = smul.addr %s5455, 4
        %s5457 = scalar_lea.vmem %s7, %s5456
      $region64: #{a2net_forward.3} parent=59 // pred_fallthru
        _
      // Predicated region
      $region65: #{a2net_forward.3} parent=59 // pred_check
        %p5458 = pneg %p269
      $region66: #{a2net_forward.3} parent=59 // pred_check_branch
        %5460 = sbr.rel (%p5458) target = $region68
      $region67: #{a2net_forward.3} parent=59 // pred_region
        %s5461 = smul.u32 8, %s27
        %p5462 = scmp.lt.s32.totalorder %s26, 1
        %s5463 = scalar_select %p5462, %s26, 1
        %p5464 = scmp.lt.s32.totalorder %s5461, 15
        %s5465 = scalar_select %p5464, %s5461, 15
        %s5466 = smul.addr %s5463, 16
        %s5467 = sadd.s32 %s5465, %s5466
        %s5468 = smul.addr %s5467, 4
        %s5469 = scalar_lea.vmem %s8, %s5468
      $region68: #{a2net_forward.3} parent=59 // pred_fallthru
        _
    $region60: #{a2net_forward.3} parent=5 // pred_fallthru
      _
  $region6: #{a2net_forward.3} parent=0 // loop_footer
    %s19 = sadd.s32 1, %s15
  $region7: #{a2net_forward.3} parent=0 // loop_footer_branch
    %14 = sbr.rel target = $region3
  $region8: #{a2net_forward.3} parent=0 // loop_exit
    _

// kernel: a2net_forward.2
$region0: #{a2net_forward.2}
  #allocation0 [shape = 'u32[]', space=smem, size = 0x4, offset = 0x4, fixed_abs, tag = 'smem constant byte address 0x4 - core index']
  #allocation1 [shape = 'u32[72,128]{1,0:T(1,128)}', space=vmem, size = 0x9000, scoped, tag = 'internal scratch']
  %s0 = inlined_call_operand.vmem [shape: bf16[2,5,3072], index: 0, kind: input, shape index: {}, may-alias: {0,1}]
  %s1 = inlined_call_operand.vmem [shape: bf16[2,5,3072], index: 1, kind: input, shape index: {}, may-alias: {0,1}]
  %s2 = inlined_call_operand.vmem [shape: bf16[27,16,5], index: 2, kind: input, shape index: {}]
  %s3 = inlined_call_operand.vmem [shape: f32[1,2048], index: 3, kind: input, shape index: {}]
  %s4 = inlined_call_operand.vmem [shape: f32[2,8,8], index: 4, kind: output, shape index: {0}]
  %s5 = inlined_call_operand.vmem [shape: f32[2,8,1], index: 5, kind: output, shape index: {1}]
  %s6 = inlined_call_operand.vmem [shape: f32[2,8,1], index: 6, kind: output, shape index: {2}]
  %7 = xla_tuple %s4, %s5, %s6
  %s8 = sld [smem:[#allocation0]]
  $region73: #{a2net_forward.2} parent=0
    _
  %s10 = ssub.s32 1, %s8
  %s11 = scalar_select 0, %s10, %s8
  loop: start=0, step=1, limit=6
  $region2: #{a2net_forward.2} parent=0 // loop_pre_header
    _
  $region3: #{a2net_forward.2} parent=0 // loop_header
    %s13 = sphi 0, %s17
    %p14 = scmp.ge.s32.totalorder %s13, 6
    %s20 = sphi 0, %s32
    %s21 = sphi 0, %s28
    %s22 = sphi 0, %s20
    %s23 = sphi 0, %s21
    %s24 = sphi 0, %s22
    %s25 = sphi 0, %s23
    %s37 = sphi 0, %s39
    %s40 = sphi 0, %s37
    %s41 = sphi 0, %s40
    %s57 = sphi 0, %s41
    %s67 = sphi 0, %s69
    %s70 = sphi 0, %s67
    %s71 = sphi 0, %s70
    %s87 = sphi 0, %s71
    %s91 = sphi 0, %s91
    %s93 = sphi 0, %s91
    %s94 = sphi 0, %s93
    %s108 = sphi 0, %s94
    %s114 = sphi 0, %s116
    %s117 = sphi 0, %s114
    %s118 = sphi 0, %s117
    %s134 = sphi 0, %s118
    %s140 = sphi 0, %s142
    %s143 = sphi 0, %s140
    %s144 = sphi 0, %s143
    %s160 = sphi 0, %s144
    %s166 = sphi 0, %s168
    %s169 = sphi 0, %s166
    %s170 = sphi 0, %s169
    %s186 = sphi 0, %s170
    %s192 = sphi 0, %s194
    %s195 = sphi 0, %s192
    %s196 = sphi 0, %s195
    %s212 = sphi 0, %s196
  $region4: #{a2net_forward.2} parent=0 // loop_header_branch
    %16 = sbr.rel (%p14) target = $region8
  $region5: #{a2net_forward.2} parent=0 // loop_body
    %s18 = ssub.s32 %s13, 1
    %s19 = ssub.s32 %s13, 2
    %s26 = sadd.s32 1, %s21
    %p27 = scmp.ge.s32.totalorder %s26, 2
    %s28 = scalar_select %p27, 0, %s26
    %s29 = sadd.s32 1, %s20
    %s30 = scalar_select %p27, %s29, %s20
    %p31 = scmp.ge.s32.totalorder %s30, 2
    %s32 = scalar_select %p31, 0, %s30
    %s33 = ssub.s32 %s20, %s32
    %s34 = ssub.s32 %s21, %s28
    %s35 = sor.u32 %s33, %s34
    %p36 = scmp.eq.s32.totalorder %s35, 0
    %s38 = sadd.s32 %s37, 1
    %s39 = scalar_select %p36, %s37, %s38
    %p42 = pneg %p36
    %p43 = scmp.eq.s32.totalorder %s13, 3
    %p44 = por %p42, %p43
    %p45 = scmp.ne.s32.totalorder %s37, %s40
    %p46 = scmp.eq.s32.totalorder %s13, 0
    %p47 = por %p45, %p46
    %p48 = scmp.ne.s32.totalorder %s37, %s40
    %p49 = scmp.eq.s32.totalorder %s18, 3
    %p50 = por %p48, %p49
    %p51 = scmp.ne.s32.totalorder %s40, %s41
    %p52 = scmp.eq.s32.totalorder %s18, 0
    %p53 = por %p51, %p52
    %p54 = scmp.ne.s32.totalorder %s40, %s41
    %p55 = scmp.eq.s32.totalorder %s19, 3
    %p56 = por %p54, %p55
    %p58 = scmp.ne.s32.totalorder %s41, %s57
    %p59 = scmp.eq.s32.totalorder %s19, 0
    %p60 = por %p58, %p59
    %s61 = sadd.s32 %s21, 1
    %s62 = sadd.s32 %s28, 1
    %s63 = ssub.s32 %s20, %s32
    %s64 = ssub.s32 %s61, %s62
    %s65 = sor.u32 %s63, %s64
    %p66 = scmp.eq.s32.totalorder %s65, 0
    %s68 = sadd.s32 %s67, 1
    %s69 = scalar_select %p66, %s67, %s68
    %p72 = pneg %p66
    %p73 = scmp.eq.s32.totalorder %s13, 3
    %p74 = por %p72, %p73
    %p75 = scmp.ne.s32.totalorder %s67, %s70
    %p76 = scmp.eq.s32.totalorder %s13, 0
    %p77 = por %p75, %p76
    %p78 = scmp.ne.s32.totalorder %s67, %s70
    %p79 = scmp.eq.s32.totalorder %s18, 3
    %p80 = por %p78, %p79
    %p81 = scmp.ne.s32.totalorder %s70, %s71
    %p82 = scmp.eq.s32.totalorder %s18, 0
    %p83 = por %p81, %p82
    %p84 = scmp.ne.s32.totalorder %s70, %s71
    %p85 = scmp.eq.s32.totalorder %s19, 3
    %p86 = por %p84, %p85
    %p88 = scmp.ne.s32.totalorder %s71, %s87
    %p89 = scmp.eq.s32.totalorder %s19, 0
    %p90 = por %p88, %p89
    %s92 = sadd.s32 %s91, 1
    %p95 = scmp.eq.s32.totalorder %s13, 3
    %p96 = scmp.ne.s32.totalorder %s91, %s93
    %p97 = scmp.eq.s32.totalorder %s13, 0
    %p98 = por %p96, %p97
    %p99 = scmp.ne.s32.totalorder %s91, %s93
    %p100 = scmp.eq.s32.totalorder %s18, 3
    %p101 = por %p99, %p100
    %p102 = scmp.ne.s32.totalorder %s93, %s94
    %p103 = scmp.eq.s32.totalorder %s18, 0
    %p104 = por %p102, %p103
    %p105 = scmp.ne.s32.totalorder %s93, %s94
    %p106 = scmp.eq.s32.totalorder %s19, 3
    %p107 = por %p105, %p106
    %p109 = scmp.ne.s32.totalorder %s94, %s108
    %p110 = scmp.eq.s32.totalorder %s19, 0
    %p111 = por %p109, %p110
    %s112 = ssub.s32 %s21, %s28
    %p113 = scmp.eq.s32.totalorder %s112, 0
    %s115 = sadd.s32 %s114, 1
    %s116 = scalar_select %p113, %s114, %s115
    %p119 = pneg %p113
    %p120 = scmp.eq.s32.totalorder %s13, 3
    %p121 = por %p119, %p120
    %p122 = scmp.ne.s32.totalorder %s114, %s117
    %p123 = scmp.eq.s32.totalorder %s13, 0
    %p124 = por %p122, %p123
    %p125 = scmp.ne.s32.totalorder %s114, %s117
    %p126 = scmp.eq.s32.totalorder %s18, 3
    %p127 = por %p125, %p126
    %p128 = scmp.ne.s32.totalorder %s117, %s118
    %p129 = scmp.eq.s32.totalorder %s18, 0
    %p130 = por %p128, %p129
    %p131 = scmp.ne.s32.totalorder %s117, %s118
    %p132 = scmp.eq.s32.totalorder %s19, 3
    %p133 = por %p131, %p132
    %p135 = scmp.ne.s32.totalorder %s118, %s134
    %p136 = scmp.eq.s32.totalorder %s19, 0
    %p137 = por %p135, %p136
    %s138 = ssub.s32 %s20, %s32
    %p139 = scmp.eq.s32.totalorder %s138, 0
    %s141 = sadd.s32 %s140, 1
    %s142 = scalar_select %p139, %s140, %s141
    %p145 = pneg %p139
    %p146 = scmp.eq.s32.totalorder %s13, 3
    %p147 = por %p145, %p146
    %p148 = scmp.ne.s32.totalorder %s140, %s143
    %p149 = scmp.eq.s32.totalorder %s13, 0
    %p150 = por %p148, %p149
    %p151 = scmp.ne.s32.totalorder %s140, %s143
    %p152 = scmp.eq.s32.totalorder %s18, 3
    %p153 = por %p151, %p152
    %p154 = scmp.ne.s32.totalorder %s143, %s144
    %p155 = scmp.eq.s32.totalorder %s18, 0
    %p156 = por %p154, %p155
    %p157 = scmp.ne.s32.totalorder %s143, %s144
    %p158 = scmp.eq.s32.totalorder %s19, 3
    %p159 = por %p157, %p158
    %p161 = scmp.ne.s32.totalorder %s144, %s160
    %p162 = scmp.eq.s32.totalorder %s19, 0
    %p163 = por %p161, %p162
    %s164 = ssub.s32 %s20, %s32
    %p165 = scmp.eq.s32.totalorder %s164, 0
    %s167 = sadd.s32 %s166, 1
    %s168 = scalar_select %p165, %s166, %s167
    %p171 = pneg %p165
    %p172 = scmp.eq.s32.totalorder %s13, 3
    %p173 = por %p171, %p172
    %p174 = scmp.ne.s32.totalorder %s166, %s169
    %p175 = scmp.eq.s32.totalorder %s13, 0
    %p176 = por %p174, %p175
    %p177 = scmp.ne.s32.totalorder %s166, %s169
    %p178 = scmp.eq.s32.totalorder %s18, 3
    %p179 = por %p177, %p178
    %p180 = scmp.ne.s32.totalorder %s169, %s170
    %p181 = scmp.eq.s32.totalorder %s18, 0
    %p182 = por %p180, %p181
    %p183 = scmp.ne.s32.totalorder %s169, %s170
    %p184 = scmp.eq.s32.totalorder %s19, 3
    %p185 = por %p183, %p184
    %p187 = scmp.ne.s32.totalorder %s170, %s186
    %p188 = scmp.eq.s32.totalorder %s19, 0
    %p189 = por %p187, %p188
    %s190 = ssub.s32 %s20, %s32
    %p191 = scmp.eq.s32.totalorder %s190, 0
    %s193 = sadd.s32 %s192, 1
    %s194 = scalar_select %p191, %s192, %s193
    %p197 = pneg %p191
    %p198 = scmp.eq.s32.totalorder %s13, 3
    %p199 = por %p197, %p198
    %p200 = scmp.ne.s32.totalorder %s192, %s195
    %p201 = scmp.eq.s32.totalorder %s13, 0
    %p202 = por %p200, %p201
    %p203 = scmp.ne.s32.totalorder %s192, %s195
    %p204 = scmp.eq.s32.totalorder %s18, 3
    %p205 = por %p203, %p204
    %p206 = scmp.ne.s32.totalorder %s195, %s196
    %p207 = scmp.eq.s32.totalorder %s18, 0
    %p208 = por %p206, %p207
    %p209 = scmp.ne.s32.totalorder %s195, %s196
    %p210 = scmp.eq.s32.totalorder %s19, 3
    %p211 = por %p209, %p210
    %p213 = scmp.ne.s32.totalorder %s196, %s212
    %p214 = scmp.eq.s32.totalorder %s19, 0
    %p215 = por %p213, %p214
    %p216 = scmp.le.s32.totalorder 1, %s13
    %p217 = scmp.lt.s32.totalorder %s13, 5
    %p218 = pnand %p216, %p217
    %p219 = pneg %p218
    // Predicated region
    $region9: #{a2net_forward.2} parent=5 // pred_check
      _
    $region10: #{a2net_forward.2} parent=5 // pred_check_branch
      %221 = sbr.rel (%p218) target = $region12
    $region11: #{a2net_forward.2} parent=5 // pred_region
      %s222 = ssub.s32 %s13, 1
      // Predicated region
      $region13: #{a2net_forward.2} parent=11 // pred_check
        %p223 = pneg %p104
      $region14: #{a2net_forward.2} parent=11 // pred_check_branch
        %225 = sbr.rel (%p223) target = $region16
      $region15: #{a2net_forward.2} parent=11 // pred_region
        _
      $region16: #{a2net_forward.2} parent=11 // pred_fallthru
        _
    $region12: #{a2net_forward.2} parent=5 // pred_fallthru
      _
    %p226 = scmp.lt.s32.totalorder %s13, 4
    // Predicated region
    $region17: #{a2net_forward.2} parent=5 // pred_check
      %p227 = pneg %p226
    $region18: #{a2net_forward.2} parent=5 // pred_check_branch
      %229 = sbr.rel (%p227) target = $region20
    $region19: #{a2net_forward.2} parent=5 // pred_region
      // Predicated region
      $region21: #{a2net_forward.2} parent=19 // pred_check
        %p230 = pneg %p47
      $region22: #{a2net_forward.2} parent=19 // pred_check_branch
        %232 = sbr.rel (%p230) target = $region24
      $region23: #{a2net_forward.2} parent=19 // pred_region
        %s233 = smul.u32 8, %s21
        %p234 = scmp.lt.s32.totalorder %s20, 1
        %s235 = scalar_select %p234, %s20, 1
        %p236 = scmp.lt.s32.totalorder %s233, 23
        %s237 = scalar_select %p236, %s233, 23
        %s238 = smul.addr %s235, 24
        %s239 = sadd.s32 %s237, %s238
        %s240 = smul.addr %s239, 4
        %s241 = scalar_lea.vmem %s0, %s240
        %s242 = smul.u32 8, %s21
      $region24: #{a2net_forward.2} parent=19 // pred_fallthru
        _
      // Predicated region
      $region25: #{a2net_forward.2} parent=19 // pred_check
        %p243 = pneg %p77
      $region26: #{a2net_forward.2} parent=19 // pred_check_branch
        %245 = sbr.rel (%p243) target = $region28
      $region27: #{a2net_forward.2} parent=19 // pred_region
        %s246 = sadd.s32 %s21, 1
        %s247 = smul.u32 8, %s246
        %p248 = scmp.lt.s32.totalorder %s20, 1
        %s249 = scalar_select %p248, %s20, 1
        %p250 = scmp.lt.s32.totalorder %s247, 23
        %s251 = scalar_select %p250, %s247, 23
        %s252 = smul.addr %s249, 24
        %s253 = sadd.s32 %s251, %s252
        %s254 = smul.addr %s253, 4
        %s255 = scalar_lea.vmem %s1, %s254
        %s256 = sadd.s32 %s21, 1
        %s257 = smul.u32 8, %s256
      $region28: #{a2net_forward.2} parent=19 // pred_fallthru
        _
      // Predicated region
      $region29: #{a2net_forward.2} parent=19 // pred_check
        %p258 = pneg %p124
      $region30: #{a2net_forward.2} parent=19 // pred_check_branch
        %260 = sbr.rel (%p258) target = $region32
      $region31: #{a2net_forward.2} parent=19 // pred_region
        %s261 = smul.u32 8, %s21
        %p262 = scmp.lt.s32.totalorder %s261, 15
        %s263 = scalar_select %p262, %s261, 15
        %s264 = scalar_lea.vmem %s3, %s263
        %s265 = smul.u32 8, %s21
      $region32: #{a2net_forward.2} parent=19 // pred_fallthru
        _
    $region20: #{a2net_forward.2} parent=5 // pred_fallthru
      _
    %p266 = scmp.le.s32.totalorder 1, %s13
    %p267 = scmp.lt.s32.totalorder %s13, 5
    %p268 = pnand %p266, %p267
    %p269 = pneg %p268
    // Predicated region
    $region33: #{a2net_forward.2} parent=5 // pred_check
      _
    $region34: #{a2net_forward.2} parent=5 // pred_check_branch
      %271 = sbr.rel (%p268) target = $region36
    $region35: #{a2net_forward.2} parent=5 // pred_region
      %s272 = ssub.s32 %s13, 1
      %s273 = smul.u32 8, %s23
      %p274 = scmp.lt.s32.totalorder %s22, 1
      %s275 = scalar_select %p274, %s22, 1
      %p276 = scmp.lt.s32.totalorder %s273, 23
      %s277 = scalar_select %p276, %s273, 23
      %s278 = smul.addr %s275, 24
      %s279 = sadd.s32 %s277, %s278
      %s280 = smul.addr %s279, 4
      %s281 = scalar_lea.vmem %s0, %s280
      %p282 = pneg %p53
      %p283 = pneg %p50
      %s284 = sadd.s32 %s23, 1
      %s285 = smul.u32 8, %s284
      %p286 = scmp.lt.s32.totalorder %s22, 1
      %s287 = scalar_select %p286, %s22, 1
      %p288 = scmp.lt.s32.totalorder %s285, 23
      %s289 = scalar_select %p288, %s285, 23
      %s290 = smul.addr %s287, 24
      %s291 = sadd.s32 %s289, %s290
      %s292 = smul.addr %s291, 4
      %s293 = scalar_lea.vmem %s1, %s292
      %p294 = pneg %p83
      %p295 = pneg %p80
      %p296 = pneg %p104
      %p297 = pneg %p101
      %s298 = smul.u32 8, %s23
      %p299 = scmp.lt.s32.totalorder %s298, 15
      %s300 = scalar_select %p299, %s298, 15
      %s301 = scalar_lea.vmem %s3, %s300
      %p302 = pneg %p130
      %p303 = pneg %p127
      %p304 = pneg %p156
      %p305 = pneg %p153
      %p306 = scmp.lt.s32.totalorder %s22, 1
      %s307 = scalar_select %p306, %s22, 1
      %s308 = smul.addr %s307, 8
      %s309 = scalar_lea.vmem %s4, %s308
      %p310 = pneg %p182
      %p311 = pneg %p179
      %p312 = scmp.lt.s32.totalorder %s22, 1
      %s313 = scalar_select %p312, %s22, 1
      %s314 = smul.addr %s313, 8
      %s315 = scalar_lea.vmem %s5, %s314
      %p316 = pneg %p208
      %p317 = pneg %p205
      %p318 = scmp.lt.s32.totalorder %s22, 1
      %s319 = scalar_select %p318, %s22, 1
      %s320 = smul.addr %s319, 8
      %s321 = scalar_lea.vmem %s6, %s320
      %s322 = smul.u32 8, %s23
      %p323 = scmp.lt.s32.totalorder %s22, 1
      %s324 = scalar_select %p323, %s22, 1
      %p325 = scmp.lt.s32.totalorder %s322, 23
      %s326 = scalar_select %p325, %s322, 23
      %s327 = smul.addr %s324, 24
      %s328 = sadd.s32 %s326, %s327
      %s329 = smul.addr %s328, 4
      %s330 = scalar_lea.vmem %s0, %s329
      %s331 = smul.u32 8, %s23
      %s332 = sadd.s32 %s23, 1
      %s333 = smul.u32 8, %s332
      %p334 = scmp.lt.s32.totalorder %s22, 1
      %s335 = scalar_select %p334, %s22, 1
      %p336 = scmp.lt.s32.totalorder %s333, 23
      %s337 = scalar_select %p336, %s333, 23
      %s338 = smul.addr %s335, 24
      %s339 = sadd.s32 %s337, %s338
      %s340 = smul.addr %s339, 4
      %s341 = scalar_lea.vmem %s1, %s340
      %s342 = sadd.s32 %s23, 1
      %s343 = smul.u32 8, %s342
      %s344 = smul.u32 8, %s23
      %p345 = scmp.lt.s32.totalorder %s344, 15
      %s346 = scalar_select %p345, %s344, 15
      %s347 = scalar_lea.vmem %s3, %s346
      %s348 = smul.u32 8, %s23
      %p349 = scmp.lt.s32.totalorder %s22, 1
      %s350 = scalar_select %p349, %s22, 1
      %s351 = smul.addr %s350, 8
      %s352 = scalar_lea.vmem %s4, %s351
      %p353 = scmp.lt.s32.totalorder %s22, 1
      %s354 = scalar_select %p353, %s22, 1
      %s355 = smul.addr %s354, 8
      %s356 = scalar_lea.vmem %s5, %s355
      %p357 = scmp.lt.s32.totalorder %s22, 1
      %s358 = scalar_select %p357, %s22, 1
      %s359 = smul.addr %s358, 8
      %s360 = scalar_lea.vmem %s6, %s359
      %p362 = scmp.eq.s32.totalorder %s23, 0
      // Predicated region
      $region37: #{a2net_forward.2} parent=35 // pred_check
        %p363 = pneg %p362
      $region38: #{a2net_forward.2} parent=35 // pred_check_branch
        %365 = sbr.rel (%p363) target = $region40
      $region39: #{a2net_forward.2} parent=35 // pred_region
        %vm366 = vcmask 64512
        %367 = vst.msk [vmem:[%s352] sm:$0xff] %vm366, 0.0
        %vm368 = vcmask 7168
        %369 = vst.msk [vmem:[%s356] sm:$0xff] %vm368, -1e+30
        %370 = vst.msk [vmem:[%s360] sm:$0xff] %vm368, 0.0
      $region40: #{a2net_forward.2} parent=35 // pred_fallthru
        _
      %v371 = vld [vmem:[%s330] sm:$0x77]
      %v372 = vld [vmem:[%s330 + $0x8] sm:$0x77]
      %v373 = vld [vmem:[%s330 + $0x10] sm:$0x77]
      %v374 = vld [vmem:[%s330 + $0x18] sm:$0x77]
      %v375 = vld [vmem:[%s341] sm:$0x77]
      %v376 = vld [vmem:[%s341 + $0x8] sm:$0x77]
      %v377 = vld [vmem:[%s341 + $0x10] sm:$0x77]
      %v382 = vunpack.c.l.b16 %v371
      %v383 = vunpack.c.h.b16 %v371
      %v384 = vunpack.c.l.b16 %v372
      %v385 = vunpack.c.h.b16 %v372
      %v386 = vunpack.c.l.b16 %v373
      %v387 = vunpack.c.h.b16 %v373
      %v388 = vunpack.c.l.b16 %v374
      %v389 = vunpack.c.h.b16 %v374
      %v390 = vpack.c.b16 %v382, %v382
      %v391 = vpack.c.b16 %v383, %v383
      %v392 = vpack.c.b16 %v384, %v384
      %v393 = vpack.c.b16 %v385, %v385
      %v394 = vpack.c.b16 %v386, %v386
      %v395 = vpack.c.b16 %v387, %v387
      %v396 = vpack.c.b16 %v388, %v388
      %v397 = vpack.c.b16 %v389, %v389
      %v401 = vunpack.c.l.b16 %v375
      %v402 = vunpack.c.h.b16 %v375
      %v403 = vunpack.c.l.b16 %v376
      %v404 = vunpack.c.h.b16 %v376
      %v405 = vunpack.c.l.b16 %v377
      %v406 = vpack.c.b16 %v401, %v401
      %v407 = vpack.c.b16 %v402, %v402
      %v408 = vpack.c.b16 %v403, %v403
      %v409 = vpack.c.b16 %v404, %v404
      %v410 = vpack.c.b16 %v405, %v405
      %v411 = vld [vmem:[%s2] sm:$0xf]
      %v412 = vld [vmem:[%s2 + $0x4] sm:$0xf]
      %s413 = scalar_lea.vmem %s2, 8
      %v414 = vld [vmem:[%s413] sm:$0xf]
      %v415 = vld [vmem:[%s413 + $0x4] sm:$0xf]
      %v418 = vunpack.c.l.b16 %v414
      %v419 = vunpack.c.l.b16 %v415
      %v420 = vpack.c.b16 %v419, %v418
      %421 = vrot.lane.b32.xlu0 %v390, 127
      %v422 = vpop.permute.xlu0 %421
      %423 = vrot.lane.b32.xlu0 %v391, 127
      %v424 = vpop.permute.xlu0 %423
      %425 = vrot.lane.b32.xlu0 %v392, 127
      %v426 = vpop.permute.xlu0 %425
      %427 = vrot.lane.b32.xlu0 %v393, 127
      %v428 = vpop.permute.xlu0 %427
      %429 = vrot.lane.b32.xlu0 %v394, 127
      %v430 = vpop.permute.xlu0 %429
      %431 = vrot.lane.b32.xlu0 %v395, 127
      %v432 = vpop.permute.xlu0 %431
      %433 = vrot.lane.b32.xlu0 %v396, 127
      %v434 = vpop.permute.xlu0 %433
      %435 = vrot.lane.b32.xlu0 %v397, 127
      %v436 = vpop.permute.xlu0 %435
      %437 = vrot.lane.b32.xlu0 %v406, 127
      %v438 = vpop.permute.xlu0 %437
      %vm439 = vcmask 1039360
      %v440 = vsel %vm439, %v422, %v424
      %v441 = vsel %vm439, %v424, %v426
      %v442 = vsel %vm439, %v426, %v428
      %v443 = vsel %vm439, %v428, %v430
      %v444 = vsel %vm439, %v430, %v432
      %v445 = vsel %vm439, %v432, %v434
      %v446 = vsel %vm439, %v434, %v436
      %v447 = vsel %vm439, %v436, %v438
      %vm448 = vcmask 39936
      %v450 = vsel %vm448, %v420, 0
      %vm452 = vcmask 1041408
      %vm453 = vcmask 1042432
      %v454 = vsel %vm452, 4294967295, 65535
      %v455 = vsel %vm453, %v454, 0
      %v457 = vand.u32 %v440, %v455
      %v460 = vand.u32 %v441, %v455
      %v463 = vand.u32 %v442, %v455
      %v466 = vand.u32 %v443, %v455
      %v469 = vand.u32 %v444, %v455
      %v472 = vand.u32 %v445, %v455
      %v475 = vand.u32 %v446, %v455
      %v478 = vand.u32 %v447, %v455
      %480 = vmatpush.bf16.msra.mxu0 0
      %481 = vmatpush.bf16.msra.mxu0 0
      %482 = vmatpush.bf16.msra.mxu0 0
      %483 = vmatpush.bf16.msra.mxu0 0
      %484 = vmatpush.bf16.msra.mxu0 0
      %485 = vmatpush.bf16.msra.mxu0 0
      %486 = vmatpush.bf16.msra.mxu0 0
      %487 = vmatpush.bf16.msra.mxu0 %v457
      %488 = vmatmul.bf16.gmra.mxu0 %v450
      %v489 = vpop.f32.mrf.mxu0
      %v490 = vadd.f32 0.0, %v489
      %v491 = vpop.f32.mrf.mxu0
      %v492 = vadd.f32 0.0, %v491
      %493 = vdwg.mxu0
      %494 = vmatpush.bf16.msra.mxu0 0
      %495 = vmatpush.bf16.msra.mxu0 0
      %496 = vmatpush.bf16.msra.mxu0 0
      %497 = vmatpush.bf16.msra.mxu0 0
      %498 = vmatpush.bf16.msra.mxu0 0
      %499 = vmatpush.bf16.msra.mxu0 0
      %500 = vmatpush.bf16.msra.mxu0 0
      %501 = vmatpush.bf16.msra.mxu0 %v460
      %502 = vmatmul.bf16.gmra.mxu0 %v450
      %v503 = vpop.f32.mrf.mxu0
      %v504 = vadd.f32 0.0, %v503
      %v505 = vpop.f32.mrf.mxu0
      %v506 = vadd.f32 0.0, %v505
      %507 = vdwg.mxu0
      %508 = vmatpush.bf16.msra.mxu0 0
      %509 = vmatpush.bf16.msra.mxu0 0
      %510 = vmatpush.bf16.msra.mxu0 0
      %511 = vmatpush.bf16.msra.mxu0 0
      %512 = vmatpush.bf16.msra.mxu0 0
      %513 = vmatpush.bf16.msra.mxu0 0
      %514 = vmatpush.bf16.msra.mxu0 0
      %515 = vmatpush.bf16.msra.mxu0 %v463
      %516 = vmatmul.bf16.gmra.mxu0 %v450
      %v517 = vpop.f32.mrf.mxu0
      %v518 = vadd.f32 0.0, %v517
      %v519 = vpop.f32.mrf.mxu0
      %v520 = vadd.f32 0.0, %v519
      %521 = vdwg.mxu0
      %522 = vmatpush.bf16.msra.mxu0 0
      %523 = vmatpush.bf16.msra.mxu0 0
      %524 = vmatpush.bf16.msra.mxu0 0
      %525 = vmatpush.bf16.msra.mxu0 0
      %526 = vmatpush.bf16.msra.mxu0 0
      %527 = vmatpush.bf16.msra.mxu0 0
      %528 = vmatpush.bf16.msra.mxu0 0
      %529 = vmatpush.bf16.msra.mxu0 %v466
      %530 = vmatmul.bf16.gmra.mxu0 %v450
      %v531 = vpop.f32.mrf.mxu0
      %v532 = vadd.f32 0.0, %v531
      %v533 = vpop.f32.mrf.mxu0
      %v534 = vadd.f32 0.0, %v533
      %535 = vdwg.mxu0
      %536 = vmatpush.bf16.msra.mxu0 0
      %537 = vmatpush.bf16.msra.mxu0 0
      %538 = vmatpush.bf16.msra.mxu0 0
      %539 = vmatpush.bf16.msra.mxu0 0
      %540 = vmatpush.bf16.msra.mxu0 0
      %541 = vmatpush.bf16.msra.mxu0 0
      %542 = vmatpush.bf16.msra.mxu0 0
      %543 = vmatpush.bf16.msra.mxu0 %v469
      %544 = vmatmul.bf16.gmra.mxu0 %v450
      %v545 = vpop.f32.mrf.mxu0
      %v546 = vadd.f32 0.0, %v545
      %v547 = vpop.f32.mrf.mxu0
      %v548 = vadd.f32 0.0, %v547
      %549 = vdwg.mxu0
      %550 = vmatpush.bf16.msra.mxu0 0
      %551 = vmatpush.bf16.msra.mxu0 0
      %552 = vmatpush.bf16.msra.mxu0 0
      %553 = vmatpush.bf16.msra.mxu0 0
      %554 = vmatpush.bf16.msra.mxu0 0
      %555 = vmatpush.bf16.msra.mxu0 0
      %556 = vmatpush.bf16.msra.mxu0 0
      %557 = vmatpush.bf16.msra.mxu0 %v472
      %558 = vmatmul.bf16.gmra.mxu0 %v450
      %v559 = vpop.f32.mrf.mxu0
      %v560 = vadd.f32 0.0, %v559
      %v561 = vpop.f32.mrf.mxu0
      %v562 = vadd.f32 0.0, %v561
      %563 = vdwg.mxu0
      %564 = vmatpush.bf16.msra.mxu0 0
      %565 = vmatpush.bf16.msra.mxu0 0
      %566 = vmatpush.bf16.msra.mxu0 0
      %567 = vmatpush.bf16.msra.mxu0 0
      %568 = vmatpush.bf16.msra.mxu0 0
      %569 = vmatpush.bf16.msra.mxu0 0
      %570 = vmatpush.bf16.msra.mxu0 0
      %571 = vmatpush.bf16.msra.mxu0 %v475
      %572 = vmatmul.bf16.gmra.mxu0 %v450
      %v573 = vpop.f32.mrf.mxu0
      %v574 = vadd.f32 0.0, %v573
      %v575 = vpop.f32.mrf.mxu0
      %v576 = vadd.f32 0.0, %v575
      %577 = vdwg.mxu0
      %578 = vmatpush.bf16.msra.mxu0 0
      %579 = vmatpush.bf16.msra.mxu0 0
      %580 = vmatpush.bf16.msra.mxu0 0
      %581 = vmatpush.bf16.msra.mxu0 0
      %582 = vmatpush.bf16.msra.mxu0 0
      %583 = vmatpush.bf16.msra.mxu0 0
      %584 = vmatpush.bf16.msra.mxu0 0
      %585 = vmatpush.bf16.msra.mxu0 %v478
      %586 = vmatmul.bf16.gmra.mxu0 %v450
      %v587 = vpop.f32.mrf.mxu0
      %v588 = vadd.f32 0.0, %v587
      %v589 = vpop.f32.mrf.mxu0
      %v590 = vadd.f32 0.0, %v589
      %591 = vdwg.mxu0
      %v594 = vunpack.c.l.b16 %v411
      %v595 = vunpack.c.l.b16 %v412
      %v596 = vpack.c.b16 %v595, %v594
      %v598 = vsel %vm448, %v596, 0
      %v601 = vand.u32 %v390, %v455
      %v604 = vand.u32 %v391, %v455
      %v607 = vand.u32 %v392, %v455
      %v610 = vand.u32 %v393, %v455
      %v613 = vand.u32 %v394, %v455
      %v616 = vand.u32 %v395, %v455
      %v619 = vand.u32 %v396, %v455
      %v622 = vand.u32 %v397, %v455
      %624 = vmatpush.bf16.msra.mxu0 0
      %625 = vmatpush.bf16.msra.mxu0 0
      %626 = vmatpush.bf16.msra.mxu0 0
      %627 = vmatpush.bf16.msra.mxu0 0
      %628 = vmatpush.bf16.msra.mxu0 0
      %629 = vmatpush.bf16.msra.mxu0 0
      %630 = vmatpush.bf16.msra.mxu0 0
      %631 = vmatpush.bf16.msra.mxu0 %v601
      %632 = vmatmul.bf16.gmra.mxu0 %v598
      %v633 = vpop.f32.mrf.mxu0
      %v634 = vadd.f32 %v490, %v633
      %v635 = vpop.f32.mrf.mxu0
      %v636 = vadd.f32 %v492, %v635
      %637 = vdwg.mxu0
      %638 = vmatpush.bf16.msra.mxu0 0
      %639 = vmatpush.bf16.msra.mxu0 0
      %640 = vmatpush.bf16.msra.mxu0 0
      %641 = vmatpush.bf16.msra.mxu0 0
      %642 = vmatpush.bf16.msra.mxu0 0
      %643 = vmatpush.bf16.msra.mxu0 0
      %644 = vmatpush.bf16.msra.mxu0 0
      %645 = vmatpush.bf16.msra.mxu0 %v604
      %646 = vmatmul.bf16.gmra.mxu0 %v598
      %v647 = vpop.f32.mrf.mxu0
      %v648 = vadd.f32 %v504, %v647
      %v649 = vpop.f32.mrf.mxu0
      %v650 = vadd.f32 %v506, %v649
      %651 = vdwg.mxu0
      %652 = vmatpush.bf16.msra.mxu0 0
      %653 = vmatpush.bf16.msra.mxu0 0
      %654 = vmatpush.bf16.msra.mxu0 0
      %655 = vmatpush.bf16.msra.mxu0 0
      %656 = vmatpush.bf16.msra.mxu0 0
      %657 = vmatpush.bf16.msra.mxu0 0
      %658 = vmatpush.bf16.msra.mxu0 0
      %659 = vmatpush.bf16.msra.mxu0 %v607
      %660 = vmatmul.bf16.gmra.mxu0 %v598
      %v661 = vpop.f32.mrf.mxu0
      %v662 = vadd.f32 %v518, %v661
      %v663 = vpop.f32.mrf.mxu0
      %v664 = vadd.f32 %v520, %v663
      %665 = vdwg.mxu0
      %666 = vmatpush.bf16.msra.mxu0 0
      %667 = vmatpush.bf16.msra.mxu0 0
      %668 = vmatpush.bf16.msra.mxu0 0
      %669 = vmatpush.bf16.msra.mxu0 0
      %670 = vmatpush.bf16.msra.mxu0 0
      %671 = vmatpush.bf16.msra.mxu0 0
      %672 = vmatpush.bf16.msra.mxu0 0
      %673 = vmatpush.bf16.msra.mxu0 %v610
      %674 = vmatmul.bf16.gmra.mxu0 %v598
      %v675 = vpop.f32.mrf.mxu0
      %v676 = vadd.f32 %v532, %v675
      %v677 = vpop.f32.mrf.mxu0
      %v678 = vadd.f32 %v534, %v677
      %679 = vdwg.mxu0
      %680 = vmatpush.bf16.msra.mxu0 0
      %681 = vmatpush.bf16.msra.mxu0 0
      %682 = vmatpush.bf16.msra.mxu0 0
      %683 = vmatpush.bf16.msra.mxu0 0
      %684 = vmatpush.bf16.msra.mxu0 0
      %685 = vmatpush.bf16.msra.mxu0 0
      %686 = vmatpush.bf16.msra.mxu0 0
      %687 = vmatpush.bf16.msra.mxu0 %v613
      %688 = vmatmul.bf16.gmra.mxu0 %v598
      %v689 = vpop.f32.mrf.mxu0
      %v690 = vadd.f32 %v546, %v689
      %v691 = vpop.f32.mrf.mxu0
      %v692 = vadd.f32 %v548, %v691
      %693 = vdwg.mxu0
      %694 = vmatpush.bf16.msra.mxu0 0
      %695 = vmatpush.bf16.msra.mxu0 0
      %696 = vmatpush.bf16.msra.mxu0 0
      %697 = vmatpush.bf16.msra.mxu0 0
      %698 = vmatpush.bf16.msra.mxu0 0
      %699 = vmatpush.bf16.msra.mxu0 0
      %700 = vmatpush.bf16.msra.mxu0 0
      %701 = vmatpush.bf16.msra.mxu0 %v616
      %702 = vmatmul.bf16.gmra.mxu0 %v598
      %v703 = vpop.f32.mrf.mxu0
      %v704 = vadd.f32 %v560, %v703
      %v705 = vpop.f32.mrf.mxu0
      %v706 = vadd.f32 %v562, %v705
      %707 = vdwg.mxu0
      %708 = vmatpush.bf16.msra.mxu0 0
      %709 = vmatpush.bf16.msra.mxu0 0
      %710 = vmatpush.bf16.msra.mxu0 0
      %711 = vmatpush.bf16.msra.mxu0 0
      %712 = vmatpush.bf16.msra.mxu0 0
      %713 = vmatpush.bf16.msra.mxu0 0
      %714 = vmatpush.bf16.msra.mxu0 0
      %715 = vmatpush.bf16.msra.mxu0 %v619
      %716 = vmatmul.bf16.gmra.mxu0 %v598
      %v717 = vpop.f32.mrf.mxu0
      %v718 = vadd.f32 %v574, %v717
      %v719 = vpop.f32.mrf.mxu0
      %v720 = vadd.f32 %v576, %v719
      %721 = vdwg.mxu0
      %722 = vmatpush.bf16.msra.mxu0 0
      %723 = vmatpush.bf16.msra.mxu0 0
      %724 = vmatpush.bf16.msra.mxu0 0
      %725 = vmatpush.bf16.msra.mxu0 0
      %726 = vmatpush.bf16.msra.mxu0 0
      %727 = vmatpush.bf16.msra.mxu0 0
      %728 = vmatpush.bf16.msra.mxu0 0
      %729 = vmatpush.bf16.msra.mxu0 %v622
      %730 = vmatmul.bf16.gmra.mxu0 %v598
      %v731 = vpop.f32.mrf.mxu0
      %v732 = vadd.f32 %v588, %v731
      %v733 = vpop.f32.mrf.mxu0
      %v734 = vadd.f32 %v590, %v733
      %735 = vdwg.mxu0
      %s736 = scalar_lea.vmem %s2, 16
      %v737 = vld [vmem:[%s736] sm:$0xf]
      %v738 = vld [vmem:[%s736 + $0x4] sm:$0xf]
      %v741 = vunpack.c.l.b16 %v737
      %v742 = vunpack.c.l.b16 %v738
      %v743 = vpack.c.b16 %v742, %v741
      %744 = vrot.lane.b32.xlu0 %v390, 126
      %v745 = vpop.permute.xlu0 %744
      %746 = vrot.lane.b32.xlu0 %v391, 126
      %v747 = vpop.permute.xlu0 %746
      %748 = vrot.lane.b32.xlu0 %v392, 126
      %v749 = vpop.permute.xlu0 %748
      %750 = vrot.lane.b32.xlu0 %v393, 126
      %v751 = vpop.permute.xlu0 %750
      %752 = vrot.lane.b32.xlu0 %v394, 126
      %v753 = vpop.permute.xlu0 %752
      %754 = vrot.lane.b32.xlu0 %v395, 126
      %v755 = vpop.permute.xlu0 %754
      %756 = vrot.lane.b32.xlu0 %v396, 126
      %v757 = vpop.permute.xlu0 %756
      %758 = vrot.lane.b32.xlu0 %v397, 126
      %v759 = vpop.permute.xlu0 %758
      %760 = vrot.lane.b32.xlu0 %v406, 126
      %v761 = vpop.permute.xlu0 %760
      %vm762 = vcmask 1031168
      %v763 = vsel %vm762, %v745, %v747
      %v764 = vsel %vm762, %v747, %v749
      %v765 = vsel %vm762, %v749, %v751
      %v766 = vsel %vm762, %v751, %v753
      %v767 = vsel %vm762, %v753, %v755
      %v768 = vsel %vm762, %v755, %v757
      %v769 = vsel %vm762, %v757, %v759
      %v770 = vsel %vm762, %v759, %v761
      %v772 = vsel %vm448, %v743, 0
      %v775 = vand.u32 %v763, %v455
      %v778 = vand.u32 %v764, %v455
      %v781 = vand.u32 %v765, %v455
      %v784 = vand.u32 %v766, %v455
      %v787 = vand.u32 %v767, %v455
      %v790 = vand.u32 %v768, %v455
      %v793 = vand.u32 %v769, %v455
      %v796 = vand.u32 %v770, %v455
      %798 = vmatpush.bf16.msra.mxu0 0
      %799 = vmatpush.bf16.msra.mxu0 0
      %800 = vmatpush.bf16.msra.mxu0 0
      %801 = vmatpush.bf16.msra.mxu0 0
      %802 = vmatpush.bf16.msra.mxu0 0
      %803 = vmatpush.bf16.msra.mxu0 0
      %804 = vmatpush.bf16.msra.mxu0 0
      %805 = vmatpush.bf16.msra.mxu0 %v775
      %806 = vmatmul.bf16.gmra.mxu0 %v772
      %v807 = vpop.f32.mrf.mxu0
      %v808 = vadd.f32 0.0, %v807
      %v809 = vpop.f32.mrf.mxu0
      %v810 = vadd.f32 0.0, %v809
      %811 = vdwg.mxu0
      %812 = vmatpush.bf16.msra.mxu0 0
      %813 = vmatpush.bf16.msra.mxu0 0
      %814 = vmatpush.bf16.msra.mxu0 0
      %815 = vmatpush.bf16.msra.mxu0 0
      %816 = vmatpush.bf16.msra.mxu0 0
      %817 = vmatpush.bf16.msra.mxu0 0
      %818 = vmatpush.bf16.msra.mxu0 0
      %819 = vmatpush.bf16.msra.mxu0 %v778
      %820 = vmatmul.bf16.gmra.mxu0 %v772
      %v821 = vpop.f32.mrf.mxu0
      %v822 = vadd.f32 0.0, %v821
      %v823 = vpop.f32.mrf.mxu0
      %v824 = vadd.f32 0.0, %v823
      %825 = vdwg.mxu0
      %826 = vmatpush.bf16.msra.mxu0 0
      %827 = vmatpush.bf16.msra.mxu0 0
      %828 = vmatpush.bf16.msra.mxu0 0
      %829 = vmatpush.bf16.msra.mxu0 0
      %830 = vmatpush.bf16.msra.mxu0 0
      %831 = vmatpush.bf16.msra.mxu0 0
      %832 = vmatpush.bf16.msra.mxu0 0
      %833 = vmatpush.bf16.msra.mxu0 %v781
      %834 = vmatmul.bf16.gmra.mxu0 %v772
      %v835 = vpop.f32.mrf.mxu0
      %v836 = vadd.f32 0.0, %v835
      %v837 = vpop.f32.mrf.mxu0
      %v838 = vadd.f32 0.0, %v837
      %839 = vdwg.mxu0
      %840 = vmatpush.bf16.msra.mxu0 0
      %841 = vmatpush.bf16.msra.mxu0 0
      %842 = vmatpush.bf16.msra.mxu0 0
      %843 = vmatpush.bf16.msra.mxu0 0
      %844 = vmatpush.bf16.msra.mxu0 0
      %845 = vmatpush.bf16.msra.mxu0 0
      %846 = vmatpush.bf16.msra.mxu0 0
      %847 = vmatpush.bf16.msra.mxu0 %v784
      %848 = vmatmul.bf16.gmra.mxu0 %v772
      %v849 = vpop.f32.mrf.mxu0
      %v850 = vadd.f32 0.0, %v849
      %v851 = vpop.f32.mrf.mxu0
      %v852 = vadd.f32 0.0, %v851
      %853 = vdwg.mxu0
      %854 = vmatpush.bf16.msra.mxu0 0
      %855 = vmatpush.bf16.msra.mxu0 0
      %856 = vmatpush.bf16.msra.mxu0 0
      %857 = vmatpush.bf16.msra.mxu0 0
      %858 = vmatpush.bf16.msra.mxu0 0
      %859 = vmatpush.bf16.msra.mxu0 0
      %860 = vmatpush.bf16.msra.mxu0 0
      %861 = vmatpush.bf16.msra.mxu0 %v787
      %862 = vmatmul.bf16.gmra.mxu0 %v772
      %v863 = vpop.f32.mrf.mxu0
      %v864 = vadd.f32 0.0, %v863
      %v865 = vpop.f32.mrf.mxu0
      %v866 = vadd.f32 0.0, %v865
      %867 = vdwg.mxu0
      %868 = vmatpush.bf16.msra.mxu0 0
      %869 = vmatpush.bf16.msra.mxu0 0
      %870 = vmatpush.bf16.msra.mxu0 0
      %871 = vmatpush.bf16.msra.mxu0 0
      %872 = vmatpush.bf16.msra.mxu0 0
      %873 = vmatpush.bf16.msra.mxu0 0
      %874 = vmatpush.bf16.msra.mxu0 0
      %875 = vmatpush.bf16.msra.mxu0 %v790
      %876 = vmatmul.bf16.gmra.mxu0 %v772
      %v877 = vpop.f32.mrf.mxu0
      %v878 = vadd.f32 0.0, %v877
      %v879 = vpop.f32.mrf.mxu0
      %v880 = vadd.f32 0.0, %v879
      %881 = vdwg.mxu0
      %882 = vmatpush.bf16.msra.mxu0 0
      %883 = vmatpush.bf16.msra.mxu0 0
      %884 = vmatpush.bf16.msra.mxu0 0
      %885 = vmatpush.bf16.msra.mxu0 0
      %886 = vmatpush.bf16.msra.mxu0 0
      %887 = vmatpush.bf16.msra.mxu0 0
      %888 = vmatpush.bf16.msra.mxu0 0
      %889 = vmatpush.bf16.msra.mxu0 %v793
      %890 = vmatmul.bf16.gmra.mxu0 %v772
      %v891 = vpop.f32.mrf.mxu0
      %v892 = vadd.f32 0.0, %v891
      %v893 = vpop.f32.mrf.mxu0
      %v894 = vadd.f32 0.0, %v893
      %895 = vdwg.mxu0
      %896 = vmatpush.bf16.msra.mxu0 0
      %897 = vmatpush.bf16.msra.mxu0 0
      %898 = vmatpush.bf16.msra.mxu0 0
      %899 = vmatpush.bf16.msra.mxu0 0
      %900 = vmatpush.bf16.msra.mxu0 0
      %901 = vmatpush.bf16.msra.mxu0 0
      %902 = vmatpush.bf16.msra.mxu0 0
      %903 = vmatpush.bf16.msra.mxu0 %v796
      %904 = vmatmul.bf16.gmra.mxu0 %v772
      %v905 = vpop.f32.mrf.mxu0
      %v906 = vadd.f32 0.0, %v905
      %v907 = vpop.f32.mrf.mxu0
      %v908 = vadd.f32 0.0, %v907
      %909 = vdwg.mxu0
      %v910 = vadd.f32 %v634, %v808
      %v911 = vadd.f32 %v648, %v822
      %v912 = vadd.f32 %v662, %v836
      %v913 = vadd.f32 %v676, %v850
      %v914 = vadd.f32 %v690, %v864
      %v915 = vadd.f32 %v704, %v878
      %v916 = vadd.f32 %v718, %v892
      %v917 = vadd.f32 %v732, %v906
      %v918 = vadd.f32 %v636, %v810
      %v919 = vadd.f32 %v650, %v824
      %v920 = vadd.f32 %v664, %v838
      %v921 = vadd.f32 %v678, %v852
      %v922 = vadd.f32 %v692, %v866
      %v923 = vadd.f32 %v706, %v880
      %v924 = vadd.f32 %v720, %v894
      %v925 = vadd.f32 %v734, %v908
      %s926 = scalar_lea.vmem %s2, 24
      %v927 = vld [vmem:[%s926] sm:$0xf]
      %v928 = vld [vmem:[%s926 + $0x4] sm:$0xf]
      %v931 = vunpack.c.l.b16 %v927
      %v932 = vunpack.c.l.b16 %v928
      %v933 = vpack.c.b16 %v932, %v931
      %934 = vrot.lane.b32.xlu0 %v390, 112
      %v935 = vpop.permute.xlu0 %934
      %936 = vrot.lane.b32.xlu0 %v391, 112
      %v937 = vpop.permute.xlu0 %936
      %938 = vrot.lane.b32.xlu0 %v392, 112
      %v939 = vpop.permute.xlu0 %938
      %940 = vrot.lane.b32.xlu0 %v393, 112
      %v941 = vpop.permute.xlu0 %940
      %942 = vrot.lane.b32.xlu0 %v394, 112
      %v943 = vpop.permute.xlu0 %942
      %944 = vrot.lane.b32.xlu0 %v395, 112
      %v945 = vpop.permute.xlu0 %944
      %946 = vrot.lane.b32.xlu0 %v396, 112
      %v947 = vpop.permute.xlu0 %946
      %948 = vrot.lane.b32.xlu0 %v397, 112
      %v949 = vpop.permute.xlu0 %948
      %950 = vrot.lane.b32.xlu0 %v406, 112
      %v951 = vpop.permute.xlu0 %950
      %vm952 = vcmask 916480
      %v953 = vsel %vm952, %v935, %v937
      %v954 = vsel %vm952, %v937, %v939
      %v955 = vsel %vm952, %v939, %v941
      %v956 = vsel %vm952, %v941, %v943
      %v957 = vsel %vm952, %v943, %v945
      %v958 = vsel %vm952, %v945, %v947
      %v959 = vsel %vm952, %v947, %v949
      %v960 = vsel %vm952, %v949, %v951
      %v962 = vsel %vm448, %v933, 0
      %v965 = vand.u32 %v953, %v455
      %v968 = vand.u32 %v954, %v455
      %v971 = vand.u32 %v955, %v455
      %v974 = vand.u32 %v956, %v455
      %v977 = vand.u32 %v957, %v455
      %v980 = vand.u32 %v958, %v455
      %v983 = vand.u32 %v959, %v455
      %v986 = vand.u32 %v960, %v455
      %988 = vmatpush.bf16.msra.mxu0 0
      %989 = vmatpush.bf16.msra.mxu0 0
      %990 = vmatpush.bf16.msra.mxu0 0
      %991 = vmatpush.bf16.msra.mxu0 0
      %992 = vmatpush.bf16.msra.mxu0 0
      %993 = vmatpush.bf16.msra.mxu0 0
      %994 = vmatpush.bf16.msra.mxu0 0
      %995 = vmatpush.bf16.msra.mxu0 %v965
      %996 = vmatmul.bf16.gmra.mxu0 %v962
      %v997 = vpop.f32.mrf.mxu0
      %v998 = vadd.f32 0.0, %v997
      %v999 = vpop.f32.mrf.mxu0
      %v1000 = vadd.f32 0.0, %v999
      %1001 = vdwg.mxu0
      %1002 = vmatpush.bf16.msra.mxu0 0
      %1003 = vmatpush.bf16.msra.mxu0 0
      %1004 = vmatpush.bf16.msra.mxu0 0
      %1005 = vmatpush.bf16.msra.mxu0 0
      %1006 = vmatpush.bf16.msra.mxu0 0
      %1007 = vmatpush.bf16.msra.mxu0 0
      %1008 = vmatpush.bf16.msra.mxu0 0
      %1009 = vmatpush.bf16.msra.mxu0 %v968
      %1010 = vmatmul.bf16.gmra.mxu0 %v962
      %v1011 = vpop.f32.mrf.mxu0
      %v1012 = vadd.f32 0.0, %v1011
      %v1013 = vpop.f32.mrf.mxu0
      %v1014 = vadd.f32 0.0, %v1013
      %1015 = vdwg.mxu0
      %1016 = vmatpush.bf16.msra.mxu0 0
      %1017 = vmatpush.bf16.msra.mxu0 0
      %1018 = vmatpush.bf16.msra.mxu0 0
      %1019 = vmatpush.bf16.msra.mxu0 0
      %1020 = vmatpush.bf16.msra.mxu0 0
      %1021 = vmatpush.bf16.msra.mxu0 0
      %1022 = vmatpush.bf16.msra.mxu0 0
      %1023 = vmatpush.bf16.msra.mxu0 %v971
      %1024 = vmatmul.bf16.gmra.mxu0 %v962
      %v1025 = vpop.f32.mrf.mxu0
      %v1026 = vadd.f32 0.0, %v1025
      %v1027 = vpop.f32.mrf.mxu0
      %v1028 = vadd.f32 0.0, %v1027
      %1029 = vdwg.mxu0
      %1030 = vmatpush.bf16.msra.mxu0 0
      %1031 = vmatpush.bf16.msra.mxu0 0
      %1032 = vmatpush.bf16.msra.mxu0 0
      %1033 = vmatpush.bf16.msra.mxu0 0
      %1034 = vmatpush.bf16.msra.mxu0 0
      %1035 = vmatpush.bf16.msra.mxu0 0
      %1036 = vmatpush.bf16.msra.mxu0 0
      %1037 = vmatpush.bf16.msra.mxu0 %v974
      %1038 = vmatmul.bf16.gmra.mxu0 %v962
      %v1039 = vpop.f32.mrf.mxu0
      %v1040 = vadd.f32 0.0, %v1039
      %v1041 = vpop.f32.mrf.mxu0
      %v1042 = vadd.f32 0.0, %v1041
      %1043 = vdwg.mxu0
      %1044 = vmatpush.bf16.msra.mxu0 0
      %1045 = vmatpush.bf16.msra.mxu0 0
      %1046 = vmatpush.bf16.msra.mxu0 0
      %1047 = vmatpush.bf16.msra.mxu0 0
      %1048 = vmatpush.bf16.msra.mxu0 0
      %1049 = vmatpush.bf16.msra.mxu0 0
      %1050 = vmatpush.bf16.msra.mxu0 0
      %1051 = vmatpush.bf16.msra.mxu0 %v977
      %1052 = vmatmul.bf16.gmra.mxu0 %v962
      %v1053 = vpop.f32.mrf.mxu0
      %v1054 = vadd.f32 0.0, %v1053
      %v1055 = vpop.f32.mrf.mxu0
      %v1056 = vadd.f32 0.0, %v1055
      %1057 = vdwg.mxu0
      %1058 = vmatpush.bf16.msra.mxu0 0
      %1059 = vmatpush.bf16.msra.mxu0 0
      %1060 = vmatpush.bf16.msra.mxu0 0
      %1061 = vmatpush.bf16.msra.mxu0 0
      %1062 = vmatpush.bf16.msra.mxu0 0
      %1063 = vmatpush.bf16.msra.mxu0 0
      %1064 = vmatpush.bf16.msra.mxu0 0
      %1065 = vmatpush.bf16.msra.mxu0 %v980
      %1066 = vmatmul.bf16.gmra.mxu0 %v962
      %v1067 = vpop.f32.mrf.mxu0
      %v1068 = vadd.f32 0.0, %v1067
      %v1069 = vpop.f32.mrf.mxu0
      %v1070 = vadd.f32 0.0, %v1069
      %1071 = vdwg.mxu0
      %1072 = vmatpush.bf16.msra.mxu0 0
      %1073 = vmatpush.bf16.msra.mxu0 0
      %1074 = vmatpush.bf16.msra.mxu0 0
      %1075 = vmatpush.bf16.msra.mxu0 0
      %1076 = vmatpush.bf16.msra.mxu0 0
      %1077 = vmatpush.bf16.msra.mxu0 0
      %1078 = vmatpush.bf16.msra.mxu0 0
      %1079 = vmatpush.bf16.msra.mxu0 %v983
      %1080 = vmatmul.bf16.gmra.mxu0 %v962
      %v1081 = vpop.f32.mrf.mxu0
      %v1082 = vadd.f32 0.0, %v1081
      %v1083 = vpop.f32.mrf.mxu0
      %v1084 = vadd.f32 0.0, %v1083
      %1085 = vdwg.mxu0
      %1086 = vmatpush.bf16.msra.mxu0 0
      %1087 = vmatpush.bf16.msra.mxu0 0
      %1088 = vmatpush.bf16.msra.mxu0 0
      %1089 = vmatpush.bf16.msra.mxu0 0
      %1090 = vmatpush.bf16.msra.mxu0 0
      %1091 = vmatpush.bf16.msra.mxu0 0
      %1092 = vmatpush.bf16.msra.mxu0 0
      %1093 = vmatpush.bf16.msra.mxu0 %v986
      %1094 = vmatmul.bf16.gmra.mxu0 %v962
      %v1095 = vpop.f32.mrf.mxu0
      %v1096 = vadd.f32 0.0, %v1095
      %v1097 = vpop.f32.mrf.mxu0
      %v1098 = vadd.f32 0.0, %v1097
      %1099 = vdwg.mxu0
      %v1100 = vadd.f32 %v910, %v998
      %v1101 = vadd.f32 %v911, %v1012
      %v1102 = vadd.f32 %v912, %v1026
      %v1103 = vadd.f32 %v913, %v1040
      %v1104 = vadd.f32 %v914, %v1054
      %v1105 = vadd.f32 %v915, %v1068
      %v1106 = vadd.f32 %v916, %v1082
      %v1107 = vadd.f32 %v917, %v1096
      %v1108 = vadd.f32 %v918, %v1000
      %v1109 = vadd.f32 %v919, %v1014
      %v1110 = vadd.f32 %v920, %v1028
      %v1111 = vadd.f32 %v921, %v1042
      %v1112 = vadd.f32 %v922, %v1056
      %v1113 = vadd.f32 %v923, %v1070
      %v1114 = vadd.f32 %v924, %v1084
      %v1115 = vadd.f32 %v925, %v1098
      %s1116 = scalar_lea.vmem %s2, 32
      %v1117 = vld [vmem:[%s1116] sm:$0xf]
      %v1118 = vld [vmem:[%s1116 + $0x4] sm:$0xf]
      %v1121 = vunpack.c.l.b16 %v1117
      %v1122 = vunpack.c.l.b16 %v1118
      %v1123 = vpack.c.b16 %v1122, %v1121
      %1124 = vrot.lane.b32.xlu0 %v390, 111
      %v1125 = vpop.permute.xlu0 %1124
      %1126 = vrot.lane.b32.xlu0 %v391, 111
      %v1127 = vpop.permute.xlu0 %1126
      %1128 = vrot.lane.b32.xlu0 %v392, 111
      %v1129 = vpop.permute.xlu0 %1128
      %1130 = vrot.lane.b32.xlu0 %v393, 111
      %v1131 = vpop.permute.xlu0 %1130
      %1132 = vrot.lane.b32.xlu0 %v394, 111
      %v1133 = vpop.permute.xlu0 %1132
      %1134 = vrot.lane.b32.xlu0 %v395, 111
      %v1135 = vpop.permute.xlu0 %1134
      %1136 = vrot.lane.b32.xlu0 %v396, 111
      %v1137 = vpop.permute.xlu0 %1136
      %1138 = vrot.lane.b32.xlu0 %v397, 111
      %v1139 = vpop.permute.xlu0 %1138
      %1140 = vrot.lane.b32.xlu0 %v406, 111
      %v1141 = vpop.permute.xlu0 %1140
      %vm1142 = vcmask 908288
      %v1143 = vsel %vm1142, %v1125, %v1127
      %v1144 = vsel %vm1142, %v1127, %v1129
      %v1145 = vsel %vm1142, %v1129, %v1131
      %v1146 = vsel %vm1142, %v1131, %v1133
      %v1147 = vsel %vm1142, %v1133, %v1135
      %v1148 = vsel %vm1142, %v1135, %v1137
      %v1149 = vsel %vm1142, %v1137, %v1139
      %v1150 = vsel %vm1142, %v1139, %v1141
      %v1152 = vsel %vm448, %v1123, 0
      %v1155 = vand.u32 %v1143, %v455
      %v1158 = vand.u32 %v1144, %v455
      %v1161 = vand.u32 %v1145, %v455
      %v1164 = vand.u32 %v1146, %v455
      %v1167 = vand.u32 %v1147, %v455
      %v1170 = vand.u32 %v1148, %v455
      %v1173 = vand.u32 %v1149, %v455
      %v1176 = vand.u32 %v1150, %v455
      %1178 = vmatpush.bf16.msra.mxu0 0
      %1179 = vmatpush.bf16.msra.mxu0 0
      %1180 = vmatpush.bf16.msra.mxu0 0
      %1181 = vmatpush.bf16.msra.mxu0 0
      %1182 = vmatpush.bf16.msra.mxu0 0
      %1183 = vmatpush.bf16.msra.mxu0 0
      %1184 = vmatpush.bf16.msra.mxu0 0
      %1185 = vmatpush.bf16.msra.mxu0 %v1155
      %1186 = vmatmul.bf16.gmra.mxu0 %v1152
      %v1187 = vpop.f32.mrf.mxu0
      %v1188 = vadd.f32 0.0, %v1187
      %v1189 = vpop.f32.mrf.mxu0
      %v1190 = vadd.f32 0.0, %v1189
      %1191 = vdwg.mxu0
      %1192 = vmatpush.bf16.msra.mxu0 0
      %1193 = vmatpush.bf16.msra.mxu0 0
      %1194 = vmatpush.bf16.msra.mxu0 0
      %1195 = vmatpush.bf16.msra.mxu0 0
      %1196 = vmatpush.bf16.msra.mxu0 0
      %1197 = vmatpush.bf16.msra.mxu0 0
      %1198 = vmatpush.bf16.msra.mxu0 0
      %1199 = vmatpush.bf16.msra.mxu0 %v1158
      %1200 = vmatmul.bf16.gmra.mxu0 %v1152
      %v1201 = vpop.f32.mrf.mxu0
      %v1202 = vadd.f32 0.0, %v1201
      %v1203 = vpop.f32.mrf.mxu0
      %v1204 = vadd.f32 0.0, %v1203
      %1205 = vdwg.mxu0
      %1206 = vmatpush.bf16.msra.mxu0 0
      %1207 = vmatpush.bf16.msra.mxu0 0
      %1208 = vmatpush.bf16.msra.mxu0 0
      %1209 = vmatpush.bf16.msra.mxu0 0
      %1210 = vmatpush.bf16.msra.mxu0 0
      %1211 = vmatpush.bf16.msra.mxu0 0
      %1212 = vmatpush.bf16.msra.mxu0 0
      %1213 = vmatpush.bf16.msra.mxu0 %v1161
      %1214 = vmatmul.bf16.gmra.mxu0 %v1152
      %v1215 = vpop.f32.mrf.mxu0
      %v1216 = vadd.f32 0.0, %v1215
      %v1217 = vpop.f32.mrf.mxu0
      %v1218 = vadd.f32 0.0, %v1217
      %1219 = vdwg.mxu0
      %1220 = vmatpush.bf16.msra.mxu0 0
      %1221 = vmatpush.bf16.msra.mxu0 0
      %1222 = vmatpush.bf16.msra.mxu0 0
      %1223 = vmatpush.bf16.msra.mxu0 0
      %1224 = vmatpush.bf16.msra.mxu0 0
      %1225 = vmatpush.bf16.msra.mxu0 0
      %1226 = vmatpush.bf16.msra.mxu0 0
      %1227 = vmatpush.bf16.msra.mxu0 %v1164
      %1228 = vmatmul.bf16.gmra.mxu0 %v1152
      %v1229 = vpop.f32.mrf.mxu0
      %v1230 = vadd.f32 0.0, %v1229
      %v1231 = vpop.f32.mrf.mxu0
      %v1232 = vadd.f32 0.0, %v1231
      %1233 = vdwg.mxu0
      %1234 = vmatpush.bf16.msra.mxu0 0
      %1235 = vmatpush.bf16.msra.mxu0 0
      %1236 = vmatpush.bf16.msra.mxu0 0
      %1237 = vmatpush.bf16.msra.mxu0 0
      %1238 = vmatpush.bf16.msra.mxu0 0
      %1239 = vmatpush.bf16.msra.mxu0 0
      %1240 = vmatpush.bf16.msra.mxu0 0
      %1241 = vmatpush.bf16.msra.mxu0 %v1167
      %1242 = vmatmul.bf16.gmra.mxu0 %v1152
      %v1243 = vpop.f32.mrf.mxu0
      %v1244 = vadd.f32 0.0, %v1243
      %v1245 = vpop.f32.mrf.mxu0
      %v1246 = vadd.f32 0.0, %v1245
      %1247 = vdwg.mxu0
      %1248 = vmatpush.bf16.msra.mxu0 0
      %1249 = vmatpush.bf16.msra.mxu0 0
      %1250 = vmatpush.bf16.msra.mxu0 0
      %1251 = vmatpush.bf16.msra.mxu0 0
      %1252 = vmatpush.bf16.msra.mxu0 0
      %1253 = vmatpush.bf16.msra.mxu0 0
      %1254 = vmatpush.bf16.msra.mxu0 0
      %1255 = vmatpush.bf16.msra.mxu0 %v1170
      %1256 = vmatmul.bf16.gmra.mxu0 %v1152
      %v1257 = vpop.f32.mrf.mxu0
      %v1258 = vadd.f32 0.0, %v1257
      %v1259 = vpop.f32.mrf.mxu0
      %v1260 = vadd.f32 0.0, %v1259
      %1261 = vdwg.mxu0
      %1262 = vmatpush.bf16.msra.mxu0 0
      %1263 = vmatpush.bf16.msra.mxu0 0
      %1264 = vmatpush.bf16.msra.mxu0 0
      %1265 = vmatpush.bf16.msra.mxu0 0
      %1266 = vmatpush.bf16.msra.mxu0 0
      %1267 = vmatpush.bf16.msra.mxu0 0
      %1268 = vmatpush.bf16.msra.mxu0 0
      %1269 = vmatpush.bf16.msra.mxu0 %v1173
      %1270 = vmatmul.bf16.gmra.mxu0 %v1152
      %v1271 = vpop.f32.mrf.mxu0
      %v1272 = vadd.f32 0.0, %v1271
      %v1273 = vpop.f32.mrf.mxu0
      %v1274 = vadd.f32 0.0, %v1273
      %1275 = vdwg.mxu0
      %1276 = vmatpush.bf16.msra.mxu0 0
      %1277 = vmatpush.bf16.msra.mxu0 0
      %1278 = vmatpush.bf16.msra.mxu0 0
      %1279 = vmatpush.bf16.msra.mxu0 0
      %1280 = vmatpush.bf16.msra.mxu0 0
      %1281 = vmatpush.bf16.msra.mxu0 0
      %1282 = vmatpush.bf16.msra.mxu0 0
      %1283 = vmatpush.bf16.msra.mxu0 %v1176
      %1284 = vmatmul.bf16.gmra.mxu0 %v1152
      %v1285 = vpop.f32.mrf.mxu0
      %v1286 = vadd.f32 0.0, %v1285
      %v1287 = vpop.f32.mrf.mxu0
      %v1288 = vadd.f32 0.0, %v1287
      %1289 = vdwg.mxu0
      %v1290 = vadd.f32 %v1100, %v1188
      %v1291 = vadd.f32 %v1101, %v1202
      %v1292 = vadd.f32 %v1102, %v1216
      %v1293 = vadd.f32 %v1103, %v1230
      %v1294 = vadd.f32 %v1104, %v1244
      %v1295 = vadd.f32 %v1105, %v1258
      %v1296 = vadd.f32 %v1106, %v1272
      %v1297 = vadd.f32 %v1107, %v1286
      %v1298 = vadd.f32 %v1108, %v1190
      %v1299 = vadd.f32 %v1109, %v1204
      %v1300 = vadd.f32 %v1110, %v1218
      %v1301 = vadd.f32 %v1111, %v1232
      %v1302 = vadd.f32 %v1112, %v1246
      %v1303 = vadd.f32 %v1113, %v1260
      %v1304 = vadd.f32 %v1114, %v1274
      %v1305 = vadd.f32 %v1115, %v1288
      %s1306 = scalar_lea.vmem %s2, 40
      %v1307 = vld [vmem:[%s1306] sm:$0xf]
      %v1308 = vld [vmem:[%s1306 + $0x4] sm:$0xf]
      %v1311 = vunpack.c.l.b16 %v1307
      %v1312 = vunpack.c.l.b16 %v1308
      %v1313 = vpack.c.b16 %v1312, %v1311
      %1314 = vrot.lane.b32.xlu0 %v390, 110
      %v1315 = vpop.permute.xlu0 %1314
      %1316 = vrot.lane.b32.xlu0 %v391, 110
      %v1317 = vpop.permute.xlu0 %1316
      %1318 = vrot.lane.b32.xlu0 %v392, 110
      %v1319 = vpop.permute.xlu0 %1318
      %1320 = vrot.lane.b32.xlu0 %v393, 110
      %v1321 = vpop.permute.xlu0 %1320
      %1322 = vrot.lane.b32.xlu0 %v394, 110
      %v1323 = vpop.permute.xlu0 %1322
      %1324 = vrot.lane.b32.xlu0 %v395, 110
      %v1325 = vpop.permute.xlu0 %1324
      %1326 = vrot.lane.b32.xlu0 %v396, 110
      %v1327 = vpop.permute.xlu0 %1326
      %1328 = vrot.lane.b32.xlu0 %v397, 110
      %v1329 = vpop.permute.xlu0 %1328
      %1330 = vrot.lane.b32.xlu0 %v406, 110
      %v1331 = vpop.permute.xlu0 %1330
      %vm1332 = vcmask 900096
      %v1333 = vsel %vm1332, %v1315, %v1317
      %v1334 = vsel %vm1332, %v1317, %v1319
      %v1335 = vsel %vm1332, %v1319, %v1321
      %v1336 = vsel %vm1332, %v1321, %v1323
      %v1337 = vsel %vm1332, %v1323, %v1325
      %v1338 = vsel %vm1332, %v1325, %v1327
      %v1339 = vsel %vm1332, %v1327, %v1329
      %v1340 = vsel %vm1332, %v1329, %v1331
      %v1342 = vsel %vm448, %v1313, 0
      %v1345 = vand.u32 %v1333, %v455
      %v1348 = vand.u32 %v1334, %v455
      %v1351 = vand.u32 %v1335, %v455
      %v1354 = vand.u32 %v1336, %v455
      %v1357 = vand.u32 %v1337, %v455
      %v1360 = vand.u32 %v1338, %v455
      %v1363 = vand.u32 %v1339, %v455
      %v1366 = vand.u32 %v1340, %v455
      %1368 = vmatpush.bf16.msra.mxu0 0
      %1369 = vmatpush.bf16.msra.mxu0 0
      %1370 = vmatpush.bf16.msra.mxu0 0
      %1371 = vmatpush.bf16.msra.mxu0 0
      %1372 = vmatpush.bf16.msra.mxu0 0
      %1373 = vmatpush.bf16.msra.mxu0 0
      %1374 = vmatpush.bf16.msra.mxu0 0
      %1375 = vmatpush.bf16.msra.mxu0 %v1345
      %1376 = vmatmul.bf16.gmra.mxu0 %v1342
      %v1377 = vpop.f32.mrf.mxu0
      %v1378 = vadd.f32 0.0, %v1377
      %v1379 = vpop.f32.mrf.mxu0
      %v1380 = vadd.f32 0.0, %v1379
      %1381 = vdwg.mxu0
      %1382 = vmatpush.bf16.msra.mxu0 0
      %1383 = vmatpush.bf16.msra.mxu0 0
      %1384 = vmatpush.bf16.msra.mxu0 0
      %1385 = vmatpush.bf16.msra.mxu0 0
      %1386 = vmatpush.bf16.msra.mxu0 0
      %1387 = vmatpush.bf16.msra.mxu0 0
      %1388 = vmatpush.bf16.msra.mxu0 0
      %1389 = vmatpush.bf16.msra.mxu0 %v1348
      %1390 = vmatmul.bf16.gmra.mxu0 %v1342
      %v1391 = vpop.f32.mrf.mxu0
      %v1392 = vadd.f32 0.0, %v1391
      %v1393 = vpop.f32.mrf.mxu0
      %v1394 = vadd.f32 0.0, %v1393
      %1395 = vdwg.mxu0
      %1396 = vmatpush.bf16.msra.mxu0 0
      %1397 = vmatpush.bf16.msra.mxu0 0
      %1398 = vmatpush.bf16.msra.mxu0 0
      %1399 = vmatpush.bf16.msra.mxu0 0
      %1400 = vmatpush.bf16.msra.mxu0 0
      %1401 = vmatpush.bf16.msra.mxu0 0
      %1402 = vmatpush.bf16.msra.mxu0 0
      %1403 = vmatpush.bf16.msra.mxu0 %v1351
      %1404 = vmatmul.bf16.gmra.mxu0 %v1342
      %v1405 = vpop.f32.mrf.mxu0
      %v1406 = vadd.f32 0.0, %v1405
      %v1407 = vpop.f32.mrf.mxu0
      %v1408 = vadd.f32 0.0, %v1407
      %1409 = vdwg.mxu0
      %1410 = vmatpush.bf16.msra.mxu0 0
      %1411 = vmatpush.bf16.msra.mxu0 0
      %1412 = vmatpush.bf16.msra.mxu0 0
      %1413 = vmatpush.bf16.msra.mxu0 0
      %1414 = vmatpush.bf16.msra.mxu0 0
      %1415 = vmatpush.bf16.msra.mxu0 0
      %1416 = vmatpush.bf16.msra.mxu0 0
      %1417 = vmatpush.bf16.msra.mxu0 %v1354
      %1418 = vmatmul.bf16.gmra.mxu0 %v1342
      %v1419 = vpop.f32.mrf.mxu0
      %v1420 = vadd.f32 0.0, %v1419
      %v1421 = vpop.f32.mrf.mxu0
      %v1422 = vadd.f32 0.0, %v1421
      %1423 = vdwg.mxu0
      %1424 = vmatpush.bf16.msra.mxu0 0
      %1425 = vmatpush.bf16.msra.mxu0 0
      %1426 = vmatpush.bf16.msra.mxu0 0
      %1427 = vmatpush.bf16.msra.mxu0 0
      %1428 = vmatpush.bf16.msra.mxu0 0
      %1429 = vmatpush.bf16.msra.mxu0 0
      %1430 = vmatpush.bf16.msra.mxu0 0
      %1431 = vmatpush.bf16.msra.mxu0 %v1357
      %1432 = vmatmul.bf16.gmra.mxu0 %v1342
      %v1433 = vpop.f32.mrf.mxu0
      %v1434 = vadd.f32 0.0, %v1433
      %v1435 = vpop.f32.mrf.mxu0
      %v1436 = vadd.f32 0.0, %v1435
      %1437 = vdwg.mxu0
      %1438 = vmatpush.bf16.msra.mxu0 0
      %1439 = vmatpush.bf16.msra.mxu0 0
      %1440 = vmatpush.bf16.msra.mxu0 0
      %1441 = vmatpush.bf16.msra.mxu0 0
      %1442 = vmatpush.bf16.msra.mxu0 0
      %1443 = vmatpush.bf16.msra.mxu0 0
      %1444 = vmatpush.bf16.msra.mxu0 0
      %1445 = vmatpush.bf16.msra.mxu0 %v1360
      %1446 = vmatmul.bf16.gmra.mxu0 %v1342
      %v1447 = vpop.f32.mrf.mxu0
      %v1448 = vadd.f32 0.0, %v1447
      %v1449 = vpop.f32.mrf.mxu0
      %v1450 = vadd.f32 0.0, %v1449
      %1451 = vdwg.mxu0
      %1452 = vmatpush.bf16.msra.mxu0 0
      %1453 = vmatpush.bf16.msra.mxu0 0
      %1454 = vmatpush.bf16.msra.mxu0 0
      %1455 = vmatpush.bf16.msra.mxu0 0
      %1456 = vmatpush.bf16.msra.mxu0 0
      %1457 = vmatpush.bf16.msra.mxu0 0
      %1458 = vmatpush.bf16.msra.mxu0 0
      %1459 = vmatpush.bf16.msra.mxu0 %v1363
      %1460 = vmatmul.bf16.gmra.mxu0 %v1342
      %v1461 = vpop.f32.mrf.mxu0
      %v1462 = vadd.f32 0.0, %v1461
      %v1463 = vpop.f32.mrf.mxu0
      %v1464 = vadd.f32 0.0, %v1463
      %1465 = vdwg.mxu0
      %1466 = vmatpush.bf16.msra.mxu0 0
      %1467 = vmatpush.bf16.msra.mxu0 0
      %1468 = vmatpush.bf16.msra.mxu0 0
      %1469 = vmatpush.bf16.msra.mxu0 0
      %1470 = vmatpush.bf16.msra.mxu0 0
      %1471 = vmatpush.bf16.msra.mxu0 0
      %1472 = vmatpush.bf16.msra.mxu0 0
      %1473 = vmatpush.bf16.msra.mxu0 %v1366
      %1474 = vmatmul.bf16.gmra.mxu0 %v1342
      %v1475 = vpop.f32.mrf.mxu0
      %v1476 = vadd.f32 0.0, %v1475
      %v1477 = vpop.f32.mrf.mxu0
      %v1478 = vadd.f32 0.0, %v1477
      %1479 = vdwg.mxu0
      %v1480 = vadd.f32 %v1290, %v1378
      %v1481 = vadd.f32 %v1291, %v1392
      %v1482 = vadd.f32 %v1292, %v1406
      %v1483 = vadd.f32 %v1293, %v1420
      %v1484 = vadd.f32 %v1294, %v1434
      %v1485 = vadd.f32 %v1295, %v1448
      %v1486 = vadd.f32 %v1296, %v1462
      %v1487 = vadd.f32 %v1297, %v1476
      %v1488 = vadd.f32 %v1298, %v1380
      %v1489 = vadd.f32 %v1299, %v1394
      %v1490 = vadd.f32 %v1300, %v1408
      %v1491 = vadd.f32 %v1301, %v1422
      %v1492 = vadd.f32 %v1302, %v1436
      %v1493 = vadd.f32 %v1303, %v1450
      %v1494 = vadd.f32 %v1304, %v1464
      %v1495 = vadd.f32 %v1305, %v1478
      %s1496 = scalar_lea.vmem %s2, 48
      %v1497 = vld [vmem:[%s1496] sm:$0xf]
      %v1498 = vld [vmem:[%s1496 + $0x4] sm:$0xf]
      %v1501 = vunpack.c.l.b16 %v1497
      %v1502 = vunpack.c.l.b16 %v1498
      %v1503 = vpack.c.b16 %v1502, %v1501
      %1504 = vrot.lane.b32.xlu0 %v390, 96
      %v1505 = vpop.permute.xlu0 %1504
      %1506 = vrot.lane.b32.xlu0 %v391, 96
      %v1507 = vpop.permute.xlu0 %1506
      %1508 = vrot.lane.b32.xlu0 %v392, 96
      %v1509 = vpop.permute.xlu0 %1508
      %1510 = vrot.lane.b32.xlu0 %v393, 96
      %v1511 = vpop.permute.xlu0 %1510
      %1512 = vrot.lane.b32.xlu0 %v394, 96
      %v1513 = vpop.permute.xlu0 %1512
      %1514 = vrot.lane.b32.xlu0 %v395, 96
      %v1515 = vpop.permute.xlu0 %1514
      %1516 = vrot.lane.b32.xlu0 %v396, 96
      %v1517 = vpop.permute.xlu0 %1516
      %1518 = vrot.lane.b32.xlu0 %v397, 96
      %v1519 = vpop.permute.xlu0 %1518
      %1520 = vrot.lane.b32.xlu0 %v406, 96
      %v1521 = vpop.permute.xlu0 %1520
      %vm1522 = vcmask 785408
      %v1523 = vsel %vm1522, %v1505, %v1507
      %v1524 = vsel %vm1522, %v1507, %v1509
      %v1525 = vsel %vm1522, %v1509, %v1511
      %v1526 = vsel %vm1522, %v1511, %v1513
      %v1527 = vsel %vm1522, %v1513, %v1515
      %v1528 = vsel %vm1522, %v1515, %v1517
      %v1529 = vsel %vm1522, %v1517, %v1519
      %v1530 = vsel %vm1522, %v1519, %v1521
      %v1532 = vsel %vm448, %v1503, 0
      %v1535 = vand.u32 %v1523, %v455
      %v1538 = vand.u32 %v1524, %v455
      %v1541 = vand.u32 %v1525, %v455
      %v1544 = vand.u32 %v1526, %v455
      %v1547 = vand.u32 %v1527, %v455
      %v1550 = vand.u32 %v1528, %v455
      %v1553 = vand.u32 %v1529, %v455
      %v1556 = vand.u32 %v1530, %v455
      %1558 = vmatpush.bf16.msra.mxu0 0
      %1559 = vmatpush.bf16.msra.mxu0 0
      %1560 = vmatpush.bf16.msra.mxu0 0
      %1561 = vmatpush.bf16.msra.mxu0 0
      %1562 = vmatpush.bf16.msra.mxu0 0
      %1563 = vmatpush.bf16.msra.mxu0 0
      %1564 = vmatpush.bf16.msra.mxu0 0
      %1565 = vmatpush.bf16.msra.mxu0 %v1535
      %1566 = vmatmul.bf16.gmra.mxu0 %v1532
      %v1567 = vpop.f32.mrf.mxu0
      %v1568 = vadd.f32 0.0, %v1567
      %v1569 = vpop.f32.mrf.mxu0
      %v1570 = vadd.f32 0.0, %v1569
      %1571 = vdwg.mxu0
      %1572 = vmatpush.bf16.msra.mxu0 0
      %1573 = vmatpush.bf16.msra.mxu0 0
      %1574 = vmatpush.bf16.msra.mxu0 0
      %1575 = vmatpush.bf16.msra.mxu0 0
      %1576 = vmatpush.bf16.msra.mxu0 0
      %1577 = vmatpush.bf16.msra.mxu0 0
      %1578 = vmatpush.bf16.msra.mxu0 0
      %1579 = vmatpush.bf16.msra.mxu0 %v1538
      %1580 = vmatmul.bf16.gmra.mxu0 %v1532
      %v1581 = vpop.f32.mrf.mxu0
      %v1582 = vadd.f32 0.0, %v1581
      %v1583 = vpop.f32.mrf.mxu0
      %v1584 = vadd.f32 0.0, %v1583
      %1585 = vdwg.mxu0
      %1586 = vmatpush.bf16.msra.mxu0 0
      %1587 = vmatpush.bf16.msra.mxu0 0
      %1588 = vmatpush.bf16.msra.mxu0 0
      %1589 = vmatpush.bf16.msra.mxu0 0
      %1590 = vmatpush.bf16.msra.mxu0 0
      %1591 = vmatpush.bf16.msra.mxu0 0
      %1592 = vmatpush.bf16.msra.mxu0 0
      %1593 = vmatpush.bf16.msra.mxu0 %v1541
      %1594 = vmatmul.bf16.gmra.mxu0 %v1532
      %v1595 = vpop.f32.mrf.mxu0
      %v1596 = vadd.f32 0.0, %v1595
      %v1597 = vpop.f32.mrf.mxu0
      %v1598 = vadd.f32 0.0, %v1597
      %1599 = vdwg.mxu0
      %1600 = vmatpush.bf16.msra.mxu0 0
      %1601 = vmatpush.bf16.msra.mxu0 0
      %1602 = vmatpush.bf16.msra.mxu0 0
      %1603 = vmatpush.bf16.msra.mxu0 0
      %1604 = vmatpush.bf16.msra.mxu0 0
      %1605 = vmatpush.bf16.msra.mxu0 0
      %1606 = vmatpush.bf16.msra.mxu0 0
      %1607 = vmatpush.bf16.msra.mxu0 %v1544
      %1608 = vmatmul.bf16.gmra.mxu0 %v1532
      %v1609 = vpop.f32.mrf.mxu0
      %v1610 = vadd.f32 0.0, %v1609
      %v1611 = vpop.f32.mrf.mxu0
      %v1612 = vadd.f32 0.0, %v1611
      %1613 = vdwg.mxu0
      %1614 = vmatpush.bf16.msra.mxu0 0
      %1615 = vmatpush.bf16.msra.mxu0 0
      %1616 = vmatpush.bf16.msra.mxu0 0
      %1617 = vmatpush.bf16.msra.mxu0 0
      %1618 = vmatpush.bf16.msra.mxu0 0
      %1619 = vmatpush.bf16.msra.mxu0 0
      %1620 = vmatpush.bf16.msra.mxu0 0
      %1621 = vmatpush.bf16.msra.mxu0 %v1547
      %1622 = vmatmul.bf16.gmra.mxu0 %v1532
      %v1623 = vpop.f32.mrf.mxu0
      %v1624 = vadd.f32 0.0, %v1623
      %v1625 = vpop.f32.mrf.mxu0
      %v1626 = vadd.f32 0.0, %v1625
      %1627 = vdwg.mxu0
      %1628 = vmatpush.bf16.msra.mxu0 0
      %1629 = vmatpush.bf16.msra.mxu0 0
      %1630 = vmatpush.bf16.msra.mxu0 0
      %1631 = vmatpush.bf16.msra.mxu0 0
      %1632 = vmatpush.bf16.msra.mxu0 0
      %1633 = vmatpush.bf16.msra.mxu0 0
      %1634 = vmatpush.bf16.msra.mxu0 0
      %1635 = vmatpush.bf16.msra.mxu0 %v1550
      %1636 = vmatmul.bf16.gmra.mxu0 %v1532
      %v1637 = vpop.f32.mrf.mxu0
      %v1638 = vadd.f32 0.0, %v1637
      %v1639 = vpop.f32.mrf.mxu0
      %v1640 = vadd.f32 0.0, %v1639
      %1641 = vdwg.mxu0
      %1642 = vmatpush.bf16.msra.mxu0 0
      %1643 = vmatpush.bf16.msra.mxu0 0
      %1644 = vmatpush.bf16.msra.mxu0 0
      %1645 = vmatpush.bf16.msra.mxu0 0
      %1646 = vmatpush.bf16.msra.mxu0 0
      %1647 = vmatpush.bf16.msra.mxu0 0
      %1648 = vmatpush.bf16.msra.mxu0 0
      %1649 = vmatpush.bf16.msra.mxu0 %v1553
      %1650 = vmatmul.bf16.gmra.mxu0 %v1532
      %v1651 = vpop.f32.mrf.mxu0
      %v1652 = vadd.f32 0.0, %v1651
      %v1653 = vpop.f32.mrf.mxu0
      %v1654 = vadd.f32 0.0, %v1653
      %1655 = vdwg.mxu0
      %1656 = vmatpush.bf16.msra.mxu0 0
      %1657 = vmatpush.bf16.msra.mxu0 0
      %1658 = vmatpush.bf16.msra.mxu0 0
      %1659 = vmatpush.bf16.msra.mxu0 0
      %1660 = vmatpush.bf16.msra.mxu0 0
      %1661 = vmatpush.bf16.msra.mxu0 0
      %1662 = vmatpush.bf16.msra.mxu0 0
      %1663 = vmatpush.bf16.msra.mxu0 %v1556
      %1664 = vmatmul.bf16.gmra.mxu0 %v1532
      %v1665 = vpop.f32.mrf.mxu0
      %v1666 = vadd.f32 0.0, %v1665
      %v1667 = vpop.f32.mrf.mxu0
      %v1668 = vadd.f32 0.0, %v1667
      %1669 = vdwg.mxu0
      %v1670 = vadd.f32 %v1480, %v1568
      %v1671 = vadd.f32 %v1481, %v1582
      %v1672 = vadd.f32 %v1482, %v1596
      %v1673 = vadd.f32 %v1483, %v1610
      %v1674 = vadd.f32 %v1484, %v1624
      %v1675 = vadd.f32 %v1485, %v1638
      %v1676 = vadd.f32 %v1486, %v1652
      %v1677 = vadd.f32 %v1487, %v1666
      %v1678 = vadd.f32 %v1488, %v1570
      %v1679 = vadd.f32 %v1489, %v1584
      %v1680 = vadd.f32 %v1490, %v1598
      %v1681 = vadd.f32 %v1491, %v1612
      %v1682 = vadd.f32 %v1492, %v1626
      %v1683 = vadd.f32 %v1493, %v1640
      %v1684 = vadd.f32 %v1494, %v1654
      %v1685 = vadd.f32 %v1495, %v1668
      %s1686 = scalar_lea.vmem %s2, 56
      %v1687 = vld [vmem:[%s1686] sm:$0xf]
      %v1688 = vld [vmem:[%s1686 + $0x4] sm:$0xf]
      %v1691 = vunpack.c.l.b16 %v1687
      %v1692 = vunpack.c.l.b16 %v1688
      %v1693 = vpack.c.b16 %v1692, %v1691
      %1694 = vrot.lane.b32.xlu0 %v390, 95
      %v1695 = vpop.permute.xlu0 %1694
      %1696 = vrot.lane.b32.xlu0 %v391, 95
      %v1697 = vpop.permute.xlu0 %1696
      %1698 = vrot.lane.b32.xlu0 %v392, 95
      %v1699 = vpop.permute.xlu0 %1698
      %1700 = vrot.lane.b32.xlu0 %v393, 95
      %v1701 = vpop.permute.xlu0 %1700
      %1702 = vrot.lane.b32.xlu0 %v394, 95
      %v1703 = vpop.permute.xlu0 %1702
      %1704 = vrot.lane.b32.xlu0 %v395, 95
      %v1705 = vpop.permute.xlu0 %1704
      %1706 = vrot.lane.b32.xlu0 %v396, 95
      %v1707 = vpop.permute.xlu0 %1706
      %1708 = vrot.lane.b32.xlu0 %v397, 95
      %v1709 = vpop.permute.xlu0 %1708
      %1710 = vrot.lane.b32.xlu0 %v406, 95
      %v1711 = vpop.permute.xlu0 %1710
      %vm1712 = vcmask 777216
      %v1713 = vsel %vm1712, %v1695, %v1697
      %v1714 = vsel %vm1712, %v1697, %v1699
      %v1715 = vsel %vm1712, %v1699, %v1701
      %v1716 = vsel %vm1712, %v1701, %v1703
      %v1717 = vsel %vm1712, %v1703, %v1705
      %v1718 = vsel %vm1712, %v1705, %v1707
      %v1719 = vsel %vm1712, %v1707, %v1709
      %v1720 = vsel %vm1712, %v1709, %v1711
      %v1722 = vsel %vm448, %v1693, 0
      %v1725 = vand.u32 %v1713, %v455
      %v1728 = vand.u32 %v1714, %v455
      %v1731 = vand.u32 %v1715, %v455
      %v1734 = vand.u32 %v1716, %v455
      %v1737 = vand.u32 %v1717, %v455
      %v1740 = vand.u32 %v1718, %v455
      %v1743 = vand.u32 %v1719, %v455
      %v1746 = vand.u32 %v1720, %v455
      %1748 = vmatpush.bf16.msra.mxu0 0
      %1749 = vmatpush.bf16.msra.mxu0 0
      %1750 = vmatpush.bf16.msra.mxu0 0
      %1751 = vmatpush.bf16.msra.mxu0 0
      %1752 = vmatpush.bf16.msra.mxu0 0
      %1753 = vmatpush.bf16.msra.mxu0 0
      %1754 = vmatpush.bf16.msra.mxu0 0
      %1755 = vmatpush.bf16.msra.mxu0 %v1725
      %1756 = vmatmul.bf16.gmra.mxu0 %v1722
      %v1757 = vpop.f32.mrf.mxu0
      %v1758 = vadd.f32 0.0, %v1757
      %v1759 = vpop.f32.mrf.mxu0
      %v1760 = vadd.f32 0.0, %v1759
      %1761 = vdwg.mxu0
      %1762 = vmatpush.bf16.msra.mxu0 0
      %1763 = vmatpush.bf16.msra.mxu0 0
      %1764 = vmatpush.bf16.msra.mxu0 0
      %1765 = vmatpush.bf16.msra.mxu0 0
      %1766 = vmatpush.bf16.msra.mxu0 0
      %1767 = vmatpush.bf16.msra.mxu0 0
      %1768 = vmatpush.bf16.msra.mxu0 0
      %1769 = vmatpush.bf16.msra.mxu0 %v1728
      %1770 = vmatmul.bf16.gmra.mxu0 %v1722
      %v1771 = vpop.f32.mrf.mxu0
      %v1772 = vadd.f32 0.0, %v1771
      %v1773 = vpop.f32.mrf.mxu0
      %v1774 = vadd.f32 0.0, %v1773
      %1775 = vdwg.mxu0
      %1776 = vmatpush.bf16.msra.mxu0 0
      %1777 = vmatpush.bf16.msra.mxu0 0
      %1778 = vmatpush.bf16.msra.mxu0 0
      %1779 = vmatpush.bf16.msra.mxu0 0
      %1780 = vmatpush.bf16.msra.mxu0 0
      %1781 = vmatpush.bf16.msra.mxu0 0
      %1782 = vmatpush.bf16.msra.mxu0 0
      %1783 = vmatpush.bf16.msra.mxu0 %v1731
      %1784 = vmatmul.bf16.gmra.mxu0 %v1722
      %v1785 = vpop.f32.mrf.mxu0
      %v1786 = vadd.f32 0.0, %v1785
      %v1787 = vpop.f32.mrf.mxu0
      %v1788 = vadd.f32 0.0, %v1787
      %1789 = vdwg.mxu0
      %1790 = vmatpush.bf16.msra.mxu0 0
      %1791 = vmatpush.bf16.msra.mxu0 0
      %1792 = vmatpush.bf16.msra.mxu0 0
      %1793 = vmatpush.bf16.msra.mxu0 0
      %1794 = vmatpush.bf16.msra.mxu0 0
      %1795 = vmatpush.bf16.msra.mxu0 0
      %1796 = vmatpush.bf16.msra.mxu0 0
      %1797 = vmatpush.bf16.msra.mxu0 %v1734
      %1798 = vmatmul.bf16.gmra.mxu0 %v1722
      %v1799 = vpop.f32.mrf.mxu0
      %v1800 = vadd.f32 0.0, %v1799
      %v1801 = vpop.f32.mrf.mxu0
      %v1802 = vadd.f32 0.0, %v1801
      %1803 = vdwg.mxu0
      %1804 = vmatpush.bf16.msra.mxu0 0
      %1805 = vmatpush.bf16.msra.mxu0 0
      %1806 = vmatpush.bf16.msra.mxu0 0
      %1807 = vmatpush.bf16.msra.mxu0 0
      %1808 = vmatpush.bf16.msra.mxu0 0
      %1809 = vmatpush.bf16.msra.mxu0 0
      %1810 = vmatpush.bf16.msra.mxu0 0
      %1811 = vmatpush.bf16.msra.mxu0 %v1737
      %1812 = vmatmul.bf16.gmra.mxu0 %v1722
      %v1813 = vpop.f32.mrf.mxu0
      %v1814 = vadd.f32 0.0, %v1813
      %v1815 = vpop.f32.mrf.mxu0
      %v1816 = vadd.f32 0.0, %v1815
      %1817 = vdwg.mxu0
      %1818 = vmatpush.bf16.msra.mxu0 0
      %1819 = vmatpush.bf16.msra.mxu0 0
      %1820 = vmatpush.bf16.msra.mxu0 0
      %1821 = vmatpush.bf16.msra.mxu0 0
      %1822 = vmatpush.bf16.msra.mxu0 0
      %1823 = vmatpush.bf16.msra.mxu0 0
      %1824 = vmatpush.bf16.msra.mxu0 0
      %1825 = vmatpush.bf16.msra.mxu0 %v1740
      %1826 = vmatmul.bf16.gmra.mxu0 %v1722
      %v1827 = vpop.f32.mrf.mxu0
      %v1828 = vadd.f32 0.0, %v1827
      %v1829 = vpop.f32.mrf.mxu0
      %v1830 = vadd.f32 0.0, %v1829
      %1831 = vdwg.mxu0
      %1832 = vmatpush.bf16.msra.mxu0 0
      %1833 = vmatpush.bf16.msra.mxu0 0
      %1834 = vmatpush.bf16.msra.mxu0 0
      %1835 = vmatpush.bf16.msra.mxu0 0
      %1836 = vmatpush.bf16.msra.mxu0 0
      %1837 = vmatpush.bf16.msra.mxu0 0
      %1838 = vmatpush.bf16.msra.mxu0 0
      %1839 = vmatpush.bf16.msra.mxu0 %v1743
      %1840 = vmatmul.bf16.gmra.mxu0 %v1722
      %v1841 = vpop.f32.mrf.mxu0
      %v1842 = vadd.f32 0.0, %v1841
      %v1843 = vpop.f32.mrf.mxu0
      %v1844 = vadd.f32 0.0, %v1843
      %1845 = vdwg.mxu0
      %1846 = vmatpush.bf16.msra.mxu0 0
      %1847 = vmatpush.bf16.msra.mxu0 0
      %1848 = vmatpush.bf16.msra.mxu0 0
      %1849 = vmatpush.bf16.msra.mxu0 0
      %1850 = vmatpush.bf16.msra.mxu0 0
      %1851 = vmatpush.bf16.msra.mxu0 0
      %1852 = vmatpush.bf16.msra.mxu0 0
      %1853 = vmatpush.bf16.msra.mxu0 %v1746
      %1854 = vmatmul.bf16.gmra.mxu0 %v1722
      %v1855 = vpop.f32.mrf.mxu0
      %v1856 = vadd.f32 0.0, %v1855
      %v1857 = vpop.f32.mrf.mxu0
      %v1858 = vadd.f32 0.0, %v1857
      %1859 = vdwg.mxu0
      %v1860 = vadd.f32 %v1670, %v1758
      %v1861 = vadd.f32 %v1671, %v1772
      %v1862 = vadd.f32 %v1672, %v1786
      %v1863 = vadd.f32 %v1673, %v1800
      %v1864 = vadd.f32 %v1674, %v1814
      %v1865 = vadd.f32 %v1675, %v1828
      %v1866 = vadd.f32 %v1676, %v1842
      %v1867 = vadd.f32 %v1677, %v1856
      %v1868 = vadd.f32 %v1678, %v1760
      %v1869 = vadd.f32 %v1679, %v1774
      %v1870 = vadd.f32 %v1680, %v1788
      %v1871 = vadd.f32 %v1681, %v1802
      %v1872 = vadd.f32 %v1682, %v1816
      %v1873 = vadd.f32 %v1683, %v1830
      %v1874 = vadd.f32 %v1684, %v1844
      %v1875 = vadd.f32 %v1685, %v1858
      %s1876 = scalar_lea.vmem %s2, 64
      %v1877 = vld [vmem:[%s1876] sm:$0xf]
      %v1878 = vld [vmem:[%s1876 + $0x4] sm:$0xf]
      %v1881 = vunpack.c.l.b16 %v1877
      %v1882 = vunpack.c.l.b16 %v1878
      %v1883 = vpack.c.b16 %v1882, %v1881
      %1884 = vrot.lane.b32.xlu0 %v390, 94
      %v1885 = vpop.permute.xlu0 %1884
      %1886 = vrot.lane.b32.xlu0 %v391, 94
      %v1887 = vpop.permute.xlu0 %1886
      %1888 = vrot.lane.b32.xlu0 %v392, 94
      %v1889 = vpop.permute.xlu0 %1888
      %1890 = vrot.lane.b32.xlu0 %v393, 94
      %v1891 = vpop.permute.xlu0 %1890
      %1892 = vrot.lane.b32.xlu0 %v394, 94
      %v1893 = vpop.permute.xlu0 %1892
      %1894 = vrot.lane.b32.xlu0 %v395, 94
      %v1895 = vpop.permute.xlu0 %1894
      %1896 = vrot.lane.b32.xlu0 %v396, 94
      %v1897 = vpop.permute.xlu0 %1896
      %1898 = vrot.lane.b32.xlu0 %v397, 94
      %v1899 = vpop.permute.xlu0 %1898
      %1900 = vrot.lane.b32.xlu0 %v406, 94
      %v1901 = vpop.permute.xlu0 %1900
      %vm1902 = vcmask 769024
      %v1903 = vsel %vm1902, %v1885, %v1887
      %v1904 = vsel %vm1902, %v1887, %v1889
      %v1905 = vsel %vm1902, %v1889, %v1891
      %v1906 = vsel %vm1902, %v1891, %v1893
      %v1907 = vsel %vm1902, %v1893, %v1895
      %v1908 = vsel %vm1902, %v1895, %v1897
      %v1909 = vsel %vm1902, %v1897, %v1899
      %v1910 = vsel %vm1902, %v1899, %v1901
      %v1912 = vsel %vm448, %v1883, 0
      %v1915 = vand.u32 %v1903, %v455
      %v1918 = vand.u32 %v1904, %v455
      %v1921 = vand.u32 %v1905, %v455
      %v1924 = vand.u32 %v1906, %v455
      %v1927 = vand.u32 %v1907, %v455
      %v1930 = vand.u32 %v1908, %v455
      %v1933 = vand.u32 %v1909, %v455
      %v1936 = vand.u32 %v1910, %v455
      %1938 = vmatpush.bf16.msra.mxu0 0
      %1939 = vmatpush.bf16.msra.mxu0 0
      %1940 = vmatpush.bf16.msra.mxu0 0
      %1941 = vmatpush.bf16.msra.mxu0 0
      %1942 = vmatpush.bf16.msra.mxu0 0
      %1943 = vmatpush.bf16.msra.mxu0 0
      %1944 = vmatpush.bf16.msra.mxu0 0
      %1945 = vmatpush.bf16.msra.mxu0 %v1915
      %1946 = vmatmul.bf16.gmra.mxu0 %v1912
      %v1947 = vpop.f32.mrf.mxu0
      %v1948 = vadd.f32 0.0, %v1947
      %v1949 = vpop.f32.mrf.mxu0
      %v1950 = vadd.f32 0.0, %v1949
      %1951 = vdwg.mxu0
      %1952 = vmatpush.bf16.msra.mxu0 0
      %1953 = vmatpush.bf16.msra.mxu0 0
      %1954 = vmatpush.bf16.msra.mxu0 0
      %1955 = vmatpush.bf16.msra.mxu0 0
      %1956 = vmatpush.bf16.msra.mxu0 0
      %1957 = vmatpush.bf16.msra.mxu0 0
      %1958 = vmatpush.bf16.msra.mxu0 0
      %1959 = vmatpush.bf16.msra.mxu0 %v1918
      %1960 = vmatmul.bf16.gmra.mxu0 %v1912
      %v1961 = vpop.f32.mrf.mxu0
      %v1962 = vadd.f32 0.0, %v1961
      %v1963 = vpop.f32.mrf.mxu0
      %v1964 = vadd.f32 0.0, %v1963
      %1965 = vdwg.mxu0
      %1966 = vmatpush.bf16.msra.mxu0 0
      %1967 = vmatpush.bf16.msra.mxu0 0
      %1968 = vmatpush.bf16.msra.mxu0 0
      %1969 = vmatpush.bf16.msra.mxu0 0
      %1970 = vmatpush.bf16.msra.mxu0 0
      %1971 = vmatpush.bf16.msra.mxu0 0
      %1972 = vmatpush.bf16.msra.mxu0 0
      %1973 = vmatpush.bf16.msra.mxu0 %v1921
      %1974 = vmatmul.bf16.gmra.mxu0 %v1912
      %v1975 = vpop.f32.mrf.mxu0
      %v1976 = vadd.f32 0.0, %v1975
      %v1977 = vpop.f32.mrf.mxu0
      %v1978 = vadd.f32 0.0, %v1977
      %1979 = vdwg.mxu0
      %1980 = vmatpush.bf16.msra.mxu0 0
      %1981 = vmatpush.bf16.msra.mxu0 0
      %1982 = vmatpush.bf16.msra.mxu0 0
      %1983 = vmatpush.bf16.msra.mxu0 0
      %1984 = vmatpush.bf16.msra.mxu0 0
      %1985 = vmatpush.bf16.msra.mxu0 0
      %1986 = vmatpush.bf16.msra.mxu0 0
      %1987 = vmatpush.bf16.msra.mxu0 %v1924
      %1988 = vmatmul.bf16.gmra.mxu0 %v1912
      %v1989 = vpop.f32.mrf.mxu0
      %v1990 = vadd.f32 0.0, %v1989
      %v1991 = vpop.f32.mrf.mxu0
      %v1992 = vadd.f32 0.0, %v1991
      %1993 = vdwg.mxu0
      %1994 = vmatpush.bf16.msra.mxu0 0
      %1995 = vmatpush.bf16.msra.mxu0 0
      %1996 = vmatpush.bf16.msra.mxu0 0
      %1997 = vmatpush.bf16.msra.mxu0 0
      %1998 = vmatpush.bf16.msra.mxu0 0
      %1999 = vmatpush.bf16.msra.mxu0 0
      %2000 = vmatpush.bf16.msra.mxu0 0
      %2001 = vmatpush.bf16.msra.mxu0 %v1927
      %2002 = vmatmul.bf16.gmra.mxu0 %v1912
      %v2003 = vpop.f32.mrf.mxu0
      %v2004 = vadd.f32 0.0, %v2003
      %v2005 = vpop.f32.mrf.mxu0
      %v2006 = vadd.f32 0.0, %v2005
      %2007 = vdwg.mxu0
      %2008 = vmatpush.bf16.msra.mxu0 0
      %2009 = vmatpush.bf16.msra.mxu0 0
      %2010 = vmatpush.bf16.msra.mxu0 0
      %2011 = vmatpush.bf16.msra.mxu0 0
      %2012 = vmatpush.bf16.msra.mxu0 0
      %2013 = vmatpush.bf16.msra.mxu0 0
      %2014 = vmatpush.bf16.msra.mxu0 0
      %2015 = vmatpush.bf16.msra.mxu0 %v1930
      %2016 = vmatmul.bf16.gmra.mxu0 %v1912
      %v2017 = vpop.f32.mrf.mxu0
      %v2018 = vadd.f32 0.0, %v2017
      %v2019 = vpop.f32.mrf.mxu0
      %v2020 = vadd.f32 0.0, %v2019
      %2021 = vdwg.mxu0
      %2022 = vmatpush.bf16.msra.mxu0 0
      %2023 = vmatpush.bf16.msra.mxu0 0
      %2024 = vmatpush.bf16.msra.mxu0 0
      %2025 = vmatpush.bf16.msra.mxu0 0
      %2026 = vmatpush.bf16.msra.mxu0 0
      %2027 = vmatpush.bf16.msra.mxu0 0
      %2028 = vmatpush.bf16.msra.mxu0 0
      %2029 = vmatpush.bf16.msra.mxu0 %v1933
      %2030 = vmatmul.bf16.gmra.mxu0 %v1912
      %v2031 = vpop.f32.mrf.mxu0
      %v2032 = vadd.f32 0.0, %v2031
      %v2033 = vpop.f32.mrf.mxu0
      %v2034 = vadd.f32 0.0, %v2033
      %2035 = vdwg.mxu0
      %2036 = vmatpush.bf16.msra.mxu0 0
      %2037 = vmatpush.bf16.msra.mxu0 0
      %2038 = vmatpush.bf16.msra.mxu0 0
      %2039 = vmatpush.bf16.msra.mxu0 0
      %2040 = vmatpush.bf16.msra.mxu0 0
      %2041 = vmatpush.bf16.msra.mxu0 0
      %2042 = vmatpush.bf16.msra.mxu0 0
      %2043 = vmatpush.bf16.msra.mxu0 %v1936
      %2044 = vmatmul.bf16.gmra.mxu0 %v1912
      %v2045 = vpop.f32.mrf.mxu0
      %v2046 = vadd.f32 0.0, %v2045
      %v2047 = vpop.f32.mrf.mxu0
      %v2048 = vadd.f32 0.0, %v2047
      %2049 = vdwg.mxu0
      %v2050 = vadd.f32 %v1860, %v1948
      %v2051 = vadd.f32 %v1861, %v1962
      %v2052 = vadd.f32 %v1862, %v1976
      %v2053 = vadd.f32 %v1863, %v1990
      %v2054 = vadd.f32 %v1864, %v2004
      %v2055 = vadd.f32 %v1865, %v2018
      %v2056 = vadd.f32 %v1866, %v2032
      %v2057 = vadd.f32 %v1867, %v2046
      %v2058 = vadd.f32 %v1868, %v1950
      %v2059 = vadd.f32 %v1869, %v1964
      %v2060 = vadd.f32 %v1870, %v1978
      %v2061 = vadd.f32 %v1871, %v1992
      %v2062 = vadd.f32 %v1872, %v2006
      %v2063 = vadd.f32 %v1873, %v2020
      %v2064 = vadd.f32 %v1874, %v2034
      %v2065 = vadd.f32 %v1875, %v2048
      %s2066 = scalar_lea.vmem %s2, 72
      %v2067 = vld [vmem:[%s2066] sm:$0xf]
      %v2068 = vld [vmem:[%s2066 + $0x4] sm:$0xf]
      %v2071 = vunpack.c.l.b16 %v2067
      %v2072 = vunpack.c.l.b16 %v2068
      %v2073 = vpack.c.b16 %v2072, %v2071
      %v2075 = vsel %vm448, %v2073, 0
      %v2078 = vand.u32 %v406, %v455
      %v2081 = vand.u32 %v407, %v455
      %2083 = vmatpush.bf16.msra.mxu0 0
      %2084 = vmatpush.bf16.msra.mxu0 0
      %2085 = vmatpush.bf16.msra.mxu0 0
      %2086 = vmatpush.bf16.msra.mxu0 0
      %2087 = vmatpush.bf16.msra.mxu0 0
      %2088 = vmatpush.bf16.msra.mxu0 0
      %2089 = vmatpush.bf16.msra.mxu0 0
      %2090 = vmatpush.bf16.msra.mxu0 %v607
      %2091 = vmatmul.bf16.gmra.mxu0 %v2075
      %v2092 = vpop.f32.mrf.mxu0
      %v2093 = vadd.f32 0.0, %v2092
      %v2094 = vpop.f32.mrf.mxu0
      %v2095 = vadd.f32 0.0, %v2094
      %2096 = vdwg.mxu0
      %2097 = vmatpush.bf16.msra.mxu0 0
      %2098 = vmatpush.bf16.msra.mxu0 0
      %2099 = vmatpush.bf16.msra.mxu0 0
      %2100 = vmatpush.bf16.msra.mxu0 0
      %2101 = vmatpush.bf16.msra.mxu0 0
      %2102 = vmatpush.bf16.msra.mxu0 0
      %2103 = vmatpush.bf16.msra.mxu0 0
      %2104 = vmatpush.bf16.msra.mxu0 %v610
      %2105 = vmatmul.bf16.gmra.mxu0 %v2075
      %v2106 = vpop.f32.mrf.mxu0
      %v2107 = vadd.f32 0.0, %v2106
      %v2108 = vpop.f32.mrf.mxu0
      %v2109 = vadd.f32 0.0, %v2108
      %2110 = vdwg.mxu0
      %2111 = vmatpush.bf16.msra.mxu0 0
      %2112 = vmatpush.bf16.msra.mxu0 0
      %2113 = vmatpush.bf16.msra.mxu0 0
      %2114 = vmatpush.bf16.msra.mxu0 0
      %2115 = vmatpush.bf16.msra.mxu0 0
      %2116 = vmatpush.bf16.msra.mxu0 0
      %2117 = vmatpush.bf16.msra.mxu0 0
      %2118 = vmatpush.bf16.msra.mxu0 %v613
      %2119 = vmatmul.bf16.gmra.mxu0 %v2075
      %v2120 = vpop.f32.mrf.mxu0
      %v2121 = vadd.f32 0.0, %v2120
      %v2122 = vpop.f32.mrf.mxu0
      %v2123 = vadd.f32 0.0, %v2122
      %2124 = vdwg.mxu0
      %2125 = vmatpush.bf16.msra.mxu0 0
      %2126 = vmatpush.bf16.msra.mxu0 0
      %2127 = vmatpush.bf16.msra.mxu0 0
      %2128 = vmatpush.bf16.msra.mxu0 0
      %2129 = vmatpush.bf16.msra.mxu0 0
      %2130 = vmatpush.bf16.msra.mxu0 0
      %2131 = vmatpush.bf16.msra.mxu0 0
      %2132 = vmatpush.bf16.msra.mxu0 %v616
      %2133 = vmatmul.bf16.gmra.mxu0 %v2075
      %v2134 = vpop.f32.mrf.mxu0
      %v2135 = vadd.f32 0.0, %v2134
      %v2136 = vpop.f32.mrf.mxu0
      %v2137 = vadd.f32 0.0, %v2136
      %2138 = vdwg.mxu0
      %2139 = vmatpush.bf16.msra.mxu0 0
      %2140 = vmatpush.bf16.msra.mxu0 0
      %2141 = vmatpush.bf16.msra.mxu0 0
      %2142 = vmatpush.bf16.msra.mxu0 0
      %2143 = vmatpush.bf16.msra.mxu0 0
      %2144 = vmatpush.bf16.msra.mxu0 0
      %2145 = vmatpush.bf16.msra.mxu0 0
      %2146 = vmatpush.bf16.msra.mxu0 %v619
      %2147 = vmatmul.bf16.gmra.mxu0 %v2075
      %v2148 = vpop.f32.mrf.mxu0
      %v2149 = vadd.f32 0.0, %v2148
      %v2150 = vpop.f32.mrf.mxu0
      %v2151 = vadd.f32 0.0, %v2150
      %2152 = vdwg.mxu0
      %2153 = vmatpush.bf16.msra.mxu0 0
      %2154 = vmatpush.bf16.msra.mxu0 0
      %2155 = vmatpush.bf16.msra.mxu0 0
      %2156 = vmatpush.bf16.msra.mxu0 0
      %2157 = vmatpush.bf16.msra.mxu0 0
      %2158 = vmatpush.bf16.msra.mxu0 0
      %2159 = vmatpush.bf16.msra.mxu0 0
      %2160 = vmatpush.bf16.msra.mxu0 %v622
      %2161 = vmatmul.bf16.gmra.mxu0 %v2075
      %v2162 = vpop.f32.mrf.mxu0
      %v2163 = vadd.f32 0.0, %v2162
      %v2164 = vpop.f32.mrf.mxu0
      %v2165 = vadd.f32 0.0, %v2164
      %2166 = vdwg.mxu0
      %2167 = vmatpush.bf16.msra.mxu0 0
      %2168 = vmatpush.bf16.msra.mxu0 0
      %2169 = vmatpush.bf16.msra.mxu0 0
      %2170 = vmatpush.bf16.msra.mxu0 0
      %2171 = vmatpush.bf16.msra.mxu0 0
      %2172 = vmatpush.bf16.msra.mxu0 0
      %2173 = vmatpush.bf16.msra.mxu0 0
      %2174 = vmatpush.bf16.msra.mxu0 %v2078
      %2175 = vmatmul.bf16.gmra.mxu0 %v2075
      %v2176 = vpop.f32.mrf.mxu0
      %v2177 = vadd.f32 0.0, %v2176
      %v2178 = vpop.f32.mrf.mxu0
      %v2179 = vadd.f32 0.0, %v2178
      %2180 = vdwg.mxu0
      %2181 = vmatpush.bf16.msra.mxu0 0
      %2182 = vmatpush.bf16.msra.mxu0 0
      %2183 = vmatpush.bf16.msra.mxu0 0
      %2184 = vmatpush.bf16.msra.mxu0 0
      %2185 = vmatpush.bf16.msra.mxu0 0
      %2186 = vmatpush.bf16.msra.mxu0 0
      %2187 = vmatpush.bf16.msra.mxu0 0
      %2188 = vmatpush.bf16.msra.mxu0 %v2081
      %2189 = vmatmul.bf16.gmra.mxu0 %v2075
      %v2190 = vpop.f32.mrf.mxu0
      %v2191 = vadd.f32 0.0, %v2190
      %v2192 = vpop.f32.mrf.mxu0
      %v2193 = vadd.f32 0.0, %v2192
      %2194 = vdwg.mxu0
      %v2195 = vadd.f32 %v2050, %v2093
      %v2196 = vadd.f32 %v2051, %v2107
      %v2197 = vadd.f32 %v2052, %v2121
      %v2198 = vadd.f32 %v2053, %v2135
      %v2199 = vadd.f32 %v2054, %v2149
      %v2200 = vadd.f32 %v2055, %v2163
      %v2201 = vadd.f32 %v2056, %v2177
      %v2202 = vadd.f32 %v2057, %v2191
      %v2203 = vadd.f32 %v2058, %v2095
      %v2204 = vadd.f32 %v2059, %v2109
      %v2205 = vadd.f32 %v2060, %v2123
      %v2206 = vadd.f32 %v2061, %v2137
      %v2207 = vadd.f32 %v2062, %v2151
      %v2208 = vadd.f32 %v2063, %v2165
      %v2209 = vadd.f32 %v2064, %v2179
      %v2210 = vadd.f32 %v2065, %v2193
      %s2211 = scalar_lea.vmem %s2, 80
      %v2212 = vld [vmem:[%s2211] sm:$0xf]
      %v2213 = vld [vmem:[%s2211 + $0x4] sm:$0xf]
      %v2216 = vunpack.c.l.b16 %v2212
      %v2217 = vunpack.c.l.b16 %v2213
      %v2218 = vpack.c.b16 %v2217, %v2216
      %2219 = vrot.lane.b32.xlu0 %v407, 127
      %v2220 = vpop.permute.xlu0 %2219
      %2221 = vrot.lane.b32.xlu0 %v408, 127
      %v2222 = vpop.permute.xlu0 %2221
      %v2223 = vsel %vm439, %v438, %v2220
      %v2224 = vsel %vm439, %v2220, %v2222
      %v2226 = vsel %vm448, %v2218, 0
      %v2229 = vand.u32 %v2223, %v455
      %v2232 = vand.u32 %v2224, %v455
      %2234 = vmatpush.bf16.msra.mxu0 0
      %2235 = vmatpush.bf16.msra.mxu0 0
      %2236 = vmatpush.bf16.msra.mxu0 0
      %2237 = vmatpush.bf16.msra.mxu0 0
      %2238 = vmatpush.bf16.msra.mxu0 0
      %2239 = vmatpush.bf16.msra.mxu0 0
      %2240 = vmatpush.bf16.msra.mxu0 0
      %2241 = vmatpush.bf16.msra.mxu0 %v463
      %2242 = vmatmul.bf16.gmra.mxu0 %v2226
      %v2243 = vpop.f32.mrf.mxu0
      %v2244 = vadd.f32 0.0, %v2243
      %v2245 = vpop.f32.mrf.mxu0
      %v2246 = vadd.f32 0.0, %v2245
      %2247 = vdwg.mxu0
      %2248 = vmatpush.bf16.msra.mxu0 0
      %2249 = vmatpush.bf16.msra.mxu0 0
      %2250 = vmatpush.bf16.msra.mxu0 0
      %2251 = vmatpush.bf16.msra.mxu0 0
      %2252 = vmatpush.bf16.msra.mxu0 0
      %2253 = vmatpush.bf16.msra.mxu0 0
      %2254 = vmatpush.bf16.msra.mxu0 0
      %2255 = vmatpush.bf16.msra.mxu0 %v466
      %2256 = vmatmul.bf16.gmra.mxu0 %v2226
      %v2257 = vpop.f32.mrf.mxu0
      %v2258 = vadd.f32 0.0, %v2257
      %v2259 = vpop.f32.mrf.mxu0
      %v2260 = vadd.f32 0.0, %v2259
      %2261 = vdwg.mxu0
      %2262 = vmatpush.bf16.msra.mxu0 0
      %2263 = vmatpush.bf16.msra.mxu0 0
      %2264 = vmatpush.bf16.msra.mxu0 0
      %2265 = vmatpush.bf16.msra.mxu0 0
      %2266 = vmatpush.bf16.msra.mxu0 0
      %2267 = vmatpush.bf16.msra.mxu0 0
      %2268 = vmatpush.bf16.msra.mxu0 0
      %2269 = vmatpush.bf16.msra.mxu0 %v469
      %2270 = vmatmul.bf16.gmra.mxu0 %v2226
      %v2271 = vpop.f32.mrf.mxu0
      %v2272 = vadd.f32 0.0, %v2271
      %v2273 = vpop.f32.mrf.mxu0
      %v2274 = vadd.f32 0.0, %v2273
      %2275 = vdwg.mxu0
      %2276 = vmatpush.bf16.msra.mxu0 0
      %2277 = vmatpush.bf16.msra.mxu0 0
      %2278 = vmatpush.bf16.msra.mxu0 0
      %2279 = vmatpush.bf16.msra.mxu0 0
      %2280 = vmatpush.bf16.msra.mxu0 0
      %2281 = vmatpush.bf16.msra.mxu0 0
      %2282 = vmatpush.bf16.msra.mxu0 0
      %2283 = vmatpush.bf16.msra.mxu0 %v472
      %2284 = vmatmul.bf16.gmra.mxu0 %v2226
      %v2285 = vpop.f32.mrf.mxu0
      %v2286 = vadd.f32 0.0, %v2285
      %v2287 = vpop.f32.mrf.mxu0
      %v2288 = vadd.f32 0.0, %v2287
      %2289 = vdwg.mxu0
      %2290 = vmatpush.bf16.msra.mxu0 0
      %2291 = vmatpush.bf16.msra.mxu0 0
      %2292 = vmatpush.bf16.msra.mxu0 0
      %2293 = vmatpush.bf16.msra.mxu0 0
      %2294 = vmatpush.bf16.msra.mxu0 0
      %2295 = vmatpush.bf16.msra.mxu0 0
      %2296 = vmatpush.bf16.msra.mxu0 0
      %2297 = vmatpush.bf16.msra.mxu0 %v475
      %2298 = vmatmul.bf16.gmra.mxu0 %v2226
      %v2299 = vpop.f32.mrf.mxu0
      %v2300 = vadd.f32 0.0, %v2299
      %v2301 = vpop.f32.mrf.mxu0
      %v2302 = vadd.f32 0.0, %v2301
      %2303 = vdwg.mxu0
      %2304 = vmatpush.bf16.msra.mxu0 0
      %2305 = vmatpush.bf16.msra.mxu0 0
      %2306 = vmatpush.bf16.msra.mxu0 0
      %2307 = vmatpush.bf16.msra.mxu0 0
      %2308 = vmatpush.bf16.msra.mxu0 0
      %2309 = vmatpush.bf16.msra.mxu0 0
      %2310 = vmatpush.bf16.msra.mxu0 0
      %2311 = vmatpush.bf16.msra.mxu0 %v478
      %2312 = vmatmul.bf16.gmra.mxu0 %v2226
      %v2313 = vpop.f32.mrf.mxu0
      %v2314 = vadd.f32 0.0, %v2313
      %v2315 = vpop.f32.mrf.mxu0
      %v2316 = vadd.f32 0.0, %v2315
      %2317 = vdwg.mxu0
      %2318 = vmatpush.bf16.msra.mxu0 0
      %2319 = vmatpush.bf16.msra.mxu0 0
      %2320 = vmatpush.bf16.msra.mxu0 0
      %2321 = vmatpush.bf16.msra.mxu0 0
      %2322 = vmatpush.bf16.msra.mxu0 0
      %2323 = vmatpush.bf16.msra.mxu0 0
      %2324 = vmatpush.bf16.msra.mxu0 0
      %2325 = vmatpush.bf16.msra.mxu0 %v2229
      %2326 = vmatmul.bf16.gmra.mxu0 %v2226
      %v2327 = vpop.f32.mrf.mxu0
      %v2328 = vadd.f32 0.0, %v2327
      %v2329 = vpop.f32.mrf.mxu0
      %v2330 = vadd.f32 0.0, %v2329
      %2331 = vdwg.mxu0
      %2332 = vmatpush.bf16.msra.mxu0 0
      %2333 = vmatpush.bf16.msra.mxu0 0
      %2334 = vmatpush.bf16.msra.mxu0 0
      %2335 = vmatpush.bf16.msra.mxu0 0
      %2336 = vmatpush.bf16.msra.mxu0 0
      %2337 = vmatpush.bf16.msra.mxu0 0
      %2338 = vmatpush.bf16.msra.mxu0 0
      %2339 = vmatpush.bf16.msra.mxu0 %v2232
      %2340 = vmatmul.bf16.gmra.mxu0 %v2226
      %v2341 = vpop.f32.mrf.mxu0
      %v2342 = vadd.f32 0.0, %v2341
      %v2343 = vpop.f32.mrf.mxu0
      %v2344 = vadd.f32 0.0, %v2343
      %2345 = vdwg.mxu0
      %v2346 = vadd.f32 %v2195, %v2244
      %v2347 = vadd.f32 %v2196, %v2258
      %v2348 = vadd.f32 %v2197, %v2272
      %v2349 = vadd.f32 %v2198, %v2286
      %v2350 = vadd.f32 %v2199, %v2300
      %v2351 = vadd.f32 %v2200, %v2314
      %v2352 = vadd.f32 %v2201, %v2328
      %v2353 = vadd.f32 %v2202, %v2342
      %v2354 = vadd.f32 %v2203, %v2246
      %v2355 = vadd.f32 %v2204, %v2260
      %v2356 = vadd.f32 %v2205, %v2274
      %v2357 = vadd.f32 %v2206, %v2288
      %v2358 = vadd.f32 %v2207, %v2302
      %v2359 = vadd.f32 %v2208, %v2316
      %v2360 = vadd.f32 %v2209, %v2330
      %v2361 = vadd.f32 %v2210, %v2344
      %s2362 = scalar_lea.vmem %s2, 88
      %v2363 = vld [vmem:[%s2362] sm:$0xf]
      %v2364 = vld [vmem:[%s2362 + $0x4] sm:$0xf]
      %v2367 = vunpack.c.l.b16 %v2363
      %v2368 = vunpack.c.l.b16 %v2364
      %v2369 = vpack.c.b16 %v2368, %v2367
      %2370 = vrot.lane.b32.xlu0 %v407, 126
      %v2371 = vpop.permute.xlu0 %2370
      %2372 = vrot.lane.b32.xlu0 %v408, 126
      %v2373 = vpop.permute.xlu0 %2372
      %v2374 = vsel %vm762, %v761, %v2371
      %v2375 = vsel %vm762, %v2371, %v2373
      %v2377 = vsel %vm448, %v2369, 0
      %v2380 = vand.u32 %v2374, %v455
      %v2383 = vand.u32 %v2375, %v455
      %2385 = vmatpush.bf16.msra.mxu0 0
      %2386 = vmatpush.bf16.msra.mxu0 0
      %2387 = vmatpush.bf16.msra.mxu0 0
      %2388 = vmatpush.bf16.msra.mxu0 0
      %2389 = vmatpush.bf16.msra.mxu0 0
      %2390 = vmatpush.bf16.msra.mxu0 0
      %2391 = vmatpush.bf16.msra.mxu0 0
      %2392 = vmatpush.bf16.msra.mxu0 %v781
      %2393 = vmatmul.bf16.gmra.mxu0 %v2377
      %v2394 = vpop.f32.mrf.mxu0
      %v2395 = vadd.f32 0.0, %v2394
      %v2396 = vpop.f32.mrf.mxu0
      %v2397 = vadd.f32 0.0, %v2396
      %2398 = vdwg.mxu0
      %2399 = vmatpush.bf16.msra.mxu0 0
      %2400 = vmatpush.bf16.msra.mxu0 0
      %2401 = vmatpush.bf16.msra.mxu0 0
      %2402 = vmatpush.bf16.msra.mxu0 0
      %2403 = vmatpush.bf16.msra.mxu0 0
      %2404 = vmatpush.bf16.msra.mxu0 0
      %2405 = vmatpush.bf16.msra.mxu0 0
      %2406 = vmatpush.bf16.msra.mxu0 %v784
      %2407 = vmatmul.bf16.gmra.mxu0 %v2377
      %v2408 = vpop.f32.mrf.mxu0
      %v2409 = vadd.f32 0.0, %v2408
      %v2410 = vpop.f32.mrf.mxu0
      %v2411 = vadd.f32 0.0, %v2410
      %2412 = vdwg.mxu0
      %2413 = vmatpush.bf16.msra.mxu0 0
      %2414 = vmatpush.bf16.msra.mxu0 0
      %2415 = vmatpush.bf16.msra.mxu0 0
      %2416 = vmatpush.bf16.msra.mxu0 0
      %2417 = vmatpush.bf16.msra.mxu0 0
      %2418 = vmatpush.bf16.msra.mxu0 0
      %2419 = vmatpush.bf16.msra.mxu0 0
      %2420 = vmatpush.bf16.msra.mxu0 %v787
      %2421 = vmatmul.bf16.gmra.mxu0 %v2377
      %v2422 = vpop.f32.mrf.mxu0
      %v2423 = vadd.f32 0.0, %v2422
      %v2424 = vpop.f32.mrf.mxu0
      %v2425 = vadd.f32 0.0, %v2424
      %2426 = vdwg.mxu0
      %2427 = vmatpush.bf16.msra.mxu0 0
      %2428 = vmatpush.bf16.msra.mxu0 0
      %2429 = vmatpush.bf16.msra.mxu0 0
      %2430 = vmatpush.bf16.msra.mxu0 0
      %2431 = vmatpush.bf16.msra.mxu0 0
      %2432 = vmatpush.bf16.msra.mxu0 0
      %2433 = vmatpush.bf16.msra.mxu0 0
      %2434 = vmatpush.bf16.msra.mxu0 %v790
      %2435 = vmatmul.bf16.gmra.mxu0 %v2377
      %v2436 = vpop.f32.mrf.mxu0
      %v2437 = vadd.f32 0.0, %v2436
      %v2438 = vpop.f32.mrf.mxu0
      %v2439 = vadd.f32 0.0, %v2438
      %2440 = vdwg.mxu0
      %2441 = vmatpush.bf16.msra.mxu0 0
      %2442 = vmatpush.bf16.msra.mxu0 0
      %2443 = vmatpush.bf16.msra.mxu0 0
      %2444 = vmatpush.bf16.msra.mxu0 0
      %2445 = vmatpush.bf16.msra.mxu0 0
      %2446 = vmatpush.bf16.msra.mxu0 0
      %2447 = vmatpush.bf16.msra.mxu0 0
      %2448 = vmatpush.bf16.msra.mxu0 %v793
      %2449 = vmatmul.bf16.gmra.mxu0 %v2377
      %v2450 = vpop.f32.mrf.mxu0
      %v2451 = vadd.f32 0.0, %v2450
      %v2452 = vpop.f32.mrf.mxu0
      %v2453 = vadd.f32 0.0, %v2452
      %2454 = vdwg.mxu0
      %2455 = vmatpush.bf16.msra.mxu0 0
      %2456 = vmatpush.bf16.msra.mxu0 0
      %2457 = vmatpush.bf16.msra.mxu0 0
      %2458 = vmatpush.bf16.msra.mxu0 0
      %2459 = vmatpush.bf16.msra.mxu0 0
      %2460 = vmatpush.bf16.msra.mxu0 0
      %2461 = vmatpush.bf16.msra.mxu0 0
      %2462 = vmatpush.bf16.msra.mxu0 %v796
      %2463 = vmatmul.bf16.gmra.mxu0 %v2377
      %v2464 = vpop.f32.mrf.mxu0
      %v2465 = vadd.f32 0.0, %v2464
      %v2466 = vpop.f32.mrf.mxu0
      %v2467 = vadd.f32 0.0, %v2466
      %2468 = vdwg.mxu0
      %2469 = vmatpush.bf16.msra.mxu0 0
      %2470 = vmatpush.bf16.msra.mxu0 0
      %2471 = vmatpush.bf16.msra.mxu0 0
      %2472 = vmatpush.bf16.msra.mxu0 0
      %2473 = vmatpush.bf16.msra.mxu0 0
      %2474 = vmatpush.bf16.msra.mxu0 0
      %2475 = vmatpush.bf16.msra.mxu0 0
      %2476 = vmatpush.bf16.msra.mxu0 %v2380
      %2477 = vmatmul.bf16.gmra.mxu0 %v2377
      %v2478 = vpop.f32.mrf.mxu0
      %v2479 = vadd.f32 0.0, %v2478
      %v2480 = vpop.f32.mrf.mxu0
      %v2481 = vadd.f32 0.0, %v2480
      %2482 = vdwg.mxu0
      %2483 = vmatpush.bf16.msra.mxu0 0
      %2484 = vmatpush.bf16.msra.mxu0 0
      %2485 = vmatpush.bf16.msra.mxu0 0
      %2486 = vmatpush.bf16.msra.mxu0 0
      %2487 = vmatpush.bf16.msra.mxu0 0
      %2488 = vmatpush.bf16.msra.mxu0 0
      %2489 = vmatpush.bf16.msra.mxu0 0
      %2490 = vmatpush.bf16.msra.mxu0 %v2383
      %2491 = vmatmul.bf16.gmra.mxu0 %v2377
      %v2492 = vpop.f32.mrf.mxu0
      %v2493 = vadd.f32 0.0, %v2492
      %v2494 = vpop.f32.mrf.mxu0
      %v2495 = vadd.f32 0.0, %v2494
      %2496 = vdwg.mxu0
      %v2497 = vadd.f32 %v2346, %v2395
      %v2498 = vadd.f32 %v2347, %v2409
      %v2499 = vadd.f32 %v2348, %v2423
      %v2500 = vadd.f32 %v2349, %v2437
      %v2501 = vadd.f32 %v2350, %v2451
      %v2502 = vadd.f32 %v2351, %v2465
      %v2503 = vadd.f32 %v2352, %v2479
      %v2504 = vadd.f32 %v2353, %v2493
      %v2505 = vadd.f32 %v2354, %v2397
      %v2506 = vadd.f32 %v2355, %v2411
      %v2507 = vadd.f32 %v2356, %v2425
      %v2508 = vadd.f32 %v2357, %v2439
      %v2509 = vadd.f32 %v2358, %v2453
      %v2510 = vadd.f32 %v2359, %v2467
      %v2511 = vadd.f32 %v2360, %v2481
      %v2512 = vadd.f32 %v2361, %v2495
      %s2513 = scalar_lea.vmem %s2, 96
      %v2514 = vld [vmem:[%s2513] sm:$0xf]
      %v2515 = vld [vmem:[%s2513 + $0x4] sm:$0xf]
      %v2518 = vunpack.c.l.b16 %v2514
      %v2519 = vunpack.c.l.b16 %v2515
      %v2520 = vpack.c.b16 %v2519, %v2518
      %2521 = vrot.lane.b32.xlu0 %v407, 112
      %v2522 = vpop.permute.xlu0 %2521
      %2523 = vrot.lane.b32.xlu0 %v408, 112
      %v2524 = vpop.permute.xlu0 %2523
      %v2525 = vsel %vm952, %v951, %v2522
      %v2526 = vsel %vm952, %v2522, %v2524
      %v2528 = vsel %vm448, %v2520, 0
      %v2531 = vand.u32 %v2525, %v455
      %v2534 = vand.u32 %v2526, %v455
      %2536 = vmatpush.bf16.msra.mxu0 0
      %2537 = vmatpush.bf16.msra.mxu0 0
      %2538 = vmatpush.bf16.msra.mxu0 0
      %2539 = vmatpush.bf16.msra.mxu0 0
      %2540 = vmatpush.bf16.msra.mxu0 0
      %2541 = vmatpush.bf16.msra.mxu0 0
      %2542 = vmatpush.bf16.msra.mxu0 0
      %2543 = vmatpush.bf16.msra.mxu0 %v971
      %2544 = vmatmul.bf16.gmra.mxu0 %v2528
      %v2545 = vpop.f32.mrf.mxu0
      %v2546 = vadd.f32 0.0, %v2545
      %v2547 = vpop.f32.mrf.mxu0
      %v2548 = vadd.f32 0.0, %v2547
      %2549 = vdwg.mxu0
      %2550 = vmatpush.bf16.msra.mxu0 0
      %2551 = vmatpush.bf16.msra.mxu0 0
      %2552 = vmatpush.bf16.msra.mxu0 0
      %2553 = vmatpush.bf16.msra.mxu0 0
      %2554 = vmatpush.bf16.msra.mxu0 0
      %2555 = vmatpush.bf16.msra.mxu0 0
      %2556 = vmatpush.bf16.msra.mxu0 0
      %2557 = vmatpush.bf16.msra.mxu0 %v974
      %2558 = vmatmul.bf16.gmra.mxu0 %v2528
      %v2559 = vpop.f32.mrf.mxu0
      %v2560 = vadd.f32 0.0, %v2559
      %v2561 = vpop.f32.mrf.mxu0
      %v2562 = vadd.f32 0.0, %v2561
      %2563 = vdwg.mxu0
      %2564 = vmatpush.bf16.msra.mxu0 0
      %2565 = vmatpush.bf16.msra.mxu0 0
      %2566 = vmatpush.bf16.msra.mxu0 0
      %2567 = vmatpush.bf16.msra.mxu0 0
      %2568 = vmatpush.bf16.msra.mxu0 0
      %2569 = vmatpush.bf16.msra.mxu0 0
      %2570 = vmatpush.bf16.msra.mxu0 0
      %2571 = vmatpush.bf16.msra.mxu0 %v977
      %2572 = vmatmul.bf16.gmra.mxu0 %v2528
      %v2573 = vpop.f32.mrf.mxu0
      %v2574 = vadd.f32 0.0, %v2573
      %v2575 = vpop.f32.mrf.mxu0
      %v2576 = vadd.f32 0.0, %v2575
      %2577 = vdwg.mxu0
      %2578 = vmatpush.bf16.msra.mxu0 0
      %2579 = vmatpush.bf16.msra.mxu0 0
      %2580 = vmatpush.bf16.msra.mxu0 0
      %2581 = vmatpush.bf16.msra.mxu0 0
      %2582 = vmatpush.bf16.msra.mxu0 0
      %2583 = vmatpush.bf16.msra.mxu0 0
      %2584 = vmatpush.bf16.msra.mxu0 0
      %2585 = vmatpush.bf16.msra.mxu0 %v980
      %2586 = vmatmul.bf16.gmra.mxu0 %v2528
      %v2587 = vpop.f32.mrf.mxu0
      %v2588 = vadd.f32 0.0, %v2587
      %v2589 = vpop.f32.mrf.mxu0
      %v2590 = vadd.f32 0.0, %v2589
      %2591 = vdwg.mxu0
      %2592 = vmatpush.bf16.msra.mxu0 0
      %2593 = vmatpush.bf16.msra.mxu0 0
      %2594 = vmatpush.bf16.msra.mxu0 0
      %2595 = vmatpush.bf16.msra.mxu0 0
      %2596 = vmatpush.bf16.msra.mxu0 0
      %2597 = vmatpush.bf16.msra.mxu0 0
      %2598 = vmatpush.bf16.msra.mxu0 0
      %2599 = vmatpush.bf16.msra.mxu0 %v983
      %2600 = vmatmul.bf16.gmra.mxu0 %v2528
      %v2601 = vpop.f32.mrf.mxu0
      %v2602 = vadd.f32 0.0, %v2601
      %v2603 = vpop.f32.mrf.mxu0
      %v2604 = vadd.f32 0.0, %v2603
      %2605 = vdwg.mxu0
      %2606 = vmatpush.bf16.msra.mxu0 0
      %2607 = vmatpush.bf16.msra.mxu0 0
      %2608 = vmatpush.bf16.msra.mxu0 0
      %2609 = vmatpush.bf16.msra.mxu0 0
      %2610 = vmatpush.bf16.msra.mxu0 0
      %2611 = vmatpush.bf16.msra.mxu0 0
      %2612 = vmatpush.bf16.msra.mxu0 0
      %2613 = vmatpush.bf16.msra.mxu0 %v986
      %2614 = vmatmul.bf16.gmra.mxu0 %v2528
      %v2615 = vpop.f32.mrf.mxu0
      %v2616 = vadd.f32 0.0, %v2615
      %v2617 = vpop.f32.mrf.mxu0
      %v2618 = vadd.f32 0.0, %v2617
      %2619 = vdwg.mxu0
      %2620 = vmatpush.bf16.msra.mxu0 0
      %2621 = vmatpush.bf16.msra.mxu0 0
      %2622 = vmatpush.bf16.msra.mxu0 0
      %2623 = vmatpush.bf16.msra.mxu0 0
      %2624 = vmatpush.bf16.msra.mxu0 0
      %2625 = vmatpush.bf16.msra.mxu0 0
      %2626 = vmatpush.bf16.msra.mxu0 0
      %2627 = vmatpush.bf16.msra.mxu0 %v2531
      %2628 = vmatmul.bf16.gmra.mxu0 %v2528
      %v2629 = vpop.f32.mrf.mxu0
      %v2630 = vadd.f32 0.0, %v2629
      %v2631 = vpop.f32.mrf.mxu0
      %v2632 = vadd.f32 0.0, %v2631
      %2633 = vdwg.mxu0
      %2634 = vmatpush.bf16.msra.mxu0 0
      %2635 = vmatpush.bf16.msra.mxu0 0
      %2636 = vmatpush.bf16.msra.mxu0 0
      %2637 = vmatpush.bf16.msra.mxu0 0
      %2638 = vmatpush.bf16.msra.mxu0 0
      %2639 = vmatpush.bf16.msra.mxu0 0
      %2640 = vmatpush.bf16.msra.mxu0 0
      %2641 = vmatpush.bf16.msra.mxu0 %v2534
      %2642 = vmatmul.bf16.gmra.mxu0 %v2528
      %v2643 = vpop.f32.mrf.mxu0
      %v2644 = vadd.f32 0.0, %v2643
      %v2645 = vpop.f32.mrf.mxu0
      %v2646 = vadd.f32 0.0, %v2645
      %2647 = vdwg.mxu0
      %v2648 = vadd.f32 %v2497, %v2546
      %v2649 = vadd.f32 %v2498, %v2560
      %v2650 = vadd.f32 %v2499, %v2574
      %v2651 = vadd.f32 %v2500, %v2588
      %v2652 = vadd.f32 %v2501, %v2602
      %v2653 = vadd.f32 %v2502, %v2616
      %v2654 = vadd.f32 %v2503, %v2630
      %v2655 = vadd.f32 %v2504, %v2644
      %v2656 = vadd.f32 %v2505, %v2548
      %v2657 = vadd.f32 %v2506, %v2562
      %v2658 = vadd.f32 %v2507, %v2576
      %v2659 = vadd.f32 %v2508, %v2590
      %v2660 = vadd.f32 %v2509, %v2604
      %v2661 = vadd.f32 %v2510, %v2618
      %v2662 = vadd.f32 %v2511, %v2632
      %v2663 = vadd.f32 %v2512, %v2646
      %s2664 = scalar_lea.vmem %s2, 104
      %v2665 = vld [vmem:[%s2664] sm:$0xf]
      %v2666 = vld [vmem:[%s2664 + $0x4] sm:$0xf]
      %v2669 = vunpack.c.l.b16 %v2665
      %v2670 = vunpack.c.l.b16 %v2666
      %v2671 = vpack.c.b16 %v2670, %v2669
      %2672 = vrot.lane.b32.xlu0 %v407, 111
      %v2673 = vpop.permute.xlu0 %2672
      %2674 = vrot.lane.b32.xlu0 %v408, 111
      %v2675 = vpop.permute.xlu0 %2674
      %v2676 = vsel %vm1142, %v1141, %v2673
      %v2677 = vsel %vm1142, %v2673, %v2675
      %v2679 = vsel %vm448, %v2671, 0
      %v2682 = vand.u32 %v2676, %v455
      %v2685 = vand.u32 %v2677, %v455
      %2687 = vmatpush.bf16.msra.mxu0 0
      %2688 = vmatpush.bf16.msra.mxu0 0
      %2689 = vmatpush.bf16.msra.mxu0 0
      %2690 = vmatpush.bf16.msra.mxu0 0
      %2691 = vmatpush.bf16.msra.mxu0 0
      %2692 = vmatpush.bf16.msra.mxu0 0
      %2693 = vmatpush.bf16.msra.mxu0 0
      %2694 = vmatpush.bf16.msra.mxu0 %v1161
      %2695 = vmatmul.bf16.gmra.mxu0 %v2679
      %v2696 = vpop.f32.mrf.mxu0
      %v2697 = vadd.f32 0.0, %v2696
      %v2698 = vpop.f32.mrf.mxu0
      %v2699 = vadd.f32 0.0, %v2698
      %2700 = vdwg.mxu0
      %2701 = vmatpush.bf16.msra.mxu0 0
      %2702 = vmatpush.bf16.msra.mxu0 0
      %2703 = vmatpush.bf16.msra.mxu0 0
      %2704 = vmatpush.bf16.msra.mxu0 0
      %2705 = vmatpush.bf16.msra.mxu0 0
      %2706 = vmatpush.bf16.msra.mxu0 0
      %2707 = vmatpush.bf16.msra.mxu0 0
      %2708 = vmatpush.bf16.msra.mxu0 %v1164
      %2709 = vmatmul.bf16.gmra.mxu0 %v2679
      %v2710 = vpop.f32.mrf.mxu0
      %v2711 = vadd.f32 0.0, %v2710
      %v2712 = vpop.f32.mrf.mxu0
      %v2713 = vadd.f32 0.0, %v2712
      %2714 = vdwg.mxu0
      %2715 = vmatpush.bf16.msra.mxu0 0
      %2716 = vmatpush.bf16.msra.mxu0 0
      %2717 = vmatpush.bf16.msra.mxu0 0
      %2718 = vmatpush.bf16.msra.mxu0 0
      %2719 = vmatpush.bf16.msra.mxu0 0
      %2720 = vmatpush.bf16.msra.mxu0 0
      %2721 = vmatpush.bf16.msra.mxu0 0
      %2722 = vmatpush.bf16.msra.mxu0 %v1167
      %2723 = vmatmul.bf16.gmra.mxu0 %v2679
      %v2724 = vpop.f32.mrf.mxu0
      %v2725 = vadd.f32 0.0, %v2724
      %v2726 = vpop.f32.mrf.mxu0
      %v2727 = vadd.f32 0.0, %v2726
      %2728 = vdwg.mxu0
      %2729 = vmatpush.bf16.msra.mxu0 0
      %2730 = vmatpush.bf16.msra.mxu0 0
      %2731 = vmatpush.bf16.msra.mxu0 0
      %2732 = vmatpush.bf16.msra.mxu0 0
      %2733 = vmatpush.bf16.msra.mxu0 0
      %2734 = vmatpush.bf16.msra.mxu0 0
      %2735 = vmatpush.bf16.msra.mxu0 0
      %2736 = vmatpush.bf16.msra.mxu0 %v1170
      %2737 = vmatmul.bf16.gmra.mxu0 %v2679
      %v2738 = vpop.f32.mrf.mxu0
      %v2739 = vadd.f32 0.0, %v2738
      %v2740 = vpop.f32.mrf.mxu0
      %v2741 = vadd.f32 0.0, %v2740
      %2742 = vdwg.mxu0
      %2743 = vmatpush.bf16.msra.mxu0 0
      %2744 = vmatpush.bf16.msra.mxu0 0
      %2745 = vmatpush.bf16.msra.mxu0 0
      %2746 = vmatpush.bf16.msra.mxu0 0
      %2747 = vmatpush.bf16.msra.mxu0 0
      %2748 = vmatpush.bf16.msra.mxu0 0
      %2749 = vmatpush.bf16.msra.mxu0 0
      %2750 = vmatpush.bf16.msra.mxu0 %v1173
      %2751 = vmatmul.bf16.gmra.mxu0 %v2679
      %v2752 = vpop.f32.mrf.mxu0
      %v2753 = vadd.f32 0.0, %v2752
      %v2754 = vpop.f32.mrf.mxu0
      %v2755 = vadd.f32 0.0, %v2754
      %2756 = vdwg.mxu0
      %2757 = vmatpush.bf16.msra.mxu0 0
      %2758 = vmatpush.bf16.msra.mxu0 0
      %2759 = vmatpush.bf16.msra.mxu0 0
      %2760 = vmatpush.bf16.msra.mxu0 0
      %2761 = vmatpush.bf16.msra.mxu0 0
      %2762 = vmatpush.bf16.msra.mxu0 0
      %2763 = vmatpush.bf16.msra.mxu0 0
      %2764 = vmatpush.bf16.msra.mxu0 %v1176
      %2765 = vmatmul.bf16.gmra.mxu0 %v2679
      %v2766 = vpop.f32.mrf.mxu0
      %v2767 = vadd.f32 0.0, %v2766
      %v2768 = vpop.f32.mrf.mxu0
      %v2769 = vadd.f32 0.0, %v2768
      %2770 = vdwg.mxu0
      %2771 = vmatpush.bf16.msra.mxu0 0
      %2772 = vmatpush.bf16.msra.mxu0 0
      %2773 = vmatpush.bf16.msra.mxu0 0
      %2774 = vmatpush.bf16.msra.mxu0 0
      %2775 = vmatpush.bf16.msra.mxu0 0
      %2776 = vmatpush.bf16.msra.mxu0 0
      %2777 = vmatpush.bf16.msra.mxu0 0
      %2778 = vmatpush.bf16.msra.mxu0 %v2682
      %2779 = vmatmul.bf16.gmra.mxu0 %v2679
      %v2780 = vpop.f32.mrf.mxu0
      %v2781 = vadd.f32 0.0, %v2780
      %v2782 = vpop.f32.mrf.mxu0
      %v2783 = vadd.f32 0.0, %v2782
      %2784 = vdwg.mxu0
      %2785 = vmatpush.bf16.msra.mxu0 0
      %2786 = vmatpush.bf16.msra.mxu0 0
      %2787 = vmatpush.bf16.msra.mxu0 0
      %2788 = vmatpush.bf16.msra.mxu0 0
      %2789 = vmatpush.bf16.msra.mxu0 0
      %2790 = vmatpush.bf16.msra.mxu0 0
      %2791 = vmatpush.bf16.msra.mxu0 0
      %2792 = vmatpush.bf16.msra.mxu0 %v2685
      %2793 = vmatmul.bf16.gmra.mxu0 %v2679
      %v2794 = vpop.f32.mrf.mxu0
      %v2795 = vadd.f32 0.0, %v2794
      %v2796 = vpop.f32.mrf.mxu0
      %v2797 = vadd.f32 0.0, %v2796
      %2798 = vdwg.mxu0
      %v2799 = vadd.f32 %v2648, %v2697
      %v2800 = vadd.f32 %v2649, %v2711
      %v2801 = vadd.f32 %v2650, %v2725
      %v2802 = vadd.f32 %v2651, %v2739
      %v2803 = vadd.f32 %v2652, %v2753
      %v2804 = vadd.f32 %v2653, %v2767
      %v2805 = vadd.f32 %v2654, %v2781
      %v2806 = vadd.f32 %v2655, %v2795
      %v2807 = vadd.f32 %v2656, %v2699
      %v2808 = vadd.f32 %v2657, %v2713
      %v2809 = vadd.f32 %v2658, %v2727
      %v2810 = vadd.f32 %v2659, %v2741
      %v2811 = vadd.f32 %v2660, %v2755
      %v2812 = vadd.f32 %v2661, %v2769
      %v2813 = vadd.f32 %v2662, %v2783
      %v2814 = vadd.f32 %v2663, %v2797
      %s2815 = scalar_lea.vmem %s2, 112
      %v2816 = vld [vmem:[%s2815] sm:$0xf]
      %v2817 = vld [vmem:[%s2815 + $0x4] sm:$0xf]
      %v2820 = vunpack.c.l.b16 %v2816
      %v2821 = vunpack.c.l.b16 %v2817
      %v2822 = vpack.c.b16 %v2821, %v2820
      %2823 = vrot.lane.b32.xlu0 %v407, 110
      %v2824 = vpop.permute.xlu0 %2823
      %2825 = vrot.lane.b32.xlu0 %v408, 110
      %v2826 = vpop.permute.xlu0 %2825
      %v2827 = vsel %vm1332, %v1331, %v2824
      %v2828 = vsel %vm1332, %v2824, %v2826
      %v2830 = vsel %vm448, %v2822, 0
      %v2833 = vand.u32 %v2827, %v455
      %v2836 = vand.u32 %v2828, %v455
      %2838 = vmatpush.bf16.msra.mxu0 0
      %2839 = vmatpush.bf16.msra.mxu0 0
      %2840 = vmatpush.bf16.msra.mxu0 0
      %2841 = vmatpush.bf16.msra.mxu0 0
      %2842 = vmatpush.bf16.msra.mxu0 0
      %2843 = vmatpush.bf16.msra.mxu0 0
      %2844 = vmatpush.bf16.msra.mxu0 0
      %2845 = vmatpush.bf16.msra.mxu0 %v1351
      %2846 = vmatmul.bf16.gmra.mxu0 %v2830
      %v2847 = vpop.f32.mrf.mxu0
      %v2848 = vadd.f32 0.0, %v2847
      %v2849 = vpop.f32.mrf.mxu0
      %v2850 = vadd.f32 0.0, %v2849
      %2851 = vdwg.mxu0
      %2852 = vmatpush.bf16.msra.mxu0 0
      %2853 = vmatpush.bf16.msra.mxu0 0
      %2854 = vmatpush.bf16.msra.mxu0 0
      %2855 = vmatpush.bf16.msra.mxu0 0
      %2856 = vmatpush.bf16.msra.mxu0 0
      %2857 = vmatpush.bf16.msra.mxu0 0
      %2858 = vmatpush.bf16.msra.mxu0 0
      %2859 = vmatpush.bf16.msra.mxu0 %v1354
      %2860 = vmatmul.bf16.gmra.mxu0 %v2830
      %v2861 = vpop.f32.mrf.mxu0
      %v2862 = vadd.f32 0.0, %v2861
      %v2863 = vpop.f32.mrf.mxu0
      %v2864 = vadd.f32 0.0, %v2863
      %2865 = vdwg.mxu0
      %2866 = vmatpush.bf16.msra.mxu0 0
      %2867 = vmatpush.bf16.msra.mxu0 0
      %2868 = vmatpush.bf16.msra.mxu0 0
      %2869 = vmatpush.bf16.msra.mxu0 0
      %2870 = vmatpush.bf16.msra.mxu0 0
      %2871 = vmatpush.bf16.msra.mxu0 0
      %2872 = vmatpush.bf16.msra.mxu0 0
      %2873 = vmatpush.bf16.msra.mxu0 %v1357
      %2874 = vmatmul.bf16.gmra.mxu0 %v2830
      %v2875 = vpop.f32.mrf.mxu0
      %v2876 = vadd.f32 0.0, %v2875
      %v2877 = vpop.f32.mrf.mxu0
      %v2878 = vadd.f32 0.0, %v2877
      %2879 = vdwg.mxu0
      %2880 = vmatpush.bf16.msra.mxu0 0
      %2881 = vmatpush.bf16.msra.mxu0 0
      %2882 = vmatpush.bf16.msra.mxu0 0
      %2883 = vmatpush.bf16.msra.mxu0 0
      %2884 = vmatpush.bf16.msra.mxu0 0
      %2885 = vmatpush.bf16.msra.mxu0 0
      %2886 = vmatpush.bf16.msra.mxu0 0
      %2887 = vmatpush.bf16.msra.mxu0 %v1360
      %2888 = vmatmul.bf16.gmra.mxu0 %v2830
      %v2889 = vpop.f32.mrf.mxu0
      %v2890 = vadd.f32 0.0, %v2889
      %v2891 = vpop.f32.mrf.mxu0
      %v2892 = vadd.f32 0.0, %v2891
      %2893 = vdwg.mxu0
      %2894 = vmatpush.bf16.msra.mxu0 0
      %2895 = vmatpush.bf16.msra.mxu0 0
      %2896 = vmatpush.bf16.msra.mxu0 0
      %2897 = vmatpush.bf16.msra.mxu0 0
      %2898 = vmatpush.bf16.msra.mxu0 0
      %2899 = vmatpush.bf16.msra.mxu0 0
      %2900 = vmatpush.bf16.msra.mxu0 0
      %2901 = vmatpush.bf16.msra.mxu0 %v1363
      %2902 = vmatmul.bf16.gmra.mxu0 %v2830
      %v2903 = vpop.f32.mrf.mxu0
      %v2904 = vadd.f32 0.0, %v2903
      %v2905 = vpop.f32.mrf.mxu0
      %v2906 = vadd.f32 0.0, %v2905
      %2907 = vdwg.mxu0
      %2908 = vmatpush.bf16.msra.mxu0 0
      %2909 = vmatpush.bf16.msra.mxu0 0
      %2910 = vmatpush.bf16.msra.mxu0 0
      %2911 = vmatpush.bf16.msra.mxu0 0
      %2912 = vmatpush.bf16.msra.mxu0 0
      %2913 = vmatpush.bf16.msra.mxu0 0
      %2914 = vmatpush.bf16.msra.mxu0 0
      %2915 = vmatpush.bf16.msra.mxu0 %v1366
      %2916 = vmatmul.bf16.gmra.mxu0 %v2830
      %v2917 = vpop.f32.mrf.mxu0
      %v2918 = vadd.f32 0.0, %v2917
      %v2919 = vpop.f32.mrf.mxu0
      %v2920 = vadd.f32 0.0, %v2919
      %2921 = vdwg.mxu0
      %2922 = vmatpush.bf16.msra.mxu0 0
      %2923 = vmatpush.bf16.msra.mxu0 0
      %2924 = vmatpush.bf16.msra.mxu0 0
      %2925 = vmatpush.bf16.msra.mxu0 0
      %2926 = vmatpush.bf16.msra.mxu0 0
      %2927 = vmatpush.bf16.msra.mxu0 0
      %2928 = vmatpush.bf16.msra.mxu0 0
      %2929 = vmatpush.bf16.msra.mxu0 %v2833
      %2930 = vmatmul.bf16.gmra.mxu0 %v2830
      %v2931 = vpop.f32.mrf.mxu0
      %v2932 = vadd.f32 0.0, %v2931
      %v2933 = vpop.f32.mrf.mxu0
      %v2934 = vadd.f32 0.0, %v2933
      %2935 = vdwg.mxu0
      %2936 = vmatpush.bf16.msra.mxu0 0
      %2937 = vmatpush.bf16.msra.mxu0 0
      %2938 = vmatpush.bf16.msra.mxu0 0
      %2939 = vmatpush.bf16.msra.mxu0 0
      %2940 = vmatpush.bf16.msra.mxu0 0
      %2941 = vmatpush.bf16.msra.mxu0 0
      %2942 = vmatpush.bf16.msra.mxu0 0
      %2943 = vmatpush.bf16.msra.mxu0 %v2836
      %2944 = vmatmul.bf16.gmra.mxu0 %v2830
      %v2945 = vpop.f32.mrf.mxu0
      %v2946 = vadd.f32 0.0, %v2945
      %v2947 = vpop.f32.mrf.mxu0
      %v2948 = vadd.f32 0.0, %v2947
      %2949 = vdwg.mxu0
      %v2950 = vadd.f32 %v2799, %v2848
      %v2951 = vadd.f32 %v2800, %v2862
      %v2952 = vadd.f32 %v2801, %v2876
      %v2953 = vadd.f32 %v2802, %v2890
      %v2954 = vadd.f32 %v2803, %v2904
      %v2955 = vadd.f32 %v2804, %v2918
      %v2956 = vadd.f32 %v2805, %v2932
      %v2957 = vadd.f32 %v2806, %v2946
      %v2958 = vadd.f32 %v2807, %v2850
      %v2959 = vadd.f32 %v2808, %v2864
      %v2960 = vadd.f32 %v2809, %v2878
      %v2961 = vadd.f32 %v2810, %v2892
      %v2962 = vadd.f32 %v2811, %v2906
      %v2963 = vadd.f32 %v2812, %v2920
      %v2964 = vadd.f32 %v2813, %v2934
      %v2965 = vadd.f32 %v2814, %v2948
      %s2966 = scalar_lea.vmem %s2, 120
      %v2967 = vld [vmem:[%s2966] sm:$0xf]
      %v2968 = vld [vmem:[%s2966 + $0x4] sm:$0xf]
      %v2971 = vunpack.c.l.b16 %v2967
      %v2972 = vunpack.c.l.b16 %v2968
      %v2973 = vpack.c.b16 %v2972, %v2971
      %2974 = vrot.lane.b32.xlu0 %v407, 96
      %v2975 = vpop.permute.xlu0 %2974
      %2976 = vrot.lane.b32.xlu0 %v408, 96
      %v2977 = vpop.permute.xlu0 %2976
      %v2978 = vsel %vm1522, %v1521, %v2975
      %v2979 = vsel %vm1522, %v2975, %v2977
      %v2981 = vsel %vm448, %v2973, 0
      %v2984 = vand.u32 %v2978, %v455
      %v2987 = vand.u32 %v2979, %v455
      %2989 = vmatpush.bf16.msra.mxu0 0
      %2990 = vmatpush.bf16.msra.mxu0 0
      %2991 = vmatpush.bf16.msra.mxu0 0
      %2992 = vmatpush.bf16.msra.mxu0 0
      %2993 = vmatpush.bf16.msra.mxu0 0
      %2994 = vmatpush.bf16.msra.mxu0 0
      %2995 = vmatpush.bf16.msra.mxu0 0
      %2996 = vmatpush.bf16.msra.mxu0 %v1541
      %2997 = vmatmul.bf16.gmra.mxu0 %v2981
      %v2998 = vpop.f32.mrf.mxu0
      %v2999 = vadd.f32 0.0, %v2998
      %v3000 = vpop.f32.mrf.mxu0
      %v3001 = vadd.f32 0.0, %v3000
      %3002 = vdwg.mxu0
      %3003 = vmatpush.bf16.msra.mxu0 0
      %3004 = vmatpush.bf16.msra.mxu0 0
      %3005 = vmatpush.bf16.msra.mxu0 0
      %3006 = vmatpush.bf16.msra.mxu0 0
      %3007 = vmatpush.bf16.msra.mxu0 0
      %3008 = vmatpush.bf16.msra.mxu0 0
      %3009 = vmatpush.bf16.msra.mxu0 0
      %3010 = vmatpush.bf16.msra.mxu0 %v1544
      %3011 = vmatmul.bf16.gmra.mxu0 %v2981
      %v3012 = vpop.f32.mrf.mxu0
      %v3013 = vadd.f32 0.0, %v3012
      %v3014 = vpop.f32.mrf.mxu0
      %v3015 = vadd.f32 0.0, %v3014
      %3016 = vdwg.mxu0
      %3017 = vmatpush.bf16.msra.mxu0 0
      %3018 = vmatpush.bf16.msra.mxu0 0
      %3019 = vmatpush.bf16.msra.mxu0 0
      %3020 = vmatpush.bf16.msra.mxu0 0
      %3021 = vmatpush.bf16.msra.mxu0 0
      %3022 = vmatpush.bf16.msra.mxu0 0
      %3023 = vmatpush.bf16.msra.mxu0 0
      %3024 = vmatpush.bf16.msra.mxu0 %v1547
      %3025 = vmatmul.bf16.gmra.mxu0 %v2981
      %v3026 = vpop.f32.mrf.mxu0
      %v3027 = vadd.f32 0.0, %v3026
      %v3028 = vpop.f32.mrf.mxu0
      %v3029 = vadd.f32 0.0, %v3028
      %3030 = vdwg.mxu0
      %3031 = vmatpush.bf16.msra.mxu0 0
      %3032 = vmatpush.bf16.msra.mxu0 0
      %3033 = vmatpush.bf16.msra.mxu0 0
      %3034 = vmatpush.bf16.msra.mxu0 0
      %3035 = vmatpush.bf16.msra.mxu0 0
      %3036 = vmatpush.bf16.msra.mxu0 0
      %3037 = vmatpush.bf16.msra.mxu0 0
      %3038 = vmatpush.bf16.msra.mxu0 %v1550
      %3039 = vmatmul.bf16.gmra.mxu0 %v2981
      %v3040 = vpop.f32.mrf.mxu0
      %v3041 = vadd.f32 0.0, %v3040
      %v3042 = vpop.f32.mrf.mxu0
      %v3043 = vadd.f32 0.0, %v3042
      %3044 = vdwg.mxu0
      %3045 = vmatpush.bf16.msra.mxu0 0
      %3046 = vmatpush.bf16.msra.mxu0 0
      %3047 = vmatpush.bf16.msra.mxu0 0
      %3048 = vmatpush.bf16.msra.mxu0 0
      %3049 = vmatpush.bf16.msra.mxu0 0
      %3050 = vmatpush.bf16.msra.mxu0 0
      %3051 = vmatpush.bf16.msra.mxu0 0
      %3052 = vmatpush.bf16.msra.mxu0 %v1553
      %3053 = vmatmul.bf16.gmra.mxu0 %v2981
      %v3054 = vpop.f32.mrf.mxu0
      %v3055 = vadd.f32 0.0, %v3054
      %v3056 = vpop.f32.mrf.mxu0
      %v3057 = vadd.f32 0.0, %v3056
      %3058 = vdwg.mxu0
      %3059 = vmatpush.bf16.msra.mxu0 0
      %3060 = vmatpush.bf16.msra.mxu0 0
      %3061 = vmatpush.bf16.msra.mxu0 0
      %3062 = vmatpush.bf16.msra.mxu0 0
      %3063 = vmatpush.bf16.msra.mxu0 0
      %3064 = vmatpush.bf16.msra.mxu0 0
      %3065 = vmatpush.bf16.msra.mxu0 0
      %3066 = vmatpush.bf16.msra.mxu0 %v1556
      %3067 = vmatmul.bf16.gmra.mxu0 %v2981
      %v3068 = vpop.f32.mrf.mxu0
      %v3069 = vadd.f32 0.0, %v3068
      %v3070 = vpop.f32.mrf.mxu0
      %v3071 = vadd.f32 0.0, %v3070
      %3072 = vdwg.mxu0
      %3073 = vmatpush.bf16.msra.mxu0 0
      %3074 = vmatpush.bf16.msra.mxu0 0
      %3075 = vmatpush.bf16.msra.mxu0 0
      %3076 = vmatpush.bf16.msra.mxu0 0
      %3077 = vmatpush.bf16.msra.mxu0 0
      %3078 = vmatpush.bf16.msra.mxu0 0
      %3079 = vmatpush.bf16.msra.mxu0 0
      %3080 = vmatpush.bf16.msra.mxu0 %v2984
      %3081 = vmatmul.bf16.gmra.mxu0 %v2981
      %v3082 = vpop.f32.mrf.mxu0
      %v3083 = vadd.f32 0.0, %v3082
      %v3084 = vpop.f32.mrf.mxu0
      %v3085 = vadd.f32 0.0, %v3084
      %3086 = vdwg.mxu0
      %3087 = vmatpush.bf16.msra.mxu0 0
      %3088 = vmatpush.bf16.msra.mxu0 0
      %3089 = vmatpush.bf16.msra.mxu0 0
      %3090 = vmatpush.bf16.msra.mxu0 0
      %3091 = vmatpush.bf16.msra.mxu0 0
      %3092 = vmatpush.bf16.msra.mxu0 0
      %3093 = vmatpush.bf16.msra.mxu0 0
      %3094 = vmatpush.bf16.msra.mxu0 %v2987
      %3095 = vmatmul.bf16.gmra.mxu0 %v2981
      %v3096 = vpop.f32.mrf.mxu0
      %v3097 = vadd.f32 0.0, %v3096
      %v3098 = vpop.f32.mrf.mxu0
      %v3099 = vadd.f32 0.0, %v3098
      %3100 = vdwg.mxu0
      %v3101 = vadd.f32 %v2950, %v2999
      %v3102 = vadd.f32 %v2951, %v3013
      %v3103 = vadd.f32 %v2952, %v3027
      %v3104 = vadd.f32 %v2953, %v3041
      %v3105 = vadd.f32 %v2954, %v3055
      %v3106 = vadd.f32 %v2955, %v3069
      %v3107 = vadd.f32 %v2956, %v3083
      %v3108 = vadd.f32 %v2957, %v3097
      %v3109 = vadd.f32 %v2958, %v3001
      %v3110 = vadd.f32 %v2959, %v3015
      %v3111 = vadd.f32 %v2960, %v3029
      %v3112 = vadd.f32 %v2961, %v3043
      %v3113 = vadd.f32 %v2962, %v3057
      %v3114 = vadd.f32 %v2963, %v3071
      %v3115 = vadd.f32 %v2964, %v3085
      %v3116 = vadd.f32 %v2965, %v3099
      %s3117 = scalar_lea.vmem %s2, 128
      %v3118 = vld [vmem:[%s3117] sm:$0xf]
      %v3119 = vld [vmem:[%s3117 + $0x4] sm:$0xf]
      %v3122 = vunpack.c.l.b16 %v3118
      %v3123 = vunpack.c.l.b16 %v3119
      %v3124 = vpack.c.b16 %v3123, %v3122
      %3125 = vrot.lane.b32.xlu0 %v407, 95
      %v3126 = vpop.permute.xlu0 %3125
      %3127 = vrot.lane.b32.xlu0 %v408, 95
      %v3128 = vpop.permute.xlu0 %3127
      %v3129 = vsel %vm1712, %v1711, %v3126
      %v3130 = vsel %vm1712, %v3126, %v3128
      %v3132 = vsel %vm448, %v3124, 0
      %v3135 = vand.u32 %v3129, %v455
      %v3138 = vand.u32 %v3130, %v455
      %3140 = vmatpush.bf16.msra.mxu0 0
      %3141 = vmatpush.bf16.msra.mxu0 0
      %3142 = vmatpush.bf16.msra.mxu0 0
      %3143 = vmatpush.bf16.msra.mxu0 0
      %3144 = vmatpush.bf16.msra.mxu0 0
      %3145 = vmatpush.bf16.msra.mxu0 0
      %3146 = vmatpush.bf16.msra.mxu0 0
      %3147 = vmatpush.bf16.msra.mxu0 %v1731
      %3148 = vmatmul.bf16.gmra.mxu0 %v3132
      %v3149 = vpop.f32.mrf.mxu0
      %v3150 = vadd.f32 0.0, %v3149
      %v3151 = vpop.f32.mrf.mxu0
      %v3152 = vadd.f32 0.0, %v3151
      %3153 = vdwg.mxu0
      %3154 = vmatpush.bf16.msra.mxu0 0
      %3155 = vmatpush.bf16.msra.mxu0 0
      %3156 = vmatpush.bf16.msra.mxu0 0
      %3157 = vmatpush.bf16.msra.mxu0 0
      %3158 = vmatpush.bf16.msra.mxu0 0
      %3159 = vmatpush.bf16.msra.mxu0 0
      %3160 = vmatpush.bf16.msra.mxu0 0
      %3161 = vmatpush.bf16.msra.mxu0 %v1734
      %3162 = vmatmul.bf16.gmra.mxu0 %v3132
      %v3163 = vpop.f32.mrf.mxu0
      %v3164 = vadd.f32 0.0, %v3163
      %v3165 = vpop.f32.mrf.mxu0
      %v3166 = vadd.f32 0.0, %v3165
      %3167 = vdwg.mxu0
      %3168 = vmatpush.bf16.msra.mxu0 0
      %3169 = vmatpush.bf16.msra.mxu0 0
      %3170 = vmatpush.bf16.msra.mxu0 0
      %3171 = vmatpush.bf16.msra.mxu0 0
      %3172 = vmatpush.bf16.msra.mxu0 0
      %3173 = vmatpush.bf16.msra.mxu0 0
      %3174 = vmatpush.bf16.msra.mxu0 0
      %3175 = vmatpush.bf16.msra.mxu0 %v1737
      %3176 = vmatmul.bf16.gmra.mxu0 %v3132
      %v3177 = vpop.f32.mrf.mxu0
      %v3178 = vadd.f32 0.0, %v3177
      %v3179 = vpop.f32.mrf.mxu0
      %v3180 = vadd.f32 0.0, %v3179
      %3181 = vdwg.mxu0
      %3182 = vmatpush.bf16.msra.mxu0 0
      %3183 = vmatpush.bf16.msra.mxu0 0
      %3184 = vmatpush.bf16.msra.mxu0 0
      %3185 = vmatpush.bf16.msra.mxu0 0
      %3186 = vmatpush.bf16.msra.mxu0 0
      %3187 = vmatpush.bf16.msra.mxu0 0
      %3188 = vmatpush.bf16.msra.mxu0 0
      %3189 = vmatpush.bf16.msra.mxu0 %v1740
      %3190 = vmatmul.bf16.gmra.mxu0 %v3132
      %v3191 = vpop.f32.mrf.mxu0
      %v3192 = vadd.f32 0.0, %v3191
      %v3193 = vpop.f32.mrf.mxu0
      %v3194 = vadd.f32 0.0, %v3193
      %3195 = vdwg.mxu0
      %3196 = vmatpush.bf16.msra.mxu0 0
      %3197 = vmatpush.bf16.msra.mxu0 0
      %3198 = vmatpush.bf16.msra.mxu0 0
      %3199 = vmatpush.bf16.msra.mxu0 0
      %3200 = vmatpush.bf16.msra.mxu0 0
      %3201 = vmatpush.bf16.msra.mxu0 0
      %3202 = vmatpush.bf16.msra.mxu0 0
      %3203 = vmatpush.bf16.msra.mxu0 %v1743
      %3204 = vmatmul.bf16.gmra.mxu0 %v3132
      %v3205 = vpop.f32.mrf.mxu0
      %v3206 = vadd.f32 0.0, %v3205
      %v3207 = vpop.f32.mrf.mxu0
      %v3208 = vadd.f32 0.0, %v3207
      %3209 = vdwg.mxu0
      %3210 = vmatpush.bf16.msra.mxu0 0
      %3211 = vmatpush.bf16.msra.mxu0 0
      %3212 = vmatpush.bf16.msra.mxu0 0
      %3213 = vmatpush.bf16.msra.mxu0 0
      %3214 = vmatpush.bf16.msra.mxu0 0
      %3215 = vmatpush.bf16.msra.mxu0 0
      %3216 = vmatpush.bf16.msra.mxu0 0
      %3217 = vmatpush.bf16.msra.mxu0 %v1746
      %3218 = vmatmul.bf16.gmra.mxu0 %v3132
      %v3219 = vpop.f32.mrf.mxu0
      %v3220 = vadd.f32 0.0, %v3219
      %v3221 = vpop.f32.mrf.mxu0
      %v3222 = vadd.f32 0.0, %v3221
      %3223 = vdwg.mxu0
      %3224 = vmatpush.bf16.msra.mxu0 0
      %3225 = vmatpush.bf16.msra.mxu0 0
      %3226 = vmatpush.bf16.msra.mxu0 0
      %3227 = vmatpush.bf16.msra.mxu0 0
      %3228 = vmatpush.bf16.msra.mxu0 0
      %3229 = vmatpush.bf16.msra.mxu0 0
      %3230 = vmatpush.bf16.msra.mxu0 0
      %3231 = vmatpush.bf16.msra.mxu0 %v3135
      %3232 = vmatmul.bf16.gmra.mxu0 %v3132
      %v3233 = vpop.f32.mrf.mxu0
      %v3234 = vadd.f32 0.0, %v3233
      %v3235 = vpop.f32.mrf.mxu0
      %v3236 = vadd.f32 0.0, %v3235
      %3237 = vdwg.mxu0
      %3238 = vmatpush.bf16.msra.mxu0 0
      %3239 = vmatpush.bf16.msra.mxu0 0
      %3240 = vmatpush.bf16.msra.mxu0 0
      %3241 = vmatpush.bf16.msra.mxu0 0
      %3242 = vmatpush.bf16.msra.mxu0 0
      %3243 = vmatpush.bf16.msra.mxu0 0
      %3244 = vmatpush.bf16.msra.mxu0 0
      %3245 = vmatpush.bf16.msra.mxu0 %v3138
      %3246 = vmatmul.bf16.gmra.mxu0 %v3132
      %v3247 = vpop.f32.mrf.mxu0
      %v3248 = vadd.f32 0.0, %v3247
      %v3249 = vpop.f32.mrf.mxu0
      %v3250 = vadd.f32 0.0, %v3249
      %3251 = vdwg.mxu0
      %v3252 = vadd.f32 %v3101, %v3150
      %v3253 = vadd.f32 %v3102, %v3164
      %v3254 = vadd.f32 %v3103, %v3178
      %v3255 = vadd.f32 %v3104, %v3192
      %v3256 = vadd.f32 %v3105, %v3206
      %v3257 = vadd.f32 %v3106, %v3220
      %v3258 = vadd.f32 %v3107, %v3234
      %v3259 = vadd.f32 %v3108, %v3248
      %v3260 = vadd.f32 %v3109, %v3152
      %v3261 = vadd.f32 %v3110, %v3166
      %v3262 = vadd.f32 %v3111, %v3180
      %v3263 = vadd.f32 %v3112, %v3194
      %v3264 = vadd.f32 %v3113, %v3208
      %v3265 = vadd.f32 %v3114, %v3222
      %v3266 = vadd.f32 %v3115, %v3236
      %v3267 = vadd.f32 %v3116, %v3250
      %s3268 = scalar_lea.vmem %s2, 136
      %v3269 = vld [vmem:[%s3268] sm:$0xf]
      %v3270 = vld [vmem:[%s3268 + $0x4] sm:$0xf]
      %v3273 = vunpack.c.l.b16 %v3269
      %v3274 = vunpack.c.l.b16 %v3270
      %v3275 = vpack.c.b16 %v3274, %v3273
      %3276 = vrot.lane.b32.xlu0 %v407, 94
      %v3277 = vpop.permute.xlu0 %3276
      %3278 = vrot.lane.b32.xlu0 %v408, 94
      %v3279 = vpop.permute.xlu0 %3278
      %v3280 = vsel %vm1902, %v1901, %v3277
      %v3281 = vsel %vm1902, %v3277, %v3279
      %v3283 = vsel %vm448, %v3275, 0
      %v3286 = vand.u32 %v3280, %v455
      %v3289 = vand.u32 %v3281, %v455
      %3291 = vmatpush.bf16.msra.mxu0 0
      %3292 = vmatpush.bf16.msra.mxu0 0
      %3293 = vmatpush.bf16.msra.mxu0 0
      %3294 = vmatpush.bf16.msra.mxu0 0
      %3295 = vmatpush.bf16.msra.mxu0 0
      %3296 = vmatpush.bf16.msra.mxu0 0
      %3297 = vmatpush.bf16.msra.mxu0 0
      %3298 = vmatpush.bf16.msra.mxu0 %v1921
      %3299 = vmatmul.bf16.gmra.mxu0 %v3283
      %v3300 = vpop.f32.mrf.mxu0
      %v3301 = vadd.f32 0.0, %v3300
      %v3302 = vpop.f32.mrf.mxu0
      %v3303 = vadd.f32 0.0, %v3302
      %3304 = vdwg.mxu0
      %3305 = vmatpush.bf16.msra.mxu0 0
      %3306 = vmatpush.bf16.msra.mxu0 0
      %3307 = vmatpush.bf16.msra.mxu0 0
      %3308 = vmatpush.bf16.msra.mxu0 0
      %3309 = vmatpush.bf16.msra.mxu0 0
      %3310 = vmatpush.bf16.msra.mxu0 0
      %3311 = vmatpush.bf16.msra.mxu0 0
      %3312 = vmatpush.bf16.msra.mxu0 %v1924
      %3313 = vmatmul.bf16.gmra.mxu0 %v3283
      %v3314 = vpop.f32.mrf.mxu0
      %v3315 = vadd.f32 0.0, %v3314
      %v3316 = vpop.f32.mrf.mxu0
      %v3317 = vadd.f32 0.0, %v3316
      %3318 = vdwg.mxu0
      %3319 = vmatpush.bf16.msra.mxu0 0
      %3320 = vmatpush.bf16.msra.mxu0 0
      %3321 = vmatpush.bf16.msra.mxu0 0
      %3322 = vmatpush.bf16.msra.mxu0 0
      %3323 = vmatpush.bf16.msra.mxu0 0
      %3324 = vmatpush.bf16.msra.mxu0 0
      %3325 = vmatpush.bf16.msra.mxu0 0
      %3326 = vmatpush.bf16.msra.mxu0 %v1927
      %3327 = vmatmul.bf16.gmra.mxu0 %v3283
      %v3328 = vpop.f32.mrf.mxu0
      %v3329 = vadd.f32 0.0, %v3328
      %v3330 = vpop.f32.mrf.mxu0
      %v3331 = vadd.f32 0.0, %v3330
      %3332 = vdwg.mxu0
      %3333 = vmatpush.bf16.msra.mxu0 0
      %3334 = vmatpush.bf16.msra.mxu0 0
      %3335 = vmatpush.bf16.msra.mxu0 0
      %3336 = vmatpush.bf16.msra.mxu0 0
      %3337 = vmatpush.bf16.msra.mxu0 0
      %3338 = vmatpush.bf16.msra.mxu0 0
      %3339 = vmatpush.bf16.msra.mxu0 0
      %3340 = vmatpush.bf16.msra.mxu0 %v1930
      %3341 = vmatmul.bf16.gmra.mxu0 %v3283
      %v3342 = vpop.f32.mrf.mxu0
      %v3343 = vadd.f32 0.0, %v3342
      %v3344 = vpop.f32.mrf.mxu0
      %v3345 = vadd.f32 0.0, %v3344
      %3346 = vdwg.mxu0
      %3347 = vmatpush.bf16.msra.mxu0 0
      %3348 = vmatpush.bf16.msra.mxu0 0
      %3349 = vmatpush.bf16.msra.mxu0 0
      %3350 = vmatpush.bf16.msra.mxu0 0
      %3351 = vmatpush.bf16.msra.mxu0 0
      %3352 = vmatpush.bf16.msra.mxu0 0
      %3353 = vmatpush.bf16.msra.mxu0 0
      %3354 = vmatpush.bf16.msra.mxu0 %v1933
      %3355 = vmatmul.bf16.gmra.mxu0 %v3283
      %v3356 = vpop.f32.mrf.mxu0
      %v3357 = vadd.f32 0.0, %v3356
      %v3358 = vpop.f32.mrf.mxu0
      %v3359 = vadd.f32 0.0, %v3358
      %3360 = vdwg.mxu0
      %3361 = vmatpush.bf16.msra.mxu0 0
      %3362 = vmatpush.bf16.msra.mxu0 0
      %3363 = vmatpush.bf16.msra.mxu0 0
      %3364 = vmatpush.bf16.msra.mxu0 0
      %3365 = vmatpush.bf16.msra.mxu0 0
      %3366 = vmatpush.bf16.msra.mxu0 0
      %3367 = vmatpush.bf16.msra.mxu0 0
      %3368 = vmatpush.bf16.msra.mxu0 %v1936
      %3369 = vmatmul.bf16.gmra.mxu0 %v3283
      %v3370 = vpop.f32.mrf.mxu0
      %v3371 = vadd.f32 0.0, %v3370
      %v3372 = vpop.f32.mrf.mxu0
      %v3373 = vadd.f32 0.0, %v3372
      %3374 = vdwg.mxu0
      %3375 = vmatpush.bf16.msra.mxu0 0
      %3376 = vmatpush.bf16.msra.mxu0 0
      %3377 = vmatpush.bf16.msra.mxu0 0
      %3378 = vmatpush.bf16.msra.mxu0 0
      %3379 = vmatpush.bf16.msra.mxu0 0
      %3380 = vmatpush.bf16.msra.mxu0 0
      %3381 = vmatpush.bf16.msra.mxu0 0
      %3382 = vmatpush.bf16.msra.mxu0 %v3286
      %3383 = vmatmul.bf16.gmra.mxu0 %v3283
      %v3384 = vpop.f32.mrf.mxu0
      %v3385 = vadd.f32 0.0, %v3384
      %v3386 = vpop.f32.mrf.mxu0
      %v3387 = vadd.f32 0.0, %v3386
      %3388 = vdwg.mxu0
      %3389 = vmatpush.bf16.msra.mxu0 0
      %3390 = vmatpush.bf16.msra.mxu0 0
      %3391 = vmatpush.bf16.msra.mxu0 0
      %3392 = vmatpush.bf16.msra.mxu0 0
      %3393 = vmatpush.bf16.msra.mxu0 0
      %3394 = vmatpush.bf16.msra.mxu0 0
      %3395 = vmatpush.bf16.msra.mxu0 0
      %3396 = vmatpush.bf16.msra.mxu0 %v3289
      %3397 = vmatmul.bf16.gmra.mxu0 %v3283
      %v3398 = vpop.f32.mrf.mxu0
      %v3399 = vadd.f32 0.0, %v3398
      %v3400 = vpop.f32.mrf.mxu0
      %v3401 = vadd.f32 0.0, %v3400
      %3402 = vdwg.mxu0
      %v3403 = vadd.f32 %v3252, %v3301
      %v3404 = vadd.f32 %v3253, %v3315
      %v3405 = vadd.f32 %v3254, %v3329
      %v3406 = vadd.f32 %v3255, %v3343
      %v3407 = vadd.f32 %v3256, %v3357
      %v3408 = vadd.f32 %v3257, %v3371
      %v3409 = vadd.f32 %v3258, %v3385
      %v3410 = vadd.f32 %v3259, %v3399
      %v3411 = vadd.f32 %v3260, %v3303
      %v3412 = vadd.f32 %v3261, %v3317
      %v3413 = vadd.f32 %v3262, %v3331
      %v3414 = vadd.f32 %v3263, %v3345
      %v3415 = vadd.f32 %v3264, %v3359
      %v3416 = vadd.f32 %v3265, %v3373
      %v3417 = vadd.f32 %v3266, %v3387
      %v3418 = vadd.f32 %v3267, %v3401
      %s3419 = scalar_lea.vmem %s2, 144
      %v3420 = vld [vmem:[%s3419] sm:$0xf]
      %v3421 = vld [vmem:[%s3419 + $0x4] sm:$0xf]
      %v3424 = vunpack.c.l.b16 %v3420
      %v3425 = vunpack.c.l.b16 %v3421
      %v3426 = vpack.c.b16 %v3425, %v3424
      %v3428 = vsel %vm448, %v3426, 0
      %v3431 = vand.u32 %v408, %v455
      %v3434 = vand.u32 %v409, %v455
      %3436 = vmatpush.bf16.msra.mxu0 0
      %3437 = vmatpush.bf16.msra.mxu0 0
      %3438 = vmatpush.bf16.msra.mxu0 0
      %3439 = vmatpush.bf16.msra.mxu0 0
      %3440 = vmatpush.bf16.msra.mxu0 0
      %3441 = vmatpush.bf16.msra.mxu0 0
      %3442 = vmatpush.bf16.msra.mxu0 0
      %3443 = vmatpush.bf16.msra.mxu0 %v613
      %3444 = vmatmul.bf16.gmra.mxu0 %v3428
      %v3445 = vpop.f32.mrf.mxu0
      %v3446 = vadd.f32 0.0, %v3445
      %v3447 = vpop.f32.mrf.mxu0
      %v3448 = vadd.f32 0.0, %v3447
      %3449 = vdwg.mxu0
      %3450 = vmatpush.bf16.msra.mxu0 0
      %3451 = vmatpush.bf16.msra.mxu0 0
      %3452 = vmatpush.bf16.msra.mxu0 0
      %3453 = vmatpush.bf16.msra.mxu0 0
      %3454 = vmatpush.bf16.msra.mxu0 0
      %3455 = vmatpush.bf16.msra.mxu0 0
      %3456 = vmatpush.bf16.msra.mxu0 0
      %3457 = vmatpush.bf16.msra.mxu0 %v616
      %3458 = vmatmul.bf16.gmra.mxu0 %v3428
      %v3459 = vpop.f32.mrf.mxu0
      %v3460 = vadd.f32 0.0, %v3459
      %v3461 = vpop.f32.mrf.mxu0
      %v3462 = vadd.f32 0.0, %v3461
      %3463 = vdwg.mxu0
      %3464 = vmatpush.bf16.msra.mxu0 0
      %3465 = vmatpush.bf16.msra.mxu0 0
      %3466 = vmatpush.bf16.msra.mxu0 0
      %3467 = vmatpush.bf16.msra.mxu0 0
      %3468 = vmatpush.bf16.msra.mxu0 0
      %3469 = vmatpush.bf16.msra.mxu0 0
      %3470 = vmatpush.bf16.msra.mxu0 0
      %3471 = vmatpush.bf16.msra.mxu0 %v619
      %3472 = vmatmul.bf16.gmra.mxu0 %v3428
      %v3473 = vpop.f32.mrf.mxu0
      %v3474 = vadd.f32 0.0, %v3473
      %v3475 = vpop.f32.mrf.mxu0
      %v3476 = vadd.f32 0.0, %v3475
      %3477 = vdwg.mxu0
      %3478 = vmatpush.bf16.msra.mxu0 0
      %3479 = vmatpush.bf16.msra.mxu0 0
      %3480 = vmatpush.bf16.msra.mxu0 0
      %3481 = vmatpush.bf16.msra.mxu0 0
      %3482 = vmatpush.bf16.msra.mxu0 0
      %3483 = vmatpush.bf16.msra.mxu0 0
      %3484 = vmatpush.bf16.msra.mxu0 0
      %3485 = vmatpush.bf16.msra.mxu0 %v622
      %3486 = vmatmul.bf16.gmra.mxu0 %v3428
      %v3487 = vpop.f32.mrf.mxu0
      %v3488 = vadd.f32 0.0, %v3487
      %v3489 = vpop.f32.mrf.mxu0
      %v3490 = vadd.f32 0.0, %v3489
      %3491 = vdwg.mxu0
      %3492 = vmatpush.bf16.msra.mxu0 0
      %3493 = vmatpush.bf16.msra.mxu0 0
      %3494 = vmatpush.bf16.msra.mxu0 0
      %3495 = vmatpush.bf16.msra.mxu0 0
      %3496 = vmatpush.bf16.msra.mxu0 0
      %3497 = vmatpush.bf16.msra.mxu0 0
      %3498 = vmatpush.bf16.msra.mxu0 0
      %3499 = vmatpush.bf16.msra.mxu0 %v2078
      %3500 = vmatmul.bf16.gmra.mxu0 %v3428
      %v3501 = vpop.f32.mrf.mxu0
      %v3502 = vadd.f32 0.0, %v3501
      %v3503 = vpop.f32.mrf.mxu0
      %v3504 = vadd.f32 0.0, %v3503
      %3505 = vdwg.mxu0
      %3506 = vmatpush.bf16.msra.mxu0 0
      %3507 = vmatpush.bf16.msra.mxu0 0
      %3508 = vmatpush.bf16.msra.mxu0 0
      %3509 = vmatpush.bf16.msra.mxu0 0
      %3510 = vmatpush.bf16.msra.mxu0 0
      %3511 = vmatpush.bf16.msra.mxu0 0
      %3512 = vmatpush.bf16.msra.mxu0 0
      %3513 = vmatpush.bf16.msra.mxu0 %v2081
      %3514 = vmatmul.bf16.gmra.mxu0 %v3428
      %v3515 = vpop.f32.mrf.mxu0
      %v3516 = vadd.f32 0.0, %v3515
      %v3517 = vpop.f32.mrf.mxu0
      %v3518 = vadd.f32 0.0, %v3517
      %3519 = vdwg.mxu0
      %3520 = vmatpush.bf16.msra.mxu0 0
      %3521 = vmatpush.bf16.msra.mxu0 0
      %3522 = vmatpush.bf16.msra.mxu0 0
      %3523 = vmatpush.bf16.msra.mxu0 0
      %3524 = vmatpush.bf16.msra.mxu0 0
      %3525 = vmatpush.bf16.msra.mxu0 0
      %3526 = vmatpush.bf16.msra.mxu0 0
      %3527 = vmatpush.bf16.msra.mxu0 %v3431
      %3528 = vmatmul.bf16.gmra.mxu0 %v3428
      %v3529 = vpop.f32.mrf.mxu0
      %v3530 = vadd.f32 0.0, %v3529
      %v3531 = vpop.f32.mrf.mxu0
      %v3532 = vadd.f32 0.0, %v3531
      %3533 = vdwg.mxu0
      %3534 = vmatpush.bf16.msra.mxu0 0
      %3535 = vmatpush.bf16.msra.mxu0 0
      %3536 = vmatpush.bf16.msra.mxu0 0
      %3537 = vmatpush.bf16.msra.mxu0 0
      %3538 = vmatpush.bf16.msra.mxu0 0
      %3539 = vmatpush.bf16.msra.mxu0 0
      %3540 = vmatpush.bf16.msra.mxu0 0
      %3541 = vmatpush.bf16.msra.mxu0 %v3434
      %3542 = vmatmul.bf16.gmra.mxu0 %v3428
      %v3543 = vpop.f32.mrf.mxu0
      %v3544 = vadd.f32 0.0, %v3543
      %v3545 = vpop.f32.mrf.mxu0
      %v3546 = vadd.f32 0.0, %v3545
      %3547 = vdwg.mxu0
      %v3548 = vadd.f32 %v3403, %v3446
      %v3549 = vadd.f32 %v3404, %v3460
      %v3550 = vadd.f32 %v3405, %v3474
      %v3551 = vadd.f32 %v3406, %v3488
      %v3552 = vadd.f32 %v3407, %v3502
      %v3553 = vadd.f32 %v3408, %v3516
      %v3554 = vadd.f32 %v3409, %v3530
      %v3555 = vadd.f32 %v3410, %v3544
      %v3556 = vadd.f32 %v3411, %v3448
      %v3557 = vadd.f32 %v3412, %v3462
      %v3558 = vadd.f32 %v3413, %v3476
      %v3559 = vadd.f32 %v3414, %v3490
      %v3560 = vadd.f32 %v3415, %v3504
      %v3561 = vadd.f32 %v3416, %v3518
      %v3562 = vadd.f32 %v3417, %v3532
      %v3563 = vadd.f32 %v3418, %v3546
      %s3564 = scalar_lea.vmem %s2, 152
      %v3565 = vld [vmem:[%s3564] sm:$0xf]
      %v3566 = vld [vmem:[%s3564 + $0x4] sm:$0xf]
      %v3569 = vunpack.c.l.b16 %v3565
      %v3570 = vunpack.c.l.b16 %v3566
      %v3571 = vpack.c.b16 %v3570, %v3569
      %3572 = vrot.lane.b32.xlu0 %v409, 127
      %v3573 = vpop.permute.xlu0 %3572
      %3574 = vrot.lane.b32.xlu0 %v410, 127
      %v3575 = vpop.permute.xlu0 %3574
      %v3576 = vsel %vm439, %v2222, %v3573
      %v3577 = vsel %vm439, %v3573, %v3575
      %v3579 = vsel %vm448, %v3571, 0
      %v3582 = vand.u32 %v3576, %v455
      %v3585 = vand.u32 %v3577, %v455
      %3587 = vmatpush.bf16.msra.mxu0 0
      %3588 = vmatpush.bf16.msra.mxu0 0
      %3589 = vmatpush.bf16.msra.mxu0 0
      %3590 = vmatpush.bf16.msra.mxu0 0
      %3591 = vmatpush.bf16.msra.mxu0 0
      %3592 = vmatpush.bf16.msra.mxu0 0
      %3593 = vmatpush.bf16.msra.mxu0 0
      %3594 = vmatpush.bf16.msra.mxu0 %v469
      %3595 = vmatmul.bf16.gmra.mxu0 %v3579
      %v3596 = vpop.f32.mrf.mxu0
      %v3597 = vadd.f32 0.0, %v3596
      %v3598 = vpop.f32.mrf.mxu0
      %v3599 = vadd.f32 0.0, %v3598
      %3600 = vdwg.mxu0
      %3601 = vmatpush.bf16.msra.mxu0 0
      %3602 = vmatpush.bf16.msra.mxu0 0
      %3603 = vmatpush.bf16.msra.mxu0 0
      %3604 = vmatpush.bf16.msra.mxu0 0
      %3605 = vmatpush.bf16.msra.mxu0 0
      %3606 = vmatpush.bf16.msra.mxu0 0
      %3607 = vmatpush.bf16.msra.mxu0 0
      %3608 = vmatpush.bf16.msra.mxu0 %v472
      %3609 = vmatmul.bf16.gmra.mxu0 %v3579
      %v3610 = vpop.f32.mrf.mxu0
      %v3611 = vadd.f32 0.0, %v3610
      %v3612 = vpop.f32.mrf.mxu0
      %v3613 = vadd.f32 0.0, %v3612
      %3614 = vdwg.mxu0
      %3615 = vmatpush.bf16.msra.mxu0 0
      %3616 = vmatpush.bf16.msra.mxu0 0
      %3617 = vmatpush.bf16.msra.mxu0 0
      %3618 = vmatpush.bf16.msra.mxu0 0
      %3619 = vmatpush.bf16.msra.mxu0 0
      %3620 = vmatpush.bf16.msra.mxu0 0
      %3621 = vmatpush.bf16.msra.mxu0 0
      %3622 = vmatpush.bf16.msra.mxu0 %v475
      %3623 = vmatmul.bf16.gmra.mxu0 %v3579
      %v3624 = vpop.f32.mrf.mxu0
      %v3625 = vadd.f32 0.0, %v3624
      %v3626 = vpop.f32.mrf.mxu0
      %v3627 = vadd.f32 0.0, %v3626
      %3628 = vdwg.mxu0
      %3629 = vmatpush.bf16.msra.mxu0 0
      %3630 = vmatpush.bf16.msra.mxu0 0
      %3631 = vmatpush.bf16.msra.mxu0 0
      %3632 = vmatpush.bf16.msra.mxu0 0
      %3633 = vmatpush.bf16.msra.mxu0 0
      %3634 = vmatpush.bf16.msra.mxu0 0
      %3635 = vmatpush.bf16.msra.mxu0 0
      %3636 = vmatpush.bf16.msra.mxu0 %v478
      %3637 = vmatmul.bf16.gmra.mxu0 %v3579
      %v3638 = vpop.f32.mrf.mxu0
      %v3639 = vadd.f32 0.0, %v3638
      %v3640 = vpop.f32.mrf.mxu0
      %v3641 = vadd.f32 0.0, %v3640
      %3642 = vdwg.mxu0
      %3643 = vmatpush.bf16.msra.mxu0 0
      %3644 = vmatpush.bf16.msra.mxu0 0
      %3645 = vmatpush.bf16.msra.mxu0 0
      %3646 = vmatpush.bf16.msra.mxu0 0
      %3647 = vmatpush.bf16.msra.mxu0 0
      %3648 = vmatpush.bf16.msra.mxu0 0
      %3649 = vmatpush.bf16.msra.mxu0 0
      %3650 = vmatpush.bf16.msra.mxu0 %v2229
      %3651 = vmatmul.bf16.gmra.mxu0 %v3579
      %v3652 = vpop.f32.mrf.mxu0
      %v3653 = vadd.f32 0.0, %v3652
      %v3654 = vpop.f32.mrf.mxu0
      %v3655 = vadd.f32 0.0, %v3654
      %3656 = vdwg.mxu0
      %3657 = vmatpush.bf16.msra.mxu0 0
      %3658 = vmatpush.bf16.msra.mxu0 0
      %3659 = vmatpush.bf16.msra.mxu0 0
      %3660 = vmatpush.bf16.msra.mxu0 0
      %3661 = vmatpush.bf16.msra.mxu0 0
      %3662 = vmatpush.bf16.msra.mxu0 0
      %3663 = vmatpush.bf16.msra.mxu0 0
      %3664 = vmatpush.bf16.msra.mxu0 %v2232
      %3665 = vmatmul.bf16.gmra.mxu0 %v3579
      %v3666 = vpop.f32.mrf.mxu0
      %v3667 = vadd.f32 0.0, %v3666
      %v3668 = vpop.f32.mrf.mxu0
      %v3669 = vadd.f32 0.0, %v3668
      %3670 = vdwg.mxu0
      %3671 = vmatpush.bf16.msra.mxu0 0
      %3672 = vmatpush.bf16.msra.mxu0 0
      %3673 = vmatpush.bf16.msra.mxu0 0
      %3674 = vmatpush.bf16.msra.mxu0 0
      %3675 = vmatpush.bf16.msra.mxu0 0
      %3676 = vmatpush.bf16.msra.mxu0 0
      %3677 = vmatpush.bf16.msra.mxu0 0
      %3678 = vmatpush.bf16.msra.mxu0 %v3582
      %3679 = vmatmul.bf16.gmra.mxu0 %v3579
      %v3680 = vpop.f32.mrf.mxu0
      %v3681 = vadd.f32 0.0, %v3680
      %v3682 = vpop.f32.mrf.mxu0
      %v3683 = vadd.f32 0.0, %v3682
      %3684 = vdwg.mxu0
      %3685 = vmatpush.bf16.msra.mxu0 0
      %3686 = vmatpush.bf16.msra.mxu0 0
      %3687 = vmatpush.bf16.msra.mxu0 0
      %3688 = vmatpush.bf16.msra.mxu0 0
      %3689 = vmatpush.bf16.msra.mxu0 0
      %3690 = vmatpush.bf16.msra.mxu0 0
      %3691 = vmatpush.bf16.msra.mxu0 0
      %3692 = vmatpush.bf16.msra.mxu0 %v3585
      %3693 = vmatmul.bf16.gmra.mxu0 %v3579
      %v3694 = vpop.f32.mrf.mxu0
      %v3695 = vadd.f32 0.0, %v3694
      %v3696 = vpop.f32.mrf.mxu0
      %v3697 = vadd.f32 0.0, %v3696
      %3698 = vdwg.mxu0
      %v3699 = vadd.f32 %v3548, %v3597
      %v3700 = vadd.f32 %v3549, %v3611
      %v3701 = vadd.f32 %v3550, %v3625
      %v3702 = vadd.f32 %v3551, %v3639
      %v3703 = vadd.f32 %v3552, %v3653
      %v3704 = vadd.f32 %v3553, %v3667
      %v3705 = vadd.f32 %v3554, %v3681
      %v3706 = vadd.f32 %v3555, %v3695
      %v3707 = vadd.f32 %v3556, %v3599
      %v3708 = vadd.f32 %v3557, %v3613
      %v3709 = vadd.f32 %v3558, %v3627
      %v3710 = vadd.f32 %v3559, %v3641
      %v3711 = vadd.f32 %v3560, %v3655
      %v3712 = vadd.f32 %v3561, %v3669
      %v3713 = vadd.f32 %v3562, %v3683
      %v3714 = vadd.f32 %v3563, %v3697
      %s3715 = scalar_lea.vmem %s2, 160
      %v3716 = vld [vmem:[%s3715] sm:$0xf]
      %v3717 = vld [vmem:[%s3715 + $0x4] sm:$0xf]
      %v3720 = vunpack.c.l.b16 %v3716
      %v3721 = vunpack.c.l.b16 %v3717
      %v3722 = vpack.c.b16 %v3721, %v3720
      %3723 = vrot.lane.b32.xlu0 %v409, 126
      %v3724 = vpop.permute.xlu0 %3723
      %3725 = vrot.lane.b32.xlu0 %v410, 126
      %v3726 = vpop.permute.xlu0 %3725
      %v3727 = vsel %vm762, %v2373, %v3724
      %v3728 = vsel %vm762, %v3724, %v3726
      %v3730 = vsel %vm448, %v3722, 0
      %v3733 = vand.u32 %v3727, %v455
      %v3736 = vand.u32 %v3728, %v455
      %3738 = vmatpush.bf16.msra.mxu0 0
      %3739 = vmatpush.bf16.msra.mxu0 0
      %3740 = vmatpush.bf16.msra.mxu0 0
      %3741 = vmatpush.bf16.msra.mxu0 0
      %3742 = vmatpush.bf16.msra.mxu0 0
      %3743 = vmatpush.bf16.msra.mxu0 0
      %3744 = vmatpush.bf16.msra.mxu0 0
      %3745 = vmatpush.bf16.msra.mxu0 %v787
      %3746 = vmatmul.bf16.gmra.mxu0 %v3730
      %v3747 = vpop.f32.mrf.mxu0
      %v3748 = vadd.f32 0.0, %v3747
      %v3749 = vpop.f32.mrf.mxu0
      %v3750 = vadd.f32 0.0, %v3749
      %3751 = vdwg.mxu0
      %3752 = vmatpush.bf16.msra.mxu0 0
      %3753 = vmatpush.bf16.msra.mxu0 0
      %3754 = vmatpush.bf16.msra.mxu0 0
      %3755 = vmatpush.bf16.msra.mxu0 0
      %3756 = vmatpush.bf16.msra.mxu0 0
      %3757 = vmatpush.bf16.msra.mxu0 0
      %3758 = vmatpush.bf16.msra.mxu0 0
      %3759 = vmatpush.bf16.msra.mxu0 %v790
      %3760 = vmatmul.bf16.gmra.mxu0 %v3730
      %v3761 = vpop.f32.mrf.mxu0
      %v3762 = vadd.f32 0.0, %v3761
      %v3763 = vpop.f32.mrf.mxu0
      %v3764 = vadd.f32 0.0, %v3763
      %3765 = vdwg.mxu0
      %3766 = vmatpush.bf16.msra.mxu0 0
      %3767 = vmatpush.bf16.msra.mxu0 0
      %3768 = vmatpush.bf16.msra.mxu0 0
      %3769 = vmatpush.bf16.msra.mxu0 0
      %3770 = vmatpush.bf16.msra.mxu0 0
      %3771 = vmatpush.bf16.msra.mxu0 0
      %3772 = vmatpush.bf16.msra.mxu0 0
      %3773 = vmatpush.bf16.msra.mxu0 %v793
      %3774 = vmatmul.bf16.gmra.mxu0 %v3730
      %v3775 = vpop.f32.mrf.mxu0
      %v3776 = vadd.f32 0.0, %v3775
      %v3777 = vpop.f32.mrf.mxu0
      %v3778 = vadd.f32 0.0, %v3777
      %3779 = vdwg.mxu0
      %3780 = vmatpush.bf16.msra.mxu0 0
      %3781 = vmatpush.bf16.msra.mxu0 0
      %3782 = vmatpush.bf16.msra.mxu0 0
      %3783 = vmatpush.bf16.msra.mxu0 0
      %3784 = vmatpush.bf16.msra.mxu0 0
      %3785 = vmatpush.bf16.msra.mxu0 0
      %3786 = vmatpush.bf16.msra.mxu0 0
      %3787 = vmatpush.bf16.msra.mxu0 %v796
      %3788 = vmatmul.bf16.gmra.mxu0 %v3730
      %v3789 = vpop.f32.mrf.mxu0
      %v3790 = vadd.f32 0.0, %v3789
      %v3791 = vpop.f32.mrf.mxu0
      %v3792 = vadd.f32 0.0, %v3791
      %3793 = vdwg.mxu0
      %3794 = vmatpush.bf16.msra.mxu0 0
      %3795 = vmatpush.bf16.msra.mxu0 0
      %3796 = vmatpush.bf16.msra.mxu0 0
      %3797 = vmatpush.bf16.msra.mxu0 0
      %3798 = vmatpush.bf16.msra.mxu0 0
      %3799 = vmatpush.bf16.msra.mxu0 0
      %3800 = vmatpush.bf16.msra.mxu0 0
      %3801 = vmatpush.bf16.msra.mxu0 %v2380
      %3802 = vmatmul.bf16.gmra.mxu0 %v3730
      %v3803 = vpop.f32.mrf.mxu0
      %v3804 = vadd.f32 0.0, %v3803
      %v3805 = vpop.f32.mrf.mxu0
      %v3806 = vadd.f32 0.0, %v3805
      %3807 = vdwg.mxu0
      %3808 = vmatpush.bf16.msra.mxu0 0
      %3809 = vmatpush.bf16.msra.mxu0 0
      %3810 = vmatpush.bf16.msra.mxu0 0
      %3811 = vmatpush.bf16.msra.mxu0 0
      %3812 = vmatpush.bf16.msra.mxu0 0
      %3813 = vmatpush.bf16.msra.mxu0 0
      %3814 = vmatpush.bf16.msra.mxu0 0
      %3815 = vmatpush.bf16.msra.mxu0 %v2383
      %3816 = vmatmul.bf16.gmra.mxu0 %v3730
      %v3817 = vpop.f32.mrf.mxu0
      %v3818 = vadd.f32 0.0, %v3817
      %v3819 = vpop.f32.mrf.mxu0
      %v3820 = vadd.f32 0.0, %v3819
      %3821 = vdwg.mxu0
      %3822 = vmatpush.bf16.msra.mxu0 0
      %3823 = vmatpush.bf16.msra.mxu0 0
      %3824 = vmatpush.bf16.msra.mxu0 0
      %3825 = vmatpush.bf16.msra.mxu0 0
      %3826 = vmatpush.bf16.msra.mxu0 0
      %3827 = vmatpush.bf16.msra.mxu0 0
      %3828 = vmatpush.bf16.msra.mxu0 0
      %3829 = vmatpush.bf16.msra.mxu0 %v3733
      %3830 = vmatmul.bf16.gmra.mxu0 %v3730
      %v3831 = vpop.f32.mrf.mxu0
      %v3832 = vadd.f32 0.0, %v3831
      %v3833 = vpop.f32.mrf.mxu0
      %v3834 = vadd.f32 0.0, %v3833
      %3835 = vdwg.mxu0
      %3836 = vmatpush.bf16.msra.mxu0 0
      %3837 = vmatpush.bf16.msra.mxu0 0
      %3838 = vmatpush.bf16.msra.mxu0 0
      %3839 = vmatpush.bf16.msra.mxu0 0
      %3840 = vmatpush.bf16.msra.mxu0 0
      %3841 = vmatpush.bf16.msra.mxu0 0
      %3842 = vmatpush.bf16.msra.mxu0 0
      %3843 = vmatpush.bf16.msra.mxu0 %v3736
      %3844 = vmatmul.bf16.gmra.mxu0 %v3730
      %v3845 = vpop.f32.mrf.mxu0
      %v3846 = vadd.f32 0.0, %v3845
      %v3847 = vpop.f32.mrf.mxu0
      %v3848 = vadd.f32 0.0, %v3847
      %3849 = vdwg.mxu0
      %v3850 = vadd.f32 %v3699, %v3748
      %v3851 = vadd.f32 %v3700, %v3762
      %v3852 = vadd.f32 %v3701, %v3776
      %v3853 = vadd.f32 %v3702, %v3790
      %v3854 = vadd.f32 %v3703, %v3804
      %v3855 = vadd.f32 %v3704, %v3818
      %v3856 = vadd.f32 %v3705, %v3832
      %v3857 = vadd.f32 %v3706, %v3846
      %v3858 = vadd.f32 %v3707, %v3750
      %v3859 = vadd.f32 %v3708, %v3764
      %v3860 = vadd.f32 %v3709, %v3778
      %v3861 = vadd.f32 %v3710, %v3792
      %v3862 = vadd.f32 %v3711, %v3806
      %v3863 = vadd.f32 %v3712, %v3820
      %v3864 = vadd.f32 %v3713, %v3834
      %v3865 = vadd.f32 %v3714, %v3848
      %s3866 = scalar_lea.vmem %s2, 168
      %v3867 = vld [vmem:[%s3866] sm:$0xf]
      %v3868 = vld [vmem:[%s3866 + $0x4] sm:$0xf]
      %v3871 = vunpack.c.l.b16 %v3867
      %v3872 = vunpack.c.l.b16 %v3868
      %v3873 = vpack.c.b16 %v3872, %v3871
      %3874 = vrot.lane.b32.xlu0 %v409, 112
      %v3875 = vpop.permute.xlu0 %3874
      %3876 = vrot.lane.b32.xlu0 %v410, 112
      %v3877 = vpop.permute.xlu0 %3876
      %v3878 = vsel %vm952, %v2524, %v3875
      %v3879 = vsel %vm952, %v3875, %v3877
      %v3881 = vsel %vm448, %v3873, 0
      %v3884 = vand.u32 %v3878, %v455
      %v3887 = vand.u32 %v3879, %v455
      %3889 = vmatpush.bf16.msra.mxu0 0
      %3890 = vmatpush.bf16.msra.mxu0 0
      %3891 = vmatpush.bf16.msra.mxu0 0
      %3892 = vmatpush.bf16.msra.mxu0 0
      %3893 = vmatpush.bf16.msra.mxu0 0
      %3894 = vmatpush.bf16.msra.mxu0 0
      %3895 = vmatpush.bf16.msra.mxu0 0
      %3896 = vmatpush.bf16.msra.mxu0 %v977
      %3897 = vmatmul.bf16.gmra.mxu0 %v3881
      %v3898 = vpop.f32.mrf.mxu0
      %v3899 = vadd.f32 0.0, %v3898
      %v3900 = vpop.f32.mrf.mxu0
      %v3901 = vadd.f32 0.0, %v3900
      %3902 = vdwg.mxu0
      %3903 = vmatpush.bf16.msra.mxu0 0
      %3904 = vmatpush.bf16.msra.mxu0 0
      %3905 = vmatpush.bf16.msra.mxu0 0
      %3906 = vmatpush.bf16.msra.mxu0 0
      %3907 = vmatpush.bf16.msra.mxu0 0
      %3908 = vmatpush.bf16.msra.mxu0 0
      %3909 = vmatpush.bf16.msra.mxu0 0
      %3910 = vmatpush.bf16.msra.mxu0 %v980
      %3911 = vmatmul.bf16.gmra.mxu0 %v3881
      %v3912 = vpop.f32.mrf.mxu0
      %v3913 = vadd.f32 0.0, %v3912
      %v3914 = vpop.f32.mrf.mxu0
      %v3915 = vadd.f32 0.0, %v3914
      %3916 = vdwg.mxu0
      %3917 = vmatpush.bf16.msra.mxu0 0
      %3918 = vmatpush.bf16.msra.mxu0 0
      %3919 = vmatpush.bf16.msra.mxu0 0
      %3920 = vmatpush.bf16.msra.mxu0 0
      %3921 = vmatpush.bf16.msra.mxu0 0
      %3922 = vmatpush.bf16.msra.mxu0 0
      %3923 = vmatpush.bf16.msra.mxu0 0
      %3924 = vmatpush.bf16.msra.mxu0 %v983
      %3925 = vmatmul.bf16.gmra.mxu0 %v3881
      %v3926 = vpop.f32.mrf.mxu0
      %v3927 = vadd.f32 0.0, %v3926
      %v3928 = vpop.f32.mrf.mxu0
      %v3929 = vadd.f32 0.0, %v3928
      %3930 = vdwg.mxu0
      %3931 = vmatpush.bf16.msra.mxu0 0
      %3932 = vmatpush.bf16.msra.mxu0 0
      %3933 = vmatpush.bf16.msra.mxu0 0
      %3934 = vmatpush.bf16.msra.mxu0 0
      %3935 = vmatpush.bf16.msra.mxu0 0
      %3936 = vmatpush.bf16.msra.mxu0 0
      %3937 = vmatpush.bf16.msra.mxu0 0
      %3938 = vmatpush.bf16.msra.mxu0 %v986
      %3939 = vmatmul.bf16.gmra.mxu0 %v3881
      %v3940 = vpop.f32.mrf.mxu0
      %v3941 = vadd.f32 0.0, %v3940
      %v3942 = vpop.f32.mrf.mxu0
      %v3943 = vadd.f32 0.0, %v3942
      %3944 = vdwg.mxu0
      %3945 = vmatpush.bf16.msra.mxu0 0
      %3946 = vmatpush.bf16.msra.mxu0 0
      %3947 = vmatpush.bf16.msra.mxu0 0
      %3948 = vmatpush.bf16.msra.mxu0 0
      %3949 = vmatpush.bf16.msra.mxu0 0
      %3950 = vmatpush.bf16.msra.mxu0 0
      %3951 = vmatpush.bf16.msra.mxu0 0
      %3952 = vmatpush.bf16.msra.mxu0 %v2531
      %3953 = vmatmul.bf16.gmra.mxu0 %v3881
      %v3954 = vpop.f32.mrf.mxu0
      %v3955 = vadd.f32 0.0, %v3954
      %v3956 = vpop.f32.mrf.mxu0
      %v3957 = vadd.f32 0.0, %v3956
      %3958 = vdwg.mxu0
      %3959 = vmatpush.bf16.msra.mxu0 0
      %3960 = vmatpush.bf16.msra.mxu0 0
      %3961 = vmatpush.bf16.msra.mxu0 0
      %3962 = vmatpush.bf16.msra.mxu0 0
      %3963 = vmatpush.bf16.msra.mxu0 0
      %3964 = vmatpush.bf16.msra.mxu0 0
      %3965 = vmatpush.bf16.msra.mxu0 0
      %3966 = vmatpush.bf16.msra.mxu0 %v2534
      %3967 = vmatmul.bf16.gmra.mxu0 %v3881
      %v3968 = vpop.f32.mrf.mxu0
      %v3969 = vadd.f32 0.0, %v3968
      %v3970 = vpop.f32.mrf.mxu0
      %v3971 = vadd.f32 0.0, %v3970
      %3972 = vdwg.mxu0
      %3973 = vmatpush.bf16.msra.mxu0 0
      %3974 = vmatpush.bf16.msra.mxu0 0
      %3975 = vmatpush.bf16.msra.mxu0 0
      %3976 = vmatpush.bf16.msra.mxu0 0
      %3977 = vmatpush.bf16.msra.mxu0 0
      %3978 = vmatpush.bf16.msra.mxu0 0
      %3979 = vmatpush.bf16.msra.mxu0 0
      %3980 = vmatpush.bf16.msra.mxu0 %v3884
      %3981 = vmatmul.bf16.gmra.mxu0 %v3881
      %v3982 = vpop.f32.mrf.mxu0
      %v3983 = vadd.f32 0.0, %v3982
      %v3984 = vpop.f32.mrf.mxu0
      %v3985 = vadd.f32 0.0, %v3984
      %3986 = vdwg.mxu0
      %3987 = vmatpush.bf16.msra.mxu0 0
      %3988 = vmatpush.bf16.msra.mxu0 0
      %3989 = vmatpush.bf16.msra.mxu0 0
      %3990 = vmatpush.bf16.msra.mxu0 0
      %3991 = vmatpush.bf16.msra.mxu0 0
      %3992 = vmatpush.bf16.msra.mxu0 0
      %3993 = vmatpush.bf16.msra.mxu0 0
      %3994 = vmatpush.bf16.msra.mxu0 %v3887
      %3995 = vmatmul.bf16.gmra.mxu0 %v3881
      %v3996 = vpop.f32.mrf.mxu0
      %v3997 = vadd.f32 0.0, %v3996
      %v3998 = vpop.f32.mrf.mxu0
      %v3999 = vadd.f32 0.0, %v3998
      %4000 = vdwg.mxu0
      %v4001 = vadd.f32 %v3850, %v3899
      %v4002 = vadd.f32 %v3851, %v3913
      %v4003 = vadd.f32 %v3852, %v3927
      %v4004 = vadd.f32 %v3853, %v3941
      %v4005 = vadd.f32 %v3854, %v3955
      %v4006 = vadd.f32 %v3855, %v3969
      %v4007 = vadd.f32 %v3856, %v3983
      %v4008 = vadd.f32 %v3857, %v3997
      %v4009 = vadd.f32 %v3858, %v3901
      %v4010 = vadd.f32 %v3859, %v3915
      %v4011 = vadd.f32 %v3860, %v3929
      %v4012 = vadd.f32 %v3861, %v3943
      %v4013 = vadd.f32 %v3862, %v3957
      %v4014 = vadd.f32 %v3863, %v3971
      %v4015 = vadd.f32 %v3864, %v3985
      %v4016 = vadd.f32 %v3865, %v3999
      %s4017 = scalar_lea.vmem %s2, 176
      %v4018 = vld [vmem:[%s4017] sm:$0xf]
      %v4019 = vld [vmem:[%s4017 + $0x4] sm:$0xf]
      %v4022 = vunpack.c.l.b16 %v4018
      %v4023 = vunpack.c.l.b16 %v4019
      %v4024 = vpack.c.b16 %v4023, %v4022
      %4025 = vrot.lane.b32.xlu0 %v409, 111
      %v4026 = vpop.permute.xlu0 %4025
      %4027 = vrot.lane.b32.xlu0 %v410, 111
      %v4028 = vpop.permute.xlu0 %4027
      %v4029 = vsel %vm1142, %v2675, %v4026
      %v4030 = vsel %vm1142, %v4026, %v4028
      %v4032 = vsel %vm448, %v4024, 0
      %v4035 = vand.u32 %v4029, %v455
      %v4038 = vand.u32 %v4030, %v455
      %4040 = vmatpush.bf16.msra.mxu0 0
      %4041 = vmatpush.bf16.msra.mxu0 0
      %4042 = vmatpush.bf16.msra.mxu0 0
      %4043 = vmatpush.bf16.msra.mxu0 0
      %4044 = vmatpush.bf16.msra.mxu0 0
      %4045 = vmatpush.bf16.msra.mxu0 0
      %4046 = vmatpush.bf16.msra.mxu0 0
      %4047 = vmatpush.bf16.msra.mxu0 %v1167
      %4048 = vmatmul.bf16.gmra.mxu0 %v4032
      %v4049 = vpop.f32.mrf.mxu0
      %v4050 = vadd.f32 0.0, %v4049
      %v4051 = vpop.f32.mrf.mxu0
      %v4052 = vadd.f32 0.0, %v4051
      %4053 = vdwg.mxu0
      %4054 = vmatpush.bf16.msra.mxu0 0
      %4055 = vmatpush.bf16.msra.mxu0 0
      %4056 = vmatpush.bf16.msra.mxu0 0
      %4057 = vmatpush.bf16.msra.mxu0 0
      %4058 = vmatpush.bf16.msra.mxu0 0
      %4059 = vmatpush.bf16.msra.mxu0 0
      %4060 = vmatpush.bf16.msra.mxu0 0
      %4061 = vmatpush.bf16.msra.mxu0 %v1170
      %4062 = vmatmul.bf16.gmra.mxu0 %v4032
      %v4063 = vpop.f32.mrf.mxu0
      %v4064 = vadd.f32 0.0, %v4063
      %v4065 = vpop.f32.mrf.mxu0
      %v4066 = vadd.f32 0.0, %v4065
      %4067 = vdwg.mxu0
      %4068 = vmatpush.bf16.msra.mxu0 0
      %4069 = vmatpush.bf16.msra.mxu0 0
      %4070 = vmatpush.bf16.msra.mxu0 0
      %4071 = vmatpush.bf16.msra.mxu0 0
      %4072 = vmatpush.bf16.msra.mxu0 0
      %4073 = vmatpush.bf16.msra.mxu0 0
      %4074 = vmatpush.bf16.msra.mxu0 0
      %4075 = vmatpush.bf16.msra.mxu0 %v1173
      %4076 = vmatmul.bf16.gmra.mxu0 %v4032
      %v4077 = vpop.f32.mrf.mxu0
      %v4078 = vadd.f32 0.0, %v4077
      %v4079 = vpop.f32.mrf.mxu0
      %v4080 = vadd.f32 0.0, %v4079
      %4081 = vdwg.mxu0
      %4082 = vmatpush.bf16.msra.mxu0 0
      %4083 = vmatpush.bf16.msra.mxu0 0
      %4084 = vmatpush.bf16.msra.mxu0 0
      %4085 = vmatpush.bf16.msra.mxu0 0
      %4086 = vmatpush.bf16.msra.mxu0 0
      %4087 = vmatpush.bf16.msra.mxu0 0
      %4088 = vmatpush.bf16.msra.mxu0 0
      %4089 = vmatpush.bf16.msra.mxu0 %v1176
      %4090 = vmatmul.bf16.gmra.mxu0 %v4032
      %v4091 = vpop.f32.mrf.mxu0
      %v4092 = vadd.f32 0.0, %v4091
      %v4093 = vpop.f32.mrf.mxu0
      %v4094 = vadd.f32 0.0, %v4093
      %4095 = vdwg.mxu0
      %4096 = vmatpush.bf16.msra.mxu0 0
      %4097 = vmatpush.bf16.msra.mxu0 0
      %4098 = vmatpush.bf16.msra.mxu0 0
      %4099 = vmatpush.bf16.msra.mxu0 0
      %4100 = vmatpush.bf16.msra.mxu0 0
      %4101 = vmatpush.bf16.msra.mxu0 0
      %4102 = vmatpush.bf16.msra.mxu0 0
      %4103 = vmatpush.bf16.msra.mxu0 %v2682
      %4104 = vmatmul.bf16.gmra.mxu0 %v4032
      %v4105 = vpop.f32.mrf.mxu0
      %v4106 = vadd.f32 0.0, %v4105
      %v4107 = vpop.f32.mrf.mxu0
      %v4108 = vadd.f32 0.0, %v4107
      %4109 = vdwg.mxu0
      %4110 = vmatpush.bf16.msra.mxu0 0
      %4111 = vmatpush.bf16.msra.mxu0 0
      %4112 = vmatpush.bf16.msra.mxu0 0
      %4113 = vmatpush.bf16.msra.mxu0 0
      %4114 = vmatpush.bf16.msra.mxu0 0
      %4115 = vmatpush.bf16.msra.mxu0 0
      %4116 = vmatpush.bf16.msra.mxu0 0
      %4117 = vmatpush.bf16.msra.mxu0 %v2685
      %4118 = vmatmul.bf16.gmra.mxu0 %v4032
      %v4119 = vpop.f32.mrf.mxu0
      %v4120 = vadd.f32 0.0, %v4119
      %v4121 = vpop.f32.mrf.mxu0
      %v4122 = vadd.f32 0.0, %v4121
      %4123 = vdwg.mxu0
      %4124 = vmatpush.bf16.msra.mxu0 0
      %4125 = vmatpush.bf16.msra.mxu0 0
      %4126 = vmatpush.bf16.msra.mxu0 0
      %4127 = vmatpush.bf16.msra.mxu0 0
      %4128 = vmatpush.bf16.msra.mxu0 0
      %4129 = vmatpush.bf16.msra.mxu0 0
      %4130 = vmatpush.bf16.msra.mxu0 0
      %4131 = vmatpush.bf16.msra.mxu0 %v4035
      %4132 = vmatmul.bf16.gmra.mxu0 %v4032
      %v4133 = vpop.f32.mrf.mxu0
      %v4134 = vadd.f32 0.0, %v4133
      %v4135 = vpop.f32.mrf.mxu0
      %v4136 = vadd.f32 0.0, %v4135
      %4137 = vdwg.mxu0
      %4138 = vmatpush.bf16.msra.mxu0 0
      %4139 = vmatpush.bf16.msra.mxu0 0
      %4140 = vmatpush.bf16.msra.mxu0 0
      %4141 = vmatpush.bf16.msra.mxu0 0
      %4142 = vmatpush.bf16.msra.mxu0 0
      %4143 = vmatpush.bf16.msra.mxu0 0
      %4144 = vmatpush.bf16.msra.mxu0 0
      %4145 = vmatpush.bf16.msra.mxu0 %v4038
      %4146 = vmatmul.bf16.gmra.mxu0 %v4032
      %v4147 = vpop.f32.mrf.mxu0
      %v4148 = vadd.f32 0.0, %v4147
      %v4149 = vpop.f32.mrf.mxu0
      %v4150 = vadd.f32 0.0, %v4149
      %4151 = vdwg.mxu0
      %v4152 = vadd.f32 %v4001, %v4050
      %v4153 = vadd.f32 %v4002, %v4064
      %v4154 = vadd.f32 %v4003, %v4078
      %v4155 = vadd.f32 %v4004, %v4092
      %v4156 = vadd.f32 %v4005, %v4106
      %v4157 = vadd.f32 %v4006, %v4120
      %v4158 = vadd.f32 %v4007, %v4134
      %v4159 = vadd.f32 %v4008, %v4148
      %v4160 = vadd.f32 %v4009, %v4052
      %v4161 = vadd.f32 %v4010, %v4066
      %v4162 = vadd.f32 %v4011, %v4080
      %v4163 = vadd.f32 %v4012, %v4094
      %v4164 = vadd.f32 %v4013, %v4108
      %v4165 = vadd.f32 %v4014, %v4122
      %v4166 = vadd.f32 %v4015, %v4136
      %v4167 = vadd.f32 %v4016, %v4150
      %s4168 = scalar_lea.vmem %s2, 184
      %v4169 = vld [vmem:[%s4168] sm:$0xf]
      %v4170 = vld [vmem:[%s4168 + $0x4] sm:$0xf]
      %v4173 = vunpack.c.l.b16 %v4169
      %v4174 = vunpack.c.l.b16 %v4170
      %v4175 = vpack.c.b16 %v4174, %v4173
      %4176 = vrot.lane.b32.xlu0 %v409, 110
      %v4177 = vpop.permute.xlu0 %4176
      %4178 = vrot.lane.b32.xlu0 %v410, 110
      %v4179 = vpop.permute.xlu0 %4178
      %v4180 = vsel %vm1332, %v2826, %v4177
      %v4181 = vsel %vm1332, %v4177, %v4179
      %v4183 = vsel %vm448, %v4175, 0
      %v4186 = vand.u32 %v4180, %v455
      %v4189 = vand.u32 %v4181, %v455
      %4191 = vmatpush.bf16.msra.mxu0 0
      %4192 = vmatpush.bf16.msra.mxu0 0
      %4193 = vmatpush.bf16.msra.mxu0 0
      %4194 = vmatpush.bf16.msra.mxu0 0
      %4195 = vmatpush.bf16.msra.mxu0 0
      %4196 = vmatpush.bf16.msra.mxu0 0
      %4197 = vmatpush.bf16.msra.mxu0 0
      %4198 = vmatpush.bf16.msra.mxu0 %v1357
      %4199 = vmatmul.bf16.gmra.mxu0 %v4183
      %v4200 = vpop.f32.mrf.mxu0
      %v4201 = vadd.f32 0.0, %v4200
      %v4202 = vpop.f32.mrf.mxu0
      %v4203 = vadd.f32 0.0, %v4202
      %4204 = vdwg.mxu0
      %4205 = vmatpush.bf16.msra.mxu0 0
      %4206 = vmatpush.bf16.msra.mxu0 0
      %4207 = vmatpush.bf16.msra.mxu0 0
      %4208 = vmatpush.bf16.msra.mxu0 0
      %4209 = vmatpush.bf16.msra.mxu0 0
      %4210 = vmatpush.bf16.msra.mxu0 0
      %4211 = vmatpush.bf16.msra.mxu0 0
      %4212 = vmatpush.bf16.msra.mxu0 %v1360
      %4213 = vmatmul.bf16.gmra.mxu0 %v4183
      %v4214 = vpop.f32.mrf.mxu0
      %v4215 = vadd.f32 0.0, %v4214
      %v4216 = vpop.f32.mrf.mxu0
      %v4217 = vadd.f32 0.0, %v4216
      %4218 = vdwg.mxu0
      %4219 = vmatpush.bf16.msra.mxu0 0
      %4220 = vmatpush.bf16.msra.mxu0 0
      %4221 = vmatpush.bf16.msra.mxu0 0
      %4222 = vmatpush.bf16.msra.mxu0 0
      %4223 = vmatpush.bf16.msra.mxu0 0
      %4224 = vmatpush.bf16.msra.mxu0 0
      %4225 = vmatpush.bf16.msra.mxu0 0
      %4226 = vmatpush.bf16.msra.mxu0 %v1363
      %4227 = vmatmul.bf16.gmra.mxu0 %v4183
      %v4228 = vpop.f32.mrf.mxu0
      %v4229 = vadd.f32 0.0, %v4228
      %v4230 = vpop.f32.mrf.mxu0
      %v4231 = vadd.f32 0.0, %v4230
      %4232 = vdwg.mxu0
      %4233 = vmatpush.bf16.msra.mxu0 0
      %4234 = vmatpush.bf16.msra.mxu0 0
      %4235 = vmatpush.bf16.msra.mxu0 0
      %4236 = vmatpush.bf16.msra.mxu0 0
      %4237 = vmatpush.bf16.msra.mxu0 0
      %4238 = vmatpush.bf16.msra.mxu0 0
      %4239 = vmatpush.bf16.msra.mxu0 0
      %4240 = vmatpush.bf16.msra.mxu0 %v1366
      %4241 = vmatmul.bf16.gmra.mxu0 %v4183
      %v4242 = vpop.f32.mrf.mxu0
      %v4243 = vadd.f32 0.0, %v4242
      %v4244 = vpop.f32.mrf.mxu0
      %v4245 = vadd.f32 0.0, %v4244
      %4246 = vdwg.mxu0
      %4247 = vmatpush.bf16.msra.mxu0 0
      %4248 = vmatpush.bf16.msra.mxu0 0
      %4249 = vmatpush.bf16.msra.mxu0 0
      %4250 = vmatpush.bf16.msra.mxu0 0
      %4251 = vmatpush.bf16.msra.mxu0 0
      %4252 = vmatpush.bf16.msra.mxu0 0
      %4253 = vmatpush.bf16.msra.mxu0 0
      %4254 = vmatpush.bf16.msra.mxu0 %v2833
      %4255 = vmatmul.bf16.gmra.mxu0 %v4183
      %v4256 = vpop.f32.mrf.mxu0
      %v4257 = vadd.f32 0.0, %v4256
      %v4258 = vpop.f32.mrf.mxu0
      %v4259 = vadd.f32 0.0, %v4258
      %4260 = vdwg.mxu0
      %4261 = vmatpush.bf16.msra.mxu0 0
      %4262 = vmatpush.bf16.msra.mxu0 0
      %4263 = vmatpush.bf16.msra.mxu0 0
      %4264 = vmatpush.bf16.msra.mxu0 0
      %4265 = vmatpush.bf16.msra.mxu0 0
      %4266 = vmatpush.bf16.msra.mxu0 0
      %4267 = vmatpush.bf16.msra.mxu0 0
      %4268 = vmatpush.bf16.msra.mxu0 %v2836
      %4269 = vmatmul.bf16.gmra.mxu0 %v4183
      %v4270 = vpop.f32.mrf.mxu0
      %v4271 = vadd.f32 0.0, %v4270
      %v4272 = vpop.f32.mrf.mxu0
      %v4273 = vadd.f32 0.0, %v4272
      %4274 = vdwg.mxu0
      %4275 = vmatpush.bf16.msra.mxu0 0
      %4276 = vmatpush.bf16.msra.mxu0 0
      %4277 = vmatpush.bf16.msra.mxu0 0
      %4278 = vmatpush.bf16.msra.mxu0 0
      %4279 = vmatpush.bf16.msra.mxu0 0
      %4280 = vmatpush.bf16.msra.mxu0 0
      %4281 = vmatpush.bf16.msra.mxu0 0
      %4282 = vmatpush.bf16.msra.mxu0 %v4186
      %4283 = vmatmul.bf16.gmra.mxu0 %v4183
      %v4284 = vpop.f32.mrf.mxu0
      %v4285 = vadd.f32 0.0, %v4284
      %v4286 = vpop.f32.mrf.mxu0
      %v4287 = vadd.f32 0.0, %v4286
      %4288 = vdwg.mxu0
      %4289 = vmatpush.bf16.msra.mxu0 0
      %4290 = vmatpush.bf16.msra.mxu0 0
      %4291 = vmatpush.bf16.msra.mxu0 0
      %4292 = vmatpush.bf16.msra.mxu0 0
      %4293 = vmatpush.bf16.msra.mxu0 0
      %4294 = vmatpush.bf16.msra.mxu0 0
      %4295 = vmatpush.bf16.msra.mxu0 0
      %4296 = vmatpush.bf16.msra.mxu0 %v4189
      %4297 = vmatmul.bf16.gmra.mxu0 %v4183
      %v4298 = vpop.f32.mrf.mxu0
      %v4299 = vadd.f32 0.0, %v4298
      %v4300 = vpop.f32.mrf.mxu0
      %v4301 = vadd.f32 0.0, %v4300
      %4302 = vdwg.mxu0
      %v4303 = vadd.f32 %v4152, %v4201
      %v4304 = vadd.f32 %v4153, %v4215
      %v4305 = vadd.f32 %v4154, %v4229
      %v4306 = vadd.f32 %v4155, %v4243
      %v4307 = vadd.f32 %v4156, %v4257
      %v4308 = vadd.f32 %v4157, %v4271
      %v4309 = vadd.f32 %v4158, %v4285
      %v4310 = vadd.f32 %v4159, %v4299
      %v4311 = vadd.f32 %v4160, %v4203
      %v4312 = vadd.f32 %v4161, %v4217
      %v4313 = vadd.f32 %v4162, %v4231
      %v4314 = vadd.f32 %v4163, %v4245
      %v4315 = vadd.f32 %v4164, %v4259
      %v4316 = vadd.f32 %v4165, %v4273
      %v4317 = vadd.f32 %v4166, %v4287
      %v4318 = vadd.f32 %v4167, %v4301
      %s4319 = scalar_lea.vmem %s2, 192
      %v4320 = vld [vmem:[%s4319] sm:$0xf]
      %v4321 = vld [vmem:[%s4319 + $0x4] sm:$0xf]
      %v4324 = vunpack.c.l.b16 %v4320
      %v4325 = vunpack.c.l.b16 %v4321
      %v4326 = vpack.c.b16 %v4325, %v4324
      %4327 = vrot.lane.b32.xlu0 %v409, 96
      %v4328 = vpop.permute.xlu0 %4327
      %4329 = vrot.lane.b32.xlu0 %v410, 96
      %v4330 = vpop.permute.xlu0 %4329
      %v4331 = vsel %vm1522, %v2977, %v4328
      %v4332 = vsel %vm1522, %v4328, %v4330
      %v4334 = vsel %vm448, %v4326, 0
      %v4337 = vand.u32 %v4331, %v455
      %v4340 = vand.u32 %v4332, %v455
      %4342 = vmatpush.bf16.msra.mxu0 0
      %4343 = vmatpush.bf16.msra.mxu0 0
      %4344 = vmatpush.bf16.msra.mxu0 0
      %4345 = vmatpush.bf16.msra.mxu0 0
      %4346 = vmatpush.bf16.msra.mxu0 0
      %4347 = vmatpush.bf16.msra.mxu0 0
      %4348 = vmatpush.bf16.msra.mxu0 0
      %4349 = vmatpush.bf16.msra.mxu0 %v1547
      %4350 = vmatmul.bf16.gmra.mxu0 %v4334
      %v4351 = vpop.f32.mrf.mxu0
      %v4352 = vadd.f32 0.0, %v4351
      %v4353 = vpop.f32.mrf.mxu0
      %v4354 = vadd.f32 0.0, %v4353
      %4355 = vdwg.mxu0
      %4356 = vmatpush.bf16.msra.mxu0 0
      %4357 = vmatpush.bf16.msra.mxu0 0
      %4358 = vmatpush.bf16.msra.mxu0 0
      %4359 = vmatpush.bf16.msra.mxu0 0
      %4360 = vmatpush.bf16.msra.mxu0 0
      %4361 = vmatpush.bf16.msra.mxu0 0
      %4362 = vmatpush.bf16.msra.mxu0 0
      %4363 = vmatpush.bf16.msra.mxu0 %v1550
      %4364 = vmatmul.bf16.gmra.mxu0 %v4334
      %v4365 = vpop.f32.mrf.mxu0
      %v4366 = vadd.f32 0.0, %v4365
      %v4367 = vpop.f32.mrf.mxu0
      %v4368 = vadd.f32 0.0, %v4367
      %4369 = vdwg.mxu0
      %4370 = vmatpush.bf16.msra.mxu0 0
      %4371 = vmatpush.bf16.msra.mxu0 0
      %4372 = vmatpush.bf16.msra.mxu0 0
      %4373 = vmatpush.bf16.msra.mxu0 0
      %4374 = vmatpush.bf16.msra.mxu0 0
      %4375 = vmatpush.bf16.msra.mxu0 0
      %4376 = vmatpush.bf16.msra.mxu0 0
      %4377 = vmatpush.bf16.msra.mxu0 %v1553
      %4378 = vmatmul.bf16.gmra.mxu0 %v4334
      %v4379 = vpop.f32.mrf.mxu0
      %v4380 = vadd.f32 0.0, %v4379
      %v4381 = vpop.f32.mrf.mxu0
      %v4382 = vadd.f32 0.0, %v4381
      %4383 = vdwg.mxu0
      %4384 = vmatpush.bf16.msra.mxu0 0
      %4385 = vmatpush.bf16.msra.mxu0 0
      %4386 = vmatpush.bf16.msra.mxu0 0
      %4387 = vmatpush.bf16.msra.mxu0 0
      %4388 = vmatpush.bf16.msra.mxu0 0
      %4389 = vmatpush.bf16.msra.mxu0 0
      %4390 = vmatpush.bf16.msra.mxu0 0
      %4391 = vmatpush.bf16.msra.mxu0 %v1556
      %4392 = vmatmul.bf16.gmra.mxu0 %v4334
      %v4393 = vpop.f32.mrf.mxu0
      %v4394 = vadd.f32 0.0, %v4393
      %v4395 = vpop.f32.mrf.mxu0
      %v4396 = vadd.f32 0.0, %v4395
      %4397 = vdwg.mxu0
      %4398 = vmatpush.bf16.msra.mxu0 0
      %4399 = vmatpush.bf16.msra.mxu0 0
      %4400 = vmatpush.bf16.msra.mxu0 0
      %4401 = vmatpush.bf16.msra.mxu0 0
      %4402 = vmatpush.bf16.msra.mxu0 0
      %4403 = vmatpush.bf16.msra.mxu0 0
      %4404 = vmatpush.bf16.msra.mxu0 0
      %4405 = vmatpush.bf16.msra.mxu0 %v2984
      %4406 = vmatmul.bf16.gmra.mxu0 %v4334
      %v4407 = vpop.f32.mrf.mxu0
      %v4408 = vadd.f32 0.0, %v4407
      %v4409 = vpop.f32.mrf.mxu0
      %v4410 = vadd.f32 0.0, %v4409
      %4411 = vdwg.mxu0
      %4412 = vmatpush.bf16.msra.mxu0 0
      %4413 = vmatpush.bf16.msra.mxu0 0
      %4414 = vmatpush.bf16.msra.mxu0 0
      %4415 = vmatpush.bf16.msra.mxu0 0
      %4416 = vmatpush.bf16.msra.mxu0 0
      %4417 = vmatpush.bf16.msra.mxu0 0
      %4418 = vmatpush.bf16.msra.mxu0 0
      %4419 = vmatpush.bf16.msra.mxu0 %v2987
      %4420 = vmatmul.bf16.gmra.mxu0 %v4334
      %v4421 = vpop.f32.mrf.mxu0
      %v4422 = vadd.f32 0.0, %v4421
      %v4423 = vpop.f32.mrf.mxu0
      %v4424 = vadd.f32 0.0, %v4423
      %4425 = vdwg.mxu0
      %4426 = vmatpush.bf16.msra.mxu0 0
      %4427 = vmatpush.bf16.msra.mxu0 0
      %4428 = vmatpush.bf16.msra.mxu0 0
      %4429 = vmatpush.bf16.msra.mxu0 0
      %4430 = vmatpush.bf16.msra.mxu0 0
      %4431 = vmatpush.bf16.msra.mxu0 0
      %4432 = vmatpush.bf16.msra.mxu0 0
      %4433 = vmatpush.bf16.msra.mxu0 %v4337
      %4434 = vmatmul.bf16.gmra.mxu0 %v4334
      %v4435 = vpop.f32.mrf.mxu0
      %v4436 = vadd.f32 0.0, %v4435
      %v4437 = vpop.f32.mrf.mxu0
      %v4438 = vadd.f32 0.0, %v4437
      %4439 = vdwg.mxu0
      %4440 = vmatpush.bf16.msra.mxu0 0
      %4441 = vmatpush.bf16.msra.mxu0 0
      %4442 = vmatpush.bf16.msra.mxu0 0
      %4443 = vmatpush.bf16.msra.mxu0 0
      %4444 = vmatpush.bf16.msra.mxu0 0
      %4445 = vmatpush.bf16.msra.mxu0 0
      %4446 = vmatpush.bf16.msra.mxu0 0
      %4447 = vmatpush.bf16.msra.mxu0 %v4340
      %4448 = vmatmul.bf16.gmra.mxu0 %v4334
      %v4449 = vpop.f32.mrf.mxu0
      %v4450 = vadd.f32 0.0, %v4449
      %v4451 = vpop.f32.mrf.mxu0
      %v4452 = vadd.f32 0.0, %v4451
      %4453 = vdwg.mxu0
      %v4454 = vadd.f32 %v4303, %v4352
      %v4455 = vadd.f32 %v4304, %v4366
      %v4456 = vadd.f32 %v4305, %v4380
      %v4457 = vadd.f32 %v4306, %v4394
      %v4458 = vadd.f32 %v4307, %v4408
      %v4459 = vadd.f32 %v4308, %v4422
      %v4460 = vadd.f32 %v4309, %v4436
      %v4461 = vadd.f32 %v4310, %v4450
      %v4462 = vadd.f32 %v4311, %v4354
      %v4463 = vadd.f32 %v4312, %v4368
      %v4464 = vadd.f32 %v4313, %v4382
      %v4465 = vadd.f32 %v4314, %v4396
      %v4466 = vadd.f32 %v4315, %v4410
      %v4467 = vadd.f32 %v4316, %v4424
      %v4468 = vadd.f32 %v4317, %v4438
      %v4469 = vadd.f32 %v4318, %v4452
      %s4470 = scalar_lea.vmem %s2, 200
      %v4471 = vld [vmem:[%s4470] sm:$0xf]
      %v4472 = vld [vmem:[%s4470 + $0x4] sm:$0xf]
      %v4475 = vunpack.c.l.b16 %v4471
      %v4476 = vunpack.c.l.b16 %v4472
      %v4477 = vpack.c.b16 %v4476, %v4475
      %4478 = vrot.lane.b32.xlu0 %v409, 95
      %v4479 = vpop.permute.xlu0 %4478
      %4480 = vrot.lane.b32.xlu0 %v410, 95
      %v4481 = vpop.permute.xlu0 %4480
      %v4482 = vsel %vm1712, %v3128, %v4479
      %v4483 = vsel %vm1712, %v4479, %v4481
      %v4485 = vsel %vm448, %v4477, 0
      %v4488 = vand.u32 %v4482, %v455
      %v4491 = vand.u32 %v4483, %v455
      %4493 = vmatpush.bf16.msra.mxu0 0
      %4494 = vmatpush.bf16.msra.mxu0 0
      %4495 = vmatpush.bf16.msra.mxu0 0
      %4496 = vmatpush.bf16.msra.mxu0 0
      %4497 = vmatpush.bf16.msra.mxu0 0
      %4498 = vmatpush.bf16.msra.mxu0 0
      %4499 = vmatpush.bf16.msra.mxu0 0
      %4500 = vmatpush.bf16.msra.mxu0 %v1737
      %4501 = vmatmul.bf16.gmra.mxu0 %v4485
      %v4502 = vpop.f32.mrf.mxu0
      %v4503 = vadd.f32 0.0, %v4502
      %v4504 = vpop.f32.mrf.mxu0
      %v4505 = vadd.f32 0.0, %v4504
      %4506 = vdwg.mxu0
      %4507 = vmatpush.bf16.msra.mxu0 0
      %4508 = vmatpush.bf16.msra.mxu0 0
      %4509 = vmatpush.bf16.msra.mxu0 0
      %4510 = vmatpush.bf16.msra.mxu0 0
      %4511 = vmatpush.bf16.msra.mxu0 0
      %4512 = vmatpush.bf16.msra.mxu0 0
      %4513 = vmatpush.bf16.msra.mxu0 0
      %4514 = vmatpush.bf16.msra.mxu0 %v1740
      %4515 = vmatmul.bf16.gmra.mxu0 %v4485
      %v4516 = vpop.f32.mrf.mxu0
      %v4517 = vadd.f32 0.0, %v4516
      %v4518 = vpop.f32.mrf.mxu0
      %v4519 = vadd.f32 0.0, %v4518
      %4520 = vdwg.mxu0
      %4521 = vmatpush.bf16.msra.mxu0 0
      %4522 = vmatpush.bf16.msra.mxu0 0
      %4523 = vmatpush.bf16.msra.mxu0 0
      %4524 = vmatpush.bf16.msra.mxu0 0
      %4525 = vmatpush.bf16.msra.mxu0 0
      %4526 = vmatpush.bf16.msra.mxu0 0
      %4527 = vmatpush.bf16.msra.mxu0 0
      %4528 = vmatpush.bf16.msra.mxu0 %v1743
      %4529 = vmatmul.bf16.gmra.mxu0 %v4485
      %v4530 = vpop.f32.mrf.mxu0
      %v4531 = vadd.f32 0.0, %v4530
      %v4532 = vpop.f32.mrf.mxu0
      %v4533 = vadd.f32 0.0, %v4532
      %4534 = vdwg.mxu0
      %4535 = vmatpush.bf16.msra.mxu0 0
      %4536 = vmatpush.bf16.msra.mxu0 0
      %4537 = vmatpush.bf16.msra.mxu0 0
      %4538 = vmatpush.bf16.msra.mxu0 0
      %4539 = vmatpush.bf16.msra.mxu0 0
      %4540 = vmatpush.bf16.msra.mxu0 0
      %4541 = vmatpush.bf16.msra.mxu0 0
      %4542 = vmatpush.bf16.msra.mxu0 %v1746
      %4543 = vmatmul.bf16.gmra.mxu0 %v4485
      %v4544 = vpop.f32.mrf.mxu0
      %v4545 = vadd.f32 0.0, %v4544
      %v4546 = vpop.f32.mrf.mxu0
      %v4547 = vadd.f32 0.0, %v4546
      %4548 = vdwg.mxu0
      %4549 = vmatpush.bf16.msra.mxu0 0
      %4550 = vmatpush.bf16.msra.mxu0 0
      %4551 = vmatpush.bf16.msra.mxu0 0
      %4552 = vmatpush.bf16.msra.mxu0 0
      %4553 = vmatpush.bf16.msra.mxu0 0
      %4554 = vmatpush.bf16.msra.mxu0 0
      %4555 = vmatpush.bf16.msra.mxu0 0
      %4556 = vmatpush.bf16.msra.mxu0 %v3135
      %4557 = vmatmul.bf16.gmra.mxu0 %v4485
      %v4558 = vpop.f32.mrf.mxu0
      %v4559 = vadd.f32 0.0, %v4558
      %v4560 = vpop.f32.mrf.mxu0
      %v4561 = vadd.f32 0.0, %v4560
      %4562 = vdwg.mxu0
      %4563 = vmatpush.bf16.msra.mxu0 0
      %4564 = vmatpush.bf16.msra.mxu0 0
      %4565 = vmatpush.bf16.msra.mxu0 0
      %4566 = vmatpush.bf16.msra.mxu0 0
      %4567 = vmatpush.bf16.msra.mxu0 0
      %4568 = vmatpush.bf16.msra.mxu0 0
      %4569 = vmatpush.bf16.msra.mxu0 0
      %4570 = vmatpush.bf16.msra.mxu0 %v3138
      %4571 = vmatmul.bf16.gmra.mxu0 %v4485
      %v4572 = vpop.f32.mrf.mxu0
      %v4573 = vadd.f32 0.0, %v4572
      %v4574 = vpop.f32.mrf.mxu0
      %v4575 = vadd.f32 0.0, %v4574
      %4576 = vdwg.mxu0
      %4577 = vmatpush.bf16.msra.mxu0 0
      %4578 = vmatpush.bf16.msra.mxu0 0
      %4579 = vmatpush.bf16.msra.mxu0 0
      %4580 = vmatpush.bf16.msra.mxu0 0
      %4581 = vmatpush.bf16.msra.mxu0 0
      %4582 = vmatpush.bf16.msra.mxu0 0
      %4583 = vmatpush.bf16.msra.mxu0 0
      %4584 = vmatpush.bf16.msra.mxu0 %v4488
      %4585 = vmatmul.bf16.gmra.mxu0 %v4485
      %v4586 = vpop.f32.mrf.mxu0
      %v4587 = vadd.f32 0.0, %v4586
      %v4588 = vpop.f32.mrf.mxu0
      %v4589 = vadd.f32 0.0, %v4588
      %4590 = vdwg.mxu0
      %4591 = vmatpush.bf16.msra.mxu0 0
      %4592 = vmatpush.bf16.msra.mxu0 0
      %4593 = vmatpush.bf16.msra.mxu0 0
      %4594 = vmatpush.bf16.msra.mxu0 0
      %4595 = vmatpush.bf16.msra.mxu0 0
      %4596 = vmatpush.bf16.msra.mxu0 0
      %4597 = vmatpush.bf16.msra.mxu0 0
      %4598 = vmatpush.bf16.msra.mxu0 %v4491
      %4599 = vmatmul.bf16.gmra.mxu0 %v4485
      %v4600 = vpop.f32.mrf.mxu0
      %v4601 = vadd.f32 0.0, %v4600
      %v4602 = vpop.f32.mrf.mxu0
      %v4603 = vadd.f32 0.0, %v4602
      %4604 = vdwg.mxu0
      %v4605 = vadd.f32 %v4454, %v4503
      %v4606 = vadd.f32 %v4455, %v4517
      %v4607 = vadd.f32 %v4456, %v4531
      %v4608 = vadd.f32 %v4457, %v4545
      %v4609 = vadd.f32 %v4458, %v4559
      %v4610 = vadd.f32 %v4459, %v4573
      %v4611 = vadd.f32 %v4460, %v4587
      %v4612 = vadd.f32 %v4461, %v4601
      %v4613 = vadd.f32 %v4462, %v4505
      %v4614 = vadd.f32 %v4463, %v4519
      %v4615 = vadd.f32 %v4464, %v4533
      %v4616 = vadd.f32 %v4465, %v4547
      %v4617 = vadd.f32 %v4466, %v4561
      %v4618 = vadd.f32 %v4467, %v4575
      %v4619 = vadd.f32 %v4468, %v4589
      %v4620 = vadd.f32 %v4469, %v4603
      %s4621 = scalar_lea.vmem %s2, 208
      %v4622 = vld [vmem:[%s4621] sm:$0xf]
      %v4623 = vld [vmem:[%s4621 + $0x4] sm:$0xf]
      %v4626 = vunpack.c.l.b16 %v4622
      %v4627 = vunpack.c.l.b16 %v4623
      %v4628 = vpack.c.b16 %v4627, %v4626
      %4629 = vrot.lane.b32.xlu0 %v409, 94
      %v4630 = vpop.permute.xlu0 %4629
      %4631 = vrot.lane.b32.xlu0 %v410, 94
      %v4632 = vpop.permute.xlu0 %4631
      %v4633 = vsel %vm1902, %v3279, %v4630
      %v4634 = vsel %vm1902, %v4630, %v4632
      %v4636 = vsel %vm448, %v4628, 0
      %v4639 = vand.u32 %v4633, %v455
      %v4642 = vand.u32 %v4634, %v455
      %4644 = vmatpush.bf16.msra.mxu0 0
      %4645 = vmatpush.bf16.msra.mxu0 0
      %4646 = vmatpush.bf16.msra.mxu0 0
      %4647 = vmatpush.bf16.msra.mxu0 0
      %4648 = vmatpush.bf16.msra.mxu0 0
      %4649 = vmatpush.bf16.msra.mxu0 0
      %4650 = vmatpush.bf16.msra.mxu0 0
      %4651 = vmatpush.bf16.msra.mxu0 %v1927
      %4652 = vmatmul.bf16.gmra.mxu0 %v4636
      %v4653 = vpop.f32.mrf.mxu0
      %v4654 = vadd.f32 0.0, %v4653
      %v4655 = vpop.f32.mrf.mxu0
      %v4656 = vadd.f32 0.0, %v4655
      %4657 = vdwg.mxu0
      %4658 = vmatpush.bf16.msra.mxu0 0
      %4659 = vmatpush.bf16.msra.mxu0 0
      %4660 = vmatpush.bf16.msra.mxu0 0
      %4661 = vmatpush.bf16.msra.mxu0 0
      %4662 = vmatpush.bf16.msra.mxu0 0
      %4663 = vmatpush.bf16.msra.mxu0 0
      %4664 = vmatpush.bf16.msra.mxu0 0
      %4665 = vmatpush.bf16.msra.mxu0 %v1930
      %4666 = vmatmul.bf16.gmra.mxu0 %v4636
      %v4667 = vpop.f32.mrf.mxu0
      %v4668 = vadd.f32 0.0, %v4667
      %v4669 = vpop.f32.mrf.mxu0
      %v4670 = vadd.f32 0.0, %v4669
      %4671 = vdwg.mxu0
      %4672 = vmatpush.bf16.msra.mxu0 0
      %4673 = vmatpush.bf16.msra.mxu0 0
      %4674 = vmatpush.bf16.msra.mxu0 0
      %4675 = vmatpush.bf16.msra.mxu0 0
      %4676 = vmatpush.bf16.msra.mxu0 0
      %4677 = vmatpush.bf16.msra.mxu0 0
      %4678 = vmatpush.bf16.msra.mxu0 0
      %4679 = vmatpush.bf16.msra.mxu0 %v1933
      %4680 = vmatmul.bf16.gmra.mxu0 %v4636
      %v4681 = vpop.f32.mrf.mxu0
      %v4682 = vadd.f32 0.0, %v4681
      %v4683 = vpop.f32.mrf.mxu0
      %v4684 = vadd.f32 0.0, %v4683
      %4685 = vdwg.mxu0
      %4686 = vmatpush.bf16.msra.mxu0 0
      %4687 = vmatpush.bf16.msra.mxu0 0
      %4688 = vmatpush.bf16.msra.mxu0 0
      %4689 = vmatpush.bf16.msra.mxu0 0
      %4690 = vmatpush.bf16.msra.mxu0 0
      %4691 = vmatpush.bf16.msra.mxu0 0
      %4692 = vmatpush.bf16.msra.mxu0 0
      %4693 = vmatpush.bf16.msra.mxu0 %v1936
      %4694 = vmatmul.bf16.gmra.mxu0 %v4636
      %v4695 = vpop.f32.mrf.mxu0
      %v4696 = vadd.f32 0.0, %v4695
      %v4697 = vpop.f32.mrf.mxu0
      %v4698 = vadd.f32 0.0, %v4697
      %4699 = vdwg.mxu0
      %4700 = vmatpush.bf16.msra.mxu0 0
      %4701 = vmatpush.bf16.msra.mxu0 0
      %4702 = vmatpush.bf16.msra.mxu0 0
      %4703 = vmatpush.bf16.msra.mxu0 0
      %4704 = vmatpush.bf16.msra.mxu0 0
      %4705 = vmatpush.bf16.msra.mxu0 0
      %4706 = vmatpush.bf16.msra.mxu0 0
      %4707 = vmatpush.bf16.msra.mxu0 %v3286
      %4708 = vmatmul.bf16.gmra.mxu0 %v4636
      %v4709 = vpop.f32.mrf.mxu0
      %v4710 = vadd.f32 0.0, %v4709
      %v4711 = vpop.f32.mrf.mxu0
      %v4712 = vadd.f32 0.0, %v4711
      %4713 = vdwg.mxu0
      %4714 = vmatpush.bf16.msra.mxu0 0
      %4715 = vmatpush.bf16.msra.mxu0 0
      %4716 = vmatpush.bf16.msra.mxu0 0
      %4717 = vmatpush.bf16.msra.mxu0 0
      %4718 = vmatpush.bf16.msra.mxu0 0
      %4719 = vmatpush.bf16.msra.mxu0 0
      %4720 = vmatpush.bf16.msra.mxu0 0
      %4721 = vmatpush.bf16.msra.mxu0 %v3289
      %4722 = vmatmul.bf16.gmra.mxu0 %v4636
      %v4723 = vpop.f32.mrf.mxu0
      %v4724 = vadd.f32 0.0, %v4723
      %v4725 = vpop.f32.mrf.mxu0
      %v4726 = vadd.f32 0.0, %v4725
      %4727 = vdwg.mxu0
      %4728 = vmatpush.bf16.msra.mxu0 0
      %4729 = vmatpush.bf16.msra.mxu0 0
      %4730 = vmatpush.bf16.msra.mxu0 0
      %4731 = vmatpush.bf16.msra.mxu0 0
      %4732 = vmatpush.bf16.msra.mxu0 0
      %4733 = vmatpush.bf16.msra.mxu0 0
      %4734 = vmatpush.bf16.msra.mxu0 0
      %4735 = vmatpush.bf16.msra.mxu0 %v4639
      %4736 = vmatmul.bf16.gmra.mxu0 %v4636
      %v4737 = vpop.f32.mrf.mxu0
      %v4738 = vadd.f32 0.0, %v4737
      %v4739 = vpop.f32.mrf.mxu0
      %v4740 = vadd.f32 0.0, %v4739
      %4741 = vdwg.mxu0
      %4742 = vmatpush.bf16.msra.mxu0 0
      %4743 = vmatpush.bf16.msra.mxu0 0
      %4744 = vmatpush.bf16.msra.mxu0 0
      %4745 = vmatpush.bf16.msra.mxu0 0
      %4746 = vmatpush.bf16.msra.mxu0 0
      %4747 = vmatpush.bf16.msra.mxu0 0
      %4748 = vmatpush.bf16.msra.mxu0 0
      %4749 = vmatpush.bf16.msra.mxu0 %v4642
      %4750 = vmatmul.bf16.gmra.mxu0 %v4636
      %v4751 = vpop.f32.mrf.mxu0
      %v4752 = vadd.f32 0.0, %v4751
      %v4753 = vpop.f32.mrf.mxu0
      %v4754 = vadd.f32 0.0, %v4753
      %4755 = vdwg.mxu0
      %v4756 = vadd.f32 %v4605, %v4654
      %v4757 = vadd.f32 %v4606, %v4668
      %v4758 = vadd.f32 %v4607, %v4682
      %v4759 = vadd.f32 %v4608, %v4696
      %v4760 = vadd.f32 %v4609, %v4710
      %v4761 = vadd.f32 %v4610, %v4724
      %v4762 = vadd.f32 %v4611, %v4738
      %v4763 = vadd.f32 %v4612, %v4752
      %v4764 = vadd.f32 %v4613, %v4656
      %v4765 = vadd.f32 %v4614, %v4670
      %v4766 = vadd.f32 %v4615, %v4684
      %v4767 = vadd.f32 %v4616, %v4698
      %v4768 = vadd.f32 %v4617, %v4712
      %v4769 = vadd.f32 %v4618, %v4726
      %v4770 = vadd.f32 %v4619, %v4740
      %v4771 = vadd.f32 %v4620, %v4754
      %v4772 = vld [vmem:[%s347] sm:$0xff]
      %v4774 = vperm.slane %v4772, 0
      %v4775 = vperm.slane %v4772, 1
      %v4776 = vperm.slane %v4772, 2
      %v4777 = vperm.slane %v4772, 3
      %v4778 = vperm.slane %v4772, 4
      %v4779 = vperm.slane %v4772, 5
      %v4780 = vperm.slane %v4772, 6
      %v4781 = vperm.slane %v4772, 7
      %v4790 = vadd.f32 %v4764, %v4774
      %v4791 = vadd.f32 %v4765, %v4775
      %v4792 = vadd.f32 %v4766, %v4776
      %v4793 = vadd.f32 %v4767, %v4777
      %v4794 = vadd.f32 %v4768, %v4778
      %v4795 = vadd.f32 %v4769, %v4779
      %v4796 = vadd.f32 %v4770, %v4780
      %v4797 = vadd.f32 %v4771, %v4781
      %v4798 = vmax.f32 %v4790, %v4794
      %v4799 = vmax.f32 %v4791, %v4795
      %v4800 = vmax.f32 %v4792, %v4796
      %v4801 = vmax.f32 %v4793, %v4797
      %v4802 = vmax.f32 %v4798, %v4799
      %v4803 = vmax.f32 %v4800, %v4801
      %v4804 = vmax.f32 %v4802, %v4803
      %4805 = vmax.xlane.f32.xlu0 %v4804
      %v4806 = vpop.xlane.xlu0 %4805
      %v4807 = vld [vmem:[%s356] sm:$0xff]
      %v4808 = vmax.f32 %v4807, %v4806
      %v4809 = vsub.f32 %v4807, %v4808
      %v4810 = vmul.f32 %v4809, 1.442695
      %v4811 = vpow.pop %v4810
      %4813 = vset.pattern.permute.xlu0 0
      %4814 = vperm.xlu0 %4813, %v4808
      %v4815 = vpop.permute.xlu0 %4814
      %v4817 = vsub.f32 %v4790, %v4815
      %v4818 = vsub.f32 %v4791, %v4815
      %v4819 = vsub.f32 %v4792, %v4815
      %v4820 = vsub.f32 %v4793, %v4815
      %v4821 = vsub.f32 %v4794, %v4815
      %v4822 = vsub.f32 %v4795, %v4815
      %v4823 = vsub.f32 %v4796, %v4815
      %v4824 = vsub.f32 %v4797, %v4815
      %v4825 = vmul.f32 %v4817, 1.442695
      %v4826 = vpow.pop %v4825
      %v4827 = vmul.f32 %v4818, 1.442695
      %v4828 = vpow.pop %v4827
      %v4829 = vmul.f32 %v4819, 1.442695
      %v4830 = vpow.pop %v4829
      %v4831 = vmul.f32 %v4820, 1.442695
      %v4832 = vpow.pop %v4831
      %v4833 = vmul.f32 %v4821, 1.442695
      %v4834 = vpow.pop %v4833
      %v4835 = vmul.f32 %v4822, 1.442695
      %v4836 = vpow.pop %v4835
      %v4837 = vmul.f32 %v4823, 1.442695
      %v4838 = vpow.pop %v4837
      %v4839 = vmul.f32 %v4824, 1.442695
      %v4840 = vpow.pop %v4839
      %v4841 = vld [vmem:[%s360] sm:$0xff]
      %v4842 = vmul.f32 %v4811, %v4841
      %v4843 = vadd.f32 %v4826, %v4828
      %v4844 = vadd.f32 %v4843, %v4830
      %v4845 = vadd.f32 %v4844, %v4832
      %v4846 = vadd.f32 %v4845, %v4834
      %v4847 = vadd.f32 %v4846, %v4836
      %v4848 = vadd.f32 %v4847, %v4838
      %v4849 = vadd.f32 %v4848, %v4840
      %4850 = vadd.xlane.f32.xlu0 %v4849
      %v4851 = vpop.xlane.xlu0 %4850
      %v4852 = vadd.f32 %v4842, %v4851
      %vm4853 = vcmask 7168
      %4854 = vst.msk [vmem:[%s360] sm:$0xff] %vm4853, %v4852
      %v4855 = vld [vmem:[%s352] sm:$0xff]
      %4857 = vset.pattern.permute.xlu0 0
      %4858 = vperm.xlu0 %4857, %v4811
      %v4859 = vpop.permute.xlu0 %4858
      %v4861 = vmul.f32 %v4859, %v4855
      %4862 = vmatpush.xpose.msra.mxu0 0.0
      %4863 = vmatpush.xpose.msra.mxu0 0.0
      %4864 = vmatpush.xpose.msra.mxu0 0.0
      %4865 = vmatpush.xpose.msra.mxu0 0.0
      %4866 = vmatpush.xpose.msra.mxu0 0.0
      %4867 = vmatpush.xpose.msra.mxu0 0.0
      %4868 = vmatpush.xpose.msra.mxu0 0.0
      %4869 = vmatpush.xpose.msra.mxu0 0.0
      %4870 = vmatpush.xpose.msra.mxu0 0.0
      %4871 = vmatpush.xpose.msra.mxu0 0.0
      %4872 = vmatpush.xpose.msra.mxu0 0.0
      %4873 = vmatpush.xpose.msra.mxu0 0.0
      %4874 = vmatpush.xpose.msra.mxu0 0.0
      %4875 = vmatpush.xpose.msra.mxu0 0.0
      %4876 = vmatpush.xpose.msra.mxu0 0.0
      %4877 = vmatpush.xpose.msra.mxu0 %v4756
      %4878 = vmatmul.f32.gmra.mxu0 %v4826
      %v4879 = vpop.f32.mrf.mxu0
      %v4880 = vadd.f32 0.0, %v4879
      %4881 = vdwg.mxu0
      %4882 = vmatpush.xpose.msra.mxu0 0.0
      %4883 = vmatpush.xpose.msra.mxu0 0.0
      %4884 = vmatpush.xpose.msra.mxu0 0.0
      %4885 = vmatpush.xpose.msra.mxu0 0.0
      %4886 = vmatpush.xpose.msra.mxu0 0.0
      %4887 = vmatpush.xpose.msra.mxu0 0.0
      %4888 = vmatpush.xpose.msra.mxu0 0.0
      %4889 = vmatpush.xpose.msra.mxu0 0.0
      %4890 = vmatpush.xpose.msra.mxu0 0.0
      %4891 = vmatpush.xpose.msra.mxu0 0.0
      %4892 = vmatpush.xpose.msra.mxu0 0.0
      %4893 = vmatpush.xpose.msra.mxu0 0.0
      %4894 = vmatpush.xpose.msra.mxu0 0.0
      %4895 = vmatpush.xpose.msra.mxu0 0.0
      %4896 = vmatpush.xpose.msra.mxu0 0.0
      %4897 = vmatpush.xpose.msra.mxu0 %v4757
      %4898 = vmatmul.f32.gmra.mxu0 %v4828
      %v4899 = vpop.f32.mrf.mxu0
      %v4900 = vadd.f32 %v4880, %v4899
      %4901 = vdwg.mxu0
      %4902 = vmatpush.xpose.msra.mxu0 0.0
      %4903 = vmatpush.xpose.msra.mxu0 0.0
      %4904 = vmatpush.xpose.msra.mxu0 0.0
      %4905 = vmatpush.xpose.msra.mxu0 0.0
      %4906 = vmatpush.xpose.msra.mxu0 0.0
      %4907 = vmatpush.xpose.msra.mxu0 0.0
      %4908 = vmatpush.xpose.msra.mxu0 0.0
      %4909 = vmatpush.xpose.msra.mxu0 0.0
      %4910 = vmatpush.xpose.msra.mxu0 0.0
      %4911 = vmatpush.xpose.msra.mxu0 0.0
      %4912 = vmatpush.xpose.msra.mxu0 0.0
      %4913 = vmatpush.xpose.msra.mxu0 0.0
      %4914 = vmatpush.xpose.msra.mxu0 0.0
      %4915 = vmatpush.xpose.msra.mxu0 0.0
      %4916 = vmatpush.xpose.msra.mxu0 0.0
      %4917 = vmatpush.xpose.msra.mxu0 %v4758
      %4918 = vmatmul.f32.gmra.mxu0 %v4830
      %v4919 = vpop.f32.mrf.mxu0
      %v4920 = vadd.f32 %v4900, %v4919
      %4921 = vdwg.mxu0
      %4922 = vmatpush.xpose.msra.mxu0 0.0
      %4923 = vmatpush.xpose.msra.mxu0 0.0
      %4924 = vmatpush.xpose.msra.mxu0 0.0
      %4925 = vmatpush.xpose.msra.mxu0 0.0
      %4926 = vmatpush.xpose.msra.mxu0 0.0
      %4927 = vmatpush.xpose.msra.mxu0 0.0
      %4928 = vmatpush.xpose.msra.mxu0 0.0
      %4929 = vmatpush.xpose.msra.mxu0 0.0
      %4930 = vmatpush.xpose.msra.mxu0 0.0
      %4931 = vmatpush.xpose.msra.mxu0 0.0
      %4932 = vmatpush.xpose.msra.mxu0 0.0
      %4933 = vmatpush.xpose.msra.mxu0 0.0
      %4934 = vmatpush.xpose.msra.mxu0 0.0
      %4935 = vmatpush.xpose.msra.mxu0 0.0
      %4936 = vmatpush.xpose.msra.mxu0 0.0
      %4937 = vmatpush.xpose.msra.mxu0 %v4759
      %4938 = vmatmul.f32.gmra.mxu0 %v4832
      %v4939 = vpop.f32.mrf.mxu0
      %v4940 = vadd.f32 %v4920, %v4939
      %4941 = vdwg.mxu0
      %4942 = vmatpush.xpose.msra.mxu0 0.0
      %4943 = vmatpush.xpose.msra.mxu0 0.0
      %4944 = vmatpush.xpose.msra.mxu0 0.0
      %4945 = vmatpush.xpose.msra.mxu0 0.0
      %4946 = vmatpush.xpose.msra.mxu0 0.0
      %4947 = vmatpush.xpose.msra.mxu0 0.0
      %4948 = vmatpush.xpose.msra.mxu0 0.0
      %4949 = vmatpush.xpose.msra.mxu0 0.0
      %4950 = vmatpush.xpose.msra.mxu0 0.0
      %4951 = vmatpush.xpose.msra.mxu0 0.0
      %4952 = vmatpush.xpose.msra.mxu0 0.0
      %4953 = vmatpush.xpose.msra.mxu0 0.0
      %4954 = vmatpush.xpose.msra.mxu0 0.0
      %4955 = vmatpush.xpose.msra.mxu0 0.0
      %4956 = vmatpush.xpose.msra.mxu0 0.0
      %4957 = vmatpush.xpose.msra.mxu0 %v4760
      %4958 = vmatmul.f32.gmra.mxu0 %v4834
      %v4959 = vpop.f32.mrf.mxu0
      %v4960 = vadd.f32 %v4940, %v4959
      %4961 = vdwg.mxu0
      %4962 = vmatpush.xpose.msra.mxu0 0.0
      %4963 = vmatpush.xpose.msra.mxu0 0.0
      %4964 = vmatpush.xpose.msra.mxu0 0.0
      %4965 = vmatpush.xpose.msra.mxu0 0.0
      %4966 = vmatpush.xpose.msra.mxu0 0.0
      %4967 = vmatpush.xpose.msra.mxu0 0.0
      %4968 = vmatpush.xpose.msra.mxu0 0.0
      %4969 = vmatpush.xpose.msra.mxu0 0.0
      %4970 = vmatpush.xpose.msra.mxu0 0.0
      %4971 = vmatpush.xpose.msra.mxu0 0.0
      %4972 = vmatpush.xpose.msra.mxu0 0.0
      %4973 = vmatpush.xpose.msra.mxu0 0.0
      %4974 = vmatpush.xpose.msra.mxu0 0.0
      %4975 = vmatpush.xpose.msra.mxu0 0.0
      %4976 = vmatpush.xpose.msra.mxu0 0.0
      %4977 = vmatpush.xpose.msra.mxu0 %v4761
      %4978 = vmatmul.f32.gmra.mxu0 %v4836
      %v4979 = vpop.f32.mrf.mxu0
      %v4980 = vadd.f32 %v4960, %v4979
      %4981 = vdwg.mxu0
      %4982 = vmatpush.xpose.msra.mxu0 0.0
      %4983 = vmatpush.xpose.msra.mxu0 0.0
      %4984 = vmatpush.xpose.msra.mxu0 0.0
      %4985 = vmatpush.xpose.msra.mxu0 0.0
      %4986 = vmatpush.xpose.msra.mxu0 0.0
      %4987 = vmatpush.xpose.msra.mxu0 0.0
      %4988 = vmatpush.xpose.msra.mxu0 0.0
      %4989 = vmatpush.xpose.msra.mxu0 0.0
      %4990 = vmatpush.xpose.msra.mxu0 0.0
      %4991 = vmatpush.xpose.msra.mxu0 0.0
      %4992 = vmatpush.xpose.msra.mxu0 0.0
      %4993 = vmatpush.xpose.msra.mxu0 0.0
      %4994 = vmatpush.xpose.msra.mxu0 0.0
      %4995 = vmatpush.xpose.msra.mxu0 0.0
      %4996 = vmatpush.xpose.msra.mxu0 0.0
      %4997 = vmatpush.xpose.msra.mxu0 %v4762
      %4998 = vmatmul.f32.gmra.mxu0 %v4838
      %v4999 = vpop.f32.mrf.mxu0
      %v5000 = vadd.f32 %v4980, %v4999
      %5001 = vdwg.mxu0
      %5002 = vmatpush.xpose.msra.mxu0 0.0
      %5003 = vmatpush.xpose.msra.mxu0 0.0
      %5004 = vmatpush.xpose.msra.mxu0 0.0
      %5005 = vmatpush.xpose.msra.mxu0 0.0
      %5006 = vmatpush.xpose.msra.mxu0 0.0
      %5007 = vmatpush.xpose.msra.mxu0 0.0
      %5008 = vmatpush.xpose.msra.mxu0 0.0
      %5009 = vmatpush.xpose.msra.mxu0 0.0
      %5010 = vmatpush.xpose.msra.mxu0 0.0
      %5011 = vmatpush.xpose.msra.mxu0 0.0
      %5012 = vmatpush.xpose.msra.mxu0 0.0
      %5013 = vmatpush.xpose.msra.mxu0 0.0
      %5014 = vmatpush.xpose.msra.mxu0 0.0
      %5015 = vmatpush.xpose.msra.mxu0 0.0
      %5016 = vmatpush.xpose.msra.mxu0 0.0
      %5017 = vmatpush.xpose.msra.mxu0 %v4763
      %5018 = vmatmul.f32.gmra.mxu0 %v4840
      %v5019 = vpop.f32.mrf.mxu0
      %v5020 = vadd.f32 %v5000, %v5019
      %5021 = vdwg.mxu0
      %v5022 = vadd.f32 %v4861, %v5020
      %vm5023 = vcmask 64512
      %5024 = vst.msk [vmem:[%s352] sm:$0xff] %vm5023, %v5022
      %5025 = vst.msk [vmem:[%s356] sm:$0xff] %vm4853, %v4808
      %p5026 = scmp.eq.s32.totalorder %s23, 1
      // Predicated region
      $region41: #{a2net_forward.2} parent=35 // pred_check
        %p5027 = pneg %p5026
      $region42: #{a2net_forward.2} parent=35 // pred_check_branch
        %5029 = sbr.rel (%p5027) target = $region44
      $region43: #{a2net_forward.2} parent=35 // pred_region
        %v5030 = vld [vmem:[%s360] sm:$0xff]
        %v5031 = vrcp.pop %v5030
        %v5032 = vmul.f32 %v5030, %v5031
        %v5033 = vsub.f32 1.0, %v5032
        %v5034 = vmul.f32 %v5031, %v5033
        %v5035 = vadd.f32 %v5031, %v5034
        %vm5036 = vweird.f32 %v5030
        %vm5037 = vweird.f32 %v5031
        %vm5038 = vmor %vm5036, %vm5037
        %v5039 = vsel %vm5038, %v5031, %v5035
        %v5040 = vand.u32 2147483647, %v5030
        %vm5041 = vcmp.eq.f32.partialorder %v5040, 8.507059e+37
        %v5042 = vand.u32 %v5030, 2147483648
        %v5043 = vor.u32 1.1754944e-38, %v5042
        %v5044 = vsel %vm5041, %v5043, %v5039
        %v5045 = vmul.f32 1.0, %v5044
        %v5046 = vld [vmem:[%s352] sm:$0xff]
        %5048 = vset.pattern.permute.xlu0 0
        %5049 = vperm.xlu0 %5048, %v5045
        %v5050 = vpop.permute.xlu0 %5049
        %v5052 = vmul.f32 %v5046, %v5050
        %5053 = vst.msk [vmem:[%s352] sm:$0xff] %vm5023, %v5052
        %5054 = vst.msk [vmem:[%s360] sm:$0xff] %vm4853, %v5045
      $region44: #{a2net_forward.2} parent=35 // pred_fallthru
        _
      %p5055 = scmp.lt.s32.totalorder %s22, 1
      %s5056 = scalar_select %p5055, %s22, 1
      %s5057 = smul.addr %s5056, 8
      %s5058 = scalar_lea.vmem %s4, %s5057
      %p5059 = scmp.lt.s32.totalorder %s22, 1
      %s5060 = scalar_select %p5059, %s22, 1
      %s5061 = smul.addr %s5060, 8
      %s5062 = scalar_lea.vmem %s5, %s5061
      %p5063 = scmp.lt.s32.totalorder %s22, 1
      %s5064 = scalar_select %p5063, %s22, 1
      %s5065 = smul.addr %s5064, 8
      %s5066 = scalar_lea.vmem %s6, %s5065
      // Predicated region
      $region45: #{a2net_forward.2} parent=35 // pred_check
        %p5067 = pneg %p153
      $region46: #{a2net_forward.2} parent=35 // pred_check_branch
        %5069 = sbr.rel (%p5067) target = $region48
      $region47: #{a2net_forward.2} parent=35 // pred_region
        _
      $region48: #{a2net_forward.2} parent=35 // pred_fallthru
        _
      // Predicated region
      $region49: #{a2net_forward.2} parent=35 // pred_check
        %p5070 = pneg %p179
      $region50: #{a2net_forward.2} parent=35 // pred_check_branch
        %5072 = sbr.rel (%p5070) target = $region52
      $region51: #{a2net_forward.2} parent=35 // pred_region
        _
      $region52: #{a2net_forward.2} parent=35 // pred_fallthru
        _
      // Predicated region
      $region53: #{a2net_forward.2} parent=35 // pred_check
        %p5073 = pneg %p205
      $region54: #{a2net_forward.2} parent=35 // pred_check_branch
        %5075 = sbr.rel (%p5073) target = $region56
      $region55: #{a2net_forward.2} parent=35 // pred_region
        _
      $region56: #{a2net_forward.2} parent=35 // pred_fallthru
        _
    $region36: #{a2net_forward.2} parent=5 // pred_fallthru
      _
    %p5076 = scmp.le.s32.totalorder 2, %s13
    // Predicated region
    $region57: #{a2net_forward.2} parent=5 // pred_check
      %p5077 = pneg %p5076
    $region58: #{a2net_forward.2} parent=5 // pred_check_branch
      %5079 = sbr.rel (%p5077) target = $region60
    $region59: #{a2net_forward.2} parent=5 // pred_region
      %s5080 = ssub.s32 %s13, 2
      // Predicated region
      $region61: #{a2net_forward.2} parent=59 // pred_check
        %p5081 = pneg %p159
      $region62: #{a2net_forward.2} parent=59 // pred_check_branch
        %5083 = sbr.rel (%p5081) target = $region64
      $region63: #{a2net_forward.2} parent=59 // pred_region
        %p5084 = scmp.lt.s32.totalorder %s24, 1
        %s5085 = scalar_select %p5084, %s24, 1
        %s5086 = smul.addr %s5085, 8
        %s5087 = scalar_lea.vmem %s4, %s5086
      $region64: #{a2net_forward.2} parent=59 // pred_fallthru
        _
      // Predicated region
      $region65: #{a2net_forward.2} parent=59 // pred_check
        %p5088 = pneg %p185
      $region66: #{a2net_forward.2} parent=59 // pred_check_branch
        %5090 = sbr.rel (%p5088) target = $region68
      $region67: #{a2net_forward.2} parent=59 // pred_region
        %p5091 = scmp.lt.s32.totalorder %s24, 1
        %s5092 = scalar_select %p5091, %s24, 1
        %s5093 = smul.addr %s5092, 8
        %s5094 = scalar_lea.vmem %s5, %s5093
      $region68: #{a2net_forward.2} parent=59 // pred_fallthru
        _
      // Predicated region
      $region69: #{a2net_forward.2} parent=59 // pred_check
        %p5095 = pneg %p211
      $region70: #{a2net_forward.2} parent=59 // pred_check_branch
        %5097 = sbr.rel (%p5095) target = $region72
      $region71: #{a2net_forward.2} parent=59 // pred_region
        %p5098 = scmp.lt.s32.totalorder %s24, 1
        %s5099 = scalar_select %p5098, %s24, 1
        %s5100 = smul.addr %s5099, 8
        %s5101 = scalar_lea.vmem %s6, %s5100
      $region72: #{a2net_forward.2} parent=59 // pred_fallthru
        _
    $region60: #{a2net_forward.2} parent=5 // pred_fallthru
      _
  $region6: #{a2net_forward.2} parent=0 // loop_footer
    %s17 = sadd.s32 1, %s13
  $region7: #{a2net_forward.2} parent=0 // loop_footer_branch
    %12 = sbr.rel target = $region3
  $region8: #{a2net_forward.2} parent=0 // loop_exit
    _

</llo_original>
